<compile_context>
chip_gen: v7x
topology: tpu7x:2x2x1
jax: 0.10.0
libtpu: 0.0.40
codegen_flags: <defaults>
</compile_context>

<pallas_src>
import functools

import jax
import jax.numpy as jnp
from jax.experimental import pallas as pl
from jax.experimental.pallas import tpu as pltpu


def _round_up(x, m):
    return (x + m - 1) // m * m


def _choose_wop(ho, wo):
    """Padded output width: smallest >= wo+1 with ho*wop % 128 == 0 (lane-dense
    stores), unless that costs >2x padding waste; then just 8-align."""
    for cand in range(wo + 1, 2 * (wo + 1) + 1):
        if (ho * cand) % 128 == 0:
            return cand
    return _round_up(wo + 1, 8)


def _conv_geometry(hw):
    """Per-layer (ho, wo, wop) for the 4 stride-2 convs."""
    geo, s = [], hw
    for _ in range(4):
        ho = s // 2
        geo.append((ho, ho, _choose_wop(ho, ho)))
        s = ho
    return geo


# ----------------------------------------------------------------------------
# Conv2d(k=3, stride=2, pad=1) + ReLU.
# One batch element per grid step; 9 taps packed into a single K=9*Cin matmul.
# ----------------------------------------------------------------------------
def _conv_kernel(ph_ref, w_ref, b_ref, o_ref, rhs_ref, *, cin, ho, wop):
    """ph_ref : (4, Cin, (ho+2)*wop) bf16 -- stride-2 phases of the padded input,
                                             spatial flattened onto the lane axis.
       w_ref  : (Cout, 9*Cin) bf16        -- K ordered tap-major (t*Cin + c).
       b_ref  : (Cout, 1) f32
       o_ref  : (Cout, ho*wop) bf16       -- lane-dense output tile.
       rhs_ref: (9*Cin, ho*wop) bf16 scratch -- packed im2col RHS (built once).
    """
    m = ho * wop
    # Pack the 9 shifted tap views once (slices hoisted out of the matmul).
    for ky in range(3):
        for kx in range(3):
            py, dy = ky % 2, ky // 2
            px, dx = kx % 2, kx // 2
            t = ky * 3 + kx
            start = dy * wop + dx
            rhs_ref[t * cin:(t + 1) * cin, :] = ph_ref[py * 2 + px, :, start:start + m]
    # Single MXU matmul, f32 accumulation stays inside the MXU.
    y = jnp.dot(w_ref[...], rhs_ref[...], preferred_element_type=jnp.float32)
    o_ref[...] = jnp.maximum(y + b_ref[...], 0.0).astype(o_ref.dtype)


def _build_phases(x_bchw, wop):
    """Space-to-depth view of the padded input (pure XLA glue, ~1.1x bytes).

    Phase (py, px)[i, j] == pad(x)[2i+py, 2j+px]; padded to (ho+2, wop) so every
    3x3/stride-2 tap is a contiguous slice of the flattened phase.
    Returns (B, 4, C, (ho+2)*wop) bf16 (all pad positions exact zeros).
    """
    x = x_bchw.astype(jnp.bfloat16)
    B, C, H, W = x.shape
    ho, wo = H // 2, W // 2
    xp = jnp.pad(x, ((0, 0), (0, 0), (1, 1), (1, 1)))
    phases = []
    for py in range(2):
        for px in range(2):
            p = xp[:, :, py::2, px::2]                     # (B, C, ho+1, wo+1)
            p = jnp.pad(p, ((0, 0), (0, 0), (0, 1), (0, wop - (wo + 1))))
            phases.append(p.reshape(B, 1, C, (ho + 2) * wop))
    return jnp.concatenate(phases, axis=1)


def conv3x3_s2_relu(x_bchw, w2, b, wop):
    """x: (B, C, H, W) -> (B, Cout, (H//2)*wop) bf16 (junk columns j >= W//2)."""
    B, C, H, W = x_bchw.shape
    cout = w2.shape[0]
    ho = H // 2
    m = ho * wop
    lp = (ho + 2) * wop
    phases = _build_phases(x_bchw, wop)        # (B, 4, C, lp) bf16

    return pl.pallas_call(
        functools.partial(_conv_kernel, cin=C, ho=ho, wop=wop),
        out_shape=jax.ShapeDtypeStruct((B, cout, m), jnp.bfloat16),
        grid=(B,),
        in_specs=[
            pl.BlockSpec((None, 4, C, lp), lambda i: (i, 0, 0, 0)),  # per-batch phases
            pl.BlockSpec((cout, 9 * C), lambda i: (0, 0)),           # weights resident
            pl.BlockSpec((cout, 1), lambda i: (0, 0)),               # bias resident
        ],
        out_specs=pl.BlockSpec((None, cout, m), lambda i: (i, 0, 0)),
        scratch_shapes=[pltpu.VMEM((9 * C, m), jnp.bfloat16)],       # packed RHS
        # even batch => both v7x TensorCores busy; per-step overhead negligible at B=2
        compiler_params=pltpu.CompilerParams(dimension_semantics=("parallel",)),
    )(phases, w2, b)


# ----------------------------------------------------------------------------
# Fused head: q = q1( relu( fc1([flatten(conv4), action]) ) ), one kernel,
# no grid.  fc1 feature weights are pre-scattered into conv4's padded slab
# layout (zero rows at junk columns), action part is a VPU broadcast-FMA.
# ----------------------------------------------------------------------------
def _head_kernel(feat_ref, act_ref, wf_ref, wa_ref, b1_ref, wq_ref, bq_ref, o_ref):
    h = jnp.dot(feat_ref[...], wf_ref[...], preferred_element_type=jnp.float32)
    na = act_ref.shape[1]
    for k in range(na):                          # K=na MXU dot -> VPU FMAs instead
        h += act_ref[:, k:k + 1] * wa_ref[k:k + 1, :]
    h = jnp.maximum(h + b1_ref[...], 0.0)        # (B, fc_dims) f32
    # q1 has a single output unit: VPU row-dot instead of an N=1 MXU matmul.
    q = jnp.sum(h * wq_ref[...], axis=1, keepdims=True) + bq_ref[...]
    o_ref[...] = q


def head_q(feat_slab, action, params):
    B = feat_slab.shape[0]
    return pl.pallas_call(
        _head_kernel,
        out_shape=jax.ShapeDtypeStruct((B, 1), jnp.float32),
    )(feat_slab, action.astype(jnp.float32), params["wf"], params["wa"],
      params["b1"], params["wq"], params["bq"])


# ----------------------------------------------------------------------------
# Deterministic synthetic parameters (PyTorch default-init style bounds).
# ----------------------------------------------------------------------------
def _uniform(key, shape, fan_in):
    bound = 1.0 / float(fan_in) ** 0.5
    return jax.random.uniform(key, shape, jnp.float32, -bound, bound)


def init_params(key, n_actions, fc_dims=256, input_hw=96):
    conv_specs = [(4, 32), (32, 64), (64, 32), (32, 16)]
    geo = _conv_geometry(input_hw)
    ho4, wo4, wop4 = geo[-1]
    assert conv_specs[-1][1] * ho4 * wo4 == 576, "module expects 576 flatten features (96x96 input)"

    keys = jax.random.split(key, 2 * len(conv_specs) + 4)
    convs = []
    ki = 0
    for cin, cout in conv_specs:
        fan_in = cin * 9
        w = _uniform(keys[ki], (cout, cin, 3, 3), fan_in)        # OIHW, like PyTorch
        bb = _uniform(keys[ki + 1], (cout,), fan_in)
        # (Cout, 9*Cin) with K ordered tap-major: k = (ky*3+kx)*Cin + c, bf16 MXU operands.
        w2 = jnp.transpose(w, (0, 2, 3, 1)).reshape(cout, 9 * cin).astype(jnp.bfloat16)
        convs.append((w2, bb.reshape(cout, 1)))
        ki += 2

    in_fc1 = 576 + n_actions
    w_fc1 = _uniform(keys[ki], (in_fc1, fc_dims), in_fc1)
    b_fc1 = _uniform(keys[ki + 1], (fc_dims,), in_fc1)
    w_q1 = _uniform(keys[ki + 2], (fc_dims, 1), fc_dims)
    b_q1 = _uniform(keys[ki + 3], (1,), fc_dims)

    # fc1 feature weights scattered into conv4's padded-slab layout: row index
    # c*(ho4*wop4) + i*wop4 + j ; rows at junk columns (j >= wo4) are zero, so
    # the head consumes conv4's padded output with no slicing / compaction.
    wf = w_fc1[:576].reshape(16, ho4, wo4, fc_dims)
    wf = jnp.pad(wf, ((0, 0), (0, 0), (0, wop4 - wo4), (0, 0)))
    wf = wf.reshape(16 * ho4 * wop4, fc_dims).astype(jnp.bfloat16)

    return {
        "geo": geo,
        "convs": convs,
        "wf": wf,                                   # (16*ho4*wop4, fc) bf16, zero junk rows
        "wa": w_fc1[576:],                          # (na, fc) f32, VPU FMA path
        "b1": b_fc1.reshape(1, fc_dims),
        "wq": w_q1.reshape(1, fc_dims),             # q1 weight as a row (VPU dot)
        "bq": b_q1.reshape(1, 1),
    }


# ----------------------------------------------------------------------------
# Forward pass (matches CriticNetwork.forward).
# ----------------------------------------------------------------------------
def critic_forward(params, state_nchw, action):
    x = state_nchw                                 # already NCHW / channel-first
    feat_slab = None
    n_layers = len(params["convs"])
    for li, (w2, b) in enumerate(params["convs"]):
        ho, wo, wop = params["geo"][li]
        cout = w2.shape[0]
        y = conv3x3_s2_relu(x, w2, b, wop)         # (B, Cout, ho*wop) bf16
        if li + 1 < n_layers:
            # Drop junk columns before the next layer's phase build (required for
            # correctness of the dx/dy=1 taps); bitcast reshape + fused slice/pad.
            x = y.reshape(-1, cout, ho, wop)[:, :, :, :wo]
        else:
            # nn.Flatten: free bitcast; junk columns are killed by zero wf rows.
            feat_slab = y.reshape(-1, cout * ho * wop)
    return head_q(feat_slab, action, params)       # (B, 1) float32


# Pure-JAX (XLA) reference used only for a correctness self-check.
def reference_forward(params, state, action):
    x = state
    for w2, b in params["convs"]:
        cout, k9 = w2.shape
        cin = k9 // 9
        w = jnp.transpose(w2.astype(jnp.float32).reshape(cout, 3, 3, cin), (0, 3, 1, 2))
        x = jax.lax.conv_general_dilated(
            x, w, window_strides=(2, 2), padding=((1, 1), (1, 1)),
            dimension_numbers=("NCHW", "OIHW", "NCHW"))
        x = jax.nn.relu(x + b.reshape(1, cout, 1, 1))
    feat = x.reshape(x.shape[0], -1)                           # (B, 576)
    ho4, wo4, wop4 = params["geo"][-1]
    wf = params["wf"].astype(jnp.float32).reshape(16, ho4, wop4, -1)[:, :, :wo4, :]
    wf = wf.reshape(16 * ho4 * wo4, -1)
    h = jax.nn.relu(feat @ wf + action @ params["wa"] + params["b1"])
    return h @ params["wq"].T + params["bq"]


if __name__ == "__main__":
    key = jax.random.PRNGKey(0)
    kp, ks, ka = jax.random.split(key, 3)

    n_actions = 2
    batch = 2
    # 4 stride-2 convs must produce 16*6*6 = 576 flatten features -> 96x96 input.
    state = jax.random.normal(ks, (batch, 4, 96, 96), jnp.float32)
    action = jax.random.normal(ka, (batch, n_actions), jnp.float32)

    params = init_params(kp, n_actions)
    fwd = jax.jit(lambda s, a: critic_forward(params, s, a))
    q = fwd(state, action)
    jax.block_until_ready(q)
    assert q.shape == (batch, 1) and q.dtype == jnp.float32

    q_ref = reference_forward(params, state, action)
    assert jnp.allclose(q, q_ref, rtol=5e-2, atol=5e-2), (q, q_ref)
    print("KERNEL_OK")
</pallas_src>

<mosaic_0001>
module attributes {stable_mosaic.version = 11 : i64} {
  func.func @_conv_kernel(%arg0: i32, %arg1: memref<1x4x4x2800xbf16, #tpu.memory_space<vmem>>, %arg2: memref<32x36xbf16, #tpu.memory_space<vmem>>, %arg3: memref<32x1xf32, #tpu.memory_space<vmem>>, %arg4: memref<1x32x2688xbf16, #tpu.memory_space<vmem>>, %arg5: memref<36x2688xbf16, #tpu.memory_space<vmem>>) attributes {dimension_semantics = [#tpu.dimension_semantics<parallel>], iteration_bounds = array<i64: 2>, scalar_prefetch = 0 : i64, scratch_operands = 1 : i64, tpu.core_type = #tpu.core_type<tc>, window_params = [{transform_indices = @transform_0, window_bounds = array<i64: 1, 4, 4, 2800>}, {pipeline_mode = #tpu.pipeline_mode<synchronous>, transform_indices = @transform_1, window_bounds = array<i64: 32, 36>}, {pipeline_mode = #tpu.pipeline_mode<synchronous>, transform_indices = @transform_2, window_bounds = array<i64: 32, 1>}, {transform_indices = @transform_3, window_bounds = array<i64: 1, 32, 2688>}]} {
    %c0 = arith.constant 0 : index
    %c0_0 = arith.constant 0 : index
    %c0_1 = arith.constant 0 : index
    %c0_2 = arith.constant 0 : index
    %0 = vector.load %arg1[%c0, %c0_0, %c0_1, %c0_2] : memref<1x4x4x2800xbf16, #tpu.memory_space<vmem>>, vector<1x1x4x2688xbf16>
    %1 = vector.shape_cast %0 : vector<1x1x4x2688xbf16> to vector<4x2688xbf16>
    %c0_3 = arith.constant 0 : index
    %c0_4 = arith.constant 0 : index
    %2 = vector.load %arg5[%c0_3, %c0_4] : memref<36x2688xbf16, #tpu.memory_space<vmem>>, vector<4x2688xbf16>
    tpu.vector_store %arg5[%c0_3, %c0_4], %1 {strides = array<i32>} : memref<36x2688xbf16, #tpu.memory_space<vmem>>, vector<4x2688xbf16>,
    %c0_5 = arith.constant 0 : index
    %c1 = arith.constant 1 : index
    %c0_6 = arith.constant 0 : index
    %c0_7 = arith.constant 0 : index
    %3 = vector.load %arg1[%c0_5, %c1, %c0_6, %c0_7] : memref<1x4x4x2800xbf16, #tpu.memory_space<vmem>>, vector<1x1x4x2688xbf16>
    %4 = vector.shape_cast %3 : vector<1x1x4x2688xbf16> to vector<4x2688xbf16>
    %c4 = arith.constant 4 : index
    %c0_8 = arith.constant 0 : index
    %5 = vector.load %arg5[%c4, %c0_8] : memref<36x2688xbf16, #tpu.memory_space<vmem>>, vector<4x2688xbf16>
    tpu.vector_store %arg5[%c4, %c0_8], %4 {strides = array<i32>} : memref<36x2688xbf16, #tpu.memory_space<vmem>>, vector<4x2688xbf16>,
    %c0_9 = arith.constant 0 : index
    %c0_10 = arith.constant 0 : index
    %c0_11 = arith.constant 0 : index
    %c1_12 = arith.constant 1 : index
    %6 = vector.load %arg1[%c0_9, %c0_10, %c0_11, %c1_12] : memref<1x4x4x2800xbf16, #tpu.memory_space<vmem>>, vector<1x1x4x2688xbf16>
    %7 = vector.shape_cast %6 : vector<1x1x4x2688xbf16> to vector<4x2688xbf16>
    %c8 = arith.constant 8 : index
    %c0_13 = arith.constant 0 : index
    %8 = vector.load %arg5[%c8, %c0_13] : memref<36x2688xbf16, #tpu.memory_space<vmem>>, vector<4x2688xbf16>
    tpu.vector_store %arg5[%c8, %c0_13], %7 {strides = array<i32>} : memref<36x2688xbf16, #tpu.memory_space<vmem>>, vector<4x2688xbf16>,
    %c0_14 = arith.constant 0 : index
    %c2 = arith.constant 2 : index
    %c0_15 = arith.constant 0 : index
    %c0_16 = arith.constant 0 : index
    %9 = vector.load %arg1[%c0_14, %c2, %c0_15, %c0_16] : memref<1x4x4x2800xbf16, #tpu.memory_space<vmem>>, vector<1x1x4x2688xbf16>
    %10 = vector.shape_cast %9 : vector<1x1x4x2688xbf16> to vector<4x2688xbf16>
    %c12 = arith.constant 12 : index
    %c0_17 = arith.constant 0 : index
    %11 = vector.load %arg5[%c12, %c0_17] : memref<36x2688xbf16, #tpu.memory_space<vmem>>, vector<4x2688xbf16>
    tpu.vector_store %arg5[%c12, %c0_17], %10 {strides = array<i32>} : memref<36x2688xbf16, #tpu.memory_space<vmem>>, vector<4x2688xbf16>,
    %c0_18 = arith.constant 0 : index
    %c3 = arith.constant 3 : index
    %c0_19 = arith.constant 0 : index
    %c0_20 = arith.constant 0 : index
    %12 = vector.load %arg1[%c0_18, %c3, %c0_19, %c0_20] : memref<1x4x4x2800xbf16, #tpu.memory_space<vmem>>, vector<1x1x4x2688xbf16>
    %13 = vector.shape_cast %12 : vector<1x1x4x2688xbf16> to vector<4x2688xbf16>
    %c16 = arith.constant 16 : index
    %c0_21 = arith.constant 0 : index
    %14 = vector.load %arg5[%c16, %c0_21] : memref<36x2688xbf16, #tpu.memory_space<vmem>>, vector<4x2688xbf16>
    tpu.vector_store %arg5[%c16, %c0_21], %13 {strides = array<i32>} : memref<36x2688xbf16, #tpu.memory_space<vmem>>, vector<4x2688xbf16>,
    %c0_22 = arith.constant 0 : index
    %c2_23 = arith.constant 2 : index
    %c0_24 = arith.constant 0 : index
    %c1_25 = arith.constant 1 : index
    %15 = vector.load %arg1[%c0_22, %c2_23, %c0_24, %c1_25] : memref<1x4x4x2800xbf16, #tpu.memory_space<vmem>>, vector<1x1x4x2688xbf16>
    %16 = vector.shape_cast %15 : vector<1x1x4x2688xbf16> to vector<4x2688xbf16>
    %c20 = arith.constant 20 : index
    %c0_26 = arith.constant 0 : index
    %17 = vector.load %arg5[%c20, %c0_26] : memref<36x2688xbf16, #tpu.memory_space<vmem>>, vector<4x2688xbf16>
    tpu.vector_store %arg5[%c20, %c0_26], %16 {strides = array<i32>} : memref<36x2688xbf16, #tpu.memory_space<vmem>>, vector<4x2688xbf16>,
    %c0_27 = arith.constant 0 : index
    %c0_28 = arith.constant 0 : index
    %c0_29 = arith.constant 0 : index
    %c56 = arith.constant 56 : index
    %18 = vector.load %arg1[%c0_27, %c0_28, %c0_29, %c56] : memref<1x4x4x2800xbf16, #tpu.memory_space<vmem>>, vector<1x1x4x2688xbf16>
    %19 = vector.shape_cast %18 : vector<1x1x4x2688xbf16> to vector<4x2688xbf16>
    %c24 = arith.constant 24 : index
    %c0_30 = arith.constant 0 : index
    %20 = vector.load %arg5[%c24, %c0_30] : memref<36x2688xbf16, #tpu.memory_space<vmem>>, vector<4x2688xbf16>
    tpu.vector_store %arg5[%c24, %c0_30], %19 {strides = array<i32>} : memref<36x2688xbf16, #tpu.memory_space<vmem>>, vector<4x2688xbf16>,
    %c0_31 = arith.constant 0 : index
    %c1_32 = arith.constant 1 : index
    %c0_33 = arith.constant 0 : index
    %c56_34 = arith.constant 56 : index
    %21 = vector.load %arg1[%c0_31, %c1_32, %c0_33, %c56_34] : memref<1x4x4x2800xbf16, #tpu.memory_space<vmem>>, vector<1x1x4x2688xbf16>
    %22 = vector.shape_cast %21 : vector<1x1x4x2688xbf16> to vector<4x2688xbf16>
    %c28 = arith.constant 28 : index
    %c0_35 = arith.constant 0 : index
    %23 = vector.load %arg5[%c28, %c0_35] : memref<36x2688xbf16, #tpu.memory_space<vmem>>, vector<4x2688xbf16>
    tpu.vector_store %arg5[%c28, %c0_35], %22 {strides = array<i32>} : memref<36x2688xbf16, #tpu.memory_space<vmem>>, vector<4x2688xbf16>,
    %c0_36 = arith.constant 0 : index
    %c0_37 = arith.constant 0 : index
    %c0_38 = arith.constant 0 : index
    %c57 = arith.constant 57 : index
    %24 = vector.load %arg1[%c0_36, %c0_37, %c0_38, %c57] : memref<1x4x4x2800xbf16, #tpu.memory_space<vmem>>, vector<1x1x4x2688xbf16>
    %25 = vector.shape_cast %24 : vector<1x1x4x2688xbf16> to vector<4x2688xbf16>
    %c32 = arith.constant 32 : index
    %c0_39 = arith.constant 0 : index
    %26 = vector.load %arg5[%c32, %c0_39] : memref<36x2688xbf16, #tpu.memory_space<vmem>>, vector<4x2688xbf16>
    tpu.vector_store %arg5[%c32, %c0_39], %25 {strides = array<i32>} : memref<36x2688xbf16, #tpu.memory_space<vmem>>, vector<4x2688xbf16>,
    %c0_40 = arith.constant 0 : index
    %c0_41 = arith.constant 0 : index
    %27 = vector.load %arg2[%c0_40, %c0_41] : memref<32x36xbf16, #tpu.memory_space<vmem>>, vector<32x36xbf16>
    %c0_42 = arith.constant 0 : index
    %c0_43 = arith.constant 0 : index
    %28 = vector.load %arg5[%c0_42, %c0_43] : memref<36x2688xbf16, #tpu.memory_space<vmem>>, vector<36x2688xbf16>
    %cst = arith.constant dense<0.000000e+00> : vector<32x2688xf32>
    %29 = tpu.matmul %27, %28, %cst {dimension_numbers = #tpu.dot_dimension_numbers<[1], [0], [0], [1], [0, 0, 1, 1], [], []>} : vector<32x36xbf16>, vector<36x2688xbf16>, vector<32x2688xf32> -> vector<32x2688xf32>
    %c0_44 = arith.constant 0 : index
    %c0_45 = arith.constant 0 : index
    %30 = vector.load %arg3[%c0_44, %c0_45] : memref<32x1xf32, #tpu.memory_space<vmem>>, vector<32x1xf32>
    %31 = vector.broadcast %30 : vector<32x1xf32> to vector<32x2688xf32>
    %32 = arith.addf %29, %31 : vector<32x2688xf32>
    %cst_46 = arith.constant 0.000000e+00 : f32
    %33 = vector.broadcast %cst_46 : f32 to vector<32x2688xf32>
    %34 = arith.maximumf %32, %33 : vector<32x2688xf32>
    %35 = arith.truncf %34 : vector<32x2688xf32> to vector<32x2688xbf16>
    %c0_47 = arith.constant 0 : index
    %c0_48 = arith.constant 0 : index
    %c0_49 = arith.constant 0 : index
    %36 = vector.load %arg4[%c0_47, %c0_48, %c0_49] : memref<1x32x2688xbf16, #tpu.memory_space<vmem>>, vector<1x32x2688xbf16>
    %37 = vector.shape_cast %36 : vector<1x32x2688xbf16> to vector<32x2688xbf16>
    %38 = vector.shape_cast %35 : vector<32x2688xbf16> to vector<1x32x2688xbf16>
    tpu.vector_store %arg4[%c0_47, %c0_48, %c0_49], %38 {strides = array<i32>} : memref<1x32x2688xbf16, #tpu.memory_space<vmem>>, vector<1x32x2688xbf16>,
    return
  }
  func.func @transform_0(%arg0: i32) -> (i32, i32, i32, i32) {
    %c0_i32 = arith.constant 0 : i32
    %c0_i32_0 = arith.constant 0 : i32
    %c0_i32_1 = arith.constant 0 : i32
    %c0_i32_2 = arith.constant 0 : i32
    return %arg0, %c0_i32, %c0_i32_0, %c0_i32_1 : i32, i32, i32, i32
  }
  func.func @transform_1(%arg0: i32) -> (i32, i32) {
    %c0_i32 = arith.constant 0 : i32
    %c0_i32_0 = arith.constant 0 : i32
    %c0_i32_1 = arith.constant 0 : i32
    return %c0_i32, %c0_i32_0 : i32, i32
  }
  func.func @transform_2(%arg0: i32) -> (i32, i32) {
    %c0_i32 = arith.constant 0 : i32
    %c0_i32_0 = arith.constant 0 : i32
    %c0_i32_1 = arith.constant 0 : i32
    return %c0_i32, %c0_i32_0 : i32, i32
  }
  func.func @transform_3(%arg0: i32) -> (i32, i32, i32) {
    %c0_i32 = arith.constant 0 : i32
    %c0_i32_0 = arith.constant 0 : i32
    %c0_i32_1 = arith.constant 0 : i32
    return %arg0, %c0_i32, %c0_i32_0 : i32, i32, i32
  }
}

module attributes {stable_mosaic.version = 11 : i64} {
  func.func @_conv_kernel(%arg0: i32, %arg1: memref<1x4x32x832xbf16, #tpu.memory_space<vmem>>, %arg2: memref<64x288xbf16, #tpu.memory_space<vmem>>, %arg3: memref<64x1xf32, #tpu.memory_space<vmem>>, %arg4: memref<1x64x768xbf16, #tpu.memory_space<vmem>>, %arg5: memref<288x768xbf16, #tpu.memory_space<vmem>>) attributes {dimension_semantics = [#tpu.dimension_semantics<parallel>], iteration_bounds = array<i64: 2>, scalar_prefetch = 0 : i64, scratch_operands = 1 : i64, tpu.core_type = #tpu.core_type<tc>, window_params = [{transform_indices = @transform_0, window_bounds = array<i64: 1, 4, 32, 832>}, {pipeline_mode = #tpu.pipeline_mode<synchronous>, transform_indices = @transform_1, window_bounds = array<i64: 64, 288>}, {pipeline_mode = #tpu.pipeline_mode<synchronous>, transform_indices = @transform_2, window_bounds = array<i64: 64, 1>}, {transform_indices = @transform_3, window_bounds = array<i64: 1, 64, 768>}]} {
    %c0 = arith.constant 0 : index
    %c0_0 = arith.constant 0 : index
    %c0_1 = arith.constant 0 : index
    %c0_2 = arith.constant 0 : index
    %0 = vector.load %arg1[%c0, %c0_0, %c0_1, %c0_2] : memref<1x4x32x832xbf16, #tpu.memory_space<vmem>>, vector<1x1x32x768xbf16>
    %1 = vector.shape_cast %0 : vector<1x1x32x768xbf16> to vector<32x768xbf16>
    %c0_3 = arith.constant 0 : index
    %c0_4 = arith.constant 0 : index
    %2 = vector.load %arg5[%c0_3, %c0_4] : memref<288x768xbf16, #tpu.memory_space<vmem>>, vector<32x768xbf16>
    tpu.vector_store %arg5[%c0_3, %c0_4], %1 {strides = array<i32>} : memref<288x768xbf16, #tpu.memory_space<vmem>>, vector<32x768xbf16>,
    %c0_5 = arith.constant 0 : index
    %c1 = arith.constant 1 : index
    %c0_6 = arith.constant 0 : index
    %c0_7 = arith.constant 0 : index
    %3 = vector.load %arg1[%c0_5, %c1, %c0_6, %c0_7] : memref<1x4x32x832xbf16, #tpu.memory_space<vmem>>, vector<1x1x32x768xbf16>
    %4 = vector.shape_cast %3 : vector<1x1x32x768xbf16> to vector<32x768xbf16>
    %c32 = arith.constant 32 : index
    %c0_8 = arith.constant 0 : index
    %5 = vector.load %arg5[%c32, %c0_8] : memref<288x768xbf16, #tpu.memory_space<vmem>>, vector<32x768xbf16>
    tpu.vector_store %arg5[%c32, %c0_8], %4 {strides = array<i32>} : memref<288x768xbf16, #tpu.memory_space<vmem>>, vector<32x768xbf16>,
    %c0_9 = arith.constant 0 : index
    %c0_10 = arith.constant 0 : index
    %c0_11 = arith.constant 0 : index
    %c1_12 = arith.constant 1 : index
    %6 = vector.load %arg1[%c0_9, %c0_10, %c0_11, %c1_12] : memref<1x4x32x832xbf16, #tpu.memory_space<vmem>>, vector<1x1x32x768xbf16>
    %7 = vector.shape_cast %6 : vector<1x1x32x768xbf16> to vector<32x768xbf16>
    %c64 = arith.constant 64 : index
    %c0_13 = arith.constant 0 : index
    %8 = vector.load %arg5[%c64, %c0_13] : memref<288x768xbf16, #tpu.memory_space<vmem>>, vector<32x768xbf16>
    tpu.vector_store %arg5[%c64, %c0_13], %7 {strides = array<i32>} : memref<288x768xbf16, #tpu.memory_space<vmem>>, vector<32x768xbf16>,
    %c0_14 = arith.constant 0 : index
    %c2 = arith.constant 2 : index
    %c0_15 = arith.constant 0 : index
    %c0_16 = arith.constant 0 : index
    %9 = vector.load %arg1[%c0_14, %c2, %c0_15, %c0_16] : memref<1x4x32x832xbf16, #tpu.memory_space<vmem>>, vector<1x1x32x768xbf16>
    %10 = vector.shape_cast %9 : vector<1x1x32x768xbf16> to vector<32x768xbf16>
    %c96 = arith.constant 96 : index
    %c0_17 = arith.constant 0 : index
    %11 = vector.load %arg5[%c96, %c0_17] : memref<288x768xbf16, #tpu.memory_space<vmem>>, vector<32x768xbf16>
    tpu.vector_store %arg5[%c96, %c0_17], %10 {strides = array<i32>} : memref<288x768xbf16, #tpu.memory_space<vmem>>, vector<32x768xbf16>,
    %c0_18 = arith.constant 0 : index
    %c3 = arith.constant 3 : index
    %c0_19 = arith.constant 0 : index
    %c0_20 = arith.constant 0 : index
    %12 = vector.load %arg1[%c0_18, %c3, %c0_19, %c0_20] : memref<1x4x32x832xbf16, #tpu.memory_space<vmem>>, vector<1x1x32x768xbf16>
    %13 = vector.shape_cast %12 : vector<1x1x32x768xbf16> to vector<32x768xbf16>
    %c128 = arith.constant 128 : index
    %c0_21 = arith.constant 0 : index
    %14 = vector.load %arg5[%c128, %c0_21] : memref<288x768xbf16, #tpu.memory_space<vmem>>, vector<32x768xbf16>
    tpu.vector_store %arg5[%c128, %c0_21], %13 {strides = array<i32>} : memref<288x768xbf16, #tpu.memory_space<vmem>>, vector<32x768xbf16>,
    %c0_22 = arith.constant 0 : index
    %c2_23 = arith.constant 2 : index
    %c0_24 = arith.constant 0 : index
    %c1_25 = arith.constant 1 : index
    %15 = vector.load %arg1[%c0_22, %c2_23, %c0_24, %c1_25] : memref<1x4x32x832xbf16, #tpu.memory_space<vmem>>, vector<1x1x32x768xbf16>
    %16 = vector.shape_cast %15 : vector<1x1x32x768xbf16> to vector<32x768xbf16>
    %c160 = arith.constant 160 : index
    %c0_26 = arith.constant 0 : index
    %17 = vector.load %arg5[%c160, %c0_26] : memref<288x768xbf16, #tpu.memory_space<vmem>>, vector<32x768xbf16>
    tpu.vector_store %arg5[%c160, %c0_26], %16 {strides = array<i32>} : memref<288x768xbf16, #tpu.memory_space<vmem>>, vector<32x768xbf16>,
    %c0_27 = arith.constant 0 : index
    %c0_28 = arith.constant 0 : index
    %c0_29 = arith.constant 0 : index
    %c32_30 = arith.constant 32 : index
    %18 = vector.load %arg1[%c0_27, %c0_28, %c0_29, %c32_30] : memref<1x4x32x832xbf16, #tpu.memory_space<vmem>>, vector<1x1x32x768xbf16>
    %19 = vector.shape_cast %18 : vector<1x1x32x768xbf16> to vector<32x768xbf16>
    %c192 = arith.constant 192 : index
    %c0_31 = arith.constant 0 : index
    %20 = vector.load %arg5[%c192, %c0_31] : memref<288x768xbf16, #tpu.memory_space<vmem>>, vector<32x768xbf16>
    tpu.vector_store %arg5[%c192, %c0_31], %19 {strides = array<i32>} : memref<288x768xbf16, #tpu.memory_space<vmem>>, vector<32x768xbf16>,
    %c0_32 = arith.constant 0 : index
    %c1_33 = arith.constant 1 : index
    %c0_34 = arith.constant 0 : index
    %c32_35 = arith.constant 32 : index
    %21 = vector.load %arg1[%c0_32, %c1_33, %c0_34, %c32_35] : memref<1x4x32x832xbf16, #tpu.memory_space<vmem>>, vector<1x1x32x768xbf16>
    %22 = vector.shape_cast %21 : vector<1x1x32x768xbf16> to vector<32x768xbf16>
    %c224 = arith.constant 224 : index
    %c0_36 = arith.constant 0 : index
    %23 = vector.load %arg5[%c224, %c0_36] : memref<288x768xbf16, #tpu.memory_space<vmem>>, vector<32x768xbf16>
    tpu.vector_store %arg5[%c224, %c0_36], %22 {strides = array<i32>} : memref<288x768xbf16, #tpu.memory_space<vmem>>, vector<32x768xbf16>,
    %c0_37 = arith.constant 0 : index
    %c0_38 = arith.constant 0 : index
    %c0_39 = arith.constant 0 : index
    %c33 = arith.constant 33 : index
    %24 = vector.load %arg1[%c0_37, %c0_38, %c0_39, %c33] : memref<1x4x32x832xbf16, #tpu.memory_space<vmem>>, vector<1x1x32x768xbf16>
    %25 = vector.shape_cast %24 : vector<1x1x32x768xbf16> to vector<32x768xbf16>
    %c256 = arith.constant 256 : index
    %c0_40 = arith.constant 0 : index
    %26 = vector.load %arg5[%c256, %c0_40] : memref<288x768xbf16, #tpu.memory_space<vmem>>, vector<32x768xbf16>
    tpu.vector_store %arg5[%c256, %c0_40], %25 {strides = array<i32>} : memref<288x768xbf16, #tpu.memory_space<vmem>>, vector<32x768xbf16>,
    %c0_41 = arith.constant 0 : index
    %c0_42 = arith.constant 0 : index
    %27 = vector.load %arg2[%c0_41, %c0_42] : memref<64x288xbf16, #tpu.memory_space<vmem>>, vector<64x288xbf16>
    %c0_43 = arith.constant 0 : index
    %c0_44 = arith.constant 0 : index
    %28 = vector.load %arg5[%c0_43, %c0_44] : memref<288x768xbf16, #tpu.memory_space<vmem>>, vector<288x768xbf16>
    %cst = arith.constant dense<0.000000e+00> : vector<64x768xf32>
    %29 = tpu.matmul %27, %28, %cst {dimension_numbers = #tpu.dot_dimension_numbers<[1], [0], [0], [1], [0, 0, 1, 1], [], []>} : vector<64x288xbf16>, vector<288x768xbf16>, vector<64x768xf32> -> vector<64x768xf32>
    %c0_45 = arith.constant 0 : index
    %c0_46 = arith.constant 0 : index
    %30 = vector.load %arg3[%c0_45, %c0_46] : memref<64x1xf32, #tpu.memory_space<vmem>>, vector<64x1xf32>
    %31 = vector.broadcast %30 : vector<64x1xf32> to vector<64x768xf32>
    %32 = arith.addf %29, %31 : vector<64x768xf32>
    %cst_47 = arith.constant 0.000000e+00 : f32
    %33 = vector.broadcast %cst_47 : f32 to vector<64x768xf32>
    %34 = arith.maximumf %32, %33 : vector<64x768xf32>
    %35 = arith.truncf %34 : vector<64x768xf32> to vector<64x768xbf16>
    %c0_48 = arith.constant 0 : index
    %c0_49 = arith.constant 0 : index
    %c0_50 = arith.constant 0 : index
    %36 = vector.load %arg4[%c0_48, %c0_49, %c0_50] : memref<1x64x768xbf16, #tpu.memory_space<vmem>>, vector<1x64x768xbf16>
    %37 = vector.shape_cast %36 : vector<1x64x768xbf16> to vector<64x768xbf16>
    %38 = vector.shape_cast %35 : vector<64x768xbf16> to vector<1x64x768xbf16>
    tpu.vector_store %arg4[%c0_48, %c0_49, %c0_50], %38 {strides = array<i32>} : memref<1x64x768xbf16, #tpu.memory_space<vmem>>, vector<1x64x768xbf16>,
    return
  }
  func.func @transform_0(%arg0: i32) -> (i32, i32, i32, i32) {
    %c0_i32 = arith.constant 0 : i32
    %c0_i32_0 = arith.constant 0 : i32
    %c0_i32_1 = arith.constant 0 : i32
    %c0_i32_2 = arith.constant 0 : i32
    return %arg0, %c0_i32, %c0_i32_0, %c0_i32_1 : i32, i32, i32, i32
  }
  func.func @transform_1(%arg0: i32) -> (i32, i32) {
    %c0_i32 = arith.constant 0 : i32
    %c0_i32_0 = arith.constant 0 : i32
    %c0_i32_1 = arith.constant 0 : i32
    return %c0_i32, %c0_i32_0 : i32, i32
  }
  func.func @transform_2(%arg0: i32) -> (i32, i32) {
    %c0_i32 = arith.constant 0 : i32
    %c0_i32_0 = arith.constant 0 : i32
    %c0_i32_1 = arith.constant 0 : i32
    return %c0_i32, %c0_i32_0 : i32, i32
  }
  func.func @transform_3(%arg0: i32) -> (i32, i32, i32) {
    %c0_i32 = arith.constant 0 : i32
    %c0_i32_0 = arith.constant 0 : i32
    %c0_i32_1 = arith.constant 0 : i32
    return %arg0, %c0_i32, %c0_i32_0 : i32, i32, i32
  }
}

module attributes {stable_mosaic.version = 11 : i64} {
  func.func @_conv_kernel(%arg0: i32, %arg1: memref<1x4x64x224xbf16, #tpu.memory_space<vmem>>, %arg2: memref<32x576xbf16, #tpu.memory_space<vmem>>, %arg3: memref<32x1xf32, #tpu.memory_space<vmem>>, %arg4: memref<1x32x192xbf16, #tpu.memory_space<vmem>>, %arg5: memref<576x192xbf16, #tpu.memory_space<vmem>>) attributes {dimension_semantics = [#tpu.dimension_semantics<parallel>], iteration_bounds = array<i64: 2>, scalar_prefetch = 0 : i64, scratch_operands = 1 : i64, tpu.core_type = #tpu.core_type<tc>, window_params = [{transform_indices = @transform_0, window_bounds = array<i64: 1, 4, 64, 224>}, {pipeline_mode = #tpu.pipeline_mode<synchronous>, transform_indices = @transform_1, window_bounds = array<i64: 32, 576>}, {pipeline_mode = #tpu.pipeline_mode<synchronous>, transform_indices = @transform_2, window_bounds = array<i64: 32, 1>}, {transform_indices = @transform_3, window_bounds = array<i64: 1, 32, 192>}]} {
    %c0 = arith.constant 0 : index
    %c0_0 = arith.constant 0 : index
    %c0_1 = arith.constant 0 : index
    %c0_2 = arith.constant 0 : index
    %0 = vector.load %arg1[%c0, %c0_0, %c0_1, %c0_2] : memref<1x4x64x224xbf16, #tpu.memory_space<vmem>>, vector<1x1x64x192xbf16>
    %1 = vector.shape_cast %0 : vector<1x1x64x192xbf16> to vector<64x192xbf16>
    %c0_3 = arith.constant 0 : index
    %c0_4 = arith.constant 0 : index
    %2 = vector.load %arg5[%c0_3, %c0_4] : memref<576x192xbf16, #tpu.memory_space<vmem>>, vector<64x192xbf16>
    tpu.vector_store %arg5[%c0_3, %c0_4], %1 {strides = array<i32>} : memref<576x192xbf16, #tpu.memory_space<vmem>>, vector<64x192xbf16>,
    %c0_5 = arith.constant 0 : index
    %c1 = arith.constant 1 : index
    %c0_6 = arith.constant 0 : index
    %c0_7 = arith.constant 0 : index
    %3 = vector.load %arg1[%c0_5, %c1, %c0_6, %c0_7] : memref<1x4x64x224xbf16, #tpu.memory_space<vmem>>, vector<1x1x64x192xbf16>
    %4 = vector.shape_cast %3 : vector<1x1x64x192xbf16> to vector<64x192xbf16>
    %c64 = arith.constant 64 : index
    %c0_8 = arith.constant 0 : index
    %5 = vector.load %arg5[%c64, %c0_8] : memref<576x192xbf16, #tpu.memory_space<vmem>>, vector<64x192xbf16>
    tpu.vector_store %arg5[%c64, %c0_8], %4 {strides = array<i32>} : memref<576x192xbf16, #tpu.memory_space<vmem>>, vector<64x192xbf16>,
    %c0_9 = arith.constant 0 : index
    %c0_10 = arith.constant 0 : index
    %c0_11 = arith.constant 0 : index
    %c1_12 = arith.constant 1 : index
    %6 = vector.load %arg1[%c0_9, %c0_10, %c0_11, %c1_12] : memref<1x4x64x224xbf16, #tpu.memory_space<vmem>>, vector<1x1x64x192xbf16>
    %7 = vector.shape_cast %6 : vector<1x1x64x192xbf16> to vector<64x192xbf16>
    %c128 = arith.constant 128 : index
    %c0_13 = arith.constant 0 : index
    %8 = vector.load %arg5[%c128, %c0_13] : memref<576x192xbf16, #tpu.memory_space<vmem>>, vector<64x192xbf16>
    tpu.vector_store %arg5[%c128, %c0_13], %7 {strides = array<i32>} : memref<576x192xbf16, #tpu.memory_space<vmem>>, vector<64x192xbf16>,
    %c0_14 = arith.constant 0 : index
    %c2 = arith.constant 2 : index
    %c0_15 = arith.constant 0 : index
    %c0_16 = arith.constant 0 : index
    %9 = vector.load %arg1[%c0_14, %c2, %c0_15, %c0_16] : memref<1x4x64x224xbf16, #tpu.memory_space<vmem>>, vector<1x1x64x192xbf16>
    %10 = vector.shape_cast %9 : vector<1x1x64x192xbf16> to vector<64x192xbf16>
    %c192 = arith.constant 192 : index
    %c0_17 = arith.constant 0 : index
    %11 = vector.load %arg5[%c192, %c0_17] : memref<576x192xbf16, #tpu.memory_space<vmem>>, vector<64x192xbf16>
    tpu.vector_store %arg5[%c192, %c0_17], %10 {strides = array<i32>} : memref<576x192xbf16, #tpu.memory_space<vmem>>, vector<64x192xbf16>,
    %c0_18 = arith.constant 0 : index
    %c3 = arith.constant 3 : index
    %c0_19 = arith.constant 0 : index
    %c0_20 = arith.constant 0 : index
    %12 = vector.load %arg1[%c0_18, %c3, %c0_19, %c0_20] : memref<1x4x64x224xbf16, #tpu.memory_space<vmem>>, vector<1x1x64x192xbf16>
    %13 = vector.shape_cast %12 : vector<1x1x64x192xbf16> to vector<64x192xbf16>
    %c256 = arith.constant 256 : index
    %c0_21 = arith.constant 0 : index
    %14 = vector.load %arg5[%c256, %c0_21] : memref<576x192xbf16, #tpu.memory_space<vmem>>, vector<64x192xbf16>
    tpu.vector_store %arg5[%c256, %c0_21], %13 {strides = array<i32>} : memref<576x192xbf16, #tpu.memory_space<vmem>>, vector<64x192xbf16>,
    %c0_22 = arith.constant 0 : index
    %c2_23 = arith.constant 2 : index
    %c0_24 = arith.constant 0 : index
    %c1_25 = arith.constant 1 : index
    %15 = vector.load %arg1[%c0_22, %c2_23, %c0_24, %c1_25] : memref<1x4x64x224xbf16, #tpu.memory_space<vmem>>, vector<1x1x64x192xbf16>
    %16 = vector.shape_cast %15 : vector<1x1x64x192xbf16> to vector<64x192xbf16>
    %c320 = arith.constant 320 : index
    %c0_26 = arith.constant 0 : index
    %17 = vector.load %arg5[%c320, %c0_26] : memref<576x192xbf16, #tpu.memory_space<vmem>>, vector<64x192xbf16>
    tpu.vector_store %arg5[%c320, %c0_26], %16 {strides = array<i32>} : memref<576x192xbf16, #tpu.memory_space<vmem>>, vector<64x192xbf16>,
    %c0_27 = arith.constant 0 : index
    %c0_28 = arith.constant 0 : index
    %c0_29 = arith.constant 0 : index
    %c16 = arith.constant 16 : index
    %18 = vector.load %arg1[%c0_27, %c0_28, %c0_29, %c16] : memref<1x4x64x224xbf16, #tpu.memory_space<vmem>>, vector<1x1x64x192xbf16>
    %19 = vector.shape_cast %18 : vector<1x1x64x192xbf16> to vector<64x192xbf16>
    %c384 = arith.constant 384 : index
    %c0_30 = arith.constant 0 : index
    %20 = vector.load %arg5[%c384, %c0_30] : memref<576x192xbf16, #tpu.memory_space<vmem>>, vector<64x192xbf16>
    tpu.vector_store %arg5[%c384, %c0_30], %19 {strides = array<i32>} : memref<576x192xbf16, #tpu.memory_space<vmem>>, vector<64x192xbf16>,
    %c0_31 = arith.constant 0 : index
    %c1_32 = arith.constant 1 : index
    %c0_33 = arith.constant 0 : index
    %c16_34 = arith.constant 16 : index
    %21 = vector.load %arg1[%c0_31, %c1_32, %c0_33, %c16_34] : memref<1x4x64x224xbf16, #tpu.memory_space<vmem>>, vector<1x1x64x192xbf16>
    %22 = vector.shape_cast %21 : vector<1x1x64x192xbf16> to vector<64x192xbf16>
    %c448 = arith.constant 448 : index
    %c0_35 = arith.constant 0 : index
    %23 = vector.load %arg5[%c448, %c0_35] : memref<576x192xbf16, #tpu.memory_space<vmem>>, vector<64x192xbf16>
    tpu.vector_store %arg5[%c448, %c0_35], %22 {strides = array<i32>} : memref<576x192xbf16, #tpu.memory_space<vmem>>, vector<64x192xbf16>,
    %c0_36 = arith.constant 0 : index
    %c0_37 = arith.constant 0 : index
    %c0_38 = arith.constant 0 : index
    %c17 = arith.constant 17 : index
    %24 = vector.load %arg1[%c0_36, %c0_37, %c0_38, %c17] : memref<1x4x64x224xbf16, #tpu.memory_space<vmem>>, vector<1x1x64x192xbf16>
    %25 = vector.shape_cast %24 : vector<1x1x64x192xbf16> to vector<64x192xbf16>
    %c512 = arith.constant 512 : index
    %c0_39 = arith.constant 0 : index
    %26 = vector.load %arg5[%c512, %c0_39] : memref<576x192xbf16, #tpu.memory_space<vmem>>, vector<64x192xbf16>
    tpu.vector_store %arg5[%c512, %c0_39], %25 {strides = array<i32>} : memref<576x192xbf16, #tpu.memory_space<vmem>>, vector<64x192xbf16>,
    %c0_40 = arith.constant 0 : index
    %c0_41 = arith.constant 0 : index
    %27 = vector.load %arg2[%c0_40, %c0_41] : memref<32x576xbf16, #tpu.memory_space<vmem>>, vector<32x576xbf16>
    %c0_42 = arith.constant 0 : index
    %c0_43 = arith.constant 0 : index
    %28 = vector.load %arg5[%c0_42, %c0_43] : memref<576x192xbf16, #tpu.memory_space<vmem>>, vector<576x192xbf16>
    %cst = arith.constant dense<0.000000e+00> : vector<32x192xf32>
    %29 = tpu.matmul %27, %28, %cst {dimension_numbers = #tpu.dot_dimension_numbers<[1], [0], [0], [1], [0, 0, 1, 1], [], []>} : vector<32x576xbf16>, vector<576x192xbf16>, vector<32x192xf32> -> vector<32x192xf32>
    %c0_44 = arith.constant 0 : index
    %c0_45 = arith.constant 0 : index
    %30 = vector.load %arg3[%c0_44, %c0_45] : memref<32x1xf32, #tpu.memory_space<vmem>>, vector<32x1xf32>
    %31 = vector.broadcast %30 : vector<32x1xf32> to vector<32x192xf32>
    %32 = arith.addf %29, %31 : vector<32x192xf32>
    %cst_46 = arith.constant 0.000000e+00 : f32
    %33 = vector.broadcast %cst_46 : f32 to vector<32x192xf32>
    %34 = arith.maximumf %32, %33 : vector<32x192xf32>
    %35 = arith.truncf %34 : vector<32x192xf32> to vector<32x192xbf16>
    %c0_47 = arith.constant 0 : index
    %c0_48 = arith.constant 0 : index
    %c0_49 = arith.constant 0 : index
    %36 = vector.load %arg4[%c0_47, %c0_48, %c0_49] : memref<1x32x192xbf16, #tpu.memory_space<vmem>>, vector<1x32x192xbf16>
    %37 = vector.shape_cast %36 : vector<1x32x192xbf16> to vector<32x192xbf16>
    %38 = vector.shape_cast %35 : vector<32x192xbf16> to vector<1x32x192xbf16>
    tpu.vector_store %arg4[%c0_47, %c0_48, %c0_49], %38 {strides = array<i32>} : memref<1x32x192xbf16, #tpu.memory_space<vmem>>, vector<1x32x192xbf16>,
    return
  }
  func.func @transform_0(%arg0: i32) -> (i32, i32, i32, i32) {
    %c0_i32 = arith.constant 0 : i32
    %c0_i32_0 = arith.constant 0 : i32
    %c0_i32_1 = arith.constant 0 : i32
    %c0_i32_2 = arith.constant 0 : i32
    return %arg0, %c0_i32, %c0_i32_0, %c0_i32_1 : i32, i32, i32, i32
  }
  func.func @transform_1(%arg0: i32) -> (i32, i32) {
    %c0_i32 = arith.constant 0 : i32
    %c0_i32_0 = arith.constant 0 : i32
    %c0_i32_1 = arith.constant 0 : i32
    return %c0_i32, %c0_i32_0 : i32, i32
  }
  func.func @transform_2(%arg0: i32) -> (i32, i32) {
    %c0_i32 = arith.constant 0 : i32
    %c0_i32_0 = arith.constant 0 : i32
    %c0_i32_1 = arith.constant 0 : i32
    return %c0_i32, %c0_i32_0 : i32, i32
  }
  func.func @transform_3(%arg0: i32) -> (i32, i32, i32) {
    %c0_i32 = arith.constant 0 : i32
    %c0_i32_0 = arith.constant 0 : i32
    %c0_i32_1 = arith.constant 0 : i32
    return %arg0, %c0_i32, %c0_i32_0 : i32, i32, i32
  }
}

module attributes {stable_mosaic.version = 11 : i64} {
  func.func @_conv_kernel(%arg0: i32, %arg1: memref<1x4x32x64xbf16, #tpu.memory_space<vmem>>, %arg2: memref<16x288xbf16, #tpu.memory_space<vmem>>, %arg3: memref<16x1xf32, #tpu.memory_space<vmem>>, %arg4: memref<1x16x48xbf16, #tpu.memory_space<vmem>>, %arg5: memref<288x48xbf16, #tpu.memory_space<vmem>>) attributes {dimension_semantics = [#tpu.dimension_semantics<parallel>], iteration_bounds = array<i64: 2>, scalar_prefetch = 0 : i64, scratch_operands = 1 : i64, tpu.core_type = #tpu.core_type<tc>, window_params = [{transform_indices = @transform_0, window_bounds = array<i64: 1, 4, 32, 64>}, {pipeline_mode = #tpu.pipeline_mode<synchronous>, transform_indices = @transform_1, window_bounds = array<i64: 16, 288>}, {pipeline_mode = #tpu.pipeline_mode<synchronous>, transform_indices = @transform_2, window_bounds = array<i64: 16, 1>}, {transform_indices = @transform_3, window_bounds = array<i64: 1, 16, 48>}]} {
    %c0 = arith.constant 0 : index
    %c0_0 = arith.constant 0 : index
    %c0_1 = arith.constant 0 : index
    %c0_2 = arith.constant 0 : index
    %0 = vector.load %arg1[%c0, %c0_0, %c0_1, %c0_2] : memref<1x4x32x64xbf16, #tpu.memory_space<vmem>>, vector<1x1x32x48xbf16>
    %1 = vector.shape_cast %0 : vector<1x1x32x48xbf16> to vector<32x48xbf16>
    %c0_3 = arith.constant 0 : index
    %c0_4 = arith.constant 0 : index
    %2 = vector.load %arg5[%c0_3, %c0_4] : memref<288x48xbf16, #tpu.memory_space<vmem>>, vector<32x48xbf16>
    tpu.vector_store %arg5[%c0_3, %c0_4], %1 {strides = array<i32>} : memref<288x48xbf16, #tpu.memory_space<vmem>>, vector<32x48xbf16>,
    %c0_5 = arith.constant 0 : index
    %c1 = arith.constant 1 : index
    %c0_6 = arith.constant 0 : index
    %c0_7 = arith.constant 0 : index
    %3 = vector.load %arg1[%c0_5, %c1, %c0_6, %c0_7] : memref<1x4x32x64xbf16, #tpu.memory_space<vmem>>, vector<1x1x32x48xbf16>
    %4 = vector.shape_cast %3 : vector<1x1x32x48xbf16> to vector<32x48xbf16>
    %c32 = arith.constant 32 : index
    %c0_8 = arith.constant 0 : index
    %5 = vector.load %arg5[%c32, %c0_8] : memref<288x48xbf16, #tpu.memory_space<vmem>>, vector<32x48xbf16>
    tpu.vector_store %arg5[%c32, %c0_8], %4 {strides = array<i32>} : memref<288x48xbf16, #tpu.memory_space<vmem>>, vector<32x48xbf16>,
    %c0_9 = arith.constant 0 : index
    %c0_10 = arith.constant 0 : index
    %c0_11 = arith.constant 0 : index
    %c1_12 = arith.constant 1 : index
    %6 = vector.load %arg1[%c0_9, %c0_10, %c0_11, %c1_12] : memref<1x4x32x64xbf16, #tpu.memory_space<vmem>>, vector<1x1x32x48xbf16>
    %7 = vector.shape_cast %6 : vector<1x1x32x48xbf16> to vector<32x48xbf16>
    %c64 = arith.constant 64 : index
    %c0_13 = arith.constant 0 : index
    %8 = vector.load %arg5[%c64, %c0_13] : memref<288x48xbf16, #tpu.memory_space<vmem>>, vector<32x48xbf16>
    tpu.vector_store %arg5[%c64, %c0_13], %7 {strides = array<i32>} : memref<288x48xbf16, #tpu.memory_space<vmem>>, vector<32x48xbf16>,
    %c0_14 = arith.constant 0 : index
    %c2 = arith.constant 2 : index
    %c0_15 = arith.constant 0 : index
    %c0_16 = arith.constant 0 : index
    %9 = vector.load %arg1[%c0_14, %c2, %c0_15, %c0_16] : memref<1x4x32x64xbf16, #tpu.memory_space<vmem>>, vector<1x1x32x48xbf16>
    %10 = vector.shape_cast %9 : vector<1x1x32x48xbf16> to vector<32x48xbf16>
    %c96 = arith.constant 96 : index
    %c0_17 = arith.constant 0 : index
    %11 = vector.load %arg5[%c96, %c0_17] : memref<288x48xbf16, #tpu.memory_space<vmem>>, vector<32x48xbf16>
    tpu.vector_store %arg5[%c96, %c0_17], %10 {strides = array<i32>} : memref<288x48xbf16, #tpu.memory_space<vmem>>, vector<32x48xbf16>,
    %c0_18 = arith.constant 0 : index
    %c3 = arith.constant 3 : index
    %c0_19 = arith.constant 0 : index
    %c0_20 = arith.constant 0 : index
    %12 = vector.load %arg1[%c0_18, %c3, %c0_19, %c0_20] : memref<1x4x32x64xbf16, #tpu.memory_space<vmem>>, vector<1x1x32x48xbf16>
    %13 = vector.shape_cast %12 : vector<1x1x32x48xbf16> to vector<32x48xbf16>
    %c128 = arith.constant 128 : index
    %c0_21 = arith.constant 0 : index
    %14 = vector.load %arg5[%c128, %c0_21] : memref<288x48xbf16, #tpu.memory_space<vmem>>, vector<32x48xbf16>
    tpu.vector_store %arg5[%c128, %c0_21], %13 {strides = array<i32>} : memref<288x48xbf16, #tpu.memory_space<vmem>>, vector<32x48xbf16>,
    %c0_22 = arith.constant 0 : index
    %c2_23 = arith.constant 2 : index
    %c0_24 = arith.constant 0 : index
    %c1_25 = arith.constant 1 : index
    %15 = vector.load %arg1[%c0_22, %c2_23, %c0_24, %c1_25] : memref<1x4x32x64xbf16, #tpu.memory_space<vmem>>, vector<1x1x32x48xbf16>
    %16 = vector.shape_cast %15 : vector<1x1x32x48xbf16> to vector<32x48xbf16>
    %c160 = arith.constant 160 : index
    %c0_26 = arith.constant 0 : index
    %17 = vector.load %arg5[%c160, %c0_26] : memref<288x48xbf16, #tpu.memory_space<vmem>>, vector<32x48xbf16>
    tpu.vector_store %arg5[%c160, %c0_26], %16 {strides = array<i32>} : memref<288x48xbf16, #tpu.memory_space<vmem>>, vector<32x48xbf16>,
    %c0_27 = arith.constant 0 : index
    %c0_28 = arith.constant 0 : index
    %c0_29 = arith.constant 0 : index
    %c8 = arith.constant 8 : index
    %18 = vector.load %arg1[%c0_27, %c0_28, %c0_29, %c8] : memref<1x4x32x64xbf16, #tpu.memory_space<vmem>>, vector<1x1x32x48xbf16>
    %19 = vector.shape_cast %18 : vector<1x1x32x48xbf16> to vector<32x48xbf16>
    %c192 = arith.constant 192 : index
    %c0_30 = arith.constant 0 : index
    %20 = vector.load %arg5[%c192, %c0_30] : memref<288x48xbf16, #tpu.memory_space<vmem>>, vector<32x48xbf16>
    tpu.vector_store %arg5[%c192, %c0_30], %19 {strides = array<i32>} : memref<288x48xbf16, #tpu.memory_space<vmem>>, vector<32x48xbf16>,
    %c0_31 = arith.constant 0 : index
    %c1_32 = arith.constant 1 : index
    %c0_33 = arith.constant 0 : index
    %c8_34 = arith.constant 8 : index
    %21 = vector.load %arg1[%c0_31, %c1_32, %c0_33, %c8_34] : memref<1x4x32x64xbf16, #tpu.memory_space<vmem>>, vector<1x1x32x48xbf16>
    %22 = vector.shape_cast %21 : vector<1x1x32x48xbf16> to vector<32x48xbf16>
    %c224 = arith.constant 224 : index
    %c0_35 = arith.constant 0 : index
    %23 = vector.load %arg5[%c224, %c0_35] : memref<288x48xbf16, #tpu.memory_space<vmem>>, vector<32x48xbf16>
    tpu.vector_store %arg5[%c224, %c0_35], %22 {strides = array<i32>} : memref<288x48xbf16, #tpu.memory_space<vmem>>, vector<32x48xbf16>,
    %c0_36 = arith.constant 0 : index
    %c0_37 = arith.constant 0 : index
    %c0_38 = arith.constant 0 : index
    %c9 = arith.constant 9 : index
    %24 = vector.load %arg1[%c0_36, %c0_37, %c0_38, %c9] : memref<1x4x32x64xbf16, #tpu.memory_space<vmem>>, vector<1x1x32x48xbf16>
    %25 = vector.shape_cast %24 : vector<1x1x32x48xbf16> to vector<32x48xbf16>
    %c256 = arith.constant 256 : index
    %c0_39 = arith.constant 0 : index
    %26 = vector.load %arg5[%c256, %c0_39] : memref<288x48xbf16, #tpu.memory_space<vmem>>, vector<32x48xbf16>
    tpu.vector_store %arg5[%c256, %c0_39], %25 {strides = array<i32>} : memref<288x48xbf16, #tpu.memory_space<vmem>>, vector<32x48xbf16>,
    %c0_40 = arith.constant 0 : index
    %c0_41 = arith.constant 0 : index
    %27 = vector.load %arg2[%c0_40, %c0_41] : memref<16x288xbf16, #tpu.memory_space<vmem>>, vector<16x288xbf16>
    %c0_42 = arith.constant 0 : index
    %c0_43 = arith.constant 0 : index
    %28 = vector.load %arg5[%c0_42, %c0_43] : memref<288x48xbf16, #tpu.memory_space<vmem>>, vector<288x48xbf16>
    %cst = arith.constant dense<0.000000e+00> : vector<16x48xf32>
    %29 = tpu.matmul %27, %28, %cst {dimension_numbers = #tpu.dot_dimension_numbers<[1], [0], [0], [1], [0, 0, 1, 1], [], []>} : vector<16x288xbf16>, vector<288x48xbf16>, vector<16x48xf32> -> vector<16x48xf32>
    %c0_44 = arith.constant 0 : index
    %c0_45 = arith.constant 0 : index
    %30 = vector.load %arg3[%c0_44, %c0_45] : memref<16x1xf32, #tpu.memory_space<vmem>>, vector<16x1xf32>
    %31 = vector.broadcast %30 : vector<16x1xf32> to vector<16x48xf32>
    %32 = arith.addf %29, %31 : vector<16x48xf32>
    %cst_46 = arith.constant 0.000000e+00 : f32
    %33 = vector.broadcast %cst_46 : f32 to vector<16x48xf32>
    %34 = arith.maximumf %32, %33 : vector<16x48xf32>
    %35 = arith.truncf %34 : vector<16x48xf32> to vector<16x48xbf16>
    %c0_47 = arith.constant 0 : index
    %c0_48 = arith.constant 0 : index
    %c0_49 = arith.constant 0 : index
    %36 = vector.load %arg4[%c0_47, %c0_48, %c0_49] : memref<1x16x48xbf16, #tpu.memory_space<vmem>>, vector<1x16x48xbf16>
    %37 = vector.shape_cast %36 : vector<1x16x48xbf16> to vector<16x48xbf16>
    %38 = vector.shape_cast %35 : vector<16x48xbf16> to vector<1x16x48xbf16>
    tpu.vector_store %arg4[%c0_47, %c0_48, %c0_49], %38 {strides = array<i32>} : memref<1x16x48xbf16, #tpu.memory_space<vmem>>, vector<1x16x48xbf16>,
    return
  }
  func.func @transform_0(%arg0: i32) -> (i32, i32, i32, i32) {
    %c0_i32 = arith.constant 0 : i32
    %c0_i32_0 = arith.constant 0 : i32
    %c0_i32_1 = arith.constant 0 : i32
    %c0_i32_2 = arith.constant 0 : i32
    return %arg0, %c0_i32, %c0_i32_0, %c0_i32_1 : i32, i32, i32, i32
  }
  func.func @transform_1(%arg0: i32) -> (i32, i32) {
    %c0_i32 = arith.constant 0 : i32
    %c0_i32_0 = arith.constant 0 : i32
    %c0_i32_1 = arith.constant 0 : i32
    return %c0_i32, %c0_i32_0 : i32, i32
  }
  func.func @transform_2(%arg0: i32) -> (i32, i32) {
    %c0_i32 = arith.constant 0 : i32
    %c0_i32_0 = arith.constant 0 : i32
    %c0_i32_1 = arith.constant 0 : i32
    return %c0_i32, %c0_i32_0 : i32, i32
  }
  func.func @transform_3(%arg0: i32) -> (i32, i32, i32) {
    %c0_i32 = arith.constant 0 : i32
    %c0_i32_0 = arith.constant 0 : i32
    %c0_i32_1 = arith.constant 0 : i32
    return %arg0, %c0_i32, %c0_i32_0 : i32, i32, i32
  }
}

module attributes {stable_mosaic.version = 11 : i64} {
  func.func @_head_kernel(%arg0: memref<2x768xbf16, #tpu.memory_space<vmem>>, %arg1: memref<2x2xf32, #tpu.memory_space<vmem>>, %arg2: memref<768x256xbf16, #tpu.memory_space<vmem>>, %arg3: memref<2x256xf32, #tpu.memory_space<vmem>>, %arg4: memref<1x256xf32, #tpu.memory_space<vmem>>, %arg5: memref<1x256xf32, #tpu.memory_space<vmem>>, %arg6: memref<1x1xf32, #tpu.memory_space<vmem>>, %arg7: memref<2x1xf32, #tpu.memory_space<vmem>>) attributes {dimension_semantics = [], scalar_prefetch = 0 : i64, scratch_operands = 0 : i64, tpu.core_type = #tpu.core_type<tc>} {
    %c0 = arith.constant 0 : index
    %c0_0 = arith.constant 0 : index
    %0 = vector.load %arg0[%c0, %c0_0] : memref<2x768xbf16, #tpu.memory_space<vmem>>, vector<2x768xbf16>
    %c0_1 = arith.constant 0 : index
    %c0_2 = arith.constant 0 : index
    %1 = vector.load %arg2[%c0_1, %c0_2] : memref<768x256xbf16, #tpu.memory_space<vmem>>, vector<768x256xbf16>
    %cst = arith.constant dense<0.000000e+00> : vector<2x256xf32>
    %2 = tpu.matmul %0, %1, %cst {dimension_numbers = #tpu.dot_dimension_numbers<[1], [0], [0], [1], [0, 0, 1, 1], [], []>} : vector<2x768xbf16>, vector<768x256xbf16>, vector<2x256xf32> -> vector<2x256xf32>
    %c0_3 = arith.constant 0 : index
    %c0_4 = arith.constant 0 : index
    %3 = vector.load %arg1[%c0_3, %c0_4] : memref<2x2xf32, #tpu.memory_space<vmem>>, vector<2x1xf32>
    %c0_5 = arith.constant 0 : index
    %c0_6 = arith.constant 0 : index
    %4 = vector.load %arg3[%c0_5, %c0_6] : memref<2x256xf32, #tpu.memory_space<vmem>>, vector<1x256xf32>
    %5 = vector.broadcast %3 : vector<2x1xf32> to vector<2x256xf32>
    %6 = vector.broadcast %4 : vector<1x256xf32> to vector<2x256xf32>
    %7 = arith.mulf %5, %6 : vector<2x256xf32>
    %8 = arith.addf %2, %7 : vector<2x256xf32>
    %c0_7 = arith.constant 0 : index
    %c1 = arith.constant 1 : index
    %9 = vector.load %arg1[%c0_7, %c1] : memref<2x2xf32, #tpu.memory_space<vmem>>, vector<2x1xf32>
    %c1_8 = arith.constant 1 : index
    %c0_9 = arith.constant 0 : index
    %10 = vector.load %arg3[%c1_8, %c0_9] : memref<2x256xf32, #tpu.memory_space<vmem>>, vector<1x256xf32>
    %11 = vector.broadcast %9 : vector<2x1xf32> to vector<2x256xf32>
    %12 = vector.broadcast %10 : vector<1x256xf32> to vector<2x256xf32>
    %13 = arith.mulf %11, %12 : vector<2x256xf32>
    %14 = arith.addf %8, %13 : vector<2x256xf32>
    %c0_10 = arith.constant 0 : index
    %c0_11 = arith.constant 0 : index
    %15 = vector.load %arg4[%c0_10, %c0_11] : memref<1x256xf32, #tpu.memory_space<vmem>>, vector<1x256xf32>
    %16 = vector.broadcast %15 : vector<1x256xf32> to vector<2x256xf32>
    %17 = arith.addf %14, %16 : vector<2x256xf32>
    %cst_12 = arith.constant 0.000000e+00 : f32
    %18 = vector.broadcast %cst_12 : f32 to vector<2x256xf32>
    %19 = arith.maximumf %17, %18 : vector<2x256xf32>
    %c0_13 = arith.constant 0 : index
    %c0_14 = arith.constant 0 : index
    %20 = vector.load %arg5[%c0_13, %c0_14] : memref<1x256xf32, #tpu.memory_space<vmem>>, vector<1x256xf32>
    %21 = vector.broadcast %20 : vector<1x256xf32> to vector<2x256xf32>
    %22 = arith.mulf %19, %21 : vector<2x256xf32>
    %cst_15 = arith.constant dense<0.000000e+00> : vector<2xf32>
    %23 = vector.multi_reduction <add>, %22, %cst_15 [1] : vector<2x256xf32> to vector<2xf32>
    %24 = vector.shape_cast %23 : vector<2xf32> to vector<2x1xf32>
    %c0_16 = arith.constant 0 : index
    %c0_17 = arith.constant 0 : index
    %25 = vector.load %arg6[%c0_16, %c0_17] : memref<1x1xf32, #tpu.memory_space<vmem>>, vector<1x1xf32>
    %26 = vector.broadcast %25 : vector<1x1xf32> to vector<2x1xf32>
    %27 = arith.addf %24, %26 : vector<2x1xf32>
    %c0_18 = arith.constant 0 : index
    %c0_19 = arith.constant 0 : index
    %28 = vector.load %arg7[%c0_18, %c0_19] : memref<2x1xf32, #tpu.memory_space<vmem>>, vector<2x1xf32>
    tpu.vector_store %arg7[%c0_18, %c0_19], %27 {strides = array<i32>} : memref<2x1xf32, #tpu.memory_space<vmem>>, vector<2x1xf32>,
    return
  }
}

</mosaic_0001>

<llo_original>
// kernel: _lambda_.5
$region0: #{_lambda_.5}
  #allocation0 [shape = 'u32[]', space=smem, size = 0x4, offset = 0x4, fixed_abs, tag = 'smem constant byte address 0x4 - core index']
  #allocation1 [shape = 'u32[144,128]{1,0:T(1,128)}', space=vmem, size = 0x12000, scoped, tag = 'internal scratch']
  #allocation2 [shape = 'bf16[36,2688]{1,0:T(8,128)(2,1)}', space=vmem, size = 0x34800, scoped, tag = 'scratch operand']
  %s0 = inlined_call_operand.vmem [shape: bf16[2,4,4,2800], index: 0, kind: input, shape index: {}]
  %s1 = inlined_call_operand.vmem [shape: bf16[32,36], index: 1, kind: input, shape index: {}]
  %s2 = inlined_call_operand.vmem [shape: f32[32,1], index: 2, kind: input, shape index: {}]
  %s3 = inlined_call_operand.vmem [shape: bf16[2,32,2688], index: 3, kind: output, shape index: {}]
  %s4 = sld [smem:[#allocation0]]
  $region45: #{_lambda_.5} parent=0
    _
  %s6 = ssub.s32 1, %s4
  %s7 = scalar_select 0, %s6, %s4
  loop: start=0, step=1, limit=4
  $region2: #{_lambda_.5} parent=0 // loop_pre_header
    _
  $region3: #{_lambda_.5} parent=0 // loop_header
    %s9 = sphi 0, %s13
    %p10 = scmp.ge.s32.totalorder %s9, 4
    %s19 = sphi 0, %s21
    %s22 = sphi 0, %s19
    %s23 = sphi 0, %s22
    %s39 = sphi 0, %s23
    %s43 = sphi 0, %s43
    %s45 = sphi 0, %s43
    %s46 = sphi 0, %s45
    %s60 = sphi 0, %s46
    %s64 = sphi 0, %s64
    %s66 = sphi 0, %s64
    %s67 = sphi 0, %s66
    %s81 = sphi 0, %s67
    %s87 = sphi 0, %s89
    %s90 = sphi 0, %s87
    %s91 = sphi 0, %s90
    %s107 = sphi 0, %s91
  $region4: #{_lambda_.5} parent=0 // loop_header_branch
    %12 = sbr.rel (%p10) target = $region8
  $region5: #{_lambda_.5} parent=0 // loop_body
    %s14 = ssub.s32 %s9, 1
    %s15 = ssub.s32 %s9, 2
    %s16 = sadd.s32 %s9, 1
    %s17 = ssub.s32 %s9, %s16
    %p18 = scmp.eq.s32.totalorder %s17, 0
    %s20 = sadd.s32 %s19, 1
    %s21 = scalar_select %p18, %s19, %s20
    %p24 = pneg %p18
    %p25 = scmp.eq.s32.totalorder %s9, 1
    %p26 = por %p24, %p25
    %p27 = scmp.ne.s32.totalorder %s19, %s22
    %p28 = scmp.eq.s32.totalorder %s9, 0
    %p29 = por %p27, %p28
    %p30 = scmp.ne.s32.totalorder %s19, %s22
    %p31 = scmp.eq.s32.totalorder %s14, 1
    %p32 = por %p30, %p31
    %p33 = scmp.ne.s32.totalorder %s22, %s23
    %p34 = scmp.eq.s32.totalorder %s14, 0
    %p35 = por %p33, %p34
    %p36 = scmp.ne.s32.totalorder %s22, %s23
    %p37 = scmp.eq.s32.totalorder %s15, 1
    %p38 = por %p36, %p37
    %p40 = scmp.ne.s32.totalorder %s23, %s39
    %p41 = scmp.eq.s32.totalorder %s15, 0
    %p42 = por %p40, %p41
    %s44 = sadd.s32 %s43, 1
    %p47 = scmp.eq.s32.totalorder %s9, 1
    %p48 = scmp.ne.s32.totalorder %s43, %s45
    %p49 = scmp.eq.s32.totalorder %s9, 0
    %p50 = por %p48, %p49
    %p51 = scmp.ne.s32.totalorder %s43, %s45
    %p52 = scmp.eq.s32.totalorder %s14, 1
    %p53 = por %p51, %p52
    %p54 = scmp.ne.s32.totalorder %s45, %s46
    %p55 = scmp.eq.s32.totalorder %s14, 0
    %p56 = por %p54, %p55
    %p57 = scmp.ne.s32.totalorder %s45, %s46
    %p58 = scmp.eq.s32.totalorder %s15, 1
    %p59 = por %p57, %p58
    %p61 = scmp.ne.s32.totalorder %s46, %s60
    %p62 = scmp.eq.s32.totalorder %s15, 0
    %p63 = por %p61, %p62
    %s65 = sadd.s32 %s64, 1
    %p68 = scmp.eq.s32.totalorder %s9, 1
    %p69 = scmp.ne.s32.totalorder %s64, %s66
    %p70 = scmp.eq.s32.totalorder %s9, 0
    %p71 = por %p69, %p70
    %p72 = scmp.ne.s32.totalorder %s64, %s66
    %p73 = scmp.eq.s32.totalorder %s14, 1
    %p74 = por %p72, %p73
    %p75 = scmp.ne.s32.totalorder %s66, %s67
    %p76 = scmp.eq.s32.totalorder %s14, 0
    %p77 = por %p75, %p76
    %p78 = scmp.ne.s32.totalorder %s66, %s67
    %p79 = scmp.eq.s32.totalorder %s15, 1
    %p80 = por %p78, %p79
    %p82 = scmp.ne.s32.totalorder %s67, %s81
    %p83 = scmp.eq.s32.totalorder %s15, 0
    %p84 = por %p82, %p83
    %s85 = ssub.s32 %s9, %s16
    %p86 = scmp.eq.s32.totalorder %s85, 0
    %s88 = sadd.s32 %s87, 1
    %s89 = scalar_select %p86, %s87, %s88
    %p92 = pneg %p86
    %p93 = scmp.eq.s32.totalorder %s9, 1
    %p94 = por %p92, %p93
    %p95 = scmp.ne.s32.totalorder %s87, %s90
    %p96 = scmp.eq.s32.totalorder %s9, 0
    %p97 = por %p95, %p96
    %p98 = scmp.ne.s32.totalorder %s87, %s90
    %p99 = scmp.eq.s32.totalorder %s14, 1
    %p100 = por %p98, %p99
    %p101 = scmp.ne.s32.totalorder %s90, %s91
    %p102 = scmp.eq.s32.totalorder %s14, 0
    %p103 = por %p101, %p102
    %p104 = scmp.ne.s32.totalorder %s90, %s91
    %p105 = scmp.eq.s32.totalorder %s15, 1
    %p106 = por %p104, %p105
    %p108 = scmp.ne.s32.totalorder %s91, %s107
    %p109 = scmp.eq.s32.totalorder %s15, 0
    %p110 = por %p108, %p109
    %p111 = scmp.le.s32.totalorder 1, %s9
    %p112 = scmp.lt.s32.totalorder %s9, 3
    %p113 = pnand %p111, %p112
    %p114 = pneg %p113
    // Predicated region
    $region9: #{_lambda_.5} parent=5 // pred_check
      _
    $region10: #{_lambda_.5} parent=5 // pred_check_branch
      %116 = sbr.rel (%p113) target = $region12
    $region11: #{_lambda_.5} parent=5 // pred_region
      %s117 = ssub.s32 %s9, 1
      // Predicated region
      $region13: #{_lambda_.5} parent=11 // pred_check
        %p118 = pneg %p56
      $region14: #{_lambda_.5} parent=11 // pred_check_branch
        %120 = sbr.rel (%p118) target = $region16
      $region15: #{_lambda_.5} parent=11 // pred_region
        _
      $region16: #{_lambda_.5} parent=11 // pred_fallthru
        _
      // Predicated region
      $region17: #{_lambda_.5} parent=11 // pred_check
        %p121 = pneg %p77
      $region18: #{_lambda_.5} parent=11 // pred_check_branch
        %123 = sbr.rel (%p121) target = $region20
      $region19: #{_lambda_.5} parent=11 // pred_region
        _
      $region20: #{_lambda_.5} parent=11 // pred_fallthru
        _
    $region12: #{_lambda_.5} parent=5 // pred_fallthru
      _
    %p124 = scmp.lt.s32.totalorder %s9, 2
    // Predicated region
    $region21: #{_lambda_.5} parent=5 // pred_check
      %p125 = pneg %p124
    $region22: #{_lambda_.5} parent=5 // pred_check_branch
      %127 = sbr.rel (%p125) target = $region24
    $region23: #{_lambda_.5} parent=5 // pred_region
      // Predicated region
      $region25: #{_lambda_.5} parent=23 // pred_check
        %p128 = pneg %p29
      $region26: #{_lambda_.5} parent=23 // pred_check_branch
        %130 = sbr.rel (%p128) target = $region28
      $region27: #{_lambda_.5} parent=23 // pred_region
        %p131 = scmp.lt.s32.totalorder %s9, 1
        %s132 = scalar_select %p131, %s9, 1
        %s133 = smul.addr %s132, 88
        %s134 = smul.addr %s133, 2
        %s135 = scalar_lea.vmem %s0, %s134
      $region28: #{_lambda_.5} parent=23 // pred_fallthru
        _
    $region24: #{_lambda_.5} parent=5 // pred_fallthru
      _
    %p136 = scmp.le.s32.totalorder 1, %s9
    %p137 = scmp.lt.s32.totalorder %s9, 3
    %p138 = pnand %p136, %p137
    %p139 = pneg %p138
    // Predicated region
    $region29: #{_lambda_.5} parent=5 // pred_check
      _
    $region30: #{_lambda_.5} parent=5 // pred_check_branch
      %141 = sbr.rel (%p138) target = $region32
    $region31: #{_lambda_.5} parent=5 // pred_region
      %s142 = ssub.s32 %s9, 1
      %p143 = scmp.lt.s32.totalorder %s14, 1
      %s144 = scalar_select %p143, %s14, 1
      %s145 = smul.addr %s144, 88
      %s146 = smul.addr %s145, 2
      %s147 = scalar_lea.vmem %s0, %s146
      %p148 = pneg %p35
      %p149 = pneg %p32
      %p150 = pneg %p56
      %p151 = pneg %p53
      %p152 = pneg %p77
      %p153 = pneg %p74
      %p154 = pneg %p103
      %p155 = pneg %p100
      %p156 = scmp.lt.s32.totalorder %s14, 1
      %s157 = scalar_select %p156, %s14, 1
      %s158 = smul.addr %s157, 84
      %s159 = smul.addr %s158, 4
      %s160 = scalar_lea.vmem %s3, %s159
      %p161 = scmp.lt.s32.totalorder %s14, 1
      %s162 = scalar_select %p161, %s14, 1
      %s163 = smul.addr %s162, 88
      %s164 = smul.addr %s163, 2
      %s165 = scalar_lea.vmem %s0, %s164
      %p166 = scmp.lt.s32.totalorder %s14, 1
      %s167 = scalar_select %p166, %s14, 1
      %s168 = smul.addr %s167, 84
      %s169 = smul.addr %s168, 4
      %s170 = scalar_lea.vmem %s3, %s169
      %v172 = vld [vmem:[%s165] sm:$0xff]
      %v173 = vld [vmem:[%s165 + $0x8] sm:$0xff]
      %v174 = vld [vmem:[%s165 + $0x10] sm:$0xff]
      %v175 = vld [vmem:[%s165 + $0x18] sm:$0xff]
      %v176 = vld [vmem:[%s165 + $0x20] sm:$0xff]
      %v177 = vld [vmem:[%s165 + $0x28] sm:$0x3]
      %v184 = vcombine.high %v172, %v172
      %v186 = vunpack.c.l.s4 1983009808
      %v187 = vunpack.c.0.s8 %v186
      %v188 = vlaneseq
      %v189 = vshrl.u32 %v188, 7
      %v190 = vsub.s32 %v187, %v189
      %v191 = vrot.slane %v172, %v190
      %v193 = vunpack.c.l.s4 1983009808
      %v194 = vunpack.c.0.s8 %v193
      %v195 = vlaneseq
      %v196 = vshrl.u32 %v195, 7
      %v197 = vsub.s32 %v194, %v196
      %v198 = vrot.slane %v184, %v197
      %v199 = vcombine.high %v173, %v173
      %v201 = vunpack.c.l.s4 1983009808
      %v202 = vunpack.c.0.s8 %v201
      %v203 = vlaneseq
      %v204 = vshrl.u32 %v203, 7
      %v205 = vsub.s32 %v202, %v204
      %v206 = vrot.slane %v173, %v205
      %v208 = vunpack.c.l.s4 1983009808
      %v209 = vunpack.c.0.s8 %v208
      %v210 = vlaneseq
      %v211 = vshrl.u32 %v210, 7
      %v212 = vsub.s32 %v209, %v211
      %v213 = vrot.slane %v199, %v212
      %v214 = vcombine.high %v174, %v174
      %v216 = vunpack.c.l.s4 1983009808
      %v217 = vunpack.c.0.s8 %v216
      %v218 = vlaneseq
      %v219 = vshrl.u32 %v218, 7
      %v220 = vsub.s32 %v217, %v219
      %v221 = vrot.slane %v174, %v220
      %v223 = vunpack.c.l.s4 1983009808
      %v224 = vunpack.c.0.s8 %v223
      %v225 = vlaneseq
      %v226 = vshrl.u32 %v225, 7
      %v227 = vsub.s32 %v224, %v226
      %v228 = vrot.slane %v214, %v227
      %v229 = vcombine.high %v175, %v175
      %v231 = vunpack.c.l.s4 1983009808
      %v232 = vunpack.c.0.s8 %v231
      %v233 = vlaneseq
      %v234 = vshrl.u32 %v233, 7
      %v235 = vsub.s32 %v232, %v234
      %v236 = vrot.slane %v175, %v235
      %v238 = vunpack.c.l.s4 1983009808
      %v239 = vunpack.c.0.s8 %v238
      %v240 = vlaneseq
      %v241 = vshrl.u32 %v240, 7
      %v242 = vsub.s32 %v239, %v241
      %v243 = vrot.slane %v229, %v242
      %v244 = vcombine.high %v176, %v176
      %v246 = vunpack.c.l.s4 1983009808
      %v247 = vunpack.c.0.s8 %v246
      %v248 = vlaneseq
      %v249 = vshrl.u32 %v248, 7
      %v250 = vsub.s32 %v247, %v249
      %v251 = vrot.slane %v176, %v250
      %v253 = vunpack.c.l.s4 1983009808
      %v254 = vunpack.c.0.s8 %v253
      %v255 = vlaneseq
      %v256 = vshrl.u32 %v255, 7
      %v257 = vsub.s32 %v254, %v256
      %v258 = vrot.slane %v244, %v257
      %v260 = vunpack.c.l.s4 1983009808
      %v261 = vunpack.c.0.s8 %v260
      %v262 = vlaneseq
      %v263 = vshrl.u32 %v262, 7
      %v264 = vsub.s32 %v261, %v263
      %v265 = vrot.slane %v177, %v264
      %277 = vst [vmem:[#allocation2] sm:$0x33] %v191
      %278 = vst [vmem:[#allocation2 + $0x8] sm:$0x33] %v198
      %279 = vst [vmem:[#allocation2 + $0x10] sm:$0x33] %v206
      %280 = vst [vmem:[#allocation2 + $0x18] sm:$0x33] %v213
      %281 = vst [vmem:[#allocation2 + $0x20] sm:$0x33] %v221
      %282 = vst [vmem:[#allocation2 + $0x28] sm:$0x33] %v228
      %283 = vst [vmem:[#allocation2 + $0x30] sm:$0x33] %v236
      %284 = vst [vmem:[#allocation2 + $0x38] sm:$0x33] %v243
      %285 = vst [vmem:[#allocation2 + $0x40] sm:$0x33] %v251
      %286 = vst [vmem:[#allocation2 + $0x48] sm:$0x33] %v258
      %287 = vst [vmem:[#allocation2 + $0x50] sm:$0x3] %v265
      %s288 = scalar_lea.vmem %s165, 44
      %v289 = vld [vmem:[%s288] sm:$0xff]
      %v290 = vld [vmem:[%s288 + $0x8] sm:$0xff]
      %v291 = vld [vmem:[%s288 + $0x10] sm:$0xff]
      %v292 = vld [vmem:[%s288 + $0x18] sm:$0xff]
      %v293 = vld [vmem:[%s288 + $0x20] sm:$0xff]
      %v294 = vld [vmem:[%s288 + $0x28] sm:$0x3]
      %v301 = vcombine.low %v289, %v289
      %v303 = vunpack.c.l.s4 1983009808
      %v304 = vunpack.c.0.s8 %v303
      %v305 = vlaneseq
      %v306 = vshrl.u32 %v305, 7
      %v307 = vsub.s32 %v304, %v306
      %v308 = vrot.slane %v301, %v307
      %v310 = vunpack.c.l.s4 1983009808
      %v311 = vunpack.c.0.s8 %v310
      %v312 = vlaneseq
      %v313 = vshrl.u32 %v312, 7
      %v314 = vsub.s32 %v311, %v313
      %v315 = vrot.slane %v289, %v314
      %v316 = vcombine.low %v290, %v290
      %v318 = vunpack.c.l.s4 1983009808
      %v319 = vunpack.c.0.s8 %v318
      %v320 = vlaneseq
      %v321 = vshrl.u32 %v320, 7
      %v322 = vsub.s32 %v319, %v321
      %v323 = vrot.slane %v316, %v322
      %v325 = vunpack.c.l.s4 1983009808
      %v326 = vunpack.c.0.s8 %v325
      %v327 = vlaneseq
      %v328 = vshrl.u32 %v327, 7
      %v329 = vsub.s32 %v326, %v328
      %v330 = vrot.slane %v290, %v329
      %v331 = vcombine.low %v291, %v291
      %v333 = vunpack.c.l.s4 1983009808
      %v334 = vunpack.c.0.s8 %v333
      %v335 = vlaneseq
      %v336 = vshrl.u32 %v335, 7
      %v337 = vsub.s32 %v334, %v336
      %v338 = vrot.slane %v331, %v337
      %v340 = vunpack.c.l.s4 1983009808
      %v341 = vunpack.c.0.s8 %v340
      %v342 = vlaneseq
      %v343 = vshrl.u32 %v342, 7
      %v344 = vsub.s32 %v341, %v343
      %v345 = vrot.slane %v291, %v344
      %v346 = vcombine.low %v292, %v292
      %v348 = vunpack.c.l.s4 1983009808
      %v349 = vunpack.c.0.s8 %v348
      %v350 = vlaneseq
      %v351 = vshrl.u32 %v350, 7
      %v352 = vsub.s32 %v349, %v351
      %v353 = vrot.slane %v346, %v352
      %v355 = vunpack.c.l.s4 1983009808
      %v356 = vunpack.c.0.s8 %v355
      %v357 = vlaneseq
      %v358 = vshrl.u32 %v357, 7
      %v359 = vsub.s32 %v356, %v358
      %v360 = vrot.slane %v292, %v359
      %v361 = vcombine.low %v293, %v293
      %v363 = vunpack.c.l.s4 1983009808
      %v364 = vunpack.c.0.s8 %v363
      %v365 = vlaneseq
      %v366 = vshrl.u32 %v365, 7
      %v367 = vsub.s32 %v364, %v366
      %v368 = vrot.slane %v361, %v367
      %v370 = vunpack.c.l.s4 1983009808
      %v371 = vunpack.c.0.s8 %v370
      %v372 = vlaneseq
      %v373 = vshrl.u32 %v372, 7
      %v374 = vsub.s32 %v371, %v373
      %v375 = vrot.slane %v293, %v374
      %v376 = vcombine.low %v294, %v294
      %v378 = vunpack.c.l.s4 1983009808
      %v379 = vunpack.c.0.s8 %v378
      %v380 = vlaneseq
      %v381 = vshrl.u32 %v380, 7
      %v382 = vsub.s32 %v379, %v381
      %v383 = vrot.slane %v376, %v382
      %395 = vst [vmem:[#allocation2] sm:$0xcc] %v308
      %396 = vst [vmem:[#allocation2 + $0x8] sm:$0xcc] %v315
      %397 = vst [vmem:[#allocation2 + $0x10] sm:$0xcc] %v323
      %398 = vst [vmem:[#allocation2 + $0x18] sm:$0xcc] %v330
      %399 = vst [vmem:[#allocation2 + $0x20] sm:$0xcc] %v338
      %400 = vst [vmem:[#allocation2 + $0x28] sm:$0xcc] %v345
      %401 = vst [vmem:[#allocation2 + $0x30] sm:$0xcc] %v353
      %402 = vst [vmem:[#allocation2 + $0x38] sm:$0xcc] %v360
      %403 = vst [vmem:[#allocation2 + $0x40] sm:$0xcc] %v368
      %404 = vst [vmem:[#allocation2 + $0x48] sm:$0xcc] %v375
      %405 = vst [vmem:[#allocation2 + $0x50] sm:$0xc] %v383
      %v406 = vld [vmem:[%s165] sm:$0xff]
      %v407 = vld [vmem:[%s165 + $0x8] sm:$0xff]
      %v408 = vld [vmem:[%s165 + $0x10] sm:$0xff]
      %v409 = vld [vmem:[%s165 + $0x18] sm:$0xff]
      %v410 = vld [vmem:[%s165 + $0x20] sm:$0xff]
      %v411 = vld [vmem:[%s165 + $0x28] sm:$0xf]
      %v418 = vcombine.high %v406, %v406
      %v420 = vunpack.c.l.s4 1983009808
      %v421 = vunpack.c.0.s8 %v420
      %v422 = vlaneseq
      %v423 = vshrl.u32 %v422, 7
      %v424 = vsub.s32 %v421, %v423
      %v425 = vrot.slane %v406, %v424
      %v427 = vunpack.c.l.s4 1983009808
      %v428 = vunpack.c.0.s8 %v427
      %v429 = vlaneseq
      %v430 = vshrl.u32 %v429, 7
      %v431 = vsub.s32 %v428, %v430
      %v432 = vrot.slane %v418, %v431
      %v433 = vcombine.high %v407, %v407
      %v435 = vunpack.c.l.s4 1983009808
      %v436 = vunpack.c.0.s8 %v435
      %v437 = vlaneseq
      %v438 = vshrl.u32 %v437, 7
      %v439 = vsub.s32 %v436, %v438
      %v440 = vrot.slane %v407, %v439
      %v442 = vunpack.c.l.s4 1983009808
      %v443 = vunpack.c.0.s8 %v442
      %v444 = vlaneseq
      %v445 = vshrl.u32 %v444, 7
      %v446 = vsub.s32 %v443, %v445
      %v447 = vrot.slane %v433, %v446
      %v448 = vcombine.high %v408, %v408
      %v450 = vunpack.c.l.s4 1983009808
      %v451 = vunpack.c.0.s8 %v450
      %v452 = vlaneseq
      %v453 = vshrl.u32 %v452, 7
      %v454 = vsub.s32 %v451, %v453
      %v455 = vrot.slane %v408, %v454
      %v457 = vunpack.c.l.s4 1983009808
      %v458 = vunpack.c.0.s8 %v457
      %v459 = vlaneseq
      %v460 = vshrl.u32 %v459, 7
      %v461 = vsub.s32 %v458, %v460
      %v462 = vrot.slane %v448, %v461
      %v463 = vcombine.high %v409, %v409
      %v465 = vunpack.c.l.s4 1983009808
      %v466 = vunpack.c.0.s8 %v465
      %v467 = vlaneseq
      %v468 = vshrl.u32 %v467, 7
      %v469 = vsub.s32 %v466, %v468
      %v470 = vrot.slane %v409, %v469
      %v472 = vunpack.c.l.s4 1983009808
      %v473 = vunpack.c.0.s8 %v472
      %v474 = vlaneseq
      %v475 = vshrl.u32 %v474, 7
      %v476 = vsub.s32 %v473, %v475
      %v477 = vrot.slane %v463, %v476
      %v478 = vcombine.high %v410, %v410
      %v480 = vunpack.c.l.s4 1983009808
      %v481 = vunpack.c.0.s8 %v480
      %v482 = vlaneseq
      %v483 = vshrl.u32 %v482, 7
      %v484 = vsub.s32 %v481, %v483
      %v485 = vrot.slane %v410, %v484
      %v487 = vunpack.c.l.s4 1983009808
      %v488 = vunpack.c.0.s8 %v487
      %v489 = vlaneseq
      %v490 = vshrl.u32 %v489, 7
      %v491 = vsub.s32 %v488, %v490
      %v492 = vrot.slane %v478, %v491
      %v494 = vunpack.c.l.s4 1983009808
      %v495 = vunpack.c.0.s8 %v494
      %v496 = vlaneseq
      %v497 = vshrl.u32 %v496, 7
      %v498 = vsub.s32 %v495, %v497
      %v499 = vrot.slane %v411, %v498
      %500 = vrot.lane.b32.xlu0 %v425, 127
      %v501 = vpop.permute.xlu0 %500
      %502 = vrot.lane.b32.xlu0 %v432, 127
      %v503 = vpop.permute.xlu0 %502
      %504 = vrot.lane.b32.xlu0 %v440, 127
      %v505 = vpop.permute.xlu0 %504
      %506 = vrot.lane.b32.xlu0 %v447, 127
      %v507 = vpop.permute.xlu0 %506
      %508 = vrot.lane.b32.xlu0 %v455, 127
      %v509 = vpop.permute.xlu0 %508
      %510 = vrot.lane.b32.xlu0 %v462, 127
      %v511 = vpop.permute.xlu0 %510
      %512 = vrot.lane.b32.xlu0 %v470, 127
      %v513 = vpop.permute.xlu0 %512
      %514 = vrot.lane.b32.xlu0 %v477, 127
      %v515 = vpop.permute.xlu0 %514
      %516 = vrot.lane.b32.xlu0 %v485, 127
      %v517 = vpop.permute.xlu0 %516
      %518 = vrot.lane.b32.xlu0 %v492, 127
      %v519 = vpop.permute.xlu0 %518
      %520 = vrot.lane.b32.xlu0 %v499, 127
      %v521 = vpop.permute.xlu0 %520
      %v522 = vrot.slane %v501, 4
      %v523 = vrot.slane %v503, 4
      %v524 = vrot.slane %v505, 4
      %v525 = vrot.slane %v507, 4
      %v526 = vrot.slane %v509, 4
      %v527 = vrot.slane %v511, 4
      %v528 = vrot.slane %v513, 4
      %v529 = vrot.slane %v515, 4
      %v530 = vrot.slane %v517, 4
      %v531 = vrot.slane %v519, 4
      %v532 = vrot.slane %v521, 4
      %vm533 = vcmask 1043456
      %v534 = vsel %vm533, %v522, %v523
      %vm535 = vcmask 1039360
      %v536 = vsel %vm535, %v501, %v534
      %v537 = vsel %vm533, %v523, %v524
      %v538 = vsel %vm535, %v503, %v537
      %v539 = vsel %vm533, %v524, %v525
      %v540 = vsel %vm535, %v505, %v539
      %v541 = vsel %vm533, %v525, %v526
      %v542 = vsel %vm535, %v507, %v541
      %v543 = vsel %vm533, %v526, %v527
      %v544 = vsel %vm535, %v509, %v543
      %v545 = vsel %vm533, %v527, %v528
      %v546 = vsel %vm535, %v511, %v545
      %v547 = vsel %vm533, %v528, %v529
      %v548 = vsel %vm535, %v513, %v547
      %v549 = vsel %vm533, %v529, %v530
      %v550 = vsel %vm535, %v515, %v549
      %v551 = vsel %vm533, %v530, %v531
      %v552 = vsel %vm535, %v517, %v551
      %v553 = vsel %vm533, %v531, %v532
      %v554 = vsel %vm535, %v519, %v553
      %v555 = vsel %vm535, %v521, %v532
      %567 = vst [vmem:[#allocation2 + $0x54] sm:$0x33] %v536
      %568 = vst [vmem:[#allocation2 + $0x5c] sm:$0x33] %v538
      %569 = vst [vmem:[#allocation2 + $0x64] sm:$0x33] %v540
      %570 = vst [vmem:[#allocation2 + $0x6c] sm:$0x33] %v542
      %571 = vst [vmem:[#allocation2 + $0x74] sm:$0x33] %v544
      %572 = vst [vmem:[#allocation2 + $0x7c] sm:$0x33] %v546
      %573 = vst [vmem:[#allocation2 + $0x84] sm:$0x33] %v548
      %574 = vst [vmem:[#allocation2 + $0x8c] sm:$0x33] %v550
      %575 = vst [vmem:[#allocation2 + $0x94] sm:$0x33] %v552
      %576 = vst [vmem:[#allocation2 + $0x9c] sm:$0x33] %v554
      %577 = vst [vmem:[#allocation2 + $0xa4] sm:$0x3] %v555
      %s578 = scalar_lea.vmem %s165, 88
      %v579 = vld [vmem:[%s578] sm:$0xff]
      %v580 = vld [vmem:[%s578 + $0x8] sm:$0xff]
      %v581 = vld [vmem:[%s578 + $0x10] sm:$0xff]
      %v582 = vld [vmem:[%s578 + $0x18] sm:$0xff]
      %v583 = vld [vmem:[%s578 + $0x20] sm:$0xff]
      %v584 = vld [vmem:[%s578 + $0x28] sm:$0x3]
      %v591 = vcombine.low %v579, %v579
      %v593 = vunpack.c.l.s4 1983009808
      %v594 = vunpack.c.0.s8 %v593
      %v595 = vlaneseq
      %v596 = vshrl.u32 %v595, 7
      %v597 = vsub.s32 %v594, %v596
      %v598 = vrot.slane %v591, %v597
      %v600 = vunpack.c.l.s4 1983009808
      %v601 = vunpack.c.0.s8 %v600
      %v602 = vlaneseq
      %v603 = vshrl.u32 %v602, 7
      %v604 = vsub.s32 %v601, %v603
      %v605 = vrot.slane %v579, %v604
      %v606 = vcombine.low %v580, %v580
      %v608 = vunpack.c.l.s4 1983009808
      %v609 = vunpack.c.0.s8 %v608
      %v610 = vlaneseq
      %v611 = vshrl.u32 %v610, 7
      %v612 = vsub.s32 %v609, %v611
      %v613 = vrot.slane %v606, %v612
      %v615 = vunpack.c.l.s4 1983009808
      %v616 = vunpack.c.0.s8 %v615
      %v617 = vlaneseq
      %v618 = vshrl.u32 %v617, 7
      %v619 = vsub.s32 %v616, %v618
      %v620 = vrot.slane %v580, %v619
      %v621 = vcombine.low %v581, %v581
      %v623 = vunpack.c.l.s4 1983009808
      %v624 = vunpack.c.0.s8 %v623
      %v625 = vlaneseq
      %v626 = vshrl.u32 %v625, 7
      %v627 = vsub.s32 %v624, %v626
      %v628 = vrot.slane %v621, %v627
      %v630 = vunpack.c.l.s4 1983009808
      %v631 = vunpack.c.0.s8 %v630
      %v632 = vlaneseq
      %v633 = vshrl.u32 %v632, 7
      %v634 = vsub.s32 %v631, %v633
      %v635 = vrot.slane %v581, %v634
      %v636 = vcombine.low %v582, %v582
      %v638 = vunpack.c.l.s4 1983009808
      %v639 = vunpack.c.0.s8 %v638
      %v640 = vlaneseq
      %v641 = vshrl.u32 %v640, 7
      %v642 = vsub.s32 %v639, %v641
      %v643 = vrot.slane %v636, %v642
      %v645 = vunpack.c.l.s4 1983009808
      %v646 = vunpack.c.0.s8 %v645
      %v647 = vlaneseq
      %v648 = vshrl.u32 %v647, 7
      %v649 = vsub.s32 %v646, %v648
      %v650 = vrot.slane %v582, %v649
      %v651 = vcombine.low %v583, %v583
      %v653 = vunpack.c.l.s4 1983009808
      %v654 = vunpack.c.0.s8 %v653
      %v655 = vlaneseq
      %v656 = vshrl.u32 %v655, 7
      %v657 = vsub.s32 %v654, %v656
      %v658 = vrot.slane %v651, %v657
      %v660 = vunpack.c.l.s4 1983009808
      %v661 = vunpack.c.0.s8 %v660
      %v662 = vlaneseq
      %v663 = vshrl.u32 %v662, 7
      %v664 = vsub.s32 %v661, %v663
      %v665 = vrot.slane %v583, %v664
      %v666 = vcombine.low %v584, %v584
      %v668 = vunpack.c.l.s4 1983009808
      %v669 = vunpack.c.0.s8 %v668
      %v670 = vlaneseq
      %v671 = vshrl.u32 %v670, 7
      %v672 = vsub.s32 %v669, %v671
      %v673 = vrot.slane %v666, %v672
      %685 = vst [vmem:[#allocation2 + $0x54] sm:$0xcc] %v598
      %686 = vst [vmem:[#allocation2 + $0x5c] sm:$0xcc] %v605
      %687 = vst [vmem:[#allocation2 + $0x64] sm:$0xcc] %v613
      %688 = vst [vmem:[#allocation2 + $0x6c] sm:$0xcc] %v620
      %689 = vst [vmem:[#allocation2 + $0x74] sm:$0xcc] %v628
      %690 = vst [vmem:[#allocation2 + $0x7c] sm:$0xcc] %v635
      %691 = vst [vmem:[#allocation2 + $0x84] sm:$0xcc] %v643
      %692 = vst [vmem:[#allocation2 + $0x8c] sm:$0xcc] %v650
      %693 = vst [vmem:[#allocation2 + $0x94] sm:$0xcc] %v658
      %694 = vst [vmem:[#allocation2 + $0x9c] sm:$0xcc] %v665
      %695 = vst [vmem:[#allocation2 + $0xa4] sm:$0xc] %v673
      %s696 = scalar_lea.vmem %s165, 132
      %v697 = vld [vmem:[%s696] sm:$0xff]
      %v698 = vld [vmem:[%s696 + $0x8] sm:$0xff]
      %v699 = vld [vmem:[%s696 + $0x10] sm:$0xff]
      %v700 = vld [vmem:[%s696 + $0x18] sm:$0xff]
      %v701 = vld [vmem:[%s696 + $0x20] sm:$0xff]
      %v702 = vld [vmem:[%s696 + $0x28] sm:$0x3]
      %v709 = vcombine.high %v697, %v697
      %v711 = vunpack.c.l.s4 1983009808
      %v712 = vunpack.c.0.s8 %v711
      %v713 = vlaneseq
      %v714 = vshrl.u32 %v713, 7
      %v715 = vsub.s32 %v712, %v714
      %v716 = vrot.slane %v697, %v715
      %v718 = vunpack.c.l.s4 1983009808
      %v719 = vunpack.c.0.s8 %v718
      %v720 = vlaneseq
      %v721 = vshrl.u32 %v720, 7
      %v722 = vsub.s32 %v719, %v721
      %v723 = vrot.slane %v709, %v722
      %v724 = vcombine.high %v698, %v698
      %v726 = vunpack.c.l.s4 1983009808
      %v727 = vunpack.c.0.s8 %v726
      %v728 = vlaneseq
      %v729 = vshrl.u32 %v728, 7
      %v730 = vsub.s32 %v727, %v729
      %v731 = vrot.slane %v698, %v730
      %v733 = vunpack.c.l.s4 1983009808
      %v734 = vunpack.c.0.s8 %v733
      %v735 = vlaneseq
      %v736 = vshrl.u32 %v735, 7
      %v737 = vsub.s32 %v734, %v736
      %v738 = vrot.slane %v724, %v737
      %v739 = vcombine.high %v699, %v699
      %v741 = vunpack.c.l.s4 1983009808
      %v742 = vunpack.c.0.s8 %v741
      %v743 = vlaneseq
      %v744 = vshrl.u32 %v743, 7
      %v745 = vsub.s32 %v742, %v744
      %v746 = vrot.slane %v699, %v745
      %v748 = vunpack.c.l.s4 1983009808
      %v749 = vunpack.c.0.s8 %v748
      %v750 = vlaneseq
      %v751 = vshrl.u32 %v750, 7
      %v752 = vsub.s32 %v749, %v751
      %v753 = vrot.slane %v739, %v752
      %v754 = vcombine.high %v700, %v700
      %v756 = vunpack.c.l.s4 1983009808
      %v757 = vunpack.c.0.s8 %v756
      %v758 = vlaneseq
      %v759 = vshrl.u32 %v758, 7
      %v760 = vsub.s32 %v757, %v759
      %v761 = vrot.slane %v700, %v760
      %v763 = vunpack.c.l.s4 1983009808
      %v764 = vunpack.c.0.s8 %v763
      %v765 = vlaneseq
      %v766 = vshrl.u32 %v765, 7
      %v767 = vsub.s32 %v764, %v766
      %v768 = vrot.slane %v754, %v767
      %v769 = vcombine.high %v701, %v701
      %v771 = vunpack.c.l.s4 1983009808
      %v772 = vunpack.c.0.s8 %v771
      %v773 = vlaneseq
      %v774 = vshrl.u32 %v773, 7
      %v775 = vsub.s32 %v772, %v774
      %v776 = vrot.slane %v701, %v775
      %v778 = vunpack.c.l.s4 1983009808
      %v779 = vunpack.c.0.s8 %v778
      %v780 = vlaneseq
      %v781 = vshrl.u32 %v780, 7
      %v782 = vsub.s32 %v779, %v781
      %v783 = vrot.slane %v769, %v782
      %v785 = vunpack.c.l.s4 1983009808
      %v786 = vunpack.c.0.s8 %v785
      %v787 = vlaneseq
      %v788 = vshrl.u32 %v787, 7
      %v789 = vsub.s32 %v786, %v788
      %v790 = vrot.slane %v702, %v789
      %802 = vst [vmem:[#allocation2 + $0xa8] sm:$0x33] %v716
      %803 = vst [vmem:[#allocation2 + $0xb0] sm:$0x33] %v723
      %804 = vst [vmem:[#allocation2 + $0xb8] sm:$0x33] %v731
      %805 = vst [vmem:[#allocation2 + $0xc0] sm:$0x33] %v738
      %806 = vst [vmem:[#allocation2 + $0xc8] sm:$0x33] %v746
      %807 = vst [vmem:[#allocation2 + $0xd0] sm:$0x33] %v753
      %808 = vst [vmem:[#allocation2 + $0xd8] sm:$0x33] %v761
      %809 = vst [vmem:[#allocation2 + $0xe0] sm:$0x33] %v768
      %810 = vst [vmem:[#allocation2 + $0xe8] sm:$0x33] %v776
      %811 = vst [vmem:[#allocation2 + $0xf0] sm:$0x33] %v783
      %812 = vst [vmem:[#allocation2 + $0xf8] sm:$0x3] %v790
      %v813 = vld [vmem:[%s578] sm:$0xff]
      %v814 = vld [vmem:[%s578 + $0x8] sm:$0xff]
      %v815 = vld [vmem:[%s578 + $0x10] sm:$0xff]
      %v816 = vld [vmem:[%s578 + $0x18] sm:$0xff]
      %v817 = vld [vmem:[%s578 + $0x20] sm:$0xff]
      %v818 = vld [vmem:[%s578 + $0x28] sm:$0xf]
      %v825 = vcombine.low %v813, %v813
      %v827 = vunpack.c.l.s4 1983009808
      %v828 = vunpack.c.0.s8 %v827
      %v829 = vlaneseq
      %v830 = vshrl.u32 %v829, 7
      %v831 = vsub.s32 %v828, %v830
      %v832 = vrot.slane %v825, %v831
      %v834 = vunpack.c.l.s4 1983009808
      %v835 = vunpack.c.0.s8 %v834
      %v836 = vlaneseq
      %v837 = vshrl.u32 %v836, 7
      %v838 = vsub.s32 %v835, %v837
      %v839 = vrot.slane %v813, %v838
      %v840 = vcombine.low %v814, %v814
      %v842 = vunpack.c.l.s4 1983009808
      %v843 = vunpack.c.0.s8 %v842
      %v844 = vlaneseq
      %v845 = vshrl.u32 %v844, 7
      %v846 = vsub.s32 %v843, %v845
      %v847 = vrot.slane %v840, %v846
      %v849 = vunpack.c.l.s4 1983009808
      %v850 = vunpack.c.0.s8 %v849
      %v851 = vlaneseq
      %v852 = vshrl.u32 %v851, 7
      %v853 = vsub.s32 %v850, %v852
      %v854 = vrot.slane %v814, %v853
      %v855 = vcombine.low %v815, %v815
      %v857 = vunpack.c.l.s4 1983009808
      %v858 = vunpack.c.0.s8 %v857
      %v859 = vlaneseq
      %v860 = vshrl.u32 %v859, 7
      %v861 = vsub.s32 %v858, %v860
      %v862 = vrot.slane %v855, %v861
      %v864 = vunpack.c.l.s4 1983009808
      %v865 = vunpack.c.0.s8 %v864
      %v866 = vlaneseq
      %v867 = vshrl.u32 %v866, 7
      %v868 = vsub.s32 %v865, %v867
      %v869 = vrot.slane %v815, %v868
      %v870 = vcombine.low %v816, %v816
      %v872 = vunpack.c.l.s4 1983009808
      %v873 = vunpack.c.0.s8 %v872
      %v874 = vlaneseq
      %v875 = vshrl.u32 %v874, 7
      %v876 = vsub.s32 %v873, %v875
      %v877 = vrot.slane %v870, %v876
      %v879 = vunpack.c.l.s4 1983009808
      %v880 = vunpack.c.0.s8 %v879
      %v881 = vlaneseq
      %v882 = vshrl.u32 %v881, 7
      %v883 = vsub.s32 %v880, %v882
      %v884 = vrot.slane %v816, %v883
      %v885 = vcombine.low %v817, %v817
      %v887 = vunpack.c.l.s4 1983009808
      %v888 = vunpack.c.0.s8 %v887
      %v889 = vlaneseq
      %v890 = vshrl.u32 %v889, 7
      %v891 = vsub.s32 %v888, %v890
      %v892 = vrot.slane %v885, %v891
      %v894 = vunpack.c.l.s4 1983009808
      %v895 = vunpack.c.0.s8 %v894
      %v896 = vlaneseq
      %v897 = vshrl.u32 %v896, 7
      %v898 = vsub.s32 %v895, %v897
      %v899 = vrot.slane %v817, %v898
      %v900 = vcombine.low %v818, %v818
      %v902 = vunpack.c.l.s4 1983009808
      %v903 = vunpack.c.0.s8 %v902
      %v904 = vlaneseq
      %v905 = vshrl.u32 %v904, 7
      %v906 = vsub.s32 %v903, %v905
      %v907 = vrot.slane %v900, %v906
      %908 = vrot.lane.b32.xlu0 %v832, 127
      %v909 = vpop.permute.xlu0 %908
      %910 = vrot.lane.b32.xlu0 %v839, 127
      %v911 = vpop.permute.xlu0 %910
      %912 = vrot.lane.b32.xlu0 %v847, 127
      %v913 = vpop.permute.xlu0 %912
      %914 = vrot.lane.b32.xlu0 %v854, 127
      %v915 = vpop.permute.xlu0 %914
      %916 = vrot.lane.b32.xlu0 %v862, 127
      %v917 = vpop.permute.xlu0 %916
      %918 = vrot.lane.b32.xlu0 %v869, 127
      %v919 = vpop.permute.xlu0 %918
      %920 = vrot.lane.b32.xlu0 %v877, 127
      %v921 = vpop.permute.xlu0 %920
      %922 = vrot.lane.b32.xlu0 %v884, 127
      %v923 = vpop.permute.xlu0 %922
      %924 = vrot.lane.b32.xlu0 %v892, 127
      %v925 = vpop.permute.xlu0 %924
      %926 = vrot.lane.b32.xlu0 %v899, 127
      %v927 = vpop.permute.xlu0 %926
      %928 = vrot.lane.b32.xlu0 %v907, 127
      %v929 = vpop.permute.xlu0 %928
      %v930 = vrot.slane %v909, 4
      %v931 = vrot.slane %v911, 4
      %v932 = vrot.slane %v913, 4
      %v933 = vrot.slane %v915, 4
      %v934 = vrot.slane %v917, 4
      %v935 = vrot.slane %v919, 4
      %v936 = vrot.slane %v921, 4
      %v937 = vrot.slane %v923, 4
      %v938 = vrot.slane %v925, 4
      %v939 = vrot.slane %v927, 4
      %v940 = vrot.slane %v929, 4
      %v941 = vsel %vm533, %v930, %v931
      %v942 = vsel %vm535, %v909, %v941
      %v943 = vsel %vm533, %v931, %v932
      %v944 = vsel %vm535, %v911, %v943
      %v945 = vsel %vm533, %v932, %v933
      %v946 = vsel %vm535, %v913, %v945
      %v947 = vsel %vm533, %v933, %v934
      %v948 = vsel %vm535, %v915, %v947
      %v949 = vsel %vm533, %v934, %v935
      %v950 = vsel %vm535, %v917, %v949
      %v951 = vsel %vm533, %v935, %v936
      %v952 = vsel %vm535, %v919, %v951
      %v953 = vsel %vm533, %v936, %v937
      %v954 = vsel %vm535, %v921, %v953
      %v955 = vsel %vm533, %v937, %v938
      %v956 = vsel %vm535, %v923, %v955
      %v957 = vsel %vm533, %v938, %v939
      %v958 = vsel %vm535, %v925, %v957
      %v959 = vsel %vm533, %v939, %v940
      %v960 = vsel %vm535, %v927, %v959
      %v961 = vsel %vm535, %v929, %v940
      %973 = vst [vmem:[#allocation2 + $0xa8] sm:$0xcc] %v942
      %974 = vst [vmem:[#allocation2 + $0xb0] sm:$0xcc] %v944
      %975 = vst [vmem:[#allocation2 + $0xb8] sm:$0xcc] %v946
      %976 = vst [vmem:[#allocation2 + $0xc0] sm:$0xcc] %v948
      %977 = vst [vmem:[#allocation2 + $0xc8] sm:$0xcc] %v950
      %978 = vst [vmem:[#allocation2 + $0xd0] sm:$0xcc] %v952
      %979 = vst [vmem:[#allocation2 + $0xd8] sm:$0xcc] %v954
      %980 = vst [vmem:[#allocation2 + $0xe0] sm:$0xcc] %v956
      %981 = vst [vmem:[#allocation2 + $0xe8] sm:$0xcc] %v958
      %982 = vst [vmem:[#allocation2 + $0xf0] sm:$0xcc] %v960
      %983 = vst [vmem:[#allocation2 + $0xf8] sm:$0xc] %v961
      %v984 = vld [vmem:[%s165] sm:$0xff]
      %v985 = vld [vmem:[%s165 + $0x8] sm:$0xff]
      %v986 = vld [vmem:[%s165 + $0x10] sm:$0xff]
      %v987 = vld [vmem:[%s165 + $0x18] sm:$0xff]
      %v988 = vld [vmem:[%s165 + $0x20] sm:$0xff]
      %v989 = vld [vmem:[%s165 + $0x28] sm:$0xf]
      %v996 = vcombine.high %v984, %v984
      %v998 = vunpack.c.l.s4 1983009808
      %v999 = vunpack.c.0.s8 %v998
      %v1000 = vlaneseq
      %v1001 = vshrl.u32 %v1000, 7
      %v1002 = vsub.s32 %v999, %v1001
      %v1003 = vrot.slane %v984, %v1002
      %v1005 = vunpack.c.l.s4 1983009808
      %v1006 = vunpack.c.0.s8 %v1005
      %v1007 = vlaneseq
      %v1008 = vshrl.u32 %v1007, 7
      %v1009 = vsub.s32 %v1006, %v1008
      %v1010 = vrot.slane %v996, %v1009
      %v1011 = vcombine.high %v985, %v985
      %v1013 = vunpack.c.l.s4 1983009808
      %v1014 = vunpack.c.0.s8 %v1013
      %v1015 = vlaneseq
      %v1016 = vshrl.u32 %v1015, 7
      %v1017 = vsub.s32 %v1014, %v1016
      %v1018 = vrot.slane %v985, %v1017
      %v1020 = vunpack.c.l.s4 1983009808
      %v1021 = vunpack.c.0.s8 %v1020
      %v1022 = vlaneseq
      %v1023 = vshrl.u32 %v1022, 7
      %v1024 = vsub.s32 %v1021, %v1023
      %v1025 = vrot.slane %v1011, %v1024
      %v1026 = vcombine.high %v986, %v986
      %v1028 = vunpack.c.l.s4 1983009808
      %v1029 = vunpack.c.0.s8 %v1028
      %v1030 = vlaneseq
      %v1031 = vshrl.u32 %v1030, 7
      %v1032 = vsub.s32 %v1029, %v1031
      %v1033 = vrot.slane %v986, %v1032
      %v1035 = vunpack.c.l.s4 1983009808
      %v1036 = vunpack.c.0.s8 %v1035
      %v1037 = vlaneseq
      %v1038 = vshrl.u32 %v1037, 7
      %v1039 = vsub.s32 %v1036, %v1038
      %v1040 = vrot.slane %v1026, %v1039
      %v1041 = vcombine.high %v987, %v987
      %v1043 = vunpack.c.l.s4 1983009808
      %v1044 = vunpack.c.0.s8 %v1043
      %v1045 = vlaneseq
      %v1046 = vshrl.u32 %v1045, 7
      %v1047 = vsub.s32 %v1044, %v1046
      %v1048 = vrot.slane %v987, %v1047
      %v1050 = vunpack.c.l.s4 1983009808
      %v1051 = vunpack.c.0.s8 %v1050
      %v1052 = vlaneseq
      %v1053 = vshrl.u32 %v1052, 7
      %v1054 = vsub.s32 %v1051, %v1053
      %v1055 = vrot.slane %v1041, %v1054
      %v1056 = vcombine.high %v988, %v988
      %v1058 = vunpack.c.l.s4 1983009808
      %v1059 = vunpack.c.0.s8 %v1058
      %v1060 = vlaneseq
      %v1061 = vshrl.u32 %v1060, 7
      %v1062 = vsub.s32 %v1059, %v1061
      %v1063 = vrot.slane %v988, %v1062
      %v1065 = vunpack.c.l.s4 1983009808
      %v1066 = vunpack.c.0.s8 %v1065
      %v1067 = vlaneseq
      %v1068 = vshrl.u32 %v1067, 7
      %v1069 = vsub.s32 %v1066, %v1068
      %v1070 = vrot.slane %v1056, %v1069
      %v1072 = vunpack.c.l.s4 1983009808
      %v1073 = vunpack.c.0.s8 %v1072
      %v1074 = vlaneseq
      %v1075 = vshrl.u32 %v1074, 7
      %v1076 = vsub.s32 %v1073, %v1075
      %v1077 = vrot.slane %v989, %v1076
      %1078 = vrot.lane.b32.xlu0 %v1003, 72
      %v1079 = vpop.permute.xlu0 %1078
      %1080 = vrot.lane.b32.xlu0 %v1010, 72
      %v1081 = vpop.permute.xlu0 %1080
      %1082 = vrot.lane.b32.xlu0 %v1018, 72
      %v1083 = vpop.permute.xlu0 %1082
      %1084 = vrot.lane.b32.xlu0 %v1025, 72
      %v1085 = vpop.permute.xlu0 %1084
      %1086 = vrot.lane.b32.xlu0 %v1033, 72
      %v1087 = vpop.permute.xlu0 %1086
      %1088 = vrot.lane.b32.xlu0 %v1040, 72
      %v1089 = vpop.permute.xlu0 %1088
      %1090 = vrot.lane.b32.xlu0 %v1048, 72
      %v1091 = vpop.permute.xlu0 %1090
      %1092 = vrot.lane.b32.xlu0 %v1055, 72
      %v1093 = vpop.permute.xlu0 %1092
      %1094 = vrot.lane.b32.xlu0 %v1063, 72
      %v1095 = vpop.permute.xlu0 %1094
      %1096 = vrot.lane.b32.xlu0 %v1070, 72
      %v1097 = vpop.permute.xlu0 %1096
      %1098 = vrot.lane.b32.xlu0 %v1077, 72
      %v1099 = vpop.permute.xlu0 %1098
      %v1100 = vrot.slane %v1079, 4
      %v1101 = vrot.slane %v1081, 4
      %v1102 = vrot.slane %v1083, 4
      %v1103 = vrot.slane %v1085, 4
      %v1104 = vrot.slane %v1087, 4
      %v1105 = vrot.slane %v1089, 4
      %v1106 = vrot.slane %v1091, 4
      %v1107 = vrot.slane %v1093, 4
      %v1108 = vrot.slane %v1095, 4
      %v1109 = vrot.slane %v1097, 4
      %v1110 = vrot.slane %v1099, 4
      %v1111 = vsel %vm533, %v1100, %v1101
      %vm1112 = vcmask 588800
      %v1113 = vsel %vm1112, %v1079, %v1111
      %v1114 = vsel %vm533, %v1101, %v1102
      %v1115 = vsel %vm1112, %v1081, %v1114
      %v1116 = vsel %vm533, %v1102, %v1103
      %v1117 = vsel %vm1112, %v1083, %v1116
      %v1118 = vsel %vm533, %v1103, %v1104
      %v1119 = vsel %vm1112, %v1085, %v1118
      %v1120 = vsel %vm533, %v1104, %v1105
      %v1121 = vsel %vm1112, %v1087, %v1120
      %v1122 = vsel %vm533, %v1105, %v1106
      %v1123 = vsel %vm1112, %v1089, %v1122
      %v1124 = vsel %vm533, %v1106, %v1107
      %v1125 = vsel %vm1112, %v1091, %v1124
      %v1126 = vsel %vm533, %v1107, %v1108
      %v1127 = vsel %vm1112, %v1093, %v1126
      %v1128 = vsel %vm533, %v1108, %v1109
      %v1129 = vsel %vm1112, %v1095, %v1128
      %v1130 = vsel %vm533, %v1109, %v1110
      %v1131 = vsel %vm1112, %v1097, %v1130
      %v1132 = vsel %vm1112, %v1099, %v1110
      %1144 = vst [vmem:[#allocation2 + $0xfc] sm:$0x33] %v1113
      %1145 = vst [vmem:[#allocation2 + $0x104] sm:$0x33] %v1115
      %1146 = vst [vmem:[#allocation2 + $0x10c] sm:$0x33] %v1117
      %1147 = vst [vmem:[#allocation2 + $0x114] sm:$0x33] %v1119
      %1148 = vst [vmem:[#allocation2 + $0x11c] sm:$0x33] %v1121
      %1149 = vst [vmem:[#allocation2 + $0x124] sm:$0x33] %v1123
      %1150 = vst [vmem:[#allocation2 + $0x12c] sm:$0x33] %v1125
      %1151 = vst [vmem:[#allocation2 + $0x134] sm:$0x33] %v1127
      %1152 = vst [vmem:[#allocation2 + $0x13c] sm:$0x33] %v1129
      %1153 = vst [vmem:[#allocation2 + $0x144] sm:$0x33] %v1131
      %1154 = vst [vmem:[#allocation2 + $0x14c] sm:$0x3] %v1132
      %v1155 = vld [vmem:[%s288] sm:$0xff]
      %v1156 = vld [vmem:[%s288 + $0x8] sm:$0xff]
      %v1157 = vld [vmem:[%s288 + $0x10] sm:$0xff]
      %v1158 = vld [vmem:[%s288 + $0x18] sm:$0xff]
      %v1159 = vld [vmem:[%s288 + $0x20] sm:$0xff]
      %v1160 = vld [vmem:[%s288 + $0x28] sm:$0xf]
      %v1167 = vcombine.low %v1155, %v1155
      %v1169 = vunpack.c.l.s4 1983009808
      %v1170 = vunpack.c.0.s8 %v1169
      %v1171 = vlaneseq
      %v1172 = vshrl.u32 %v1171, 7
      %v1173 = vsub.s32 %v1170, %v1172
      %v1174 = vrot.slane %v1167, %v1173
      %v1176 = vunpack.c.l.s4 1983009808
      %v1177 = vunpack.c.0.s8 %v1176
      %v1178 = vlaneseq
      %v1179 = vshrl.u32 %v1178, 7
      %v1180 = vsub.s32 %v1177, %v1179
      %v1181 = vrot.slane %v1155, %v1180
      %v1182 = vcombine.low %v1156, %v1156
      %v1184 = vunpack.c.l.s4 1983009808
      %v1185 = vunpack.c.0.s8 %v1184
      %v1186 = vlaneseq
      %v1187 = vshrl.u32 %v1186, 7
      %v1188 = vsub.s32 %v1185, %v1187
      %v1189 = vrot.slane %v1182, %v1188
      %v1191 = vunpack.c.l.s4 1983009808
      %v1192 = vunpack.c.0.s8 %v1191
      %v1193 = vlaneseq
      %v1194 = vshrl.u32 %v1193, 7
      %v1195 = vsub.s32 %v1192, %v1194
      %v1196 = vrot.slane %v1156, %v1195
      %v1197 = vcombine.low %v1157, %v1157
      %v1199 = vunpack.c.l.s4 1983009808
      %v1200 = vunpack.c.0.s8 %v1199
      %v1201 = vlaneseq
      %v1202 = vshrl.u32 %v1201, 7
      %v1203 = vsub.s32 %v1200, %v1202
      %v1204 = vrot.slane %v1197, %v1203
      %v1206 = vunpack.c.l.s4 1983009808
      %v1207 = vunpack.c.0.s8 %v1206
      %v1208 = vlaneseq
      %v1209 = vshrl.u32 %v1208, 7
      %v1210 = vsub.s32 %v1207, %v1209
      %v1211 = vrot.slane %v1157, %v1210
      %v1212 = vcombine.low %v1158, %v1158
      %v1214 = vunpack.c.l.s4 1983009808
      %v1215 = vunpack.c.0.s8 %v1214
      %v1216 = vlaneseq
      %v1217 = vshrl.u32 %v1216, 7
      %v1218 = vsub.s32 %v1215, %v1217
      %v1219 = vrot.slane %v1212, %v1218
      %v1221 = vunpack.c.l.s4 1983009808
      %v1222 = vunpack.c.0.s8 %v1221
      %v1223 = vlaneseq
      %v1224 = vshrl.u32 %v1223, 7
      %v1225 = vsub.s32 %v1222, %v1224
      %v1226 = vrot.slane %v1158, %v1225
      %v1227 = vcombine.low %v1159, %v1159
      %v1229 = vunpack.c.l.s4 1983009808
      %v1230 = vunpack.c.0.s8 %v1229
      %v1231 = vlaneseq
      %v1232 = vshrl.u32 %v1231, 7
      %v1233 = vsub.s32 %v1230, %v1232
      %v1234 = vrot.slane %v1227, %v1233
      %v1236 = vunpack.c.l.s4 1983009808
      %v1237 = vunpack.c.0.s8 %v1236
      %v1238 = vlaneseq
      %v1239 = vshrl.u32 %v1238, 7
      %v1240 = vsub.s32 %v1237, %v1239
      %v1241 = vrot.slane %v1159, %v1240
      %v1242 = vcombine.low %v1160, %v1160
      %v1244 = vunpack.c.l.s4 1983009808
      %v1245 = vunpack.c.0.s8 %v1244
      %v1246 = vlaneseq
      %v1247 = vshrl.u32 %v1246, 7
      %v1248 = vsub.s32 %v1245, %v1247
      %v1249 = vrot.slane %v1242, %v1248
      %1250 = vrot.lane.b32.xlu0 %v1174, 72
      %v1251 = vpop.permute.xlu0 %1250
      %1252 = vrot.lane.b32.xlu0 %v1181, 72
      %v1253 = vpop.permute.xlu0 %1252
      %1254 = vrot.lane.b32.xlu0 %v1189, 72
      %v1255 = vpop.permute.xlu0 %1254
      %1256 = vrot.lane.b32.xlu0 %v1196, 72
      %v1257 = vpop.permute.xlu0 %1256
      %1258 = vrot.lane.b32.xlu0 %v1204, 72
      %v1259 = vpop.permute.xlu0 %1258
      %1260 = vrot.lane.b32.xlu0 %v1211, 72
      %v1261 = vpop.permute.xlu0 %1260
      %1262 = vrot.lane.b32.xlu0 %v1219, 72
      %v1263 = vpop.permute.xlu0 %1262
      %1264 = vrot.lane.b32.xlu0 %v1226, 72
      %v1265 = vpop.permute.xlu0 %1264
      %1266 = vrot.lane.b32.xlu0 %v1234, 72
      %v1267 = vpop.permute.xlu0 %1266
      %1268 = vrot.lane.b32.xlu0 %v1241, 72
      %v1269 = vpop.permute.xlu0 %1268
      %1270 = vrot.lane.b32.xlu0 %v1249, 72
      %v1271 = vpop.permute.xlu0 %1270
      %v1272 = vrot.slane %v1251, 4
      %v1273 = vrot.slane %v1253, 4
      %v1274 = vrot.slane %v1255, 4
      %v1275 = vrot.slane %v1257, 4
      %v1276 = vrot.slane %v1259, 4
      %v1277 = vrot.slane %v1261, 4
      %v1278 = vrot.slane %v1263, 4
      %v1279 = vrot.slane %v1265, 4
      %v1280 = vrot.slane %v1267, 4
      %v1281 = vrot.slane %v1269, 4
      %v1282 = vrot.slane %v1271, 4
      %v1283 = vsel %vm533, %v1272, %v1273
      %v1284 = vsel %vm1112, %v1251, %v1283
      %v1285 = vsel %vm533, %v1273, %v1274
      %v1286 = vsel %vm1112, %v1253, %v1285
      %v1287 = vsel %vm533, %v1274, %v1275
      %v1288 = vsel %vm1112, %v1255, %v1287
      %v1289 = vsel %vm533, %v1275, %v1276
      %v1290 = vsel %vm1112, %v1257, %v1289
      %v1291 = vsel %vm533, %v1276, %v1277
      %v1292 = vsel %vm1112, %v1259, %v1291
      %v1293 = vsel %vm533, %v1277, %v1278
      %v1294 = vsel %vm1112, %v1261, %v1293
      %v1295 = vsel %vm533, %v1278, %v1279
      %v1296 = vsel %vm1112, %v1263, %v1295
      %v1297 = vsel %vm533, %v1279, %v1280
      %v1298 = vsel %vm1112, %v1265, %v1297
      %v1299 = vsel %vm533, %v1280, %v1281
      %v1300 = vsel %vm1112, %v1267, %v1299
      %v1301 = vsel %vm533, %v1281, %v1282
      %v1302 = vsel %vm1112, %v1269, %v1301
      %v1303 = vsel %vm1112, %v1271, %v1282
      %1315 = vst [vmem:[#allocation2 + $0xfc] sm:$0xcc] %v1284
      %1316 = vst [vmem:[#allocation2 + $0x104] sm:$0xcc] %v1286
      %1317 = vst [vmem:[#allocation2 + $0x10c] sm:$0xcc] %v1288
      %1318 = vst [vmem:[#allocation2 + $0x114] sm:$0xcc] %v1290
      %1319 = vst [vmem:[#allocation2 + $0x11c] sm:$0xcc] %v1292
      %1320 = vst [vmem:[#allocation2 + $0x124] sm:$0xcc] %v1294
      %1321 = vst [vmem:[#allocation2 + $0x12c] sm:$0xcc] %v1296
      %1322 = vst [vmem:[#allocation2 + $0x134] sm:$0xcc] %v1298
      %1323 = vst [vmem:[#allocation2 + $0x13c] sm:$0xcc] %v1300
      %1324 = vst [vmem:[#allocation2 + $0x144] sm:$0xcc] %v1302
      %1325 = vst [vmem:[#allocation2 + $0x14c] sm:$0xc] %v1303
      %v1326 = vld [vmem:[%s165] sm:$0xff]
      %v1327 = vld [vmem:[%s165 + $0x8] sm:$0xff]
      %v1328 = vld [vmem:[%s165 + $0x10] sm:$0xff]
      %v1329 = vld [vmem:[%s165 + $0x18] sm:$0xff]
      %v1330 = vld [vmem:[%s165 + $0x20] sm:$0xff]
      %v1331 = vld [vmem:[%s165 + $0x28] sm:$0xf]
      %v1338 = vcombine.high %v1326, %v1326
      %v1340 = vunpack.c.l.s4 1983009808
      %v1341 = vunpack.c.0.s8 %v1340
      %v1342 = vlaneseq
      %v1343 = vshrl.u32 %v1342, 7
      %v1344 = vsub.s32 %v1341, %v1343
      %v1345 = vrot.slane %v1326, %v1344
      %v1347 = vunpack.c.l.s4 1983009808
      %v1348 = vunpack.c.0.s8 %v1347
      %v1349 = vlaneseq
      %v1350 = vshrl.u32 %v1349, 7
      %v1351 = vsub.s32 %v1348, %v1350
      %v1352 = vrot.slane %v1338, %v1351
      %v1353 = vcombine.high %v1327, %v1327
      %v1355 = vunpack.c.l.s4 1983009808
      %v1356 = vunpack.c.0.s8 %v1355
      %v1357 = vlaneseq
      %v1358 = vshrl.u32 %v1357, 7
      %v1359 = vsub.s32 %v1356, %v1358
      %v1360 = vrot.slane %v1327, %v1359
      %v1362 = vunpack.c.l.s4 1983009808
      %v1363 = vunpack.c.0.s8 %v1362
      %v1364 = vlaneseq
      %v1365 = vshrl.u32 %v1364, 7
      %v1366 = vsub.s32 %v1363, %v1365
      %v1367 = vrot.slane %v1353, %v1366
      %v1368 = vcombine.high %v1328, %v1328
      %v1370 = vunpack.c.l.s4 1983009808
      %v1371 = vunpack.c.0.s8 %v1370
      %v1372 = vlaneseq
      %v1373 = vshrl.u32 %v1372, 7
      %v1374 = vsub.s32 %v1371, %v1373
      %v1375 = vrot.slane %v1328, %v1374
      %v1377 = vunpack.c.l.s4 1983009808
      %v1378 = vunpack.c.0.s8 %v1377
      %v1379 = vlaneseq
      %v1380 = vshrl.u32 %v1379, 7
      %v1381 = vsub.s32 %v1378, %v1380
      %v1382 = vrot.slane %v1368, %v1381
      %v1383 = vcombine.high %v1329, %v1329
      %v1385 = vunpack.c.l.s4 1983009808
      %v1386 = vunpack.c.0.s8 %v1385
      %v1387 = vlaneseq
      %v1388 = vshrl.u32 %v1387, 7
      %v1389 = vsub.s32 %v1386, %v1388
      %v1390 = vrot.slane %v1329, %v1389
      %v1392 = vunpack.c.l.s4 1983009808
      %v1393 = vunpack.c.0.s8 %v1392
      %v1394 = vlaneseq
      %v1395 = vshrl.u32 %v1394, 7
      %v1396 = vsub.s32 %v1393, %v1395
      %v1397 = vrot.slane %v1383, %v1396
      %v1398 = vcombine.high %v1330, %v1330
      %v1400 = vunpack.c.l.s4 1983009808
      %v1401 = vunpack.c.0.s8 %v1400
      %v1402 = vlaneseq
      %v1403 = vshrl.u32 %v1402, 7
      %v1404 = vsub.s32 %v1401, %v1403
      %v1405 = vrot.slane %v1330, %v1404
      %v1407 = vunpack.c.l.s4 1983009808
      %v1408 = vunpack.c.0.s8 %v1407
      %v1409 = vlaneseq
      %v1410 = vshrl.u32 %v1409, 7
      %v1411 = vsub.s32 %v1408, %v1410
      %v1412 = vrot.slane %v1398, %v1411
      %v1414 = vunpack.c.l.s4 1983009808
      %v1415 = vunpack.c.0.s8 %v1414
      %v1416 = vlaneseq
      %v1417 = vshrl.u32 %v1416, 7
      %v1418 = vsub.s32 %v1415, %v1417
      %v1419 = vrot.slane %v1331, %v1418
      %1420 = vrot.lane.b32.xlu0 %v1345, 71
      %v1421 = vpop.permute.xlu0 %1420
      %1422 = vrot.lane.b32.xlu0 %v1352, 71
      %v1423 = vpop.permute.xlu0 %1422
      %1424 = vrot.lane.b32.xlu0 %v1360, 71
      %v1425 = vpop.permute.xlu0 %1424
      %1426 = vrot.lane.b32.xlu0 %v1367, 71
      %v1427 = vpop.permute.xlu0 %1426
      %1428 = vrot.lane.b32.xlu0 %v1375, 71
      %v1429 = vpop.permute.xlu0 %1428
      %1430 = vrot.lane.b32.xlu0 %v1382, 71
      %v1431 = vpop.permute.xlu0 %1430
      %1432 = vrot.lane.b32.xlu0 %v1390, 71
      %v1433 = vpop.permute.xlu0 %1432
      %1434 = vrot.lane.b32.xlu0 %v1397, 71
      %v1435 = vpop.permute.xlu0 %1434
      %1436 = vrot.lane.b32.xlu0 %v1405, 71
      %v1437 = vpop.permute.xlu0 %1436
      %1438 = vrot.lane.b32.xlu0 %v1412, 71
      %v1439 = vpop.permute.xlu0 %1438
      %1440 = vrot.lane.b32.xlu0 %v1419, 71
      %v1441 = vpop.permute.xlu0 %1440
      %v1442 = vrot.slane %v1421, 4
      %v1443 = vrot.slane %v1423, 4
      %v1444 = vrot.slane %v1425, 4
      %v1445 = vrot.slane %v1427, 4
      %v1446 = vrot.slane %v1429, 4
      %v1447 = vrot.slane %v1431, 4
      %v1448 = vrot.slane %v1433, 4
      %v1449 = vrot.slane %v1435, 4
      %v1450 = vrot.slane %v1437, 4
      %v1451 = vrot.slane %v1439, 4
      %v1452 = vrot.slane %v1441, 4
      %v1453 = vsel %vm533, %v1442, %v1443
      %vm1454 = vcmask 580608
      %v1455 = vsel %vm1454, %v1421, %v1453
      %v1456 = vsel %vm533, %v1443, %v1444
      %v1457 = vsel %vm1454, %v1423, %v1456
      %v1458 = vsel %vm533, %v1444, %v1445
      %v1459 = vsel %vm1454, %v1425, %v1458
      %v1460 = vsel %vm533, %v1445, %v1446
      %v1461 = vsel %vm1454, %v1427, %v1460
      %v1462 = vsel %vm533, %v1446, %v1447
      %v1463 = vsel %vm1454, %v1429, %v1462
      %v1464 = vsel %vm533, %v1447, %v1448
      %v1465 = vsel %vm1454, %v1431, %v1464
      %v1466 = vsel %vm533, %v1448, %v1449
      %v1467 = vsel %vm1454, %v1433, %v1466
      %v1468 = vsel %vm533, %v1449, %v1450
      %v1469 = vsel %vm1454, %v1435, %v1468
      %v1470 = vsel %vm533, %v1450, %v1451
      %v1471 = vsel %vm1454, %v1437, %v1470
      %v1472 = vsel %vm533, %v1451, %v1452
      %v1473 = vsel %vm1454, %v1439, %v1472
      %v1474 = vsel %vm1454, %v1441, %v1452
      %1486 = vst [vmem:[#allocation2 + $0x150] sm:$0x33] %v1455
      %1487 = vst [vmem:[#allocation2 + $0x158] sm:$0x33] %v1457
      %1488 = vst [vmem:[#allocation2 + $0x160] sm:$0x33] %v1459
      %1489 = vst [vmem:[#allocation2 + $0x168] sm:$0x33] %v1461
      %1490 = vst [vmem:[#allocation2 + $0x170] sm:$0x33] %v1463
      %1491 = vst [vmem:[#allocation2 + $0x178] sm:$0x33] %v1465
      %1492 = vst [vmem:[#allocation2 + $0x180] sm:$0x33] %v1467
      %1493 = vst [vmem:[#allocation2 + $0x188] sm:$0x33] %v1469
      %1494 = vst [vmem:[#allocation2 + $0x190] sm:$0x33] %v1471
      %1495 = vst [vmem:[#allocation2 + $0x198] sm:$0x33] %v1473
      %1496 = vst [vmem:[#allocation2 + $0x1a0] sm:$0x3] %v1474
      %v1497 = vld [vmem:[%s1] sm:$0xf]
      %v1498 = vld [vmem:[%s1 + $0x4] sm:$0xf]
      %v1499 = vld [vmem:[%s1 + $0x8] sm:$0xf]
      %v1500 = vld [vmem:[%s1 + $0xc] sm:$0xf]
      %v1501 = vld [vmem:[#allocation2] sm:$0xff]
      %v1502 = vld [vmem:[#allocation2 + $0x8] sm:$0xff]
      %v1503 = vld [vmem:[#allocation2 + $0x10] sm:$0xff]
      %v1504 = vld [vmem:[#allocation2 + $0x18] sm:$0xff]
      %v1505 = vld [vmem:[#allocation2 + $0x20] sm:$0xff]
      %v1506 = vld [vmem:[#allocation2 + $0x28] sm:$0xff]
      %v1507 = vld [vmem:[#allocation2 + $0x30] sm:$0xff]
      %v1508 = vld [vmem:[#allocation2 + $0x38] sm:$0xff]
      %v1509 = vld [vmem:[#allocation2 + $0x40] sm:$0xff]
      %v1510 = vld [vmem:[#allocation2 + $0x48] sm:$0xff]
      %v1511 = vld [vmem:[#allocation2 + $0x50] sm:$0xf]
      %v1512 = vld [vmem:[#allocation2 + $0x54] sm:$0xff]
      %v1513 = vld [vmem:[#allocation2 + $0x5c] sm:$0xff]
      %v1514 = vld [vmem:[#allocation2 + $0x64] sm:$0xff]
      %v1515 = vld [vmem:[#allocation2 + $0x6c] sm:$0xff]
      %v1516 = vld [vmem:[#allocation2 + $0x74] sm:$0xff]
      %v1517 = vld [vmem:[#allocation2 + $0x7c] sm:$0xff]
      %v1518 = vld [vmem:[#allocation2 + $0x84] sm:$0xff]
      %v1519 = vld [vmem:[#allocation2 + $0x8c] sm:$0xff]
      %v1520 = vld [vmem:[#allocation2 + $0x94] sm:$0xff]
      %v1521 = vld [vmem:[#allocation2 + $0x9c] sm:$0xff]
      %v1522 = vld [vmem:[#allocation2 + $0xa4] sm:$0xf]
      %v1523 = vld [vmem:[#allocation2 + $0xa8] sm:$0xff]
      %v1524 = vld [vmem:[#allocation2 + $0xb0] sm:$0xff]
      %v1525 = vld [vmem:[#allocation2 + $0xb8] sm:$0xff]
      %v1526 = vld [vmem:[#allocation2 + $0xc0] sm:$0xff]
      %v1527 = vld [vmem:[#allocation2 + $0xc8] sm:$0xff]
      %v1528 = vld [vmem:[#allocation2 + $0xd0] sm:$0xff]
      %v1529 = vld [vmem:[#allocation2 + $0xd8] sm:$0xff]
      %v1530 = vld [vmem:[#allocation2 + $0xe0] sm:$0xff]
      %v1531 = vld [vmem:[#allocation2 + $0xe8] sm:$0xff]
      %v1532 = vld [vmem:[#allocation2 + $0xf0] sm:$0xff]
      %v1533 = vld [vmem:[#allocation2 + $0xf8] sm:$0xf]
      %v1534 = vld [vmem:[#allocation2 + $0xfc] sm:$0xff]
      %v1535 = vld [vmem:[#allocation2 + $0x104] sm:$0xff]
      %v1536 = vld [vmem:[#allocation2 + $0x10c] sm:$0xff]
      %v1537 = vld [vmem:[#allocation2 + $0x114] sm:$0xff]
      %v1538 = vld [vmem:[#allocation2 + $0x11c] sm:$0xff]
      %v1539 = vld [vmem:[#allocation2 + $0x124] sm:$0xff]
      %v1540 = vld [vmem:[#allocation2 + $0x12c] sm:$0xff]
      %v1541 = vld [vmem:[#allocation2 + $0x134] sm:$0xff]
      %v1542 = vld [vmem:[#allocation2 + $0x13c] sm:$0xff]
      %v1543 = vld [vmem:[#allocation2 + $0x144] sm:$0xff]
      %v1544 = vld [vmem:[#allocation2 + $0x14c] sm:$0xf]
      %v1545 = vld [vmem:[#allocation2 + $0x150] sm:$0x33]
      %v1546 = vld [vmem:[#allocation2 + $0x158] sm:$0x33]
      %v1547 = vld [vmem:[#allocation2 + $0x160] sm:$0x33]
      %v1548 = vld [vmem:[#allocation2 + $0x168] sm:$0x33]
      %v1549 = vld [vmem:[#allocation2 + $0x170] sm:$0x33]
      %v1550 = vld [vmem:[#allocation2 + $0x178] sm:$0x33]
      %v1551 = vld [vmem:[#allocation2 + $0x180] sm:$0x33]
      %v1552 = vld [vmem:[#allocation2 + $0x188] sm:$0x33]
      %v1553 = vld [vmem:[#allocation2 + $0x190] sm:$0x33]
      %v1554 = vld [vmem:[#allocation2 + $0x198] sm:$0x33]
      %v1555 = vld [vmem:[#allocation2 + $0x1a0] sm:$0x3]
      %v1556 = vld [vmem:[%s2] sm:$0xff]
      %v1557 = vld [vmem:[%s2 + $0x8] sm:$0xff]
      %v1558 = vld [vmem:[%s2 + $0x10] sm:$0xff]
      %v1559 = vld [vmem:[%s2 + $0x18] sm:$0xff]
      %1561 = vset.pattern.permute.xlu0 0
      %1562 = vperm.xlu0 %1561, %v1556
      %v1563 = vpop.permute.xlu0 %1562
      %1566 = vset.pattern.permute.xlu0 0
      %1567 = vperm.xlu0 %1566, %v1557
      %v1568 = vpop.permute.xlu0 %1567
      %1571 = vset.pattern.permute.xlu0 0
      %1572 = vperm.xlu0 %1571, %v1558
      %v1573 = vpop.permute.xlu0 %1572
      %1576 = vset.pattern.permute.xlu0 0
      %1577 = vperm.xlu0 %1576, %v1559
      %v1578 = vpop.permute.xlu0 %1577
      %v1584 = vunpack.c.l.b16 %v1497
      %v1585 = vunpack.c.l.b16 %v1498
      %v1586 = vunpack.c.l.b16 %v1499
      %v1587 = vunpack.c.l.b16 %v1500
      %v1588 = vpack.c.b16 %v1585, %v1584
      %v1589 = vpack.c.b16 %v1587, %v1586
      %v1645 = vunpack.c.l.b16 %v1501
      %v1646 = vunpack.c.h.b16 %v1501
      %v1647 = vunpack.c.l.b16 %v1502
      %v1648 = vunpack.c.h.b16 %v1502
      %v1649 = vunpack.c.l.b16 %v1503
      %v1650 = vunpack.c.h.b16 %v1503
      %v1651 = vunpack.c.l.b16 %v1504
      %v1652 = vunpack.c.h.b16 %v1504
      %v1653 = vunpack.c.l.b16 %v1505
      %v1654 = vunpack.c.h.b16 %v1505
      %v1655 = vunpack.c.l.b16 %v1506
      %v1656 = vunpack.c.h.b16 %v1506
      %v1657 = vunpack.c.l.b16 %v1507
      %v1658 = vunpack.c.h.b16 %v1507
      %v1659 = vunpack.c.l.b16 %v1508
      %v1660 = vunpack.c.h.b16 %v1508
      %v1661 = vunpack.c.l.b16 %v1509
      %v1662 = vunpack.c.h.b16 %v1509
      %v1663 = vunpack.c.l.b16 %v1510
      %v1664 = vunpack.c.h.b16 %v1510
      %v1665 = vunpack.c.l.b16 %v1511
      %v1666 = vunpack.c.l.b16 %v1512
      %v1667 = vunpack.c.h.b16 %v1512
      %v1668 = vunpack.c.l.b16 %v1513
      %v1669 = vunpack.c.h.b16 %v1513
      %v1670 = vunpack.c.l.b16 %v1514
      %v1671 = vunpack.c.h.b16 %v1514
      %v1672 = vunpack.c.l.b16 %v1515
      %v1673 = vunpack.c.h.b16 %v1515
      %v1674 = vunpack.c.l.b16 %v1516
      %v1675 = vunpack.c.h.b16 %v1516
      %v1676 = vunpack.c.l.b16 %v1517
      %v1677 = vunpack.c.h.b16 %v1517
      %v1678 = vunpack.c.l.b16 %v1518
      %v1679 = vunpack.c.h.b16 %v1518
      %v1680 = vunpack.c.l.b16 %v1519
      %v1681 = vunpack.c.h.b16 %v1519
      %v1682 = vunpack.c.l.b16 %v1520
      %v1683 = vunpack.c.h.b16 %v1520
      %v1684 = vunpack.c.l.b16 %v1521
      %v1685 = vunpack.c.h.b16 %v1521
      %v1686 = vunpack.c.l.b16 %v1522
      %v1687 = vunpack.c.l.b16 %v1523
      %v1688 = vunpack.c.h.b16 %v1523
      %v1689 = vunpack.c.l.b16 %v1524
      %v1690 = vunpack.c.h.b16 %v1524
      %v1691 = vunpack.c.l.b16 %v1525
      %v1692 = vunpack.c.h.b16 %v1525
      %v1693 = vunpack.c.l.b16 %v1526
      %v1694 = vunpack.c.h.b16 %v1526
      %v1695 = vunpack.c.l.b16 %v1527
      %v1696 = vunpack.c.h.b16 %v1527
      %v1697 = vunpack.c.l.b16 %v1528
      %v1698 = vunpack.c.h.b16 %v1528
      %v1699 = vunpack.c.l.b16 %v1529
      %v1700 = vunpack.c.h.b16 %v1529
      %v1701 = vunpack.c.l.b16 %v1530
      %v1702 = vunpack.c.h.b16 %v1530
      %v1703 = vunpack.c.l.b16 %v1531
      %v1704 = vunpack.c.h.b16 %v1531
      %v1705 = vunpack.c.l.b16 %v1532
      %v1706 = vunpack.c.h.b16 %v1532
      %v1707 = vunpack.c.l.b16 %v1533
      %v1708 = vunpack.c.l.b16 %v1534
      %v1709 = vunpack.c.h.b16 %v1534
      %v1710 = vunpack.c.l.b16 %v1535
      %v1711 = vunpack.c.h.b16 %v1535
      %v1712 = vunpack.c.l.b16 %v1536
      %v1713 = vunpack.c.h.b16 %v1536
      %v1714 = vunpack.c.l.b16 %v1537
      %v1715 = vunpack.c.h.b16 %v1537
      %v1716 = vunpack.c.l.b16 %v1538
      %v1717 = vunpack.c.h.b16 %v1538
      %v1718 = vunpack.c.l.b16 %v1539
      %v1719 = vunpack.c.h.b16 %v1539
      %v1720 = vunpack.c.l.b16 %v1540
      %v1721 = vunpack.c.h.b16 %v1540
      %v1722 = vunpack.c.l.b16 %v1541
      %v1723 = vunpack.c.h.b16 %v1541
      %v1724 = vunpack.c.l.b16 %v1542
      %v1725 = vunpack.c.h.b16 %v1542
      %v1726 = vunpack.c.l.b16 %v1543
      %v1727 = vunpack.c.h.b16 %v1543
      %v1728 = vunpack.c.l.b16 %v1544
      %v1729 = vunpack.c.l.b16 %v1545
      %v1730 = vunpack.c.h.b16 %v1545
      %v1731 = vunpack.c.l.b16 %v1546
      %v1732 = vunpack.c.h.b16 %v1546
      %v1733 = vunpack.c.l.b16 %v1547
      %v1734 = vunpack.c.h.b16 %v1547
      %v1735 = vunpack.c.l.b16 %v1548
      %v1736 = vunpack.c.h.b16 %v1548
      %v1737 = vunpack.c.l.b16 %v1549
      %v1738 = vunpack.c.h.b16 %v1549
      %v1739 = vunpack.c.l.b16 %v1550
      %v1740 = vunpack.c.h.b16 %v1550
      %v1741 = vunpack.c.l.b16 %v1551
      %v1742 = vunpack.c.h.b16 %v1551
      %v1743 = vunpack.c.l.b16 %v1552
      %v1744 = vunpack.c.h.b16 %v1552
      %v1745 = vunpack.c.l.b16 %v1553
      %v1746 = vunpack.c.h.b16 %v1553
      %v1747 = vunpack.c.l.b16 %v1554
      %v1748 = vunpack.c.h.b16 %v1554
      %v1749 = vunpack.c.l.b16 %v1555
      %v1750 = vpack.c.b16 %v1666, %v1645
      %v1751 = vpack.c.b16 %v1667, %v1646
      %v1752 = vpack.c.b16 %v1668, %v1647
      %v1753 = vpack.c.b16 %v1669, %v1648
      %v1754 = vpack.c.b16 %v1670, %v1649
      %v1755 = vpack.c.b16 %v1671, %v1650
      %v1756 = vpack.c.b16 %v1672, %v1651
      %v1757 = vpack.c.b16 %v1673, %v1652
      %v1758 = vpack.c.b16 %v1674, %v1653
      %v1759 = vpack.c.b16 %v1675, %v1654
      %v1760 = vpack.c.b16 %v1676, %v1655
      %v1761 = vpack.c.b16 %v1677, %v1656
      %v1762 = vpack.c.b16 %v1678, %v1657
      %v1763 = vpack.c.b16 %v1679, %v1658
      %v1764 = vpack.c.b16 %v1680, %v1659
      %v1765 = vpack.c.b16 %v1681, %v1660
      %v1766 = vpack.c.b16 %v1682, %v1661
      %v1767 = vpack.c.b16 %v1683, %v1662
      %v1768 = vpack.c.b16 %v1684, %v1663
      %v1769 = vpack.c.b16 %v1685, %v1664
      %v1770 = vpack.c.b16 %v1686, %v1665
      %v1771 = vpack.c.b16 %v1708, %v1687
      %v1772 = vpack.c.b16 %v1709, %v1688
      %v1773 = vpack.c.b16 %v1710, %v1689
      %v1774 = vpack.c.b16 %v1711, %v1690
      %v1775 = vpack.c.b16 %v1712, %v1691
      %v1776 = vpack.c.b16 %v1713, %v1692
      %v1777 = vpack.c.b16 %v1714, %v1693
      %v1778 = vpack.c.b16 %v1715, %v1694
      %v1779 = vpack.c.b16 %v1716, %v1695
      %v1780 = vpack.c.b16 %v1717, %v1696
      %v1781 = vpack.c.b16 %v1718, %v1697
      %v1782 = vpack.c.b16 %v1719, %v1698
      %v1783 = vpack.c.b16 %v1720, %v1699
      %v1784 = vpack.c.b16 %v1721, %v1700
      %v1785 = vpack.c.b16 %v1722, %v1701
      %v1786 = vpack.c.b16 %v1723, %v1702
      %v1787 = vpack.c.b16 %v1724, %v1703
      %v1788 = vpack.c.b16 %v1725, %v1704
      %v1789 = vpack.c.b16 %v1726, %v1705
      %v1790 = vpack.c.b16 %v1727, %v1706
      %v1791 = vpack.c.b16 %v1728, %v1707
      %v1792 = vpack.c.b16 %v1729, %v1729
      %v1793 = vpack.c.b16 %v1730, %v1730
      %v1794 = vpack.c.b16 %v1731, %v1731
      %v1795 = vpack.c.b16 %v1732, %v1732
      %v1796 = vpack.c.b16 %v1733, %v1733
      %v1797 = vpack.c.b16 %v1734, %v1734
      %v1798 = vpack.c.b16 %v1735, %v1735
      %v1799 = vpack.c.b16 %v1736, %v1736
      %v1800 = vpack.c.b16 %v1737, %v1737
      %v1801 = vpack.c.b16 %v1738, %v1738
      %v1802 = vpack.c.b16 %v1739, %v1739
      %v1803 = vpack.c.b16 %v1740, %v1740
      %v1804 = vpack.c.b16 %v1741, %v1741
      %v1805 = vpack.c.b16 %v1742, %v1742
      %v1806 = vpack.c.b16 %v1743, %v1743
      %v1807 = vpack.c.b16 %v1744, %v1744
      %v1808 = vpack.c.b16 %v1745, %v1745
      %v1809 = vpack.c.b16 %v1746, %v1746
      %v1810 = vpack.c.b16 %v1747, %v1747
      %v1811 = vpack.c.b16 %v1748, %v1748
      %v1812 = vpack.c.b16 %v1749, %v1749
      %vm1855 = vcmask 293888
      %v1857 = vsel %vm1855, %v1588, 0
      %v1860 = vsel %vm1855, %v1589, 0
      %vm1862 = vcmask 1041408
      %v1864 = vsel %vm1862, %v1792, 0
      %v1867 = vsel %vm1862, %v1793, 0
      %v1870 = vsel %vm1862, %v1794, 0
      %v1873 = vsel %vm1862, %v1795, 0
      %v1876 = vsel %vm1862, %v1796, 0
      %v1879 = vsel %vm1862, %v1797, 0
      %v1882 = vsel %vm1862, %v1798, 0
      %v1885 = vsel %vm1862, %v1799, 0
      %v1888 = vsel %vm1862, %v1800, 0
      %v1891 = vsel %vm1862, %v1801, 0
      %v1894 = vsel %vm1862, %v1802, 0
      %v1897 = vsel %vm1862, %v1803, 0
      %v1900 = vsel %vm1862, %v1804, 0
      %v1903 = vsel %vm1862, %v1805, 0
      %v1906 = vsel %vm1862, %v1806, 0
      %v1909 = vsel %vm1862, %v1807, 0
      %v1912 = vsel %vm1862, %v1808, 0
      %v1915 = vsel %vm1862, %v1809, 0
      %v1918 = vsel %vm1862, %v1810, 0
      %v1921 = vsel %vm1862, %v1811, 0
      %v1924 = vsel %vm1862, %v1812, 0
      %1926 = vmatprep.subr.bf16.mxu0 %v1751
      %1927 = vmatpush1.bf16.msra.mxu0 %v1750
      %1928 = vmatprep.subr.bf16.mxu0 %v1772
      %1929 = vmatpush1.bf16.msra.mxu0 %v1771
      %1930 = vmatprep.subr.bf16.mxu0 %v1867
      %1931 = vmatpush1.bf16.msra.mxu0 %v1864
      %1932 = vmatprep.subr.bf16.mxu0 0
      %1933 = vmatpush1.bf16.msra.mxu0 0
      %1934 = vmatprep.subr.bf16.mxu0 0
      %1935 = vmatpush1.bf16.msra.mxu0 0
      %1936 = vmatprep.subr.bf16.mxu0 0
      %1937 = vmatpush1.bf16.msra.mxu0 0
      %1938 = vmatprep.subr.bf16.mxu0 0
      %1939 = vmatpush1.bf16.msra.mxu0 0
      %1940 = vmatprep.subr.bf16.mxu0 0
      %1941 = vmatpush1.bf16.msra.mxu0 0
      %1942 = vmatprep.subr.bf16.mxu0 0
      %1943 = vmatpush1.bf16.msra.mxu0 0
      %1944 = vmatprep.subr.bf16.mxu0 0
      %1945 = vmatpush1.bf16.msra.mxu0 0
      %1946 = vmatprep.subr.bf16.mxu0 0
      %1947 = vmatpush1.bf16.msra.mxu0 0
      %1948 = vmatprep.subr.bf16.mxu0 0
      %1949 = vmatpush1.bf16.msra.mxu0 0
      %1950 = vmatprep.subr.bf16.mxu0 0
      %1951 = vmatpush1.bf16.msra.mxu0 0
      %1952 = vmatprep.subr.bf16.mxu0 0
      %1953 = vmatpush1.bf16.msra.mxu0 0
      %1954 = vmatprep.subr.bf16.mxu0 0
      %1955 = vmatpush1.bf16.msra.mxu0 0
      %1956 = vmatprep.subr.bf16.mxu0 0
      %1957 = vmatpush1.bf16.msra.mxu0 0
      %1958 = vmatprep.mubr.bf16.mxu0 0
      %1959 = vmatmul.mubr.bf16.gmra.mrb[0].mxu0 %v1857
      %v1960 = vpop.f32.mrb[0].mxu0
      %v1961 = vadd.f32 %v1563, %v1960
      %v1962 = vpop.f32.mrb[0].mxu0
      %v1963 = vadd.f32 %v1563, %v1962
      %v1964 = vpop.f32.mrb[0].mxu0
      %v1965 = vadd.f32 %v1568, %v1964
      %v1966 = vpop.f32.mrb[0].mxu0
      %v1967 = vadd.f32 %v1568, %v1966
      %1968 = vmatprep.mubr.bf16.mxu0 0
      %1969 = vmatmul.mubr.bf16.gmra.mrb[0].mxu0 %v1860
      %v1970 = vpop.f32.mrb[0].mxu0
      %v1971 = vadd.f32 %v1573, %v1970
      %v1972 = vpop.f32.mrb[0].mxu0
      %v1973 = vadd.f32 %v1573, %v1972
      %v1974 = vpop.f32.mrb[0].mxu0
      %v1975 = vadd.f32 %v1578, %v1974
      %v1976 = vpop.f32.mrb[0].mxu0
      %v1977 = vadd.f32 %v1578, %v1976
      %1978 = vdwg.mxu0
      %1979 = vmatprep.subr.bf16.mxu0 %v1753
      %1980 = vmatpush1.bf16.msra.mxu0 %v1752
      %1981 = vmatprep.subr.bf16.mxu0 %v1774
      %1982 = vmatpush1.bf16.msra.mxu0 %v1773
      %1983 = vmatprep.subr.bf16.mxu0 %v1873
      %1984 = vmatpush1.bf16.msra.mxu0 %v1870
      %1985 = vmatprep.subr.bf16.mxu0 0
      %1986 = vmatpush1.bf16.msra.mxu0 0
      %1987 = vmatprep.subr.bf16.mxu0 0
      %1988 = vmatpush1.bf16.msra.mxu0 0
      %1989 = vmatprep.subr.bf16.mxu0 0
      %1990 = vmatpush1.bf16.msra.mxu0 0
      %1991 = vmatprep.subr.bf16.mxu0 0
      %1992 = vmatpush1.bf16.msra.mxu0 0
      %1993 = vmatprep.subr.bf16.mxu0 0
      %1994 = vmatpush1.bf16.msra.mxu0 0
      %1995 = vmatprep.subr.bf16.mxu0 0
      %1996 = vmatpush1.bf16.msra.mxu0 0
      %1997 = vmatprep.subr.bf16.mxu0 0
      %1998 = vmatpush1.bf16.msra.mxu0 0
      %1999 = vmatprep.subr.bf16.mxu0 0
      %2000 = vmatpush1.bf16.msra.mxu0 0
      %2001 = vmatprep.subr.bf16.mxu0 0
      %2002 = vmatpush1.bf16.msra.mxu0 0
      %2003 = vmatprep.subr.bf16.mxu0 0
      %2004 = vmatpush1.bf16.msra.mxu0 0
      %2005 = vmatprep.subr.bf16.mxu0 0
      %2006 = vmatpush1.bf16.msra.mxu0 0
      %2007 = vmatprep.subr.bf16.mxu0 0
      %2008 = vmatpush1.bf16.msra.mxu0 0
      %2009 = vmatprep.subr.bf16.mxu0 0
      %2010 = vmatpush1.bf16.msra.mxu0 0
      %2011 = vmatprep.mubr.bf16.mxu0 0
      %2012 = vmatmul.mubr.bf16.gmra.mrb[0].mxu0 %v1857
      %v2013 = vpop.f32.mrb[0].mxu0
      %v2014 = vadd.f32 %v1563, %v2013
      %v2015 = vpop.f32.mrb[0].mxu0
      %v2016 = vadd.f32 %v1563, %v2015
      %v2017 = vpop.f32.mrb[0].mxu0
      %v2018 = vadd.f32 %v1568, %v2017
      %v2019 = vpop.f32.mrb[0].mxu0
      %v2020 = vadd.f32 %v1568, %v2019
      %2021 = vmatprep.mubr.bf16.mxu0 0
      %2022 = vmatmul.mubr.bf16.gmra.mrb[0].mxu0 %v1860
      %v2023 = vpop.f32.mrb[0].mxu0
      %v2024 = vadd.f32 %v1573, %v2023
      %v2025 = vpop.f32.mrb[0].mxu0
      %v2026 = vadd.f32 %v1573, %v2025
      %v2027 = vpop.f32.mrb[0].mxu0
      %v2028 = vadd.f32 %v1578, %v2027
      %v2029 = vpop.f32.mrb[0].mxu0
      %v2030 = vadd.f32 %v1578, %v2029
      %2031 = vdwg.mxu0
      %2032 = vmatprep.subr.bf16.mxu0 %v1755
      %2033 = vmatpush1.bf16.msra.mxu0 %v1754
      %2034 = vmatprep.subr.bf16.mxu0 %v1776
      %2035 = vmatpush1.bf16.msra.mxu0 %v1775
      %2036 = vmatprep.subr.bf16.mxu0 %v1879
      %2037 = vmatpush1.bf16.msra.mxu0 %v1876
      %2038 = vmatprep.subr.bf16.mxu0 0
      %2039 = vmatpush1.bf16.msra.mxu0 0
      %2040 = vmatprep.subr.bf16.mxu0 0
      %2041 = vmatpush1.bf16.msra.mxu0 0
      %2042 = vmatprep.subr.bf16.mxu0 0
      %2043 = vmatpush1.bf16.msra.mxu0 0
      %2044 = vmatprep.subr.bf16.mxu0 0
      %2045 = vmatpush1.bf16.msra.mxu0 0
      %2046 = vmatprep.subr.bf16.mxu0 0
      %2047 = vmatpush1.bf16.msra.mxu0 0
      %2048 = vmatprep.subr.bf16.mxu0 0
      %2049 = vmatpush1.bf16.msra.mxu0 0
      %2050 = vmatprep.subr.bf16.mxu0 0
      %2051 = vmatpush1.bf16.msra.mxu0 0
      %2052 = vmatprep.subr.bf16.mxu0 0
      %2053 = vmatpush1.bf16.msra.mxu0 0
      %2054 = vmatprep.subr.bf16.mxu0 0
      %2055 = vmatpush1.bf16.msra.mxu0 0
      %2056 = vmatprep.subr.bf16.mxu0 0
      %2057 = vmatpush1.bf16.msra.mxu0 0
      %2058 = vmatprep.subr.bf16.mxu0 0
      %2059 = vmatpush1.bf16.msra.mxu0 0
      %2060 = vmatprep.subr.bf16.mxu0 0
      %2061 = vmatpush1.bf16.msra.mxu0 0
      %2062 = vmatprep.subr.bf16.mxu0 0
      %2063 = vmatpush1.bf16.msra.mxu0 0
      %2064 = vmatprep.mubr.bf16.mxu0 0
      %2065 = vmatmul.mubr.bf16.gmra.mrb[0].mxu0 %v1857
      %v2066 = vpop.f32.mrb[0].mxu0
      %v2067 = vadd.f32 %v1563, %v2066
      %v2068 = vpop.f32.mrb[0].mxu0
      %v2069 = vadd.f32 %v1563, %v2068
      %v2070 = vpop.f32.mrb[0].mxu0
      %v2071 = vadd.f32 %v1568, %v2070
      %v2072 = vpop.f32.mrb[0].mxu0
      %v2073 = vadd.f32 %v1568, %v2072
      %2074 = vmatprep.mubr.bf16.mxu0 0
      %2075 = vmatmul.mubr.bf16.gmra.mrb[0].mxu0 %v1860
      %v2076 = vpop.f32.mrb[0].mxu0
      %v2077 = vadd.f32 %v1573, %v2076
      %v2078 = vpop.f32.mrb[0].mxu0
      %v2079 = vadd.f32 %v1573, %v2078
      %v2080 = vpop.f32.mrb[0].mxu0
      %v2081 = vadd.f32 %v1578, %v2080
      %v2082 = vpop.f32.mrb[0].mxu0
      %v2083 = vadd.f32 %v1578, %v2082
      %2084 = vdwg.mxu0
      %2085 = vmatprep.subr.bf16.mxu0 %v1757
      %2086 = vmatpush1.bf16.msra.mxu0 %v1756
      %2087 = vmatprep.subr.bf16.mxu0 %v1778
      %2088 = vmatpush1.bf16.msra.mxu0 %v1777
      %2089 = vmatprep.subr.bf16.mxu0 %v1885
      %2090 = vmatpush1.bf16.msra.mxu0 %v1882
      %2091 = vmatprep.subr.bf16.mxu0 0
      %2092 = vmatpush1.bf16.msra.mxu0 0
      %2093 = vmatprep.subr.bf16.mxu0 0
      %2094 = vmatpush1.bf16.msra.mxu0 0
      %2095 = vmatprep.subr.bf16.mxu0 0
      %2096 = vmatpush1.bf16.msra.mxu0 0
      %2097 = vmatprep.subr.bf16.mxu0 0
      %2098 = vmatpush1.bf16.msra.mxu0 0
      %2099 = vmatprep.subr.bf16.mxu0 0
      %2100 = vmatpush1.bf16.msra.mxu0 0
      %2101 = vmatprep.subr.bf16.mxu0 0
      %2102 = vmatpush1.bf16.msra.mxu0 0
      %2103 = vmatprep.subr.bf16.mxu0 0
      %2104 = vmatpush1.bf16.msra.mxu0 0
      %2105 = vmatprep.subr.bf16.mxu0 0
      %2106 = vmatpush1.bf16.msra.mxu0 0
      %2107 = vmatprep.subr.bf16.mxu0 0
      %2108 = vmatpush1.bf16.msra.mxu0 0
      %2109 = vmatprep.subr.bf16.mxu0 0
      %2110 = vmatpush1.bf16.msra.mxu0 0
      %2111 = vmatprep.subr.bf16.mxu0 0
      %2112 = vmatpush1.bf16.msra.mxu0 0
      %2113 = vmatprep.subr.bf16.mxu0 0
      %2114 = vmatpush1.bf16.msra.mxu0 0
      %2115 = vmatprep.subr.bf16.mxu0 0
      %2116 = vmatpush1.bf16.msra.mxu0 0
      %2117 = vmatprep.mubr.bf16.mxu0 0
      %2118 = vmatmul.mubr.bf16.gmra.mrb[0].mxu0 %v1857
      %v2119 = vpop.f32.mrb[0].mxu0
      %v2120 = vadd.f32 %v1563, %v2119
      %v2121 = vpop.f32.mrb[0].mxu0
      %v2122 = vadd.f32 %v1563, %v2121
      %v2123 = vpop.f32.mrb[0].mxu0
      %v2124 = vadd.f32 %v1568, %v2123
      %v2125 = vpop.f32.mrb[0].mxu0
      %v2126 = vadd.f32 %v1568, %v2125
      %2127 = vmatprep.mubr.bf16.mxu0 0
      %2128 = vmatmul.mubr.bf16.gmra.mrb[0].mxu0 %v1860
      %v2129 = vpop.f32.mrb[0].mxu0
      %v2130 = vadd.f32 %v1573, %v2129
      %v2131 = vpop.f32.mrb[0].mxu0
      %v2132 = vadd.f32 %v1573, %v2131
      %v2133 = vpop.f32.mrb[0].mxu0
      %v2134 = vadd.f32 %v1578, %v2133
      %v2135 = vpop.f32.mrb[0].mxu0
      %v2136 = vadd.f32 %v1578, %v2135
      %2137 = vdwg.mxu0
      %2138 = vmatprep.subr.bf16.mxu0 %v1759
      %2139 = vmatpush1.bf16.msra.mxu0 %v1758
      %2140 = vmatprep.subr.bf16.mxu0 %v1780
      %2141 = vmatpush1.bf16.msra.mxu0 %v1779
      %2142 = vmatprep.subr.bf16.mxu0 %v1891
      %2143 = vmatpush1.bf16.msra.mxu0 %v1888
      %2144 = vmatprep.subr.bf16.mxu0 0
      %2145 = vmatpush1.bf16.msra.mxu0 0
      %2146 = vmatprep.subr.bf16.mxu0 0
      %2147 = vmatpush1.bf16.msra.mxu0 0
      %2148 = vmatprep.subr.bf16.mxu0 0
      %2149 = vmatpush1.bf16.msra.mxu0 0
      %2150 = vmatprep.subr.bf16.mxu0 0
      %2151 = vmatpush1.bf16.msra.mxu0 0
      %2152 = vmatprep.subr.bf16.mxu0 0
      %2153 = vmatpush1.bf16.msra.mxu0 0
      %2154 = vmatprep.subr.bf16.mxu0 0
      %2155 = vmatpush1.bf16.msra.mxu0 0
      %2156 = vmatprep.subr.bf16.mxu0 0
      %2157 = vmatpush1.bf16.msra.mxu0 0
      %2158 = vmatprep.subr.bf16.mxu0 0
      %2159 = vmatpush1.bf16.msra.mxu0 0
      %2160 = vmatprep.subr.bf16.mxu0 0
      %2161 = vmatpush1.bf16.msra.mxu0 0
      %2162 = vmatprep.subr.bf16.mxu0 0
      %2163 = vmatpush1.bf16.msra.mxu0 0
      %2164 = vmatprep.subr.bf16.mxu0 0
      %2165 = vmatpush1.bf16.msra.mxu0 0
      %2166 = vmatprep.subr.bf16.mxu0 0
      %2167 = vmatpush1.bf16.msra.mxu0 0
      %2168 = vmatprep.subr.bf16.mxu0 0
      %2169 = vmatpush1.bf16.msra.mxu0 0
      %2170 = vmatprep.mubr.bf16.mxu0 0
      %2171 = vmatmul.mubr.bf16.gmra.mrb[0].mxu0 %v1857
      %v2172 = vpop.f32.mrb[0].mxu0
      %v2173 = vadd.f32 %v1563, %v2172
      %v2174 = vpop.f32.mrb[0].mxu0
      %v2175 = vadd.f32 %v1563, %v2174
      %v2176 = vpop.f32.mrb[0].mxu0
      %v2177 = vadd.f32 %v1568, %v2176
      %v2178 = vpop.f32.mrb[0].mxu0
      %v2179 = vadd.f32 %v1568, %v2178
      %2180 = vmatprep.mubr.bf16.mxu0 0
      %2181 = vmatmul.mubr.bf16.gmra.mrb[0].mxu0 %v1860
      %v2182 = vpop.f32.mrb[0].mxu0
      %v2183 = vadd.f32 %v1573, %v2182
      %v2184 = vpop.f32.mrb[0].mxu0
      %v2185 = vadd.f32 %v1573, %v2184
      %v2186 = vpop.f32.mrb[0].mxu0
      %v2187 = vadd.f32 %v1578, %v2186
      %v2188 = vpop.f32.mrb[0].mxu0
      %v2189 = vadd.f32 %v1578, %v2188
      %2190 = vdwg.mxu0
      %2191 = vmatprep.subr.bf16.mxu0 %v1761
      %2192 = vmatpush1.bf16.msra.mxu0 %v1760
      %2193 = vmatprep.subr.bf16.mxu0 %v1782
      %2194 = vmatpush1.bf16.msra.mxu0 %v1781
      %2195 = vmatprep.subr.bf16.mxu0 %v1897
      %2196 = vmatpush1.bf16.msra.mxu0 %v1894
      %2197 = vmatprep.subr.bf16.mxu0 0
      %2198 = vmatpush1.bf16.msra.mxu0 0
      %2199 = vmatprep.subr.bf16.mxu0 0
      %2200 = vmatpush1.bf16.msra.mxu0 0
      %2201 = vmatprep.subr.bf16.mxu0 0
      %2202 = vmatpush1.bf16.msra.mxu0 0
      %2203 = vmatprep.subr.bf16.mxu0 0
      %2204 = vmatpush1.bf16.msra.mxu0 0
      %2205 = vmatprep.subr.bf16.mxu0 0
      %2206 = vmatpush1.bf16.msra.mxu0 0
      %2207 = vmatprep.subr.bf16.mxu0 0
      %2208 = vmatpush1.bf16.msra.mxu0 0
      %2209 = vmatprep.subr.bf16.mxu0 0
      %2210 = vmatpush1.bf16.msra.mxu0 0
      %2211 = vmatprep.subr.bf16.mxu0 0
      %2212 = vmatpush1.bf16.msra.mxu0 0
      %2213 = vmatprep.subr.bf16.mxu0 0
      %2214 = vmatpush1.bf16.msra.mxu0 0
      %2215 = vmatprep.subr.bf16.mxu0 0
      %2216 = vmatpush1.bf16.msra.mxu0 0
      %2217 = vmatprep.subr.bf16.mxu0 0
      %2218 = vmatpush1.bf16.msra.mxu0 0
      %2219 = vmatprep.subr.bf16.mxu0 0
      %2220 = vmatpush1.bf16.msra.mxu0 0
      %2221 = vmatprep.subr.bf16.mxu0 0
      %2222 = vmatpush1.bf16.msra.mxu0 0
      %2223 = vmatprep.mubr.bf16.mxu0 0
      %2224 = vmatmul.mubr.bf16.gmra.mrb[0].mxu0 %v1857
      %v2225 = vpop.f32.mrb[0].mxu0
      %v2226 = vadd.f32 %v1563, %v2225
      %v2227 = vpop.f32.mrb[0].mxu0
      %v2228 = vadd.f32 %v1563, %v2227
      %v2229 = vpop.f32.mrb[0].mxu0
      %v2230 = vadd.f32 %v1568, %v2229
      %v2231 = vpop.f32.mrb[0].mxu0
      %v2232 = vadd.f32 %v1568, %v2231
      %2233 = vmatprep.mubr.bf16.mxu0 0
      %2234 = vmatmul.mubr.bf16.gmra.mrb[0].mxu0 %v1860
      %v2235 = vpop.f32.mrb[0].mxu0
      %v2236 = vadd.f32 %v1573, %v2235
      %v2237 = vpop.f32.mrb[0].mxu0
      %v2238 = vadd.f32 %v1573, %v2237
      %v2239 = vpop.f32.mrb[0].mxu0
      %v2240 = vadd.f32 %v1578, %v2239
      %v2241 = vpop.f32.mrb[0].mxu0
      %v2242 = vadd.f32 %v1578, %v2241
      %2243 = vdwg.mxu0
      %2244 = vmatprep.subr.bf16.mxu0 %v1763
      %2245 = vmatpush1.bf16.msra.mxu0 %v1762
      %2246 = vmatprep.subr.bf16.mxu0 %v1784
      %2247 = vmatpush1.bf16.msra.mxu0 %v1783
      %2248 = vmatprep.subr.bf16.mxu0 %v1903
      %2249 = vmatpush1.bf16.msra.mxu0 %v1900
      %2250 = vmatprep.subr.bf16.mxu0 0
      %2251 = vmatpush1.bf16.msra.mxu0 0
      %2252 = vmatprep.subr.bf16.mxu0 0
      %2253 = vmatpush1.bf16.msra.mxu0 0
      %2254 = vmatprep.subr.bf16.mxu0 0
      %2255 = vmatpush1.bf16.msra.mxu0 0
      %2256 = vmatprep.subr.bf16.mxu0 0
      %2257 = vmatpush1.bf16.msra.mxu0 0
      %2258 = vmatprep.subr.bf16.mxu0 0
      %2259 = vmatpush1.bf16.msra.mxu0 0
      %2260 = vmatprep.subr.bf16.mxu0 0
      %2261 = vmatpush1.bf16.msra.mxu0 0
      %2262 = vmatprep.subr.bf16.mxu0 0
      %2263 = vmatpush1.bf16.msra.mxu0 0
      %2264 = vmatprep.subr.bf16.mxu0 0
      %2265 = vmatpush1.bf16.msra.mxu0 0
      %2266 = vmatprep.subr.bf16.mxu0 0
      %2267 = vmatpush1.bf16.msra.mxu0 0
      %2268 = vmatprep.subr.bf16.mxu0 0
      %2269 = vmatpush1.bf16.msra.mxu0 0
      %2270 = vmatprep.subr.bf16.mxu0 0
      %2271 = vmatpush1.bf16.msra.mxu0 0
      %2272 = vmatprep.subr.bf16.mxu0 0
      %2273 = vmatpush1.bf16.msra.mxu0 0
      %2274 = vmatprep.subr.bf16.mxu0 0
      %2275 = vmatpush1.bf16.msra.mxu0 0
      %2276 = vmatprep.mubr.bf16.mxu0 0
      %2277 = vmatmul.mubr.bf16.gmra.mrb[0].mxu0 %v1857
      %v2278 = vpop.f32.mrb[0].mxu0
      %v2279 = vadd.f32 %v1563, %v2278
      %v2280 = vpop.f32.mrb[0].mxu0
      %v2281 = vadd.f32 %v1563, %v2280
      %v2282 = vpop.f32.mrb[0].mxu0
      %v2283 = vadd.f32 %v1568, %v2282
      %v2284 = vpop.f32.mrb[0].mxu0
      %v2285 = vadd.f32 %v1568, %v2284
      %2286 = vmatprep.mubr.bf16.mxu0 0
      %2287 = vmatmul.mubr.bf16.gmra.mrb[0].mxu0 %v1860
      %v2288 = vpop.f32.mrb[0].mxu0
      %v2289 = vadd.f32 %v1573, %v2288
      %v2290 = vpop.f32.mrb[0].mxu0
      %v2291 = vadd.f32 %v1573, %v2290
      %v2292 = vpop.f32.mrb[0].mxu0
      %v2293 = vadd.f32 %v1578, %v2292
      %v2294 = vpop.f32.mrb[0].mxu0
      %v2295 = vadd.f32 %v1578, %v2294
      %2296 = vdwg.mxu0
      %2297 = vmatprep.subr.bf16.mxu0 %v1765
      %2298 = vmatpush1.bf16.msra.mxu0 %v1764
      %2299 = vmatprep.subr.bf16.mxu0 %v1786
      %2300 = vmatpush1.bf16.msra.mxu0 %v1785
      %2301 = vmatprep.subr.bf16.mxu0 %v1909
      %2302 = vmatpush1.bf16.msra.mxu0 %v1906
      %2303 = vmatprep.subr.bf16.mxu0 0
      %2304 = vmatpush1.bf16.msra.mxu0 0
      %2305 = vmatprep.subr.bf16.mxu0 0
      %2306 = vmatpush1.bf16.msra.mxu0 0
      %2307 = vmatprep.subr.bf16.mxu0 0
      %2308 = vmatpush1.bf16.msra.mxu0 0
      %2309 = vmatprep.subr.bf16.mxu0 0
      %2310 = vmatpush1.bf16.msra.mxu0 0
      %2311 = vmatprep.subr.bf16.mxu0 0
      %2312 = vmatpush1.bf16.msra.mxu0 0
      %2313 = vmatprep.subr.bf16.mxu0 0
      %2314 = vmatpush1.bf16.msra.mxu0 0
      %2315 = vmatprep.subr.bf16.mxu0 0
      %2316 = vmatpush1.bf16.msra.mxu0 0
      %2317 = vmatprep.subr.bf16.mxu0 0
      %2318 = vmatpush1.bf16.msra.mxu0 0
      %2319 = vmatprep.subr.bf16.mxu0 0
      %2320 = vmatpush1.bf16.msra.mxu0 0
      %2321 = vmatprep.subr.bf16.mxu0 0
      %2322 = vmatpush1.bf16.msra.mxu0 0
      %2323 = vmatprep.subr.bf16.mxu0 0
      %2324 = vmatpush1.bf16.msra.mxu0 0
      %2325 = vmatprep.subr.bf16.mxu0 0
      %2326 = vmatpush1.bf16.msra.mxu0 0
      %2327 = vmatprep.subr.bf16.mxu0 0
      %2328 = vmatpush1.bf16.msra.mxu0 0
      %2329 = vmatprep.mubr.bf16.mxu0 0
      %2330 = vmatmul.mubr.bf16.gmra.mrb[0].mxu0 %v1857
      %v2331 = vpop.f32.mrb[0].mxu0
      %v2332 = vadd.f32 %v1563, %v2331
      %v2333 = vpop.f32.mrb[0].mxu0
      %v2334 = vadd.f32 %v1563, %v2333
      %v2335 = vpop.f32.mrb[0].mxu0
      %v2336 = vadd.f32 %v1568, %v2335
      %v2337 = vpop.f32.mrb[0].mxu0
      %v2338 = vadd.f32 %v1568, %v2337
      %2339 = vmatprep.mubr.bf16.mxu0 0
      %2340 = vmatmul.mubr.bf16.gmra.mrb[0].mxu0 %v1860
      %v2341 = vpop.f32.mrb[0].mxu0
      %v2342 = vadd.f32 %v1573, %v2341
      %v2343 = vpop.f32.mrb[0].mxu0
      %v2344 = vadd.f32 %v1573, %v2343
      %v2345 = vpop.f32.mrb[0].mxu0
      %v2346 = vadd.f32 %v1578, %v2345
      %v2347 = vpop.f32.mrb[0].mxu0
      %v2348 = vadd.f32 %v1578, %v2347
      %2349 = vdwg.mxu0
      %2350 = vmatprep.subr.bf16.mxu0 %v1767
      %2351 = vmatpush1.bf16.msra.mxu0 %v1766
      %2352 = vmatprep.subr.bf16.mxu0 %v1788
      %2353 = vmatpush1.bf16.msra.mxu0 %v1787
      %2354 = vmatprep.subr.bf16.mxu0 %v1915
      %2355 = vmatpush1.bf16.msra.mxu0 %v1912
      %2356 = vmatprep.subr.bf16.mxu0 0
      %2357 = vmatpush1.bf16.msra.mxu0 0
      %2358 = vmatprep.subr.bf16.mxu0 0
      %2359 = vmatpush1.bf16.msra.mxu0 0
      %2360 = vmatprep.subr.bf16.mxu0 0
      %2361 = vmatpush1.bf16.msra.mxu0 0
      %2362 = vmatprep.subr.bf16.mxu0 0
      %2363 = vmatpush1.bf16.msra.mxu0 0
      %2364 = vmatprep.subr.bf16.mxu0 0
      %2365 = vmatpush1.bf16.msra.mxu0 0
      %2366 = vmatprep.subr.bf16.mxu0 0
      %2367 = vmatpush1.bf16.msra.mxu0 0
      %2368 = vmatprep.subr.bf16.mxu0 0
      %2369 = vmatpush1.bf16.msra.mxu0 0
      %2370 = vmatprep.subr.bf16.mxu0 0
      %2371 = vmatpush1.bf16.msra.mxu0 0
      %2372 = vmatprep.subr.bf16.mxu0 0
      %2373 = vmatpush1.bf16.msra.mxu0 0
      %2374 = vmatprep.subr.bf16.mxu0 0
      %2375 = vmatpush1.bf16.msra.mxu0 0
      %2376 = vmatprep.subr.bf16.mxu0 0
      %2377 = vmatpush1.bf16.msra.mxu0 0
      %2378 = vmatprep.subr.bf16.mxu0 0
      %2379 = vmatpush1.bf16.msra.mxu0 0
      %2380 = vmatprep.subr.bf16.mxu0 0
      %2381 = vmatpush1.bf16.msra.mxu0 0
      %2382 = vmatprep.mubr.bf16.mxu0 0
      %2383 = vmatmul.mubr.bf16.gmra.mrb[0].mxu0 %v1857
      %v2384 = vpop.f32.mrb[0].mxu0
      %v2385 = vadd.f32 %v1563, %v2384
      %v2386 = vpop.f32.mrb[0].mxu0
      %v2387 = vadd.f32 %v1563, %v2386
      %v2388 = vpop.f32.mrb[0].mxu0
      %v2389 = vadd.f32 %v1568, %v2388
      %v2390 = vpop.f32.mrb[0].mxu0
      %v2391 = vadd.f32 %v1568, %v2390
      %2392 = vmatprep.mubr.bf16.mxu0 0
      %2393 = vmatmul.mubr.bf16.gmra.mrb[0].mxu0 %v1860
      %v2394 = vpop.f32.mrb[0].mxu0
      %v2395 = vadd.f32 %v1573, %v2394
      %v2396 = vpop.f32.mrb[0].mxu0
      %v2397 = vadd.f32 %v1573, %v2396
      %v2398 = vpop.f32.mrb[0].mxu0
      %v2399 = vadd.f32 %v1578, %v2398
      %v2400 = vpop.f32.mrb[0].mxu0
      %v2401 = vadd.f32 %v1578, %v2400
      %2402 = vdwg.mxu0
      %2403 = vmatprep.subr.bf16.mxu0 %v1769
      %2404 = vmatpush1.bf16.msra.mxu0 %v1768
      %2405 = vmatprep.subr.bf16.mxu0 %v1790
      %2406 = vmatpush1.bf16.msra.mxu0 %v1789
      %2407 = vmatprep.subr.bf16.mxu0 %v1921
      %2408 = vmatpush1.bf16.msra.mxu0 %v1918
      %2409 = vmatprep.subr.bf16.mxu0 0
      %2410 = vmatpush1.bf16.msra.mxu0 0
      %2411 = vmatprep.subr.bf16.mxu0 0
      %2412 = vmatpush1.bf16.msra.mxu0 0
      %2413 = vmatprep.subr.bf16.mxu0 0
      %2414 = vmatpush1.bf16.msra.mxu0 0
      %2415 = vmatprep.subr.bf16.mxu0 0
      %2416 = vmatpush1.bf16.msra.mxu0 0
      %2417 = vmatprep.subr.bf16.mxu0 0
      %2418 = vmatpush1.bf16.msra.mxu0 0
      %2419 = vmatprep.subr.bf16.mxu0 0
      %2420 = vmatpush1.bf16.msra.mxu0 0
      %2421 = vmatprep.subr.bf16.mxu0 0
      %2422 = vmatpush1.bf16.msra.mxu0 0
      %2423 = vmatprep.subr.bf16.mxu0 0
      %2424 = vmatpush1.bf16.msra.mxu0 0
      %2425 = vmatprep.subr.bf16.mxu0 0
      %2426 = vmatpush1.bf16.msra.mxu0 0
      %2427 = vmatprep.subr.bf16.mxu0 0
      %2428 = vmatpush1.bf16.msra.mxu0 0
      %2429 = vmatprep.subr.bf16.mxu0 0
      %2430 = vmatpush1.bf16.msra.mxu0 0
      %2431 = vmatprep.subr.bf16.mxu0 0
      %2432 = vmatpush1.bf16.msra.mxu0 0
      %2433 = vmatprep.subr.bf16.mxu0 0
      %2434 = vmatpush1.bf16.msra.mxu0 0
      %2435 = vmatprep.mubr.bf16.mxu0 0
      %2436 = vmatmul.mubr.bf16.gmra.mrb[0].mxu0 %v1857
      %v2437 = vpop.f32.mrb[0].mxu0
      %v2438 = vadd.f32 %v1563, %v2437
      %v2439 = vpop.f32.mrb[0].mxu0
      %v2440 = vadd.f32 %v1563, %v2439
      %v2441 = vpop.f32.mrb[0].mxu0
      %v2442 = vadd.f32 %v1568, %v2441
      %v2443 = vpop.f32.mrb[0].mxu0
      %v2444 = vadd.f32 %v1568, %v2443
      %2445 = vmatprep.mubr.bf16.mxu0 0
      %2446 = vmatmul.mubr.bf16.gmra.mrb[0].mxu0 %v1860
      %v2447 = vpop.f32.mrb[0].mxu0
      %v2448 = vadd.f32 %v1573, %v2447
      %v2449 = vpop.f32.mrb[0].mxu0
      %v2450 = vadd.f32 %v1573, %v2449
      %v2451 = vpop.f32.mrb[0].mxu0
      %v2452 = vadd.f32 %v1578, %v2451
      %v2453 = vpop.f32.mrb[0].mxu0
      %v2454 = vadd.f32 %v1578, %v2453
      %2455 = vdwg.mxu0
      %2456 = vmatprep.subr.bf16.mxu0 0
      %2457 = vmatpush1.bf16.msra.mxu0 %v1770
      %2458 = vmatprep.subr.bf16.mxu0 0
      %2459 = vmatpush1.bf16.msra.mxu0 %v1791
      %2460 = vmatprep.subr.bf16.mxu0 0
      %2461 = vmatpush1.bf16.msra.mxu0 %v1924
      %2462 = vmatprep.subr.bf16.mxu0 0
      %2463 = vmatpush1.bf16.msra.mxu0 0
      %2464 = vmatprep.subr.bf16.mxu0 0
      %2465 = vmatpush1.bf16.msra.mxu0 0
      %2466 = vmatprep.subr.bf16.mxu0 0
      %2467 = vmatpush1.bf16.msra.mxu0 0
      %2468 = vmatprep.subr.bf16.mxu0 0
      %2469 = vmatpush1.bf16.msra.mxu0 0
      %2470 = vmatprep.subr.bf16.mxu0 0
      %2471 = vmatpush1.bf16.msra.mxu0 0
      %2472 = vmatprep.subr.bf16.mxu0 0
      %2473 = vmatpush1.bf16.msra.mxu0 0
      %2474 = vmatprep.subr.bf16.mxu0 0
      %2475 = vmatpush1.bf16.msra.mxu0 0
      %2476 = vmatprep.subr.bf16.mxu0 0
      %2477 = vmatpush1.bf16.msra.mxu0 0
      %2478 = vmatprep.subr.bf16.mxu0 0
      %2479 = vmatpush1.bf16.msra.mxu0 0
      %2480 = vmatprep.subr.bf16.mxu0 0
      %2481 = vmatpush1.bf16.msra.mxu0 0
      %2482 = vmatprep.subr.bf16.mxu0 0
      %2483 = vmatpush1.bf16.msra.mxu0 0
      %2484 = vmatprep.subr.bf16.mxu0 0
      %2485 = vmatpush1.bf16.msra.mxu0 0
      %2486 = vmatprep.subr.bf16.mxu0 0
      %2487 = vmatpush1.bf16.msra.mxu0 0
      %2488 = vmatprep.mubr.bf16.mxu0 0
      %2489 = vmatmul.mubr.bf16.gmra.mrb[0].mxu0 %v1857
      %v2490 = vpop.f32.mrb[0].mxu0
      %v2491 = vadd.f32 %v1563, %v2490
      %v2492 = vpop.f32.mrb[0].mxu0
      %v2493 = vpop.f32.mrb[0].mxu0
      %v2494 = vadd.f32 %v1568, %v2493
      %v2495 = vpop.f32.mrb[0].mxu0
      %2496 = vmatprep.mubr.bf16.mxu0 0
      %2497 = vmatmul.mubr.bf16.gmra.mrb[0].mxu0 %v1860
      %v2498 = vpop.f32.mrb[0].mxu0
      %v2499 = vadd.f32 %v1573, %v2498
      %v2500 = vpop.f32.mrb[0].mxu0
      %v2501 = vpop.f32.mrb[0].mxu0
      %v2502 = vadd.f32 %v1578, %v2501
      %v2503 = vpop.f32.mrb[0].mxu0
      %2504 = vdwg.mxu0
      %v2505 = vmax.f32 %v1961, 0.0
      %v2506 = vmax.f32 %v1963, 0.0
      %v2507 = vmax.f32 %v2014, 0.0
      %v2508 = vmax.f32 %v2016, 0.0
      %v2509 = vmax.f32 %v2067, 0.0
      %v2510 = vmax.f32 %v2069, 0.0
      %v2511 = vmax.f32 %v2120, 0.0
      %v2512 = vmax.f32 %v2122, 0.0
      %v2513 = vmax.f32 %v2173, 0.0
      %v2514 = vmax.f32 %v2175, 0.0
      %v2515 = vmax.f32 %v2226, 0.0
      %v2516 = vmax.f32 %v2228, 0.0
      %v2517 = vmax.f32 %v2279, 0.0
      %v2518 = vmax.f32 %v2281, 0.0
      %v2519 = vmax.f32 %v2332, 0.0
      %v2520 = vmax.f32 %v2334, 0.0
      %v2521 = vmax.f32 %v2385, 0.0
      %v2522 = vmax.f32 %v2387, 0.0
      %v2523 = vmax.f32 %v2438, 0.0
      %v2524 = vmax.f32 %v2440, 0.0
      %v2525 = vmax.f32 %v2491, 0.0
      %v2526 = vmax.f32 %v1965, 0.0
      %v2527 = vmax.f32 %v1967, 0.0
      %v2528 = vmax.f32 %v2018, 0.0
      %v2529 = vmax.f32 %v2020, 0.0
      %v2530 = vmax.f32 %v2071, 0.0
      %v2531 = vmax.f32 %v2073, 0.0
      %v2532 = vmax.f32 %v2124, 0.0
      %v2533 = vmax.f32 %v2126, 0.0
      %v2534 = vmax.f32 %v2177, 0.0
      %v2535 = vmax.f32 %v2179, 0.0
      %v2536 = vmax.f32 %v2230, 0.0
      %v2537 = vmax.f32 %v2232, 0.0
      %v2538 = vmax.f32 %v2283, 0.0
      %v2539 = vmax.f32 %v2285, 0.0
      %v2540 = vmax.f32 %v2336, 0.0
      %v2541 = vmax.f32 %v2338, 0.0
      %v2542 = vmax.f32 %v2389, 0.0
      %v2543 = vmax.f32 %v2391, 0.0
      %v2544 = vmax.f32 %v2442, 0.0
      %v2545 = vmax.f32 %v2444, 0.0
      %v2546 = vmax.f32 %v2494, 0.0
      %v2547 = vmax.f32 %v1971, 0.0
      %v2548 = vmax.f32 %v1973, 0.0
      %v2549 = vmax.f32 %v2024, 0.0
      %v2550 = vmax.f32 %v2026, 0.0
      %v2551 = vmax.f32 %v2077, 0.0
      %v2552 = vmax.f32 %v2079, 0.0
      %v2553 = vmax.f32 %v2130, 0.0
      %v2554 = vmax.f32 %v2132, 0.0
      %v2555 = vmax.f32 %v2183, 0.0
      %v2556 = vmax.f32 %v2185, 0.0
      %v2557 = vmax.f32 %v2236, 0.0
      %v2558 = vmax.f32 %v2238, 0.0
      %v2559 = vmax.f32 %v2289, 0.0
      %v2560 = vmax.f32 %v2291, 0.0
      %v2561 = vmax.f32 %v2342, 0.0
      %v2562 = vmax.f32 %v2344, 0.0
      %v2563 = vmax.f32 %v2395, 0.0
      %v2564 = vmax.f32 %v2397, 0.0
      %v2565 = vmax.f32 %v2448, 0.0
      %v2566 = vmax.f32 %v2450, 0.0
      %v2567 = vmax.f32 %v2499, 0.0
      %v2568 = vmax.f32 %v1975, 0.0
      %v2569 = vmax.f32 %v1977, 0.0
      %v2570 = vmax.f32 %v2028, 0.0
      %v2571 = vmax.f32 %v2030, 0.0
      %v2572 = vmax.f32 %v2081, 0.0
      %v2573 = vmax.f32 %v2083, 0.0
      %v2574 = vmax.f32 %v2134, 0.0
      %v2575 = vmax.f32 %v2136, 0.0
      %v2576 = vmax.f32 %v2187, 0.0
      %v2577 = vmax.f32 %v2189, 0.0
      %v2578 = vmax.f32 %v2240, 0.0
      %v2579 = vmax.f32 %v2242, 0.0
      %v2580 = vmax.f32 %v2293, 0.0
      %v2581 = vmax.f32 %v2295, 0.0
      %v2582 = vmax.f32 %v2346, 0.0
      %v2583 = vmax.f32 %v2348, 0.0
      %v2584 = vmax.f32 %v2399, 0.0
      %v2585 = vmax.f32 %v2401, 0.0
      %v2586 = vmax.f32 %v2452, 0.0
      %v2587 = vmax.f32 %v2454, 0.0
      %v2588 = vmax.f32 %v2502, 0.0
      %v2589 = vpack.c.bf16 %v2526, %v2505
      %v2590 = vpack.c.bf16 %v2527, %v2506
      %v2591 = vpack.c.bf16 %v2528, %v2507
      %v2592 = vpack.c.bf16 %v2529, %v2508
      %v2593 = vpack.c.bf16 %v2530, %v2509
      %v2594 = vpack.c.bf16 %v2531, %v2510
      %v2595 = vpack.c.bf16 %v2532, %v2511
      %v2596 = vpack.c.bf16 %v2533, %v2512
      %v2597 = vpack.c.bf16 %v2534, %v2513
      %v2598 = vpack.c.bf16 %v2535, %v2514
      %v2599 = vpack.c.bf16 %v2536, %v2515
      %v2600 = vpack.c.bf16 %v2537, %v2516
      %v2601 = vpack.c.bf16 %v2538, %v2517
      %v2602 = vpack.c.bf16 %v2539, %v2518
      %v2603 = vpack.c.bf16 %v2540, %v2519
      %v2604 = vpack.c.bf16 %v2541, %v2520
      %v2605 = vpack.c.bf16 %v2542, %v2521
      %v2606 = vpack.c.bf16 %v2543, %v2522
      %v2607 = vpack.c.bf16 %v2544, %v2523
      %v2608 = vpack.c.bf16 %v2545, %v2524
      %v2609 = vpack.c.bf16 %v2546, %v2525
      %v2610 = vpack.c.bf16 %v2568, %v2547
      %v2611 = vpack.c.bf16 %v2569, %v2548
      %v2612 = vpack.c.bf16 %v2570, %v2549
      %v2613 = vpack.c.bf16 %v2571, %v2550
      %v2614 = vpack.c.bf16 %v2572, %v2551
      %v2615 = vpack.c.bf16 %v2573, %v2552
      %v2616 = vpack.c.bf16 %v2574, %v2553
      %v2617 = vpack.c.bf16 %v2575, %v2554
      %v2618 = vpack.c.bf16 %v2576, %v2555
      %v2619 = vpack.c.bf16 %v2577, %v2556
      %v2620 = vpack.c.bf16 %v2578, %v2557
      %v2621 = vpack.c.bf16 %v2579, %v2558
      %v2622 = vpack.c.bf16 %v2580, %v2559
      %v2623 = vpack.c.bf16 %v2581, %v2560
      %v2624 = vpack.c.bf16 %v2582, %v2561
      %v2625 = vpack.c.bf16 %v2583, %v2562
      %v2626 = vpack.c.bf16 %v2584, %v2563
      %v2627 = vpack.c.bf16 %v2585, %v2564
      %v2628 = vpack.c.bf16 %v2586, %v2565
      %v2629 = vpack.c.bf16 %v2587, %v2566
      %v2630 = vpack.c.bf16 %v2588, %v2567
      %v2673 = vunpack.c.l.b16 %v2589
      %v2674 = vunpack.c.l.b16 %v2590
      %v2675 = vunpack.c.l.b16 %v2591
      %v2676 = vunpack.c.l.b16 %v2592
      %v2677 = vunpack.c.l.b16 %v2593
      %v2678 = vunpack.c.l.b16 %v2594
      %v2679 = vunpack.c.l.b16 %v2595
      %v2680 = vunpack.c.l.b16 %v2596
      %v2681 = vunpack.c.l.b16 %v2597
      %v2682 = vunpack.c.l.b16 %v2598
      %v2683 = vunpack.c.l.b16 %v2599
      %v2684 = vunpack.c.l.b16 %v2600
      %v2685 = vunpack.c.l.b16 %v2601
      %v2686 = vunpack.c.l.b16 %v2602
      %v2687 = vunpack.c.l.b16 %v2603
      %v2688 = vunpack.c.l.b16 %v2604
      %v2689 = vunpack.c.l.b16 %v2605
      %v2690 = vunpack.c.l.b16 %v2606
      %v2691 = vunpack.c.l.b16 %v2607
      %v2692 = vunpack.c.l.b16 %v2608
      %v2693 = vunpack.c.l.b16 %v2609
      %v2694 = vunpack.c.h.b16 %v2589
      %v2695 = vunpack.c.h.b16 %v2590
      %v2696 = vunpack.c.h.b16 %v2591
      %v2697 = vunpack.c.h.b16 %v2592
      %v2698 = vunpack.c.h.b16 %v2593
      %v2699 = vunpack.c.h.b16 %v2594
      %v2700 = vunpack.c.h.b16 %v2595
      %v2701 = vunpack.c.h.b16 %v2596
      %v2702 = vunpack.c.h.b16 %v2597
      %v2703 = vunpack.c.h.b16 %v2598
      %v2704 = vunpack.c.h.b16 %v2599
      %v2705 = vunpack.c.h.b16 %v2600
      %v2706 = vunpack.c.h.b16 %v2601
      %v2707 = vunpack.c.h.b16 %v2602
      %v2708 = vunpack.c.h.b16 %v2603
      %v2709 = vunpack.c.h.b16 %v2604
      %v2710 = vunpack.c.h.b16 %v2605
      %v2711 = vunpack.c.h.b16 %v2606
      %v2712 = vunpack.c.h.b16 %v2607
      %v2713 = vunpack.c.h.b16 %v2608
      %v2714 = vunpack.c.h.b16 %v2609
      %v2715 = vunpack.c.l.b16 %v2610
      %v2716 = vunpack.c.l.b16 %v2611
      %v2717 = vunpack.c.l.b16 %v2612
      %v2718 = vunpack.c.l.b16 %v2613
      %v2719 = vunpack.c.l.b16 %v2614
      %v2720 = vunpack.c.l.b16 %v2615
      %v2721 = vunpack.c.l.b16 %v2616
      %v2722 = vunpack.c.l.b16 %v2617
      %v2723 = vunpack.c.l.b16 %v2618
      %v2724 = vunpack.c.l.b16 %v2619
      %v2725 = vunpack.c.l.b16 %v2620
      %v2726 = vunpack.c.l.b16 %v2621
      %v2727 = vunpack.c.l.b16 %v2622
      %v2728 = vunpack.c.l.b16 %v2623
      %v2729 = vunpack.c.l.b16 %v2624
      %v2730 = vunpack.c.l.b16 %v2625
      %v2731 = vunpack.c.l.b16 %v2626
      %v2732 = vunpack.c.l.b16 %v2627
      %v2733 = vunpack.c.l.b16 %v2628
      %v2734 = vunpack.c.l.b16 %v2629
      %v2735 = vunpack.c.l.b16 %v2630
      %v2736 = vunpack.c.h.b16 %v2610
      %v2737 = vunpack.c.h.b16 %v2611
      %v2738 = vunpack.c.h.b16 %v2612
      %v2739 = vunpack.c.h.b16 %v2613
      %v2740 = vunpack.c.h.b16 %v2614
      %v2741 = vunpack.c.h.b16 %v2615
      %v2742 = vunpack.c.h.b16 %v2616
      %v2743 = vunpack.c.h.b16 %v2617
      %v2744 = vunpack.c.h.b16 %v2618
      %v2745 = vunpack.c.h.b16 %v2619
      %v2746 = vunpack.c.h.b16 %v2620
      %v2747 = vunpack.c.h.b16 %v2621
      %v2748 = vunpack.c.h.b16 %v2622
      %v2749 = vunpack.c.h.b16 %v2623
      %v2750 = vunpack.c.h.b16 %v2624
      %v2751 = vunpack.c.h.b16 %v2625
      %v2752 = vunpack.c.h.b16 %v2626
      %v2753 = vunpack.c.h.b16 %v2627
      %v2754 = vunpack.c.h.b16 %v2628
      %v2755 = vunpack.c.h.b16 %v2629
      %v2756 = vunpack.c.h.b16 %v2630
      %v2757 = vpack.c.b16 %v2674, %v2673
      %v2758 = vpack.c.b16 %v2676, %v2675
      %v2759 = vpack.c.b16 %v2678, %v2677
      %v2760 = vpack.c.b16 %v2680, %v2679
      %v2761 = vpack.c.b16 %v2682, %v2681
      %v2762 = vpack.c.b16 %v2684, %v2683
      %v2763 = vpack.c.b16 %v2686, %v2685
      %v2764 = vpack.c.b16 %v2688, %v2687
      %v2765 = vpack.c.b16 %v2690, %v2689
      %v2766 = vpack.c.b16 %v2692, %v2691
      %v2767 = vpack.c.b16 %v2693, %v2693
      %v2768 = vpack.c.b16 %v2695, %v2694
      %v2769 = vpack.c.b16 %v2697, %v2696
      %v2770 = vpack.c.b16 %v2699, %v2698
      %v2771 = vpack.c.b16 %v2701, %v2700
      %v2772 = vpack.c.b16 %v2703, %v2702
      %v2773 = vpack.c.b16 %v2705, %v2704
      %v2774 = vpack.c.b16 %v2707, %v2706
      %v2775 = vpack.c.b16 %v2709, %v2708
      %v2776 = vpack.c.b16 %v2711, %v2710
      %v2777 = vpack.c.b16 %v2713, %v2712
      %v2778 = vpack.c.b16 %v2714, %v2714
      %v2779 = vpack.c.b16 %v2716, %v2715
      %v2780 = vpack.c.b16 %v2718, %v2717
      %v2781 = vpack.c.b16 %v2720, %v2719
      %v2782 = vpack.c.b16 %v2722, %v2721
      %v2783 = vpack.c.b16 %v2724, %v2723
      %v2784 = vpack.c.b16 %v2726, %v2725
      %v2785 = vpack.c.b16 %v2728, %v2727
      %v2786 = vpack.c.b16 %v2730, %v2729
      %v2787 = vpack.c.b16 %v2732, %v2731
      %v2788 = vpack.c.b16 %v2734, %v2733
      %v2789 = vpack.c.b16 %v2735, %v2735
      %v2790 = vpack.c.b16 %v2737, %v2736
      %v2791 = vpack.c.b16 %v2739, %v2738
      %v2792 = vpack.c.b16 %v2741, %v2740
      %v2793 = vpack.c.b16 %v2743, %v2742
      %v2794 = vpack.c.b16 %v2745, %v2744
      %v2795 = vpack.c.b16 %v2747, %v2746
      %v2796 = vpack.c.b16 %v2749, %v2748
      %v2797 = vpack.c.b16 %v2751, %v2750
      %v2798 = vpack.c.b16 %v2753, %v2752
      %v2799 = vpack.c.b16 %v2755, %v2754
      %v2800 = vpack.c.b16 %v2756, %v2756
      %2845 = vst [vmem:[%s170] sm:$0xff] %v2757
      %2846 = vst [vmem:[%s170 + $0x8] sm:$0xff] %v2758
      %2847 = vst [vmem:[%s170 + $0x10] sm:$0xff] %v2759
      %2848 = vst [vmem:[%s170 + $0x18] sm:$0xff] %v2760
      %2849 = vst [vmem:[%s170 + $0x20] sm:$0xff] %v2761
      %2850 = vst [vmem:[%s170 + $0x28] sm:$0xff] %v2762
      %2851 = vst [vmem:[%s170 + $0x30] sm:$0xff] %v2763
      %2852 = vst [vmem:[%s170 + $0x38] sm:$0xff] %v2764
      %2853 = vst [vmem:[%s170 + $0x40] sm:$0xff] %v2765
      %2854 = vst [vmem:[%s170 + $0x48] sm:$0xff] %v2766
      %2855 = vst [vmem:[%s170 + $0x50] sm:$0xf] %v2767
      %2856 = vst [vmem:[%s170 + $0x54] sm:$0xff] %v2768
      %2857 = vst [vmem:[%s170 + $0x5c] sm:$0xff] %v2769
      %2858 = vst [vmem:[%s170 + $0x64] sm:$0xff] %v2770
      %2859 = vst [vmem:[%s170 + $0x6c] sm:$0xff] %v2771
      %2860 = vst [vmem:[%s170 + $0x74] sm:$0xff] %v2772
      %2861 = vst [vmem:[%s170 + $0x7c] sm:$0xff] %v2773
      %2862 = vst [vmem:[%s170 + $0x84] sm:$0xff] %v2774
      %2863 = vst [vmem:[%s170 + $0x8c] sm:$0xff] %v2775
      %2864 = vst [vmem:[%s170 + $0x94] sm:$0xff] %v2776
      %2865 = vst [vmem:[%s170 + $0x9c] sm:$0xff] %v2777
      %2866 = vst [vmem:[%s170 + $0xa4] sm:$0xf] %v2778
      %2867 = vst [vmem:[%s170 + $0xa8] sm:$0xff] %v2779
      %2868 = vst [vmem:[%s170 + $0xb0] sm:$0xff] %v2780
      %2869 = vst [vmem:[%s170 + $0xb8] sm:$0xff] %v2781
      %2870 = vst [vmem:[%s170 + $0xc0] sm:$0xff] %v2782
      %2871 = vst [vmem:[%s170 + $0xc8] sm:$0xff] %v2783
      %2872 = vst [vmem:[%s170 + $0xd0] sm:$0xff] %v2784
      %2873 = vst [vmem:[%s170 + $0xd8] sm:$0xff] %v2785
      %2874 = vst [vmem:[%s170 + $0xe0] sm:$0xff] %v2786
      %2875 = vst [vmem:[%s170 + $0xe8] sm:$0xff] %v2787
      %2876 = vst [vmem:[%s170 + $0xf0] sm:$0xff] %v2788
      %2877 = vst [vmem:[%s170 + $0xf8] sm:$0xf] %v2789
      %2878 = vst [vmem:[%s170 + $0xfc] sm:$0xff] %v2790
      %2879 = vst [vmem:[%s170 + $0x104] sm:$0xff] %v2791
      %2880 = vst [vmem:[%s170 + $0x10c] sm:$0xff] %v2792
      %2881 = vst [vmem:[%s170 + $0x114] sm:$0xff] %v2793
      %2882 = vst [vmem:[%s170 + $0x11c] sm:$0xff] %v2794
      %2883 = vst [vmem:[%s170 + $0x124] sm:$0xff] %v2795
      %2884 = vst [vmem:[%s170 + $0x12c] sm:$0xff] %v2796
      %2885 = vst [vmem:[%s170 + $0x134] sm:$0xff] %v2797
      %2886 = vst [vmem:[%s170 + $0x13c] sm:$0xff] %v2798
      %2887 = vst [vmem:[%s170 + $0x144] sm:$0xff] %v2799
      %2888 = vst [vmem:[%s170 + $0x14c] sm:$0xf] %v2800
      %p2889 = scmp.lt.s32.totalorder %s14, 1
      %s2890 = scalar_select %p2889, %s14, 1
      %s2891 = smul.addr %s2890, 84
      %s2892 = smul.addr %s2891, 4
      %s2893 = scalar_lea.vmem %s3, %s2892
      // Predicated region
      $region33: #{_lambda_.5} parent=31 // pred_check
        %p2894 = pneg %p100
      $region34: #{_lambda_.5} parent=31 // pred_check_branch
        %2896 = sbr.rel (%p2894) target = $region36
      $region35: #{_lambda_.5} parent=31 // pred_region
        _
      $region36: #{_lambda_.5} parent=31 // pred_fallthru
        _
    $region32: #{_lambda_.5} parent=5 // pred_fallthru
      _
    %p2897 = scmp.le.s32.totalorder 2, %s9
    // Predicated region
    $region37: #{_lambda_.5} parent=5 // pred_check
      %p2898 = pneg %p2897
    $region38: #{_lambda_.5} parent=5 // pred_check_branch
      %2900 = sbr.rel (%p2898) target = $region40
    $region39: #{_lambda_.5} parent=5 // pred_region
      %s2901 = ssub.s32 %s9, 2
      // Predicated region
      $region41: #{_lambda_.5} parent=39 // pred_check
        %p2902 = pneg %p106
      $region42: #{_lambda_.5} parent=39 // pred_check_branch
        %2904 = sbr.rel (%p2902) target = $region44
      $region43: #{_lambda_.5} parent=39 // pred_region
        %p2905 = scmp.lt.s32.totalorder %s15, 1
        %s2906 = scalar_select %p2905, %s15, 1
        %s2907 = smul.addr %s2906, 84
        %s2908 = smul.addr %s2907, 4
        %s2909 = scalar_lea.vmem %s3, %s2908
      $region44: #{_lambda_.5} parent=39 // pred_fallthru
        _
    $region40: #{_lambda_.5} parent=5 // pred_fallthru
      _
  $region6: #{_lambda_.5} parent=0 // loop_footer
    %s13 = sadd.s32 1, %s9
  $region7: #{_lambda_.5} parent=0 // loop_footer_branch
    %8 = sbr.rel target = $region3
  $region8: #{_lambda_.5} parent=0 // loop_exit
    _

// kernel: _lambda_.6
$region0: #{_lambda_.6}
  #allocation0 [shape = 'u32[]', space=smem, size = 0x4, offset = 0x4, fixed_abs, tag = 'smem constant byte address 0x4 - core index']
  #allocation1 [shape = 'u32[144,128]{1,0:T(1,128)}', space=vmem, size = 0x12000, scoped, tag = 'internal scratch']
  #allocation2 [shape = 'bf16[288,768]{1,0:T(16,128)(2,1)}', space=vmem, size = 0x6c000, scoped, tag = 'scratch operand']
  %s0 = inlined_call_operand.vmem [shape: bf16[2,4,32,832], index: 0, kind: input, shape index: {}]
  %s1 = inlined_call_operand.vmem [shape: bf16[64,288], index: 1, kind: input, shape index: {}]
  %s2 = inlined_call_operand.vmem [shape: f32[64,1], index: 2, kind: input, shape index: {}]
  %s3 = inlined_call_operand.vmem [shape: bf16[2,64,768], index: 3, kind: output, shape index: {}]
  %s4 = sld [smem:[#allocation0]]
  $region45: #{_lambda_.6} parent=0
    _
  %s6 = ssub.s32 1, %s4
  %s7 = scalar_select 0, %s6, %s4
  loop: start=0, step=1, limit=4
  $region2: #{_lambda_.6} parent=0 // loop_pre_header
    _
  $region3: #{_lambda_.6} parent=0 // loop_header
    %s9 = sphi 0, %s13
    %p10 = scmp.ge.s32.totalorder %s9, 4
    %s19 = sphi 0, %s21
    %s22 = sphi 0, %s19
    %s23 = sphi 0, %s22
    %s39 = sphi 0, %s23
    %s43 = sphi 0, %s43
    %s45 = sphi 0, %s43
    %s46 = sphi 0, %s45
    %s60 = sphi 0, %s46
    %s64 = sphi 0, %s64
    %s66 = sphi 0, %s64
    %s67 = sphi 0, %s66
    %s81 = sphi 0, %s67
    %s87 = sphi 0, %s89
    %s90 = sphi 0, %s87
    %s91 = sphi 0, %s90
    %s107 = sphi 0, %s91
  $region4: #{_lambda_.6} parent=0 // loop_header_branch
    %12 = sbr.rel (%p10) target = $region8
  $region5: #{_lambda_.6} parent=0 // loop_body
    %s14 = ssub.s32 %s9, 1
    %s15 = ssub.s32 %s9, 2
    %s16 = sadd.s32 %s9, 1
    %s17 = ssub.s32 %s9, %s16
    %p18 = scmp.eq.s32.totalorder %s17, 0
    %s20 = sadd.s32 %s19, 1
    %s21 = scalar_select %p18, %s19, %s20
    %p24 = pneg %p18
    %p25 = scmp.eq.s32.totalorder %s9, 1
    %p26 = por %p24, %p25
    %p27 = scmp.ne.s32.totalorder %s19, %s22
    %p28 = scmp.eq.s32.totalorder %s9, 0
    %p29 = por %p27, %p28
    %p30 = scmp.ne.s32.totalorder %s19, %s22
    %p31 = scmp.eq.s32.totalorder %s14, 1
    %p32 = por %p30, %p31
    %p33 = scmp.ne.s32.totalorder %s22, %s23
    %p34 = scmp.eq.s32.totalorder %s14, 0
    %p35 = por %p33, %p34
    %p36 = scmp.ne.s32.totalorder %s22, %s23
    %p37 = scmp.eq.s32.totalorder %s15, 1
    %p38 = por %p36, %p37
    %p40 = scmp.ne.s32.totalorder %s23, %s39
    %p41 = scmp.eq.s32.totalorder %s15, 0
    %p42 = por %p40, %p41
    %s44 = sadd.s32 %s43, 1
    %p47 = scmp.eq.s32.totalorder %s9, 1
    %p48 = scmp.ne.s32.totalorder %s43, %s45
    %p49 = scmp.eq.s32.totalorder %s9, 0
    %p50 = por %p48, %p49
    %p51 = scmp.ne.s32.totalorder %s43, %s45
    %p52 = scmp.eq.s32.totalorder %s14, 1
    %p53 = por %p51, %p52
    %p54 = scmp.ne.s32.totalorder %s45, %s46
    %p55 = scmp.eq.s32.totalorder %s14, 0
    %p56 = por %p54, %p55
    %p57 = scmp.ne.s32.totalorder %s45, %s46
    %p58 = scmp.eq.s32.totalorder %s15, 1
    %p59 = por %p57, %p58
    %p61 = scmp.ne.s32.totalorder %s46, %s60
    %p62 = scmp.eq.s32.totalorder %s15, 0
    %p63 = por %p61, %p62
    %s65 = sadd.s32 %s64, 1
    %p68 = scmp.eq.s32.totalorder %s9, 1
    %p69 = scmp.ne.s32.totalorder %s64, %s66
    %p70 = scmp.eq.s32.totalorder %s9, 0
    %p71 = por %p69, %p70
    %p72 = scmp.ne.s32.totalorder %s64, %s66
    %p73 = scmp.eq.s32.totalorder %s14, 1
    %p74 = por %p72, %p73
    %p75 = scmp.ne.s32.totalorder %s66, %s67
    %p76 = scmp.eq.s32.totalorder %s14, 0
    %p77 = por %p75, %p76
    %p78 = scmp.ne.s32.totalorder %s66, %s67
    %p79 = scmp.eq.s32.totalorder %s15, 1
    %p80 = por %p78, %p79
    %p82 = scmp.ne.s32.totalorder %s67, %s81
    %p83 = scmp.eq.s32.totalorder %s15, 0
    %p84 = por %p82, %p83
    %s85 = ssub.s32 %s9, %s16
    %p86 = scmp.eq.s32.totalorder %s85, 0
    %s88 = sadd.s32 %s87, 1
    %s89 = scalar_select %p86, %s87, %s88
    %p92 = pneg %p86
    %p93 = scmp.eq.s32.totalorder %s9, 1
    %p94 = por %p92, %p93
    %p95 = scmp.ne.s32.totalorder %s87, %s90
    %p96 = scmp.eq.s32.totalorder %s9, 0
    %p97 = por %p95, %p96
    %p98 = scmp.ne.s32.totalorder %s87, %s90
    %p99 = scmp.eq.s32.totalorder %s14, 1
    %p100 = por %p98, %p99
    %p101 = scmp.ne.s32.totalorder %s90, %s91
    %p102 = scmp.eq.s32.totalorder %s14, 0
    %p103 = por %p101, %p102
    %p104 = scmp.ne.s32.totalorder %s90, %s91
    %p105 = scmp.eq.s32.totalorder %s15, 1
    %p106 = por %p104, %p105
    %p108 = scmp.ne.s32.totalorder %s91, %s107
    %p109 = scmp.eq.s32.totalorder %s15, 0
    %p110 = por %p108, %p109
    %p111 = scmp.le.s32.totalorder 1, %s9
    %p112 = scmp.lt.s32.totalorder %s9, 3
    %p113 = pnand %p111, %p112
    %p114 = pneg %p113
    // Predicated region
    $region9: #{_lambda_.6} parent=5 // pred_check
      _
    $region10: #{_lambda_.6} parent=5 // pred_check_branch
      %116 = sbr.rel (%p113) target = $region12
    $region11: #{_lambda_.6} parent=5 // pred_region
      %s117 = ssub.s32 %s9, 1
      // Predicated region
      $region13: #{_lambda_.6} parent=11 // pred_check
        %p118 = pneg %p56
      $region14: #{_lambda_.6} parent=11 // pred_check_branch
        %120 = sbr.rel (%p118) target = $region16
      $region15: #{_lambda_.6} parent=11 // pred_region
        _
      $region16: #{_lambda_.6} parent=11 // pred_fallthru
        _
      // Predicated region
      $region17: #{_lambda_.6} parent=11 // pred_check
        %p121 = pneg %p77
      $region18: #{_lambda_.6} parent=11 // pred_check_branch
        %123 = sbr.rel (%p121) target = $region20
      $region19: #{_lambda_.6} parent=11 // pred_region
        _
      $region20: #{_lambda_.6} parent=11 // pred_fallthru
        _
    $region12: #{_lambda_.6} parent=5 // pred_fallthru
      _
    %p124 = scmp.lt.s32.totalorder %s9, 2
    // Predicated region
    $region21: #{_lambda_.6} parent=5 // pred_check
      %p125 = pneg %p124
    $region22: #{_lambda_.6} parent=5 // pred_check_branch
      %127 = sbr.rel (%p125) target = $region24
    $region23: #{_lambda_.6} parent=5 // pred_region
      // Predicated region
      $region25: #{_lambda_.6} parent=23 // pred_check
        %p128 = pneg %p29
      $region26: #{_lambda_.6} parent=23 // pred_check_branch
        %130 = sbr.rel (%p128) target = $region28
      $region27: #{_lambda_.6} parent=23 // pred_region
        %p131 = scmp.lt.s32.totalorder %s9, 1
        %s132 = scalar_select %p131, %s9, 1
        %s133 = smul.addr %s132, 112
        %s134 = smul.addr %s133, 4
        %s135 = scalar_lea.vmem %s0, %s134
      $region28: #{_lambda_.6} parent=23 // pred_fallthru
        _
    $region24: #{_lambda_.6} parent=5 // pred_fallthru
      _
    %p136 = scmp.le.s32.totalorder 1, %s9
    %p137 = scmp.lt.s32.totalorder %s9, 3
    %p138 = pnand %p136, %p137
    %p139 = pneg %p138
    // Predicated region
    $region29: #{_lambda_.6} parent=5 // pred_check
      _
    $region30: #{_lambda_.6} parent=5 // pred_check_branch
      %141 = sbr.rel (%p138) target = $region32
    $region31: #{_lambda_.6} parent=5 // pred_region
      %s142 = ssub.s32 %s9, 1
      %p143 = scmp.lt.s32.totalorder %s14, 1
      %s144 = scalar_select %p143, %s14, 1
      %s145 = smul.addr %s144, 112
      %s146 = smul.addr %s145, 4
      %s147 = scalar_lea.vmem %s0, %s146
      %p148 = pneg %p35
      %p149 = pneg %p32
      %p150 = pneg %p56
      %p151 = pneg %p53
      %p152 = pneg %p77
      %p153 = pneg %p74
      %p154 = pneg %p103
      %p155 = pneg %p100
      %p156 = scmp.lt.s32.totalorder %s14, 1
      %s157 = scalar_select %p156, %s14, 1
      %s158 = smul.addr %s157, 48
      %s159 = smul.addr %s158, 4
      %s160 = scalar_lea.vmem %s3, %s159
      %p161 = scmp.lt.s32.totalorder %s14, 1
      %s162 = scalar_select %p161, %s14, 1
      %s163 = smul.addr %s162, 112
      %s164 = smul.addr %s163, 4
      %s165 = scalar_lea.vmem %s0, %s164
      %p166 = scmp.lt.s32.totalorder %s14, 1
      %s167 = scalar_select %p166, %s14, 1
      %s168 = smul.addr %s167, 48
      %s169 = smul.addr %s168, 4
      %s170 = scalar_lea.vmem %s3, %s169
      %v172 = vld [vmem:[%s165] sm:$0xff]
      %v173 = vld [vmem:[%s165 + $0x8] sm:$0xff]
      %v174 = vld [vmem:[%s165 + $0x10] sm:$0xff]
      %v175 = vld [vmem:[%s165 + $0x1c] sm:$0xff]
      %v176 = vld [vmem:[%s165 + $0x24] sm:$0xff]
      %v177 = vld [vmem:[%s165 + $0x2c] sm:$0xff]
      %v178 = vld [vmem:[%s165 + $0x38] sm:$0xff]
      %v179 = vld [vmem:[%s165 + $0x40] sm:$0xff]
      %v180 = vld [vmem:[%s165 + $0x48] sm:$0xff]
      %v181 = vld [vmem:[%s165 + $0x54] sm:$0xff]
      %v182 = vld [vmem:[%s165 + $0x5c] sm:$0xff]
      %v183 = vld [vmem:[%s165 + $0x64] sm:$0xff]
      %v196 = vunpack.c.l.b16 %v172
      %v197 = vunpack.c.h.b16 %v172
      %v198 = vunpack.c.l.b16 %v173
      %v199 = vunpack.c.h.b16 %v173
      %v200 = vunpack.c.l.b16 %v174
      %v201 = vunpack.c.h.b16 %v174
      %v202 = vunpack.c.l.b16 %v175
      %v203 = vunpack.c.h.b16 %v175
      %v204 = vunpack.c.l.b16 %v176
      %v205 = vunpack.c.h.b16 %v176
      %v206 = vunpack.c.l.b16 %v177
      %v207 = vunpack.c.h.b16 %v177
      %v208 = vunpack.c.l.b16 %v178
      %v209 = vunpack.c.h.b16 %v178
      %v210 = vunpack.c.l.b16 %v179
      %v211 = vunpack.c.h.b16 %v179
      %v212 = vunpack.c.l.b16 %v180
      %v213 = vunpack.c.h.b16 %v180
      %v214 = vunpack.c.l.b16 %v181
      %v215 = vunpack.c.h.b16 %v181
      %v216 = vunpack.c.l.b16 %v182
      %v217 = vunpack.c.h.b16 %v182
      %v218 = vunpack.c.l.b16 %v183
      %v219 = vunpack.c.h.b16 %v183
      %v220 = vpack.c.b16 %v202, %v196
      %v221 = vpack.c.b16 %v203, %v197
      %v222 = vpack.c.b16 %v204, %v198
      %v223 = vpack.c.b16 %v205, %v199
      %v224 = vpack.c.b16 %v206, %v200
      %v225 = vpack.c.b16 %v207, %v201
      %v226 = vpack.c.b16 %v214, %v208
      %v227 = vpack.c.b16 %v215, %v209
      %v228 = vpack.c.b16 %v216, %v210
      %v229 = vpack.c.b16 %v217, %v211
      %v230 = vpack.c.b16 %v218, %v212
      %v231 = vpack.c.b16 %v219, %v213
      %244 = vst [vmem:[#allocation2] sm:$0xff] %v220
      %245 = vst [vmem:[#allocation2 + $0x8] sm:$0xff] %v221
      %246 = vst [vmem:[#allocation2 + $0x10] sm:$0xff] %v222
      %247 = vst [vmem:[#allocation2 + $0x18] sm:$0xff] %v223
      %248 = vst [vmem:[#allocation2 + $0x20] sm:$0xff] %v224
      %249 = vst [vmem:[#allocation2 + $0x28] sm:$0xff] %v225
      %250 = vst [vmem:[#allocation2 + $0x30] sm:$0xff] %v226
      %251 = vst [vmem:[#allocation2 + $0x38] sm:$0xff] %v227
      %252 = vst [vmem:[#allocation2 + $0x40] sm:$0xff] %v228
      %253 = vst [vmem:[#allocation2 + $0x48] sm:$0xff] %v229
      %254 = vst [vmem:[#allocation2 + $0x50] sm:$0xff] %v230
      %255 = vst [vmem:[#allocation2 + $0x58] sm:$0xff] %v231
      %s256 = scalar_lea.vmem %s165, 112
      %v257 = vld [vmem:[%s256] sm:$0xff]
      %v258 = vld [vmem:[%s256 + $0x8] sm:$0xff]
      %v259 = vld [vmem:[%s256 + $0x10] sm:$0xff]
      %v260 = vld [vmem:[%s256 + $0x1c] sm:$0xff]
      %v261 = vld [vmem:[%s256 + $0x24] sm:$0xff]
      %v262 = vld [vmem:[%s256 + $0x2c] sm:$0xff]
      %v263 = vld [vmem:[%s256 + $0x38] sm:$0xff]
      %v264 = vld [vmem:[%s256 + $0x40] sm:$0xff]
      %v265 = vld [vmem:[%s256 + $0x48] sm:$0xff]
      %v266 = vld [vmem:[%s256 + $0x54] sm:$0xff]
      %v267 = vld [vmem:[%s256 + $0x5c] sm:$0xff]
      %v268 = vld [vmem:[%s256 + $0x64] sm:$0xff]
      %v281 = vunpack.c.l.b16 %v257
      %v282 = vunpack.c.h.b16 %v257
      %v283 = vunpack.c.l.b16 %v258
      %v284 = vunpack.c.h.b16 %v258
      %v285 = vunpack.c.l.b16 %v259
      %v286 = vunpack.c.h.b16 %v259
      %v287 = vunpack.c.l.b16 %v260
      %v288 = vunpack.c.h.b16 %v260
      %v289 = vunpack.c.l.b16 %v261
      %v290 = vunpack.c.h.b16 %v261
      %v291 = vunpack.c.l.b16 %v262
      %v292 = vunpack.c.h.b16 %v262
      %v293 = vunpack.c.l.b16 %v263
      %v294 = vunpack.c.h.b16 %v263
      %v295 = vunpack.c.l.b16 %v264
      %v296 = vunpack.c.h.b16 %v264
      %v297 = vunpack.c.l.b16 %v265
      %v298 = vunpack.c.h.b16 %v265
      %v299 = vunpack.c.l.b16 %v266
      %v300 = vunpack.c.h.b16 %v266
      %v301 = vunpack.c.l.b16 %v267
      %v302 = vunpack.c.h.b16 %v267
      %v303 = vunpack.c.l.b16 %v268
      %v304 = vunpack.c.h.b16 %v268
      %v305 = vpack.c.b16 %v287, %v281
      %v306 = vpack.c.b16 %v288, %v282
      %v307 = vpack.c.b16 %v289, %v283
      %v308 = vpack.c.b16 %v290, %v284
      %v309 = vpack.c.b16 %v291, %v285
      %v310 = vpack.c.b16 %v292, %v286
      %v311 = vpack.c.b16 %v299, %v293
      %v312 = vpack.c.b16 %v300, %v294
      %v313 = vpack.c.b16 %v301, %v295
      %v314 = vpack.c.b16 %v302, %v296
      %v315 = vpack.c.b16 %v303, %v297
      %v316 = vpack.c.b16 %v304, %v298
      %329 = vst [vmem:[#allocation2 + $0x60] sm:$0xff] %v305
      %330 = vst [vmem:[#allocation2 + $0x68] sm:$0xff] %v306
      %331 = vst [vmem:[#allocation2 + $0x70] sm:$0xff] %v307
      %332 = vst [vmem:[#allocation2 + $0x78] sm:$0xff] %v308
      %333 = vst [vmem:[#allocation2 + $0x80] sm:$0xff] %v309
      %334 = vst [vmem:[#allocation2 + $0x88] sm:$0xff] %v310
      %335 = vst [vmem:[#allocation2 + $0x90] sm:$0xff] %v311
      %336 = vst [vmem:[#allocation2 + $0x98] sm:$0xff] %v312
      %337 = vst [vmem:[#allocation2 + $0xa0] sm:$0xff] %v313
      %338 = vst [vmem:[#allocation2 + $0xa8] sm:$0xff] %v314
      %339 = vst [vmem:[#allocation2 + $0xb0] sm:$0xff] %v315
      %340 = vst [vmem:[#allocation2 + $0xb8] sm:$0xff] %v316
      %v341 = vld [vmem:[%s165] sm:$0xff]
      %v342 = vld [vmem:[%s165 + $0x8] sm:$0xff]
      %v343 = vld [vmem:[%s165 + $0x10] sm:$0xff]
      %v344 = vld [vmem:[%s165 + $0x18] sm:$0xf]
      %v345 = vld [vmem:[%s165 + $0x1c] sm:$0xff]
      %v346 = vld [vmem:[%s165 + $0x24] sm:$0xff]
      %v347 = vld [vmem:[%s165 + $0x2c] sm:$0xff]
      %v348 = vld [vmem:[%s165 + $0x34] sm:$0xf]
      %v349 = vld [vmem:[%s165 + $0x38] sm:$0xff]
      %v350 = vld [vmem:[%s165 + $0x40] sm:$0xff]
      %v351 = vld [vmem:[%s165 + $0x48] sm:$0xff]
      %v352 = vld [vmem:[%s165 + $0x50] sm:$0xf]
      %v353 = vld [vmem:[%s165 + $0x54] sm:$0xff]
      %v354 = vld [vmem:[%s165 + $0x5c] sm:$0xff]
      %v355 = vld [vmem:[%s165 + $0x64] sm:$0xff]
      %v356 = vld [vmem:[%s165 + $0x6c] sm:$0xf]
      %v373 = vunpack.c.l.b16 %v341
      %v374 = vunpack.c.h.b16 %v341
      %v375 = vunpack.c.l.b16 %v342
      %v376 = vunpack.c.h.b16 %v342
      %v377 = vunpack.c.l.b16 %v343
      %v378 = vunpack.c.h.b16 %v343
      %v379 = vunpack.c.l.b16 %v344
      %v380 = vunpack.c.l.b16 %v345
      %v381 = vunpack.c.h.b16 %v345
      %v382 = vunpack.c.l.b16 %v346
      %v383 = vunpack.c.h.b16 %v346
      %v384 = vunpack.c.l.b16 %v347
      %v385 = vunpack.c.h.b16 %v347
      %v386 = vunpack.c.l.b16 %v348
      %v387 = vunpack.c.l.b16 %v349
      %v388 = vunpack.c.h.b16 %v349
      %v389 = vunpack.c.l.b16 %v350
      %v390 = vunpack.c.h.b16 %v350
      %v391 = vunpack.c.l.b16 %v351
      %v392 = vunpack.c.h.b16 %v351
      %v393 = vunpack.c.l.b16 %v352
      %v394 = vunpack.c.l.b16 %v353
      %v395 = vunpack.c.h.b16 %v353
      %v396 = vunpack.c.l.b16 %v354
      %v397 = vunpack.c.h.b16 %v354
      %v398 = vunpack.c.l.b16 %v355
      %v399 = vunpack.c.h.b16 %v355
      %v400 = vunpack.c.l.b16 %v356
      %v401 = vpack.c.b16 %v380, %v373
      %v402 = vpack.c.b16 %v381, %v374
      %v403 = vpack.c.b16 %v382, %v375
      %v404 = vpack.c.b16 %v383, %v376
      %v405 = vpack.c.b16 %v384, %v377
      %v406 = vpack.c.b16 %v385, %v378
      %v407 = vpack.c.b16 %v386, %v379
      %v408 = vpack.c.b16 %v394, %v387
      %v409 = vpack.c.b16 %v395, %v388
      %v410 = vpack.c.b16 %v396, %v389
      %v411 = vpack.c.b16 %v397, %v390
      %v412 = vpack.c.b16 %v398, %v391
      %v413 = vpack.c.b16 %v399, %v392
      %v414 = vpack.c.b16 %v400, %v393
      %415 = vrot.lane.b32.xlu0 %v401, 127
      %v416 = vpop.permute.xlu0 %415
      %417 = vrot.lane.b32.xlu0 %v402, 127
      %v418 = vpop.permute.xlu0 %417
      %419 = vrot.lane.b32.xlu0 %v403, 127
      %v420 = vpop.permute.xlu0 %419
      %421 = vrot.lane.b32.xlu0 %v404, 127
      %v422 = vpop.permute.xlu0 %421
      %423 = vrot.lane.b32.xlu0 %v405, 127
      %v424 = vpop.permute.xlu0 %423
      %425 = vrot.lane.b32.xlu0 %v406, 127
      %v426 = vpop.permute.xlu0 %425
      %427 = vrot.lane.b32.xlu0 %v407, 127
      %v428 = vpop.permute.xlu0 %427
      %429 = vrot.lane.b32.xlu0 %v408, 127
      %v430 = vpop.permute.xlu0 %429
      %431 = vrot.lane.b32.xlu0 %v409, 127
      %v432 = vpop.permute.xlu0 %431
      %433 = vrot.lane.b32.xlu0 %v410, 127
      %v434 = vpop.permute.xlu0 %433
      %435 = vrot.lane.b32.xlu0 %v411, 127
      %v436 = vpop.permute.xlu0 %435
      %437 = vrot.lane.b32.xlu0 %v412, 127
      %v438 = vpop.permute.xlu0 %437
      %439 = vrot.lane.b32.xlu0 %v413, 127
      %v440 = vpop.permute.xlu0 %439
      %441 = vrot.lane.b32.xlu0 %v414, 127
      %v442 = vpop.permute.xlu0 %441
      %vm443 = vcmask 1039360
      %v444 = vsel %vm443, %v416, %v418
      %v445 = vsel %vm443, %v418, %v420
      %v446 = vsel %vm443, %v420, %v422
      %v447 = vsel %vm443, %v422, %v424
      %v448 = vsel %vm443, %v424, %v426
      %v449 = vsel %vm443, %v426, %v428
      %v450 = vsel %vm443, %v430, %v432
      %v451 = vsel %vm443, %v432, %v434
      %v452 = vsel %vm443, %v434, %v436
      %v453 = vsel %vm443, %v436, %v438
      %v454 = vsel %vm443, %v438, %v440
      %v455 = vsel %vm443, %v440, %v442
      %468 = vst [vmem:[#allocation2 + $0xc0] sm:$0xff] %v444
      %469 = vst [vmem:[#allocation2 + $0xc8] sm:$0xff] %v445
      %470 = vst [vmem:[#allocation2 + $0xd0] sm:$0xff] %v446
      %471 = vst [vmem:[#allocation2 + $0xd8] sm:$0xff] %v447
      %472 = vst [vmem:[#allocation2 + $0xe0] sm:$0xff] %v448
      %473 = vst [vmem:[#allocation2 + $0xe8] sm:$0xff] %v449
      %474 = vst [vmem:[#allocation2 + $0xf0] sm:$0xff] %v450
      %475 = vst [vmem:[#allocation2 + $0xf8] sm:$0xff] %v451
      %476 = vst [vmem:[#allocation2 + $0x100] sm:$0xff] %v452
      %477 = vst [vmem:[#allocation2 + $0x108] sm:$0xff] %v453
      %478 = vst [vmem:[#allocation2 + $0x110] sm:$0xff] %v454
      %479 = vst [vmem:[#allocation2 + $0x118] sm:$0xff] %v455
      %s480 = scalar_lea.vmem %s165, 224
      %v481 = vld [vmem:[%s480] sm:$0xff]
      %v482 = vld [vmem:[%s480 + $0x8] sm:$0xff]
      %v483 = vld [vmem:[%s480 + $0x10] sm:$0xff]
      %v484 = vld [vmem:[%s480 + $0x1c] sm:$0xff]
      %v485 = vld [vmem:[%s480 + $0x24] sm:$0xff]
      %v486 = vld [vmem:[%s480 + $0x2c] sm:$0xff]
      %v487 = vld [vmem:[%s480 + $0x38] sm:$0xff]
      %v488 = vld [vmem:[%s480 + $0x40] sm:$0xff]
      %v489 = vld [vmem:[%s480 + $0x48] sm:$0xff]
      %v490 = vld [vmem:[%s480 + $0x54] sm:$0xff]
      %v491 = vld [vmem:[%s480 + $0x5c] sm:$0xff]
      %v492 = vld [vmem:[%s480 + $0x64] sm:$0xff]
      %v505 = vunpack.c.l.b16 %v481
      %v506 = vunpack.c.h.b16 %v481
      %v507 = vunpack.c.l.b16 %v482
      %v508 = vunpack.c.h.b16 %v482
      %v509 = vunpack.c.l.b16 %v483
      %v510 = vunpack.c.h.b16 %v483
      %v511 = vunpack.c.l.b16 %v484
      %v512 = vunpack.c.h.b16 %v484
      %v513 = vunpack.c.l.b16 %v485
      %v514 = vunpack.c.h.b16 %v485
      %v515 = vunpack.c.l.b16 %v486
      %v516 = vunpack.c.h.b16 %v486
      %v517 = vunpack.c.l.b16 %v487
      %v518 = vunpack.c.h.b16 %v487
      %v519 = vunpack.c.l.b16 %v488
      %v520 = vunpack.c.h.b16 %v488
      %v521 = vunpack.c.l.b16 %v489
      %v522 = vunpack.c.h.b16 %v489
      %v523 = vunpack.c.l.b16 %v490
      %v524 = vunpack.c.h.b16 %v490
      %v525 = vunpack.c.l.b16 %v491
      %v526 = vunpack.c.h.b16 %v491
      %v527 = vunpack.c.l.b16 %v492
      %v528 = vunpack.c.h.b16 %v492
      %v529 = vpack.c.b16 %v511, %v505
      %v530 = vpack.c.b16 %v512, %v506
      %v531 = vpack.c.b16 %v513, %v507
      %v532 = vpack.c.b16 %v514, %v508
      %v533 = vpack.c.b16 %v515, %v509
      %v534 = vpack.c.b16 %v516, %v510
      %v535 = vpack.c.b16 %v523, %v517
      %v536 = vpack.c.b16 %v524, %v518
      %v537 = vpack.c.b16 %v525, %v519
      %v538 = vpack.c.b16 %v526, %v520
      %v539 = vpack.c.b16 %v527, %v521
      %v540 = vpack.c.b16 %v528, %v522
      %553 = vst [vmem:[#allocation2 + $0x120] sm:$0xff] %v529
      %554 = vst [vmem:[#allocation2 + $0x128] sm:$0xff] %v530
      %555 = vst [vmem:[#allocation2 + $0x130] sm:$0xff] %v531
      %556 = vst [vmem:[#allocation2 + $0x138] sm:$0xff] %v532
      %557 = vst [vmem:[#allocation2 + $0x140] sm:$0xff] %v533
      %558 = vst [vmem:[#allocation2 + $0x148] sm:$0xff] %v534
      %559 = vst [vmem:[#allocation2 + $0x150] sm:$0xff] %v535
      %560 = vst [vmem:[#allocation2 + $0x158] sm:$0xff] %v536
      %561 = vst [vmem:[#allocation2 + $0x160] sm:$0xff] %v537
      %562 = vst [vmem:[#allocation2 + $0x168] sm:$0xff] %v538
      %563 = vst [vmem:[#allocation2 + $0x170] sm:$0xff] %v539
      %564 = vst [vmem:[#allocation2 + $0x178] sm:$0xff] %v540
      %s565 = scalar_lea.vmem %s165, 336
      %v566 = vld [vmem:[%s565] sm:$0xff]
      %v567 = vld [vmem:[%s565 + $0x8] sm:$0xff]
      %v568 = vld [vmem:[%s565 + $0x10] sm:$0xff]
      %v569 = vld [vmem:[%s565 + $0x1c] sm:$0xff]
      %v570 = vld [vmem:[%s565 + $0x24] sm:$0xff]
      %v571 = vld [vmem:[%s565 + $0x2c] sm:$0xff]
      %v572 = vld [vmem:[%s565 + $0x38] sm:$0xff]
      %v573 = vld [vmem:[%s565 + $0x40] sm:$0xff]
      %v574 = vld [vmem:[%s565 + $0x48] sm:$0xff]
      %v575 = vld [vmem:[%s565 + $0x54] sm:$0xff]
      %v576 = vld [vmem:[%s565 + $0x5c] sm:$0xff]
      %v577 = vld [vmem:[%s565 + $0x64] sm:$0xff]
      %v590 = vunpack.c.l.b16 %v566
      %v591 = vunpack.c.h.b16 %v566
      %v592 = vunpack.c.l.b16 %v567
      %v593 = vunpack.c.h.b16 %v567
      %v594 = vunpack.c.l.b16 %v568
      %v595 = vunpack.c.h.b16 %v568
      %v596 = vunpack.c.l.b16 %v569
      %v597 = vunpack.c.h.b16 %v569
      %v598 = vunpack.c.l.b16 %v570
      %v599 = vunpack.c.h.b16 %v570
      %v600 = vunpack.c.l.b16 %v571
      %v601 = vunpack.c.h.b16 %v571
      %v602 = vunpack.c.l.b16 %v572
      %v603 = vunpack.c.h.b16 %v572
      %v604 = vunpack.c.l.b16 %v573
      %v605 = vunpack.c.h.b16 %v573
      %v606 = vunpack.c.l.b16 %v574
      %v607 = vunpack.c.h.b16 %v574
      %v608 = vunpack.c.l.b16 %v575
      %v609 = vunpack.c.h.b16 %v575
      %v610 = vunpack.c.l.b16 %v576
      %v611 = vunpack.c.h.b16 %v576
      %v612 = vunpack.c.l.b16 %v577
      %v613 = vunpack.c.h.b16 %v577
      %v614 = vpack.c.b16 %v596, %v590
      %v615 = vpack.c.b16 %v597, %v591
      %v616 = vpack.c.b16 %v598, %v592
      %v617 = vpack.c.b16 %v599, %v593
      %v618 = vpack.c.b16 %v600, %v594
      %v619 = vpack.c.b16 %v601, %v595
      %v620 = vpack.c.b16 %v608, %v602
      %v621 = vpack.c.b16 %v609, %v603
      %v622 = vpack.c.b16 %v610, %v604
      %v623 = vpack.c.b16 %v611, %v605
      %v624 = vpack.c.b16 %v612, %v606
      %v625 = vpack.c.b16 %v613, %v607
      %638 = vst [vmem:[#allocation2 + $0x180] sm:$0xff] %v614
      %639 = vst [vmem:[#allocation2 + $0x188] sm:$0xff] %v615
      %640 = vst [vmem:[#allocation2 + $0x190] sm:$0xff] %v616
      %641 = vst [vmem:[#allocation2 + $0x198] sm:$0xff] %v617
      %642 = vst [vmem:[#allocation2 + $0x1a0] sm:$0xff] %v618
      %643 = vst [vmem:[#allocation2 + $0x1a8] sm:$0xff] %v619
      %644 = vst [vmem:[#allocation2 + $0x1b0] sm:$0xff] %v620
      %645 = vst [vmem:[#allocation2 + $0x1b8] sm:$0xff] %v621
      %646 = vst [vmem:[#allocation2 + $0x1c0] sm:$0xff] %v622
      %647 = vst [vmem:[#allocation2 + $0x1c8] sm:$0xff] %v623
      %648 = vst [vmem:[#allocation2 + $0x1d0] sm:$0xff] %v624
      %649 = vst [vmem:[#allocation2 + $0x1d8] sm:$0xff] %v625
      %v650 = vld [vmem:[%s480] sm:$0xff]
      %v651 = vld [vmem:[%s480 + $0x8] sm:$0xff]
      %v652 = vld [vmem:[%s480 + $0x10] sm:$0xff]
      %v653 = vld [vmem:[%s480 + $0x18] sm:$0xf]
      %v654 = vld [vmem:[%s480 + $0x1c] sm:$0xff]
      %v655 = vld [vmem:[%s480 + $0x24] sm:$0xff]
      %v656 = vld [vmem:[%s480 + $0x2c] sm:$0xff]
      %v657 = vld [vmem:[%s480 + $0x34] sm:$0xf]
      %v658 = vld [vmem:[%s480 + $0x38] sm:$0xff]
      %v659 = vld [vmem:[%s480 + $0x40] sm:$0xff]
      %v660 = vld [vmem:[%s480 + $0x48] sm:$0xff]
      %v661 = vld [vmem:[%s480 + $0x50] sm:$0xf]
      %v662 = vld [vmem:[%s480 + $0x54] sm:$0xff]
      %v663 = vld [vmem:[%s480 + $0x5c] sm:$0xff]
      %v664 = vld [vmem:[%s480 + $0x64] sm:$0xff]
      %v665 = vld [vmem:[%s480 + $0x6c] sm:$0xf]
      %v682 = vunpack.c.l.b16 %v650
      %v683 = vunpack.c.h.b16 %v650
      %v684 = vunpack.c.l.b16 %v651
      %v685 = vunpack.c.h.b16 %v651
      %v686 = vunpack.c.l.b16 %v652
      %v687 = vunpack.c.h.b16 %v652
      %v688 = vunpack.c.l.b16 %v653
      %v689 = vunpack.c.l.b16 %v654
      %v690 = vunpack.c.h.b16 %v654
      %v691 = vunpack.c.l.b16 %v655
      %v692 = vunpack.c.h.b16 %v655
      %v693 = vunpack.c.l.b16 %v656
      %v694 = vunpack.c.h.b16 %v656
      %v695 = vunpack.c.l.b16 %v657
      %v696 = vunpack.c.l.b16 %v658
      %v697 = vunpack.c.h.b16 %v658
      %v698 = vunpack.c.l.b16 %v659
      %v699 = vunpack.c.h.b16 %v659
      %v700 = vunpack.c.l.b16 %v660
      %v701 = vunpack.c.h.b16 %v660
      %v702 = vunpack.c.l.b16 %v661
      %v703 = vunpack.c.l.b16 %v662
      %v704 = vunpack.c.h.b16 %v662
      %v705 = vunpack.c.l.b16 %v663
      %v706 = vunpack.c.h.b16 %v663
      %v707 = vunpack.c.l.b16 %v664
      %v708 = vunpack.c.h.b16 %v664
      %v709 = vunpack.c.l.b16 %v665
      %v710 = vpack.c.b16 %v689, %v682
      %v711 = vpack.c.b16 %v690, %v683
      %v712 = vpack.c.b16 %v691, %v684
      %v713 = vpack.c.b16 %v692, %v685
      %v714 = vpack.c.b16 %v693, %v686
      %v715 = vpack.c.b16 %v694, %v687
      %v716 = vpack.c.b16 %v695, %v688
      %v717 = vpack.c.b16 %v703, %v696
      %v718 = vpack.c.b16 %v704, %v697
      %v719 = vpack.c.b16 %v705, %v698
      %v720 = vpack.c.b16 %v706, %v699
      %v721 = vpack.c.b16 %v707, %v700
      %v722 = vpack.c.b16 %v708, %v701
      %v723 = vpack.c.b16 %v709, %v702
      %724 = vrot.lane.b32.xlu0 %v710, 127
      %v725 = vpop.permute.xlu0 %724
      %726 = vrot.lane.b32.xlu0 %v711, 127
      %v727 = vpop.permute.xlu0 %726
      %728 = vrot.lane.b32.xlu0 %v712, 127
      %v729 = vpop.permute.xlu0 %728
      %730 = vrot.lane.b32.xlu0 %v713, 127
      %v731 = vpop.permute.xlu0 %730
      %732 = vrot.lane.b32.xlu0 %v714, 127
      %v733 = vpop.permute.xlu0 %732
      %734 = vrot.lane.b32.xlu0 %v715, 127
      %v735 = vpop.permute.xlu0 %734
      %736 = vrot.lane.b32.xlu0 %v716, 127
      %v737 = vpop.permute.xlu0 %736
      %738 = vrot.lane.b32.xlu0 %v717, 127
      %v739 = vpop.permute.xlu0 %738
      %740 = vrot.lane.b32.xlu0 %v718, 127
      %v741 = vpop.permute.xlu0 %740
      %742 = vrot.lane.b32.xlu0 %v719, 127
      %v743 = vpop.permute.xlu0 %742
      %744 = vrot.lane.b32.xlu0 %v720, 127
      %v745 = vpop.permute.xlu0 %744
      %746 = vrot.lane.b32.xlu0 %v721, 127
      %v747 = vpop.permute.xlu0 %746
      %748 = vrot.lane.b32.xlu0 %v722, 127
      %v749 = vpop.permute.xlu0 %748
      %750 = vrot.lane.b32.xlu0 %v723, 127
      %v751 = vpop.permute.xlu0 %750
      %v752 = vsel %vm443, %v725, %v727
      %v753 = vsel %vm443, %v727, %v729
      %v754 = vsel %vm443, %v729, %v731
      %v755 = vsel %vm443, %v731, %v733
      %v756 = vsel %vm443, %v733, %v735
      %v757 = vsel %vm443, %v735, %v737
      %v758 = vsel %vm443, %v739, %v741
      %v759 = vsel %vm443, %v741, %v743
      %v760 = vsel %vm443, %v743, %v745
      %v761 = vsel %vm443, %v745, %v747
      %v762 = vsel %vm443, %v747, %v749
      %v763 = vsel %vm443, %v749, %v751
      %776 = vst [vmem:[#allocation2 + $0x1e0] sm:$0xff] %v752
      %777 = vst [vmem:[#allocation2 + $0x1e8] sm:$0xff] %v753
      %778 = vst [vmem:[#allocation2 + $0x1f0] sm:$0xff] %v754
      %779 = vst [vmem:[#allocation2 + $0x1f8] sm:$0xff] %v755
      %780 = vst [vmem:[#allocation2 + $0x200] sm:$0xff] %v756
      %781 = vst [vmem:[#allocation2 + $0x208] sm:$0xff] %v757
      %782 = vst [vmem:[#allocation2 + $0x210] sm:$0xff] %v758
      %783 = vst [vmem:[#allocation2 + $0x218] sm:$0xff] %v759
      %784 = vst [vmem:[#allocation2 + $0x220] sm:$0xff] %v760
      %785 = vst [vmem:[#allocation2 + $0x228] sm:$0xff] %v761
      %786 = vst [vmem:[#allocation2 + $0x230] sm:$0xff] %v762
      %787 = vst [vmem:[#allocation2 + $0x238] sm:$0xff] %v763
      %v788 = vld [vmem:[%s165] sm:$0xff]
      %v789 = vld [vmem:[%s165 + $0x8] sm:$0xff]
      %v790 = vld [vmem:[%s165 + $0x10] sm:$0xff]
      %v791 = vld [vmem:[%s165 + $0x18] sm:$0xf]
      %v792 = vld [vmem:[%s165 + $0x1c] sm:$0xff]
      %v793 = vld [vmem:[%s165 + $0x24] sm:$0xff]
      %v794 = vld [vmem:[%s165 + $0x2c] sm:$0xff]
      %v795 = vld [vmem:[%s165 + $0x34] sm:$0xf]
      %v796 = vld [vmem:[%s165 + $0x38] sm:$0xff]
      %v797 = vld [vmem:[%s165 + $0x40] sm:$0xff]
      %v798 = vld [vmem:[%s165 + $0x48] sm:$0xff]
      %v799 = vld [vmem:[%s165 + $0x50] sm:$0xf]
      %v800 = vld [vmem:[%s165 + $0x54] sm:$0xff]
      %v801 = vld [vmem:[%s165 + $0x5c] sm:$0xff]
      %v802 = vld [vmem:[%s165 + $0x64] sm:$0xff]
      %v803 = vld [vmem:[%s165 + $0x6c] sm:$0xf]
      %v820 = vunpack.c.l.b16 %v788
      %v821 = vunpack.c.h.b16 %v788
      %v822 = vunpack.c.l.b16 %v789
      %v823 = vunpack.c.h.b16 %v789
      %v824 = vunpack.c.l.b16 %v790
      %v825 = vunpack.c.h.b16 %v790
      %v826 = vunpack.c.l.b16 %v791
      %v827 = vunpack.c.l.b16 %v792
      %v828 = vunpack.c.h.b16 %v792
      %v829 = vunpack.c.l.b16 %v793
      %v830 = vunpack.c.h.b16 %v793
      %v831 = vunpack.c.l.b16 %v794
      %v832 = vunpack.c.h.b16 %v794
      %v833 = vunpack.c.l.b16 %v795
      %v834 = vunpack.c.l.b16 %v796
      %v835 = vunpack.c.h.b16 %v796
      %v836 = vunpack.c.l.b16 %v797
      %v837 = vunpack.c.h.b16 %v797
      %v838 = vunpack.c.l.b16 %v798
      %v839 = vunpack.c.h.b16 %v798
      %v840 = vunpack.c.l.b16 %v799
      %v841 = vunpack.c.l.b16 %v800
      %v842 = vunpack.c.h.b16 %v800
      %v843 = vunpack.c.l.b16 %v801
      %v844 = vunpack.c.h.b16 %v801
      %v845 = vunpack.c.l.b16 %v802
      %v846 = vunpack.c.h.b16 %v802
      %v847 = vunpack.c.l.b16 %v803
      %v848 = vpack.c.b16 %v827, %v820
      %v849 = vpack.c.b16 %v828, %v821
      %v850 = vpack.c.b16 %v829, %v822
      %v851 = vpack.c.b16 %v830, %v823
      %v852 = vpack.c.b16 %v831, %v824
      %v853 = vpack.c.b16 %v832, %v825
      %v854 = vpack.c.b16 %v833, %v826
      %v855 = vpack.c.b16 %v841, %v834
      %v856 = vpack.c.b16 %v842, %v835
      %v857 = vpack.c.b16 %v843, %v836
      %v858 = vpack.c.b16 %v844, %v837
      %v859 = vpack.c.b16 %v845, %v838
      %v860 = vpack.c.b16 %v846, %v839
      %v861 = vpack.c.b16 %v847, %v840
      %862 = vrot.lane.b32.xlu0 %v848, 96
      %v863 = vpop.permute.xlu0 %862
      %864 = vrot.lane.b32.xlu0 %v849, 96
      %v865 = vpop.permute.xlu0 %864
      %866 = vrot.lane.b32.xlu0 %v850, 96
      %v867 = vpop.permute.xlu0 %866
      %868 = vrot.lane.b32.xlu0 %v851, 96
      %v869 = vpop.permute.xlu0 %868
      %870 = vrot.lane.b32.xlu0 %v852, 96
      %v871 = vpop.permute.xlu0 %870
      %872 = vrot.lane.b32.xlu0 %v853, 96
      %v873 = vpop.permute.xlu0 %872
      %874 = vrot.lane.b32.xlu0 %v854, 96
      %v875 = vpop.permute.xlu0 %874
      %876 = vrot.lane.b32.xlu0 %v855, 96
      %v877 = vpop.permute.xlu0 %876
      %878 = vrot.lane.b32.xlu0 %v856, 96
      %v879 = vpop.permute.xlu0 %878
      %880 = vrot.lane.b32.xlu0 %v857, 96
      %v881 = vpop.permute.xlu0 %880
      %882 = vrot.lane.b32.xlu0 %v858, 96
      %v883 = vpop.permute.xlu0 %882
      %884 = vrot.lane.b32.xlu0 %v859, 96
      %v885 = vpop.permute.xlu0 %884
      %886 = vrot.lane.b32.xlu0 %v860, 96
      %v887 = vpop.permute.xlu0 %886
      %888 = vrot.lane.b32.xlu0 %v861, 96
      %v889 = vpop.permute.xlu0 %888
      %vm890 = vcmask 785408
      %v891 = vsel %vm890, %v863, %v865
      %v892 = vsel %vm890, %v865, %v867
      %v893 = vsel %vm890, %v867, %v869
      %v894 = vsel %vm890, %v869, %v871
      %v895 = vsel %vm890, %v871, %v873
      %v896 = vsel %vm890, %v873, %v875
      %v897 = vsel %vm890, %v877, %v879
      %v898 = vsel %vm890, %v879, %v881
      %v899 = vsel %vm890, %v881, %v883
      %v900 = vsel %vm890, %v883, %v885
      %v901 = vsel %vm890, %v885, %v887
      %v902 = vsel %vm890, %v887, %v889
      %915 = vst [vmem:[#allocation2 + $0x240] sm:$0xff] %v891
      %916 = vst [vmem:[#allocation2 + $0x248] sm:$0xff] %v892
      %917 = vst [vmem:[#allocation2 + $0x250] sm:$0xff] %v893
      %918 = vst [vmem:[#allocation2 + $0x258] sm:$0xff] %v894
      %919 = vst [vmem:[#allocation2 + $0x260] sm:$0xff] %v895
      %920 = vst [vmem:[#allocation2 + $0x268] sm:$0xff] %v896
      %921 = vst [vmem:[#allocation2 + $0x270] sm:$0xff] %v897
      %922 = vst [vmem:[#allocation2 + $0x278] sm:$0xff] %v898
      %923 = vst [vmem:[#allocation2 + $0x280] sm:$0xff] %v899
      %924 = vst [vmem:[#allocation2 + $0x288] sm:$0xff] %v900
      %925 = vst [vmem:[#allocation2 + $0x290] sm:$0xff] %v901
      %926 = vst [vmem:[#allocation2 + $0x298] sm:$0xff] %v902
      %v927 = vld [vmem:[%s256] sm:$0xff]
      %v928 = vld [vmem:[%s256 + $0x8] sm:$0xff]
      %v929 = vld [vmem:[%s256 + $0x10] sm:$0xff]
      %v930 = vld [vmem:[%s256 + $0x18] sm:$0xf]
      %v931 = vld [vmem:[%s256 + $0x1c] sm:$0xff]
      %v932 = vld [vmem:[%s256 + $0x24] sm:$0xff]
      %v933 = vld [vmem:[%s256 + $0x2c] sm:$0xff]
      %v934 = vld [vmem:[%s256 + $0x34] sm:$0xf]
      %v935 = vld [vmem:[%s256 + $0x38] sm:$0xff]
      %v936 = vld [vmem:[%s256 + $0x40] sm:$0xff]
      %v937 = vld [vmem:[%s256 + $0x48] sm:$0xff]
      %v938 = vld [vmem:[%s256 + $0x50] sm:$0xf]
      %v939 = vld [vmem:[%s256 + $0x54] sm:$0xff]
      %v940 = vld [vmem:[%s256 + $0x5c] sm:$0xff]
      %v941 = vld [vmem:[%s256 + $0x64] sm:$0xff]
      %v942 = vld [vmem:[%s256 + $0x6c] sm:$0xf]
      %v959 = vunpack.c.l.b16 %v927
      %v960 = vunpack.c.h.b16 %v927
      %v961 = vunpack.c.l.b16 %v928
      %v962 = vunpack.c.h.b16 %v928
      %v963 = vunpack.c.l.b16 %v929
      %v964 = vunpack.c.h.b16 %v929
      %v965 = vunpack.c.l.b16 %v930
      %v966 = vunpack.c.l.b16 %v931
      %v967 = vunpack.c.h.b16 %v931
      %v968 = vunpack.c.l.b16 %v932
      %v969 = vunpack.c.h.b16 %v932
      %v970 = vunpack.c.l.b16 %v933
      %v971 = vunpack.c.h.b16 %v933
      %v972 = vunpack.c.l.b16 %v934
      %v973 = vunpack.c.l.b16 %v935
      %v974 = vunpack.c.h.b16 %v935
      %v975 = vunpack.c.l.b16 %v936
      %v976 = vunpack.c.h.b16 %v936
      %v977 = vunpack.c.l.b16 %v937
      %v978 = vunpack.c.h.b16 %v937
      %v979 = vunpack.c.l.b16 %v938
      %v980 = vunpack.c.l.b16 %v939
      %v981 = vunpack.c.h.b16 %v939
      %v982 = vunpack.c.l.b16 %v940
      %v983 = vunpack.c.h.b16 %v940
      %v984 = vunpack.c.l.b16 %v941
      %v985 = vunpack.c.h.b16 %v941
      %v986 = vunpack.c.l.b16 %v942
      %v987 = vpack.c.b16 %v966, %v959
      %v988 = vpack.c.b16 %v967, %v960
      %v989 = vpack.c.b16 %v968, %v961
      %v990 = vpack.c.b16 %v969, %v962
      %v991 = vpack.c.b16 %v970, %v963
      %v992 = vpack.c.b16 %v971, %v964
      %v993 = vpack.c.b16 %v972, %v965
      %v994 = vpack.c.b16 %v980, %v973
      %v995 = vpack.c.b16 %v981, %v974
      %v996 = vpack.c.b16 %v982, %v975
      %v997 = vpack.c.b16 %v983, %v976
      %v998 = vpack.c.b16 %v984, %v977
      %v999 = vpack.c.b16 %v985, %v978
      %v1000 = vpack.c.b16 %v986, %v979
      %1001 = vrot.lane.b32.xlu0 %v987, 96
      %v1002 = vpop.permute.xlu0 %1001
      %1003 = vrot.lane.b32.xlu0 %v988, 96
      %v1004 = vpop.permute.xlu0 %1003
      %1005 = vrot.lane.b32.xlu0 %v989, 96
      %v1006 = vpop.permute.xlu0 %1005
      %1007 = vrot.lane.b32.xlu0 %v990, 96
      %v1008 = vpop.permute.xlu0 %1007
      %1009 = vrot.lane.b32.xlu0 %v991, 96
      %v1010 = vpop.permute.xlu0 %1009
      %1011 = vrot.lane.b32.xlu0 %v992, 96
      %v1012 = vpop.permute.xlu0 %1011
      %1013 = vrot.lane.b32.xlu0 %v993, 96
      %v1014 = vpop.permute.xlu0 %1013
      %1015 = vrot.lane.b32.xlu0 %v994, 96
      %v1016 = vpop.permute.xlu0 %1015
      %1017 = vrot.lane.b32.xlu0 %v995, 96
      %v1018 = vpop.permute.xlu0 %1017
      %1019 = vrot.lane.b32.xlu0 %v996, 96
      %v1020 = vpop.permute.xlu0 %1019
      %1021 = vrot.lane.b32.xlu0 %v997, 96
      %v1022 = vpop.permute.xlu0 %1021
      %1023 = vrot.lane.b32.xlu0 %v998, 96
      %v1024 = vpop.permute.xlu0 %1023
      %1025 = vrot.lane.b32.xlu0 %v999, 96
      %v1026 = vpop.permute.xlu0 %1025
      %1027 = vrot.lane.b32.xlu0 %v1000, 96
      %v1028 = vpop.permute.xlu0 %1027
      %v1029 = vsel %vm890, %v1002, %v1004
      %v1030 = vsel %vm890, %v1004, %v1006
      %v1031 = vsel %vm890, %v1006, %v1008
      %v1032 = vsel %vm890, %v1008, %v1010
      %v1033 = vsel %vm890, %v1010, %v1012
      %v1034 = vsel %vm890, %v1012, %v1014
      %v1035 = vsel %vm890, %v1016, %v1018
      %v1036 = vsel %vm890, %v1018, %v1020
      %v1037 = vsel %vm890, %v1020, %v1022
      %v1038 = vsel %vm890, %v1022, %v1024
      %v1039 = vsel %vm890, %v1024, %v1026
      %v1040 = vsel %vm890, %v1026, %v1028
      %1053 = vst [vmem:[#allocation2 + $0x2a0] sm:$0xff] %v1029
      %1054 = vst [vmem:[#allocation2 + $0x2a8] sm:$0xff] %v1030
      %1055 = vst [vmem:[#allocation2 + $0x2b0] sm:$0xff] %v1031
      %1056 = vst [vmem:[#allocation2 + $0x2b8] sm:$0xff] %v1032
      %1057 = vst [vmem:[#allocation2 + $0x2c0] sm:$0xff] %v1033
      %1058 = vst [vmem:[#allocation2 + $0x2c8] sm:$0xff] %v1034
      %1059 = vst [vmem:[#allocation2 + $0x2d0] sm:$0xff] %v1035
      %1060 = vst [vmem:[#allocation2 + $0x2d8] sm:$0xff] %v1036
      %1061 = vst [vmem:[#allocation2 + $0x2e0] sm:$0xff] %v1037
      %1062 = vst [vmem:[#allocation2 + $0x2e8] sm:$0xff] %v1038
      %1063 = vst [vmem:[#allocation2 + $0x2f0] sm:$0xff] %v1039
      %1064 = vst [vmem:[#allocation2 + $0x2f8] sm:$0xff] %v1040
      %v1065 = vld [vmem:[%s165] sm:$0xff]
      %v1066 = vld [vmem:[%s165 + $0x8] sm:$0xff]
      %v1067 = vld [vmem:[%s165 + $0x10] sm:$0xff]
      %v1068 = vld [vmem:[%s165 + $0x18] sm:$0xf]
      %v1069 = vld [vmem:[%s165 + $0x1c] sm:$0xff]
      %v1070 = vld [vmem:[%s165 + $0x24] sm:$0xff]
      %v1071 = vld [vmem:[%s165 + $0x2c] sm:$0xff]
      %v1072 = vld [vmem:[%s165 + $0x34] sm:$0xf]
      %v1073 = vld [vmem:[%s165 + $0x38] sm:$0xff]
      %v1074 = vld [vmem:[%s165 + $0x40] sm:$0xff]
      %v1075 = vld [vmem:[%s165 + $0x48] sm:$0xff]
      %v1076 = vld [vmem:[%s165 + $0x50] sm:$0xf]
      %v1077 = vld [vmem:[%s165 + $0x54] sm:$0xff]
      %v1078 = vld [vmem:[%s165 + $0x5c] sm:$0xff]
      %v1079 = vld [vmem:[%s165 + $0x64] sm:$0xff]
      %v1080 = vld [vmem:[%s165 + $0x6c] sm:$0xf]
      %v1097 = vunpack.c.l.b16 %v1065
      %v1098 = vunpack.c.h.b16 %v1065
      %v1099 = vunpack.c.l.b16 %v1066
      %v1100 = vunpack.c.h.b16 %v1066
      %v1101 = vunpack.c.l.b16 %v1067
      %v1102 = vunpack.c.h.b16 %v1067
      %v1103 = vunpack.c.l.b16 %v1068
      %v1104 = vunpack.c.l.b16 %v1069
      %v1105 = vunpack.c.h.b16 %v1069
      %v1106 = vunpack.c.l.b16 %v1070
      %v1107 = vunpack.c.h.b16 %v1070
      %v1108 = vunpack.c.l.b16 %v1071
      %v1109 = vunpack.c.h.b16 %v1071
      %v1110 = vunpack.c.l.b16 %v1072
      %v1111 = vunpack.c.l.b16 %v1073
      %v1112 = vunpack.c.h.b16 %v1073
      %v1113 = vunpack.c.l.b16 %v1074
      %v1114 = vunpack.c.h.b16 %v1074
      %v1115 = vunpack.c.l.b16 %v1075
      %v1116 = vunpack.c.h.b16 %v1075
      %v1117 = vunpack.c.l.b16 %v1076
      %v1118 = vunpack.c.l.b16 %v1077
      %v1119 = vunpack.c.h.b16 %v1077
      %v1120 = vunpack.c.l.b16 %v1078
      %v1121 = vunpack.c.h.b16 %v1078
      %v1122 = vunpack.c.l.b16 %v1079
      %v1123 = vunpack.c.h.b16 %v1079
      %v1124 = vunpack.c.l.b16 %v1080
      %v1125 = vpack.c.b16 %v1104, %v1097
      %v1126 = vpack.c.b16 %v1105, %v1098
      %v1127 = vpack.c.b16 %v1106, %v1099
      %v1128 = vpack.c.b16 %v1107, %v1100
      %v1129 = vpack.c.b16 %v1108, %v1101
      %v1130 = vpack.c.b16 %v1109, %v1102
      %v1131 = vpack.c.b16 %v1110, %v1103
      %v1132 = vpack.c.b16 %v1118, %v1111
      %v1133 = vpack.c.b16 %v1119, %v1112
      %v1134 = vpack.c.b16 %v1120, %v1113
      %v1135 = vpack.c.b16 %v1121, %v1114
      %v1136 = vpack.c.b16 %v1122, %v1115
      %v1137 = vpack.c.b16 %v1123, %v1116
      %v1138 = vpack.c.b16 %v1124, %v1117
      %1139 = vrot.lane.b32.xlu0 %v1125, 95
      %v1140 = vpop.permute.xlu0 %1139
      %1141 = vrot.lane.b32.xlu0 %v1126, 95
      %v1142 = vpop.permute.xlu0 %1141
      %1143 = vrot.lane.b32.xlu0 %v1127, 95
      %v1144 = vpop.permute.xlu0 %1143
      %1145 = vrot.lane.b32.xlu0 %v1128, 95
      %v1146 = vpop.permute.xlu0 %1145
      %1147 = vrot.lane.b32.xlu0 %v1129, 95
      %v1148 = vpop.permute.xlu0 %1147
      %1149 = vrot.lane.b32.xlu0 %v1130, 95
      %v1150 = vpop.permute.xlu0 %1149
      %1151 = vrot.lane.b32.xlu0 %v1131, 95
      %v1152 = vpop.permute.xlu0 %1151
      %1153 = vrot.lane.b32.xlu0 %v1132, 95
      %v1154 = vpop.permute.xlu0 %1153
      %1155 = vrot.lane.b32.xlu0 %v1133, 95
      %v1156 = vpop.permute.xlu0 %1155
      %1157 = vrot.lane.b32.xlu0 %v1134, 95
      %v1158 = vpop.permute.xlu0 %1157
      %1159 = vrot.lane.b32.xlu0 %v1135, 95
      %v1160 = vpop.permute.xlu0 %1159
      %1161 = vrot.lane.b32.xlu0 %v1136, 95
      %v1162 = vpop.permute.xlu0 %1161
      %1163 = vrot.lane.b32.xlu0 %v1137, 95
      %v1164 = vpop.permute.xlu0 %1163
      %1165 = vrot.lane.b32.xlu0 %v1138, 95
      %v1166 = vpop.permute.xlu0 %1165
      %vm1167 = vcmask 777216
      %v1168 = vsel %vm1167, %v1140, %v1142
      %v1169 = vsel %vm1167, %v1142, %v1144
      %v1170 = vsel %vm1167, %v1144, %v1146
      %v1171 = vsel %vm1167, %v1146, %v1148
      %v1172 = vsel %vm1167, %v1148, %v1150
      %v1173 = vsel %vm1167, %v1150, %v1152
      %v1174 = vsel %vm1167, %v1154, %v1156
      %v1175 = vsel %vm1167, %v1156, %v1158
      %v1176 = vsel %vm1167, %v1158, %v1160
      %v1177 = vsel %vm1167, %v1160, %v1162
      %v1178 = vsel %vm1167, %v1162, %v1164
      %v1179 = vsel %vm1167, %v1164, %v1166
      %1192 = vst [vmem:[#allocation2 + $0x300] sm:$0xff] %v1168
      %1193 = vst [vmem:[#allocation2 + $0x308] sm:$0xff] %v1169
      %1194 = vst [vmem:[#allocation2 + $0x310] sm:$0xff] %v1170
      %1195 = vst [vmem:[#allocation2 + $0x318] sm:$0xff] %v1171
      %1196 = vst [vmem:[#allocation2 + $0x320] sm:$0xff] %v1172
      %1197 = vst [vmem:[#allocation2 + $0x328] sm:$0xff] %v1173
      %1198 = vst [vmem:[#allocation2 + $0x330] sm:$0xff] %v1174
      %1199 = vst [vmem:[#allocation2 + $0x338] sm:$0xff] %v1175
      %1200 = vst [vmem:[#allocation2 + $0x340] sm:$0xff] %v1176
      %1201 = vst [vmem:[#allocation2 + $0x348] sm:$0xff] %v1177
      %1202 = vst [vmem:[#allocation2 + $0x350] sm:$0xff] %v1178
      %1203 = vst [vmem:[#allocation2 + $0x358] sm:$0xff] %v1179
      %v1204 = vld [vmem:[%s1] sm:$0xff]
      %v1205 = vld [vmem:[%s1 + $0x8] sm:$0xf]
      %v1206 = vld [vmem:[%s1 + $0xc] sm:$0xff]
      %v1207 = vld [vmem:[%s1 + $0x14] sm:$0xf]
      %v1208 = vld [vmem:[%s1 + $0x18] sm:$0xff]
      %v1209 = vld [vmem:[%s1 + $0x20] sm:$0xf]
      %v1210 = vld [vmem:[%s1 + $0x24] sm:$0xff]
      %v1211 = vld [vmem:[%s1 + $0x2c] sm:$0xf]
      %v1212 = vld [vmem:[%s1 + $0x30] sm:$0xff]
      %v1213 = vld [vmem:[%s1 + $0x38] sm:$0xf]
      %v1214 = vld [vmem:[%s1 + $0x3c] sm:$0xff]
      %v1215 = vld [vmem:[%s1 + $0x44] sm:$0xf]
      %v1216 = vld [vmem:[%s1 + $0x48] sm:$0xff]
      %v1217 = vld [vmem:[%s1 + $0x50] sm:$0xf]
      %v1218 = vld [vmem:[%s1 + $0x54] sm:$0xff]
      %v1219 = vld [vmem:[%s1 + $0x5c] sm:$0xf]
      %v1220 = vld [vmem:[#allocation2] sm:$0xff]
      %v1221 = vld [vmem:[#allocation2 + $0x8] sm:$0xff]
      %v1222 = vld [vmem:[#allocation2 + $0x10] sm:$0xff]
      %v1223 = vld [vmem:[#allocation2 + $0x18] sm:$0xff]
      %v1224 = vld [vmem:[#allocation2 + $0x20] sm:$0xff]
      %v1225 = vld [vmem:[#allocation2 + $0x28] sm:$0xff]
      %v1226 = vld [vmem:[#allocation2 + $0x30] sm:$0xff]
      %v1227 = vld [vmem:[#allocation2 + $0x38] sm:$0xff]
      %v1228 = vld [vmem:[#allocation2 + $0x40] sm:$0xff]
      %v1229 = vld [vmem:[#allocation2 + $0x48] sm:$0xff]
      %v1230 = vld [vmem:[#allocation2 + $0x50] sm:$0xff]
      %v1231 = vld [vmem:[#allocation2 + $0x58] sm:$0xff]
      %v1232 = vld [vmem:[#allocation2 + $0x60] sm:$0xff]
      %v1233 = vld [vmem:[#allocation2 + $0x68] sm:$0xff]
      %v1234 = vld [vmem:[#allocation2 + $0x70] sm:$0xff]
      %v1235 = vld [vmem:[#allocation2 + $0x78] sm:$0xff]
      %v1236 = vld [vmem:[#allocation2 + $0x80] sm:$0xff]
      %v1237 = vld [vmem:[#allocation2 + $0x88] sm:$0xff]
      %v1238 = vld [vmem:[#allocation2 + $0x90] sm:$0xff]
      %v1239 = vld [vmem:[#allocation2 + $0x98] sm:$0xff]
      %v1240 = vld [vmem:[#allocation2 + $0xa0] sm:$0xff]
      %v1241 = vld [vmem:[#allocation2 + $0xa8] sm:$0xff]
      %v1242 = vld [vmem:[#allocation2 + $0xb0] sm:$0xff]
      %v1243 = vld [vmem:[#allocation2 + $0xb8] sm:$0xff]
      %v1244 = vld [vmem:[#allocation2 + $0xc0] sm:$0xff]
      %v1245 = vld [vmem:[#allocation2 + $0xc8] sm:$0xff]
      %v1246 = vld [vmem:[#allocation2 + $0xd0] sm:$0xff]
      %v1247 = vld [vmem:[#allocation2 + $0xd8] sm:$0xff]
      %v1248 = vld [vmem:[#allocation2 + $0xe0] sm:$0xff]
      %v1249 = vld [vmem:[#allocation2 + $0xe8] sm:$0xff]
      %v1250 = vld [vmem:[#allocation2 + $0xf0] sm:$0xff]
      %v1251 = vld [vmem:[#allocation2 + $0xf8] sm:$0xff]
      %v1252 = vld [vmem:[#allocation2 + $0x100] sm:$0xff]
      %v1253 = vld [vmem:[#allocation2 + $0x108] sm:$0xff]
      %v1254 = vld [vmem:[#allocation2 + $0x110] sm:$0xff]
      %v1255 = vld [vmem:[#allocation2 + $0x118] sm:$0xff]
      %v1256 = vld [vmem:[#allocation2 + $0x120] sm:$0xff]
      %v1257 = vld [vmem:[#allocation2 + $0x128] sm:$0xff]
      %v1258 = vld [vmem:[#allocation2 + $0x130] sm:$0xff]
      %v1259 = vld [vmem:[#allocation2 + $0x138] sm:$0xff]
      %v1260 = vld [vmem:[#allocation2 + $0x140] sm:$0xff]
      %v1261 = vld [vmem:[#allocation2 + $0x148] sm:$0xff]
      %v1262 = vld [vmem:[#allocation2 + $0x150] sm:$0xff]
      %v1263 = vld [vmem:[#allocation2 + $0x158] sm:$0xff]
      %v1264 = vld [vmem:[#allocation2 + $0x160] sm:$0xff]
      %v1265 = vld [vmem:[#allocation2 + $0x168] sm:$0xff]
      %v1266 = vld [vmem:[#allocation2 + $0x170] sm:$0xff]
      %v1267 = vld [vmem:[#allocation2 + $0x178] sm:$0xff]
      %v1268 = vld [vmem:[#allocation2 + $0x180] sm:$0xff]
      %v1269 = vld [vmem:[#allocation2 + $0x188] sm:$0xff]
      %v1270 = vld [vmem:[#allocation2 + $0x190] sm:$0xff]
      %v1271 = vld [vmem:[#allocation2 + $0x198] sm:$0xff]
      %v1272 = vld [vmem:[#allocation2 + $0x1a0] sm:$0xff]
      %v1273 = vld [vmem:[#allocation2 + $0x1a8] sm:$0xff]
      %v1274 = vld [vmem:[#allocation2 + $0x1b0] sm:$0xff]
      %v1275 = vld [vmem:[#allocation2 + $0x1b8] sm:$0xff]
      %v1276 = vld [vmem:[#allocation2 + $0x1c0] sm:$0xff]
      %v1277 = vld [vmem:[#allocation2 + $0x1c8] sm:$0xff]
      %v1278 = vld [vmem:[#allocation2 + $0x1d0] sm:$0xff]
      %v1279 = vld [vmem:[#allocation2 + $0x1d8] sm:$0xff]
      %v1280 = vld [vmem:[#allocation2 + $0x1e0] sm:$0xff]
      %v1281 = vld [vmem:[#allocation2 + $0x1e8] sm:$0xff]
      %v1282 = vld [vmem:[#allocation2 + $0x1f0] sm:$0xff]
      %v1283 = vld [vmem:[#allocation2 + $0x1f8] sm:$0xff]
      %v1284 = vld [vmem:[#allocation2 + $0x200] sm:$0xff]
      %v1285 = vld [vmem:[#allocation2 + $0x208] sm:$0xff]
      %v1286 = vld [vmem:[#allocation2 + $0x210] sm:$0xff]
      %v1287 = vld [vmem:[#allocation2 + $0x218] sm:$0xff]
      %v1288 = vld [vmem:[#allocation2 + $0x220] sm:$0xff]
      %v1289 = vld [vmem:[#allocation2 + $0x228] sm:$0xff]
      %v1290 = vld [vmem:[#allocation2 + $0x230] sm:$0xff]
      %v1291 = vld [vmem:[#allocation2 + $0x238] sm:$0xff]
      %v1292 = vld [vmem:[#allocation2 + $0x240] sm:$0xff]
      %v1293 = vld [vmem:[#allocation2 + $0x248] sm:$0xff]
      %v1294 = vld [vmem:[#allocation2 + $0x250] sm:$0xff]
      %v1295 = vld [vmem:[#allocation2 + $0x258] sm:$0xff]
      %v1296 = vld [vmem:[#allocation2 + $0x260] sm:$0xff]
      %v1297 = vld [vmem:[#allocation2 + $0x268] sm:$0xff]
      %v1298 = vld [vmem:[#allocation2 + $0x270] sm:$0xff]
      %v1299 = vld [vmem:[#allocation2 + $0x278] sm:$0xff]
      %v1300 = vld [vmem:[#allocation2 + $0x280] sm:$0xff]
      %v1301 = vld [vmem:[#allocation2 + $0x288] sm:$0xff]
      %v1302 = vld [vmem:[#allocation2 + $0x290] sm:$0xff]
      %v1303 = vld [vmem:[#allocation2 + $0x298] sm:$0xff]
      %v1304 = vld [vmem:[#allocation2 + $0x2a0] sm:$0xff]
      %v1305 = vld [vmem:[#allocation2 + $0x2a8] sm:$0xff]
      %v1306 = vld [vmem:[#allocation2 + $0x2b0] sm:$0xff]
      %v1307 = vld [vmem:[#allocation2 + $0x2b8] sm:$0xff]
      %v1308 = vld [vmem:[#allocation2 + $0x2c0] sm:$0xff]
      %v1309 = vld [vmem:[#allocation2 + $0x2c8] sm:$0xff]
      %v1310 = vld [vmem:[#allocation2 + $0x2d0] sm:$0xff]
      %v1311 = vld [vmem:[#allocation2 + $0x2d8] sm:$0xff]
      %v1312 = vld [vmem:[#allocation2 + $0x2e0] sm:$0xff]
      %v1313 = vld [vmem:[#allocation2 + $0x2e8] sm:$0xff]
      %v1314 = vld [vmem:[#allocation2 + $0x2f0] sm:$0xff]
      %v1315 = vld [vmem:[#allocation2 + $0x2f8] sm:$0xff]
      %v1316 = vld [vmem:[#allocation2 + $0x300] sm:$0xff]
      %v1317 = vld [vmem:[#allocation2 + $0x308] sm:$0xff]
      %v1318 = vld [vmem:[#allocation2 + $0x310] sm:$0xff]
      %v1319 = vld [vmem:[#allocation2 + $0x318] sm:$0xff]
      %v1320 = vld [vmem:[#allocation2 + $0x320] sm:$0xff]
      %v1321 = vld [vmem:[#allocation2 + $0x328] sm:$0xff]
      %v1322 = vld [vmem:[#allocation2 + $0x330] sm:$0xff]
      %v1323 = vld [vmem:[#allocation2 + $0x338] sm:$0xff]
      %v1324 = vld [vmem:[#allocation2 + $0x340] sm:$0xff]
      %v1325 = vld [vmem:[#allocation2 + $0x348] sm:$0xff]
      %v1326 = vld [vmem:[#allocation2 + $0x350] sm:$0xff]
      %v1327 = vld [vmem:[#allocation2 + $0x358] sm:$0xff]
      %v1328 = vld [vmem:[%s2] sm:$0xff]
      %v1329 = vld [vmem:[%s2 + $0x8] sm:$0xff]
      %v1330 = vld [vmem:[%s2 + $0x10] sm:$0xff]
      %v1331 = vld [vmem:[%s2 + $0x18] sm:$0xff]
      %v1332 = vld [vmem:[%s2 + $0x20] sm:$0xff]
      %v1333 = vld [vmem:[%s2 + $0x28] sm:$0xff]
      %v1334 = vld [vmem:[%s2 + $0x30] sm:$0xff]
      %v1335 = vld [vmem:[%s2 + $0x38] sm:$0xff]
      %1337 = vset.pattern.permute.xlu0 0
      %1338 = vperm.xlu0 %1337, %v1328
      %v1339 = vpop.permute.xlu0 %1338
      %1342 = vset.pattern.permute.xlu0 0
      %1343 = vperm.xlu0 %1342, %v1329
      %v1344 = vpop.permute.xlu0 %1343
      %1347 = vset.pattern.permute.xlu0 0
      %1348 = vperm.xlu0 %1347, %v1330
      %v1349 = vpop.permute.xlu0 %1348
      %1352 = vset.pattern.permute.xlu0 0
      %1353 = vperm.xlu0 %1352, %v1331
      %v1354 = vpop.permute.xlu0 %1353
      %1357 = vset.pattern.permute.xlu0 0
      %1358 = vperm.xlu0 %1357, %v1332
      %v1359 = vpop.permute.xlu0 %1358
      %1362 = vset.pattern.permute.xlu0 0
      %1363 = vperm.xlu0 %1362, %v1333
      %v1364 = vpop.permute.xlu0 %1363
      %1367 = vset.pattern.permute.xlu0 0
      %1368 = vperm.xlu0 %1367, %v1334
      %v1369 = vpop.permute.xlu0 %1368
      %1372 = vset.pattern.permute.xlu0 0
      %1373 = vperm.xlu0 %1372, %v1335
      %v1374 = vpop.permute.xlu0 %1373
      %v1392 = vunpack.c.l.b16 %v1204
      %v1393 = vunpack.c.h.b16 %v1204
      %v1394 = vunpack.c.l.b16 %v1205
      %v1395 = vunpack.c.l.b16 %v1206
      %v1396 = vunpack.c.h.b16 %v1206
      %v1397 = vunpack.c.l.b16 %v1207
      %v1398 = vunpack.c.l.b16 %v1208
      %v1399 = vunpack.c.h.b16 %v1208
      %v1400 = vunpack.c.l.b16 %v1209
      %v1401 = vunpack.c.l.b16 %v1210
      %v1402 = vunpack.c.h.b16 %v1210
      %v1403 = vunpack.c.l.b16 %v1211
      %v1404 = vunpack.c.l.b16 %v1212
      %v1405 = vunpack.c.h.b16 %v1212
      %v1406 = vunpack.c.l.b16 %v1213
      %v1407 = vunpack.c.l.b16 %v1214
      %v1408 = vunpack.c.h.b16 %v1214
      %v1409 = vunpack.c.l.b16 %v1215
      %v1410 = vunpack.c.l.b16 %v1216
      %v1411 = vunpack.c.h.b16 %v1216
      %v1412 = vunpack.c.l.b16 %v1217
      %v1413 = vunpack.c.l.b16 %v1218
      %v1414 = vunpack.c.h.b16 %v1218
      %v1415 = vunpack.c.l.b16 %v1219
      %v1416 = vpack.c.b16 %v1395, %v1392
      %v1417 = vpack.c.b16 %v1396, %v1393
      %v1418 = vpack.c.b16 %v1397, %v1394
      %v1419 = vpack.c.b16 %v1401, %v1398
      %v1420 = vpack.c.b16 %v1402, %v1399
      %v1421 = vpack.c.b16 %v1403, %v1400
      %v1422 = vpack.c.b16 %v1407, %v1404
      %v1423 = vpack.c.b16 %v1408, %v1405
      %v1424 = vpack.c.b16 %v1409, %v1406
      %v1425 = vpack.c.b16 %v1413, %v1410
      %v1426 = vpack.c.b16 %v1414, %v1411
      %v1427 = vpack.c.b16 %v1415, %v1412
      %vm1436 = vcmask 261120
      %v1438 = vsel %vm1436, %v1418, 0
      %v1441 = vsel %vm1436, %v1421, 0
      %v1444 = vsel %vm1436, %v1424, 0
      %v1447 = vsel %vm1436, %v1427, 0
      %1449 = vmatprep.subr.bf16.mxu0 %v1221
      %1450 = vmatpush1.bf16.msra.mxu0 %v1220
      %1451 = vmatprep.subr.bf16.mxu0 %v1227
      %1452 = vmatpush1.bf16.msra.mxu0 %v1226
      %1453 = vmatprep.subr.bf16.mxu0 %v1233
      %1454 = vmatpush1.bf16.msra.mxu0 %v1232
      %1455 = vmatprep.subr.bf16.mxu0 %v1239
      %1456 = vmatpush1.bf16.msra.mxu0 %v1238
      %1457 = vmatprep.subr.bf16.mxu0 %v1245
      %1458 = vmatpush1.bf16.msra.mxu0 %v1244
      %1459 = vmatprep.subr.bf16.mxu0 %v1251
      %1460 = vmatpush1.bf16.msra.mxu0 %v1250
      %1461 = vmatprep.subr.bf16.mxu0 %v1257
      %1462 = vmatpush1.bf16.msra.mxu0 %v1256
      %1463 = vmatprep.subr.bf16.mxu0 %v1263
      %1464 = vmatpush1.bf16.msra.mxu0 %v1262
      %1465 = vmatprep.subr.bf16.mxu0 %v1269
      %1466 = vmatpush1.bf16.msra.mxu0 %v1268
      %1467 = vmatprep.subr.bf16.mxu0 %v1275
      %1468 = vmatpush1.bf16.msra.mxu0 %v1274
      %1469 = vmatprep.subr.bf16.mxu0 %v1281
      %1470 = vmatpush1.bf16.msra.mxu0 %v1280
      %1471 = vmatprep.subr.bf16.mxu0 %v1287
      %1472 = vmatpush1.bf16.msra.mxu0 %v1286
      %1473 = vmatprep.subr.bf16.mxu0 %v1293
      %1474 = vmatpush1.bf16.msra.mxu0 %v1292
      %1475 = vmatprep.subr.bf16.mxu0 %v1299
      %1476 = vmatpush1.bf16.msra.mxu0 %v1298
      %1477 = vmatprep.subr.bf16.mxu0 %v1305
      %1478 = vmatpush1.bf16.msra.mxu0 %v1304
      %1479 = vmatprep.subr.bf16.mxu0 %v1311
      %1480 = vmatpush1.bf16.msra.mxu0 %v1310
      %1481 = vmatprep.mubr.bf16.mxu0 %v1417
      %1482 = vmatmul.mubr.bf16.gmra.mrb[0].mxu0 %v1416
      %v1483 = vpop.f32.mrb[0].mxu0
      %v1484 = vadd.f32 %v1339, %v1483
      %v1485 = vpop.f32.mrb[0].mxu0
      %v1486 = vadd.f32 %v1339, %v1485
      %v1487 = vpop.f32.mrb[0].mxu0
      %v1488 = vadd.f32 %v1344, %v1487
      %v1489 = vpop.f32.mrb[0].mxu0
      %v1490 = vadd.f32 %v1344, %v1489
      %1491 = vmatprep.mubr.bf16.mxu0 %v1420
      %1492 = vmatmul.mubr.bf16.gmra.mrb[0].mxu0 %v1419
      %v1493 = vpop.f32.mrb[0].mxu0
      %v1494 = vadd.f32 %v1349, %v1493
      %v1495 = vpop.f32.mrb[0].mxu0
      %v1496 = vadd.f32 %v1349, %v1495
      %v1497 = vpop.f32.mrb[0].mxu0
      %v1498 = vadd.f32 %v1354, %v1497
      %v1499 = vpop.f32.mrb[0].mxu0
      %v1500 = vadd.f32 %v1354, %v1499
      %1501 = vmatprep.mubr.bf16.mxu0 %v1423
      %1502 = vmatmul.mubr.bf16.gmra.mrb[0].mxu0 %v1422
      %v1503 = vpop.f32.mrb[0].mxu0
      %v1504 = vadd.f32 %v1359, %v1503
      %v1505 = vpop.f32.mrb[0].mxu0
      %v1506 = vadd.f32 %v1359, %v1505
      %v1507 = vpop.f32.mrb[0].mxu0
      %v1508 = vadd.f32 %v1364, %v1507
      %v1509 = vpop.f32.mrb[0].mxu0
      %v1510 = vadd.f32 %v1364, %v1509
      %1511 = vmatprep.mubr.bf16.mxu0 %v1426
      %1512 = vmatmul.mubr.bf16.gmra.mrb[0].mxu0 %v1425
      %v1513 = vpop.f32.mrb[0].mxu0
      %v1514 = vadd.f32 %v1369, %v1513
      %v1515 = vpop.f32.mrb[0].mxu0
      %v1516 = vadd.f32 %v1369, %v1515
      %v1517 = vpop.f32.mrb[0].mxu0
      %v1518 = vadd.f32 %v1374, %v1517
      %v1519 = vpop.f32.mrb[0].mxu0
      %v1520 = vadd.f32 %v1374, %v1519
      %1521 = vdwg.mxu0
      %1522 = vmatprep.subr.bf16.mxu0 %v1317
      %1523 = vmatpush1.bf16.msra.mxu0 %v1316
      %1524 = vmatprep.subr.bf16.mxu0 %v1323
      %1525 = vmatpush1.bf16.msra.mxu0 %v1322
      %1526 = vmatprep.subr.bf16.mxu0 0
      %1527 = vmatpush1.bf16.msra.mxu0 0
      %1528 = vmatprep.subr.bf16.mxu0 0
      %1529 = vmatpush1.bf16.msra.mxu0 0
      %1530 = vmatprep.subr.bf16.mxu0 0
      %1531 = vmatpush1.bf16.msra.mxu0 0
      %1532 = vmatprep.subr.bf16.mxu0 0
      %1533 = vmatpush1.bf16.msra.mxu0 0
      %1534 = vmatprep.subr.bf16.mxu0 0
      %1535 = vmatpush1.bf16.msra.mxu0 0
      %1536 = vmatprep.subr.bf16.mxu0 0
      %1537 = vmatpush1.bf16.msra.mxu0 0
      %1538 = vmatprep.subr.bf16.mxu0 0
      %1539 = vmatpush1.bf16.msra.mxu0 0
      %1540 = vmatprep.subr.bf16.mxu0 0
      %1541 = vmatpush1.bf16.msra.mxu0 0
      %1542 = vmatprep.subr.bf16.mxu0 0
      %1543 = vmatpush1.bf16.msra.mxu0 0
      %1544 = vmatprep.subr.bf16.mxu0 0
      %1545 = vmatpush1.bf16.msra.mxu0 0
      %1546 = vmatprep.subr.bf16.mxu0 0
      %1547 = vmatpush1.bf16.msra.mxu0 0
      %1548 = vmatprep.subr.bf16.mxu0 0
      %1549 = vmatpush1.bf16.msra.mxu0 0
      %1550 = vmatprep.subr.bf16.mxu0 0
      %1551 = vmatpush1.bf16.msra.mxu0 0
      %1552 = vmatprep.subr.bf16.mxu0 0
      %1553 = vmatpush1.bf16.msra.mxu0 0
      %1554 = vmatprep.mubr.bf16.mxu0 0
      %1555 = vmatmul.mubr.bf16.gmra.mrb[0].mxu0 %v1438
      %v1556 = vpop.f32.mrb[0].mxu0
      %v1557 = vadd.f32 %v1484, %v1556
      %v1558 = vpop.f32.mrb[0].mxu0
      %v1559 = vadd.f32 %v1486, %v1558
      %v1560 = vpop.f32.mrb[0].mxu0
      %v1561 = vadd.f32 %v1488, %v1560
      %v1562 = vpop.f32.mrb[0].mxu0
      %v1563 = vadd.f32 %v1490, %v1562
      %1564 = vmatprep.mubr.bf16.mxu0 0
      %1565 = vmatmul.mubr.bf16.gmra.mrb[0].mxu0 %v1441
      %v1566 = vpop.f32.mrb[0].mxu0
      %v1567 = vadd.f32 %v1494, %v1566
      %v1568 = vpop.f32.mrb[0].mxu0
      %v1569 = vadd.f32 %v1496, %v1568
      %v1570 = vpop.f32.mrb[0].mxu0
      %v1571 = vadd.f32 %v1498, %v1570
      %v1572 = vpop.f32.mrb[0].mxu0
      %v1573 = vadd.f32 %v1500, %v1572
      %1574 = vmatprep.mubr.bf16.mxu0 0
      %1575 = vmatmul.mubr.bf16.gmra.mrb[0].mxu0 %v1444
      %v1576 = vpop.f32.mrb[0].mxu0
      %v1577 = vadd.f32 %v1504, %v1576
      %v1578 = vpop.f32.mrb[0].mxu0
      %v1579 = vadd.f32 %v1506, %v1578
      %v1580 = vpop.f32.mrb[0].mxu0
      %v1581 = vadd.f32 %v1508, %v1580
      %v1582 = vpop.f32.mrb[0].mxu0
      %v1583 = vadd.f32 %v1510, %v1582
      %1584 = vmatprep.mubr.bf16.mxu0 0
      %1585 = vmatmul.mubr.bf16.gmra.mrb[0].mxu0 %v1447
      %v1586 = vpop.f32.mrb[0].mxu0
      %v1587 = vadd.f32 %v1514, %v1586
      %v1588 = vpop.f32.mrb[0].mxu0
      %v1589 = vadd.f32 %v1516, %v1588
      %v1590 = vpop.f32.mrb[0].mxu0
      %v1591 = vadd.f32 %v1518, %v1590
      %v1592 = vpop.f32.mrb[0].mxu0
      %v1593 = vadd.f32 %v1520, %v1592
      %1594 = vdwg.mxu0
      %1595 = vmatprep.subr.bf16.mxu0 %v1223
      %1596 = vmatpush1.bf16.msra.mxu0 %v1222
      %1597 = vmatprep.subr.bf16.mxu0 %v1229
      %1598 = vmatpush1.bf16.msra.mxu0 %v1228
      %1599 = vmatprep.subr.bf16.mxu0 %v1235
      %1600 = vmatpush1.bf16.msra.mxu0 %v1234
      %1601 = vmatprep.subr.bf16.mxu0 %v1241
      %1602 = vmatpush1.bf16.msra.mxu0 %v1240
      %1603 = vmatprep.subr.bf16.mxu0 %v1247
      %1604 = vmatpush1.bf16.msra.mxu0 %v1246
      %1605 = vmatprep.subr.bf16.mxu0 %v1253
      %1606 = vmatpush1.bf16.msra.mxu0 %v1252
      %1607 = vmatprep.subr.bf16.mxu0 %v1259
      %1608 = vmatpush1.bf16.msra.mxu0 %v1258
      %1609 = vmatprep.subr.bf16.mxu0 %v1265
      %1610 = vmatpush1.bf16.msra.mxu0 %v1264
      %1611 = vmatprep.subr.bf16.mxu0 %v1271
      %1612 = vmatpush1.bf16.msra.mxu0 %v1270
      %1613 = vmatprep.subr.bf16.mxu0 %v1277
      %1614 = vmatpush1.bf16.msra.mxu0 %v1276
      %1615 = vmatprep.subr.bf16.mxu0 %v1283
      %1616 = vmatpush1.bf16.msra.mxu0 %v1282
      %1617 = vmatprep.subr.bf16.mxu0 %v1289
      %1618 = vmatpush1.bf16.msra.mxu0 %v1288
      %1619 = vmatprep.subr.bf16.mxu0 %v1295
      %1620 = vmatpush1.bf16.msra.mxu0 %v1294
      %1621 = vmatprep.subr.bf16.mxu0 %v1301
      %1622 = vmatpush1.bf16.msra.mxu0 %v1300
      %1623 = vmatprep.subr.bf16.mxu0 %v1307
      %1624 = vmatpush1.bf16.msra.mxu0 %v1306
      %1625 = vmatprep.subr.bf16.mxu0 %v1313
      %1626 = vmatpush1.bf16.msra.mxu0 %v1312
      %1627 = vmatprep.mubr.bf16.mxu0 %v1417
      %1628 = vmatmul.mubr.bf16.gmra.mrb[0].mxu0 %v1416
      %v1629 = vpop.f32.mrb[0].mxu0
      %v1630 = vadd.f32 %v1339, %v1629
      %v1631 = vpop.f32.mrb[0].mxu0
      %v1632 = vadd.f32 %v1339, %v1631
      %v1633 = vpop.f32.mrb[0].mxu0
      %v1634 = vadd.f32 %v1344, %v1633
      %v1635 = vpop.f32.mrb[0].mxu0
      %v1636 = vadd.f32 %v1344, %v1635
      %1637 = vmatprep.mubr.bf16.mxu0 %v1420
      %1638 = vmatmul.mubr.bf16.gmra.mrb[0].mxu0 %v1419
      %v1639 = vpop.f32.mrb[0].mxu0
      %v1640 = vadd.f32 %v1349, %v1639
      %v1641 = vpop.f32.mrb[0].mxu0
      %v1642 = vadd.f32 %v1349, %v1641
      %v1643 = vpop.f32.mrb[0].mxu0
      %v1644 = vadd.f32 %v1354, %v1643
      %v1645 = vpop.f32.mrb[0].mxu0
      %v1646 = vadd.f32 %v1354, %v1645
      %1647 = vmatprep.mubr.bf16.mxu0 %v1423
      %1648 = vmatmul.mubr.bf16.gmra.mrb[0].mxu0 %v1422
      %v1649 = vpop.f32.mrb[0].mxu0
      %v1650 = vadd.f32 %v1359, %v1649
      %v1651 = vpop.f32.mrb[0].mxu0
      %v1652 = vadd.f32 %v1359, %v1651
      %v1653 = vpop.f32.mrb[0].mxu0
      %v1654 = vadd.f32 %v1364, %v1653
      %v1655 = vpop.f32.mrb[0].mxu0
      %v1656 = vadd.f32 %v1364, %v1655
      %1657 = vmatprep.mubr.bf16.mxu0 %v1426
      %1658 = vmatmul.mubr.bf16.gmra.mrb[0].mxu0 %v1425
      %v1659 = vpop.f32.mrb[0].mxu0
      %v1660 = vadd.f32 %v1369, %v1659
      %v1661 = vpop.f32.mrb[0].mxu0
      %v1662 = vadd.f32 %v1369, %v1661
      %v1663 = vpop.f32.mrb[0].mxu0
      %v1664 = vadd.f32 %v1374, %v1663
      %v1665 = vpop.f32.mrb[0].mxu0
      %v1666 = vadd.f32 %v1374, %v1665
      %1667 = vdwg.mxu0
      %1668 = vmatprep.subr.bf16.mxu0 %v1319
      %1669 = vmatpush1.bf16.msra.mxu0 %v1318
      %1670 = vmatprep.subr.bf16.mxu0 %v1325
      %1671 = vmatpush1.bf16.msra.mxu0 %v1324
      %1672 = vmatprep.subr.bf16.mxu0 0
      %1673 = vmatpush1.bf16.msra.mxu0 0
      %1674 = vmatprep.subr.bf16.mxu0 0
      %1675 = vmatpush1.bf16.msra.mxu0 0
      %1676 = vmatprep.subr.bf16.mxu0 0
      %1677 = vmatpush1.bf16.msra.mxu0 0
      %1678 = vmatprep.subr.bf16.mxu0 0
      %1679 = vmatpush1.bf16.msra.mxu0 0
      %1680 = vmatprep.subr.bf16.mxu0 0
      %1681 = vmatpush1.bf16.msra.mxu0 0
      %1682 = vmatprep.subr.bf16.mxu0 0
      %1683 = vmatpush1.bf16.msra.mxu0 0
      %1684 = vmatprep.subr.bf16.mxu0 0
      %1685 = vmatpush1.bf16.msra.mxu0 0
      %1686 = vmatprep.subr.bf16.mxu0 0
      %1687 = vmatpush1.bf16.msra.mxu0 0
      %1688 = vmatprep.subr.bf16.mxu0 0
      %1689 = vmatpush1.bf16.msra.mxu0 0
      %1690 = vmatprep.subr.bf16.mxu0 0
      %1691 = vmatpush1.bf16.msra.mxu0 0
      %1692 = vmatprep.subr.bf16.mxu0 0
      %1693 = vmatpush1.bf16.msra.mxu0 0
      %1694 = vmatprep.subr.bf16.mxu0 0
      %1695 = vmatpush1.bf16.msra.mxu0 0
      %1696 = vmatprep.subr.bf16.mxu0 0
      %1697 = vmatpush1.bf16.msra.mxu0 0
      %1698 = vmatprep.subr.bf16.mxu0 0
      %1699 = vmatpush1.bf16.msra.mxu0 0
      %1700 = vmatprep.mubr.bf16.mxu0 0
      %1701 = vmatmul.mubr.bf16.gmra.mrb[0].mxu0 %v1438
      %v1702 = vpop.f32.mrb[0].mxu0
      %v1703 = vadd.f32 %v1630, %v1702
      %v1704 = vpop.f32.mrb[0].mxu0
      %v1705 = vadd.f32 %v1632, %v1704
      %v1706 = vpop.f32.mrb[0].mxu0
      %v1707 = vadd.f32 %v1634, %v1706
      %v1708 = vpop.f32.mrb[0].mxu0
      %v1709 = vadd.f32 %v1636, %v1708
      %1710 = vmatprep.mubr.bf16.mxu0 0
      %1711 = vmatmul.mubr.bf16.gmra.mrb[0].mxu0 %v1441
      %v1712 = vpop.f32.mrb[0].mxu0
      %v1713 = vadd.f32 %v1640, %v1712
      %v1714 = vpop.f32.mrb[0].mxu0
      %v1715 = vadd.f32 %v1642, %v1714
      %v1716 = vpop.f32.mrb[0].mxu0
      %v1717 = vadd.f32 %v1644, %v1716
      %v1718 = vpop.f32.mrb[0].mxu0
      %v1719 = vadd.f32 %v1646, %v1718
      %1720 = vmatprep.mubr.bf16.mxu0 0
      %1721 = vmatmul.mubr.bf16.gmra.mrb[0].mxu0 %v1444
      %v1722 = vpop.f32.mrb[0].mxu0
      %v1723 = vadd.f32 %v1650, %v1722
      %v1724 = vpop.f32.mrb[0].mxu0
      %v1725 = vadd.f32 %v1652, %v1724
      %v1726 = vpop.f32.mrb[0].mxu0
      %v1727 = vadd.f32 %v1654, %v1726
      %v1728 = vpop.f32.mrb[0].mxu0
      %v1729 = vadd.f32 %v1656, %v1728
      %1730 = vmatprep.mubr.bf16.mxu0 0
      %1731 = vmatmul.mubr.bf16.gmra.mrb[0].mxu0 %v1447
      %v1732 = vpop.f32.mrb[0].mxu0
      %v1733 = vadd.f32 %v1660, %v1732
      %v1734 = vpop.f32.mrb[0].mxu0
      %v1735 = vadd.f32 %v1662, %v1734
      %v1736 = vpop.f32.mrb[0].mxu0
      %v1737 = vadd.f32 %v1664, %v1736
      %v1738 = vpop.f32.mrb[0].mxu0
      %v1739 = vadd.f32 %v1666, %v1738
      %1740 = vdwg.mxu0
      %1741 = vmatprep.subr.bf16.mxu0 %v1225
      %1742 = vmatpush1.bf16.msra.mxu0 %v1224
      %1743 = vmatprep.subr.bf16.mxu0 %v1231
      %1744 = vmatpush1.bf16.msra.mxu0 %v1230
      %1745 = vmatprep.subr.bf16.mxu0 %v1237
      %1746 = vmatpush1.bf16.msra.mxu0 %v1236
      %1747 = vmatprep.subr.bf16.mxu0 %v1243
      %1748 = vmatpush1.bf16.msra.mxu0 %v1242
      %1749 = vmatprep.subr.bf16.mxu0 %v1249
      %1750 = vmatpush1.bf16.msra.mxu0 %v1248
      %1751 = vmatprep.subr.bf16.mxu0 %v1255
      %1752 = vmatpush1.bf16.msra.mxu0 %v1254
      %1753 = vmatprep.subr.bf16.mxu0 %v1261
      %1754 = vmatpush1.bf16.msra.mxu0 %v1260
      %1755 = vmatprep.subr.bf16.mxu0 %v1267
      %1756 = vmatpush1.bf16.msra.mxu0 %v1266
      %1757 = vmatprep.subr.bf16.mxu0 %v1273
      %1758 = vmatpush1.bf16.msra.mxu0 %v1272
      %1759 = vmatprep.subr.bf16.mxu0 %v1279
      %1760 = vmatpush1.bf16.msra.mxu0 %v1278
      %1761 = vmatprep.subr.bf16.mxu0 %v1285
      %1762 = vmatpush1.bf16.msra.mxu0 %v1284
      %1763 = vmatprep.subr.bf16.mxu0 %v1291
      %1764 = vmatpush1.bf16.msra.mxu0 %v1290
      %1765 = vmatprep.subr.bf16.mxu0 %v1297
      %1766 = vmatpush1.bf16.msra.mxu0 %v1296
      %1767 = vmatprep.subr.bf16.mxu0 %v1303
      %1768 = vmatpush1.bf16.msra.mxu0 %v1302
      %1769 = vmatprep.subr.bf16.mxu0 %v1309
      %1770 = vmatpush1.bf16.msra.mxu0 %v1308
      %1771 = vmatprep.subr.bf16.mxu0 %v1315
      %1772 = vmatpush1.bf16.msra.mxu0 %v1314
      %1773 = vmatprep.mubr.bf16.mxu0 %v1417
      %1774 = vmatmul.mubr.bf16.gmra.mrb[0].mxu0 %v1416
      %v1775 = vpop.f32.mrb[0].mxu0
      %v1776 = vadd.f32 %v1339, %v1775
      %v1777 = vpop.f32.mrb[0].mxu0
      %v1778 = vadd.f32 %v1339, %v1777
      %v1779 = vpop.f32.mrb[0].mxu0
      %v1780 = vadd.f32 %v1344, %v1779
      %v1781 = vpop.f32.mrb[0].mxu0
      %v1782 = vadd.f32 %v1344, %v1781
      %1783 = vmatprep.mubr.bf16.mxu0 %v1420
      %1784 = vmatmul.mubr.bf16.gmra.mrb[0].mxu0 %v1419
      %v1785 = vpop.f32.mrb[0].mxu0
      %v1786 = vadd.f32 %v1349, %v1785
      %v1787 = vpop.f32.mrb[0].mxu0
      %v1788 = vadd.f32 %v1349, %v1787
      %v1789 = vpop.f32.mrb[0].mxu0
      %v1790 = vadd.f32 %v1354, %v1789
      %v1791 = vpop.f32.mrb[0].mxu0
      %v1792 = vadd.f32 %v1354, %v1791
      %1793 = vmatprep.mubr.bf16.mxu0 %v1423
      %1794 = vmatmul.mubr.bf16.gmra.mrb[0].mxu0 %v1422
      %v1795 = vpop.f32.mrb[0].mxu0
      %v1796 = vadd.f32 %v1359, %v1795
      %v1797 = vpop.f32.mrb[0].mxu0
      %v1798 = vadd.f32 %v1359, %v1797
      %v1799 = vpop.f32.mrb[0].mxu0
      %v1800 = vadd.f32 %v1364, %v1799
      %v1801 = vpop.f32.mrb[0].mxu0
      %v1802 = vadd.f32 %v1364, %v1801
      %1803 = vmatprep.mubr.bf16.mxu0 %v1426
      %1804 = vmatmul.mubr.bf16.gmra.mrb[0].mxu0 %v1425
      %v1805 = vpop.f32.mrb[0].mxu0
      %v1806 = vadd.f32 %v1369, %v1805
      %v1807 = vpop.f32.mrb[0].mxu0
      %v1808 = vadd.f32 %v1369, %v1807
      %v1809 = vpop.f32.mrb[0].mxu0
      %v1810 = vadd.f32 %v1374, %v1809
      %v1811 = vpop.f32.mrb[0].mxu0
      %v1812 = vadd.f32 %v1374, %v1811
      %1813 = vdwg.mxu0
      %1814 = vmatprep.subr.bf16.mxu0 %v1321
      %1815 = vmatpush1.bf16.msra.mxu0 %v1320
      %1816 = vmatprep.subr.bf16.mxu0 %v1327
      %1817 = vmatpush1.bf16.msra.mxu0 %v1326
      %1818 = vmatprep.subr.bf16.mxu0 0
      %1819 = vmatpush1.bf16.msra.mxu0 0
      %1820 = vmatprep.subr.bf16.mxu0 0
      %1821 = vmatpush1.bf16.msra.mxu0 0
      %1822 = vmatprep.subr.bf16.mxu0 0
      %1823 = vmatpush1.bf16.msra.mxu0 0
      %1824 = vmatprep.subr.bf16.mxu0 0
      %1825 = vmatpush1.bf16.msra.mxu0 0
      %1826 = vmatprep.subr.bf16.mxu0 0
      %1827 = vmatpush1.bf16.msra.mxu0 0
      %1828 = vmatprep.subr.bf16.mxu0 0
      %1829 = vmatpush1.bf16.msra.mxu0 0
      %1830 = vmatprep.subr.bf16.mxu0 0
      %1831 = vmatpush1.bf16.msra.mxu0 0
      %1832 = vmatprep.subr.bf16.mxu0 0
      %1833 = vmatpush1.bf16.msra.mxu0 0
      %1834 = vmatprep.subr.bf16.mxu0 0
      %1835 = vmatpush1.bf16.msra.mxu0 0
      %1836 = vmatprep.subr.bf16.mxu0 0
      %1837 = vmatpush1.bf16.msra.mxu0 0
      %1838 = vmatprep.subr.bf16.mxu0 0
      %1839 = vmatpush1.bf16.msra.mxu0 0
      %1840 = vmatprep.subr.bf16.mxu0 0
      %1841 = vmatpush1.bf16.msra.mxu0 0
      %1842 = vmatprep.subr.bf16.mxu0 0
      %1843 = vmatpush1.bf16.msra.mxu0 0
      %1844 = vmatprep.subr.bf16.mxu0 0
      %1845 = vmatpush1.bf16.msra.mxu0 0
      %1846 = vmatprep.mubr.bf16.mxu0 0
      %1847 = vmatmul.mubr.bf16.gmra.mrb[0].mxu0 %v1438
      %v1848 = vpop.f32.mrb[0].mxu0
      %v1849 = vadd.f32 %v1776, %v1848
      %v1850 = vpop.f32.mrb[0].mxu0
      %v1851 = vadd.f32 %v1778, %v1850
      %v1852 = vpop.f32.mrb[0].mxu0
      %v1853 = vadd.f32 %v1780, %v1852
      %v1854 = vpop.f32.mrb[0].mxu0
      %v1855 = vadd.f32 %v1782, %v1854
      %1856 = vmatprep.mubr.bf16.mxu0 0
      %1857 = vmatmul.mubr.bf16.gmra.mrb[0].mxu0 %v1441
      %v1858 = vpop.f32.mrb[0].mxu0
      %v1859 = vadd.f32 %v1786, %v1858
      %v1860 = vpop.f32.mrb[0].mxu0
      %v1861 = vadd.f32 %v1788, %v1860
      %v1862 = vpop.f32.mrb[0].mxu0
      %v1863 = vadd.f32 %v1790, %v1862
      %v1864 = vpop.f32.mrb[0].mxu0
      %v1865 = vadd.f32 %v1792, %v1864
      %1866 = vmatprep.mubr.bf16.mxu0 0
      %1867 = vmatmul.mubr.bf16.gmra.mrb[0].mxu0 %v1444
      %v1868 = vpop.f32.mrb[0].mxu0
      %v1869 = vadd.f32 %v1796, %v1868
      %v1870 = vpop.f32.mrb[0].mxu0
      %v1871 = vadd.f32 %v1798, %v1870
      %v1872 = vpop.f32.mrb[0].mxu0
      %v1873 = vadd.f32 %v1800, %v1872
      %v1874 = vpop.f32.mrb[0].mxu0
      %v1875 = vadd.f32 %v1802, %v1874
      %1876 = vmatprep.mubr.bf16.mxu0 0
      %1877 = vmatmul.mubr.bf16.gmra.mrb[0].mxu0 %v1447
      %v1878 = vpop.f32.mrb[0].mxu0
      %v1879 = vadd.f32 %v1806, %v1878
      %v1880 = vpop.f32.mrb[0].mxu0
      %v1881 = vadd.f32 %v1808, %v1880
      %v1882 = vpop.f32.mrb[0].mxu0
      %v1883 = vadd.f32 %v1810, %v1882
      %v1884 = vpop.f32.mrb[0].mxu0
      %v1885 = vadd.f32 %v1812, %v1884
      %1886 = vdwg.mxu0
      %v1887 = vmax.f32 %v1557, 0.0
      %v1888 = vmax.f32 %v1559, 0.0
      %v1889 = vmax.f32 %v1703, 0.0
      %v1890 = vmax.f32 %v1705, 0.0
      %v1891 = vmax.f32 %v1849, 0.0
      %v1892 = vmax.f32 %v1851, 0.0
      %v1893 = vmax.f32 %v1561, 0.0
      %v1894 = vmax.f32 %v1563, 0.0
      %v1895 = vmax.f32 %v1707, 0.0
      %v1896 = vmax.f32 %v1709, 0.0
      %v1897 = vmax.f32 %v1853, 0.0
      %v1898 = vmax.f32 %v1855, 0.0
      %v1899 = vmax.f32 %v1567, 0.0
      %v1900 = vmax.f32 %v1569, 0.0
      %v1901 = vmax.f32 %v1713, 0.0
      %v1902 = vmax.f32 %v1715, 0.0
      %v1903 = vmax.f32 %v1859, 0.0
      %v1904 = vmax.f32 %v1861, 0.0
      %v1905 = vmax.f32 %v1571, 0.0
      %v1906 = vmax.f32 %v1573, 0.0
      %v1907 = vmax.f32 %v1717, 0.0
      %v1908 = vmax.f32 %v1719, 0.0
      %v1909 = vmax.f32 %v1863, 0.0
      %v1910 = vmax.f32 %v1865, 0.0
      %v1911 = vmax.f32 %v1577, 0.0
      %v1912 = vmax.f32 %v1579, 0.0
      %v1913 = vmax.f32 %v1723, 0.0
      %v1914 = vmax.f32 %v1725, 0.0
      %v1915 = vmax.f32 %v1869, 0.0
      %v1916 = vmax.f32 %v1871, 0.0
      %v1917 = vmax.f32 %v1581, 0.0
      %v1918 = vmax.f32 %v1583, 0.0
      %v1919 = vmax.f32 %v1727, 0.0
      %v1920 = vmax.f32 %v1729, 0.0
      %v1921 = vmax.f32 %v1873, 0.0
      %v1922 = vmax.f32 %v1875, 0.0
      %v1923 = vmax.f32 %v1587, 0.0
      %v1924 = vmax.f32 %v1589, 0.0
      %v1925 = vmax.f32 %v1733, 0.0
      %v1926 = vmax.f32 %v1735, 0.0
      %v1927 = vmax.f32 %v1879, 0.0
      %v1928 = vmax.f32 %v1881, 0.0
      %v1929 = vmax.f32 %v1591, 0.0
      %v1930 = vmax.f32 %v1593, 0.0
      %v1931 = vmax.f32 %v1737, 0.0
      %v1932 = vmax.f32 %v1739, 0.0
      %v1933 = vmax.f32 %v1883, 0.0
      %v1934 = vmax.f32 %v1885, 0.0
      %v1935 = vpack.c.bf16 %v1893, %v1887
      %v1936 = vpack.c.bf16 %v1894, %v1888
      %v1937 = vpack.c.bf16 %v1895, %v1889
      %v1938 = vpack.c.bf16 %v1896, %v1890
      %v1939 = vpack.c.bf16 %v1897, %v1891
      %v1940 = vpack.c.bf16 %v1898, %v1892
      %v1941 = vpack.c.bf16 %v1905, %v1899
      %v1942 = vpack.c.bf16 %v1906, %v1900
      %v1943 = vpack.c.bf16 %v1907, %v1901
      %v1944 = vpack.c.bf16 %v1908, %v1902
      %v1945 = vpack.c.bf16 %v1909, %v1903
      %v1946 = vpack.c.bf16 %v1910, %v1904
      %v1947 = vpack.c.bf16 %v1917, %v1911
      %v1948 = vpack.c.bf16 %v1918, %v1912
      %v1949 = vpack.c.bf16 %v1919, %v1913
      %v1950 = vpack.c.bf16 %v1920, %v1914
      %v1951 = vpack.c.bf16 %v1921, %v1915
      %v1952 = vpack.c.bf16 %v1922, %v1916
      %v1953 = vpack.c.bf16 %v1929, %v1923
      %v1954 = vpack.c.bf16 %v1930, %v1924
      %v1955 = vpack.c.bf16 %v1931, %v1925
      %v1956 = vpack.c.bf16 %v1932, %v1926
      %v1957 = vpack.c.bf16 %v1933, %v1927
      %v1958 = vpack.c.bf16 %v1934, %v1928
      %v1983 = vunpack.c.l.b16 %v1935
      %v1984 = vunpack.c.l.b16 %v1936
      %v1985 = vunpack.c.l.b16 %v1937
      %v1986 = vunpack.c.l.b16 %v1938
      %v1987 = vunpack.c.l.b16 %v1939
      %v1988 = vunpack.c.l.b16 %v1940
      %v1989 = vunpack.c.h.b16 %v1935
      %v1990 = vunpack.c.h.b16 %v1936
      %v1991 = vunpack.c.h.b16 %v1937
      %v1992 = vunpack.c.h.b16 %v1938
      %v1993 = vunpack.c.h.b16 %v1939
      %v1994 = vunpack.c.h.b16 %v1940
      %v1995 = vunpack.c.l.b16 %v1941
      %v1996 = vunpack.c.l.b16 %v1942
      %v1997 = vunpack.c.l.b16 %v1943
      %v1998 = vunpack.c.l.b16 %v1944
      %v1999 = vunpack.c.l.b16 %v1945
      %v2000 = vunpack.c.l.b16 %v1946
      %v2001 = vunpack.c.h.b16 %v1941
      %v2002 = vunpack.c.h.b16 %v1942
      %v2003 = vunpack.c.h.b16 %v1943
      %v2004 = vunpack.c.h.b16 %v1944
      %v2005 = vunpack.c.h.b16 %v1945
      %v2006 = vunpack.c.h.b16 %v1946
      %v2007 = vunpack.c.l.b16 %v1947
      %v2008 = vunpack.c.l.b16 %v1948
      %v2009 = vunpack.c.l.b16 %v1949
      %v2010 = vunpack.c.l.b16 %v1950
      %v2011 = vunpack.c.l.b16 %v1951
      %v2012 = vunpack.c.l.b16 %v1952
      %v2013 = vunpack.c.h.b16 %v1947
      %v2014 = vunpack.c.h.b16 %v1948
      %v2015 = vunpack.c.h.b16 %v1949
      %v2016 = vunpack.c.h.b16 %v1950
      %v2017 = vunpack.c.h.b16 %v1951
      %v2018 = vunpack.c.h.b16 %v1952
      %v2019 = vunpack.c.l.b16 %v1953
      %v2020 = vunpack.c.l.b16 %v1954
      %v2021 = vunpack.c.l.b16 %v1955
      %v2022 = vunpack.c.l.b16 %v1956
      %v2023 = vunpack.c.l.b16 %v1957
      %v2024 = vunpack.c.l.b16 %v1958
      %v2025 = vunpack.c.h.b16 %v1953
      %v2026 = vunpack.c.h.b16 %v1954
      %v2027 = vunpack.c.h.b16 %v1955
      %v2028 = vunpack.c.h.b16 %v1956
      %v2029 = vunpack.c.h.b16 %v1957
      %v2030 = vunpack.c.h.b16 %v1958
      %v2031 = vpack.c.b16 %v1984, %v1983
      %v2032 = vpack.c.b16 %v1986, %v1985
      %v2033 = vpack.c.b16 %v1988, %v1987
      %v2034 = vpack.c.b16 %v1990, %v1989
      %v2035 = vpack.c.b16 %v1992, %v1991
      %v2036 = vpack.c.b16 %v1994, %v1993
      %v2037 = vpack.c.b16 %v1996, %v1995
      %v2038 = vpack.c.b16 %v1998, %v1997
      %v2039 = vpack.c.b16 %v2000, %v1999
      %v2040 = vpack.c.b16 %v2002, %v2001
      %v2041 = vpack.c.b16 %v2004, %v2003
      %v2042 = vpack.c.b16 %v2006, %v2005
      %v2043 = vpack.c.b16 %v2008, %v2007
      %v2044 = vpack.c.b16 %v2010, %v2009
      %v2045 = vpack.c.b16 %v2012, %v2011
      %v2046 = vpack.c.b16 %v2014, %v2013
      %v2047 = vpack.c.b16 %v2016, %v2015
      %v2048 = vpack.c.b16 %v2018, %v2017
      %v2049 = vpack.c.b16 %v2020, %v2019
      %v2050 = vpack.c.b16 %v2022, %v2021
      %v2051 = vpack.c.b16 %v2024, %v2023
      %v2052 = vpack.c.b16 %v2026, %v2025
      %v2053 = vpack.c.b16 %v2028, %v2027
      %v2054 = vpack.c.b16 %v2030, %v2029
      %2079 = vst [vmem:[%s170] sm:$0xff] %v2031
      %2080 = vst [vmem:[%s170 + $0x8] sm:$0xff] %v2032
      %2081 = vst [vmem:[%s170 + $0x10] sm:$0xff] %v2033
      %2082 = vst [vmem:[%s170 + $0x18] sm:$0xff] %v2034
      %2083 = vst [vmem:[%s170 + $0x20] sm:$0xff] %v2035
      %2084 = vst [vmem:[%s170 + $0x28] sm:$0xff] %v2036
      %2085 = vst [vmem:[%s170 + $0x30] sm:$0xff] %v2037
      %2086 = vst [vmem:[%s170 + $0x38] sm:$0xff] %v2038
      %2087 = vst [vmem:[%s170 + $0x40] sm:$0xff] %v2039
      %2088 = vst [vmem:[%s170 + $0x48] sm:$0xff] %v2040
      %2089 = vst [vmem:[%s170 + $0x50] sm:$0xff] %v2041
      %2090 = vst [vmem:[%s170 + $0x58] sm:$0xff] %v2042
      %2091 = vst [vmem:[%s170 + $0x60] sm:$0xff] %v2043
      %2092 = vst [vmem:[%s170 + $0x68] sm:$0xff] %v2044
      %2093 = vst [vmem:[%s170 + $0x70] sm:$0xff] %v2045
      %2094 = vst [vmem:[%s170 + $0x78] sm:$0xff] %v2046
      %2095 = vst [vmem:[%s170 + $0x80] sm:$0xff] %v2047
      %2096 = vst [vmem:[%s170 + $0x88] sm:$0xff] %v2048
      %2097 = vst [vmem:[%s170 + $0x90] sm:$0xff] %v2049
      %2098 = vst [vmem:[%s170 + $0x98] sm:$0xff] %v2050
      %2099 = vst [vmem:[%s170 + $0xa0] sm:$0xff] %v2051
      %2100 = vst [vmem:[%s170 + $0xa8] sm:$0xff] %v2052
      %2101 = vst [vmem:[%s170 + $0xb0] sm:$0xff] %v2053
      %2102 = vst [vmem:[%s170 + $0xb8] sm:$0xff] %v2054
      %p2103 = scmp.lt.s32.totalorder %s14, 1
      %s2104 = scalar_select %p2103, %s14, 1
      %s2105 = smul.addr %s2104, 48
      %s2106 = smul.addr %s2105, 4
      %s2107 = scalar_lea.vmem %s3, %s2106
      // Predicated region
      $region33: #{_lambda_.6} parent=31 // pred_check
        %p2108 = pneg %p100
      $region34: #{_lambda_.6} parent=31 // pred_check_branch
        %2110 = sbr.rel (%p2108) target = $region36
      $region35: #{_lambda_.6} parent=31 // pred_region
        _
      $region36: #{_lambda_.6} parent=31 // pred_fallthru
        _
    $region32: #{_lambda_.6} parent=5 // pred_fallthru
      _
    %p2111 = scmp.le.s32.totalorder 2, %s9
    // Predicated region
    $region37: #{_lambda_.6} parent=5 // pred_check
      %p2112 = pneg %p2111
    $region38: #{_lambda_.6} parent=5 // pred_check_branch
      %2114 = sbr.rel (%p2112) target = $region40
    $region39: #{_lambda_.6} parent=5 // pred_region
      %s2115 = ssub.s32 %s9, 2
      // Predicated region
      $region41: #{_lambda_.6} parent=39 // pred_check
        %p2116 = pneg %p106
      $region42: #{_lambda_.6} parent=39 // pred_check_branch
        %2118 = sbr.rel (%p2116) target = $region44
      $region43: #{_lambda_.6} parent=39 // pred_region
        %p2119 = scmp.lt.s32.totalorder %s15, 1
        %s2120 = scalar_select %p2119, %s15, 1
        %s2121 = smul.addr %s2120, 48
        %s2122 = smul.addr %s2121, 4
        %s2123 = scalar_lea.vmem %s3, %s2122
      $region44: #{_lambda_.6} parent=39 // pred_fallthru
        _
    $region40: #{_lambda_.6} parent=5 // pred_fallthru
      _
  $region6: #{_lambda_.6} parent=0 // loop_footer
    %s13 = sadd.s32 1, %s9
  $region7: #{_lambda_.6} parent=0 // loop_footer_branch
    %8 = sbr.rel target = $region3
  $region8: #{_lambda_.6} parent=0 // loop_exit
    _

// kernel: _lambda_.7
$region0: #{_lambda_.7}
  #allocation0 [shape = 'u32[]', space=smem, size = 0x4, offset = 0x4, fixed_abs, tag = 'smem constant byte address 0x4 - core index']
  #allocation1 [shape = 'u32[144,128]{1,0:T(1,128)}', space=vmem, size = 0x12000, scoped, tag = 'internal scratch']
  #allocation2 [shape = 'bf16[576,192]{1,0:T(16,128)(2,1)}', space=vmem, size = 0x48000, scoped, tag = 'scratch operand']
  %s0 = inlined_call_operand.vmem [shape: bf16[2,4,64,224], index: 0, kind: input, shape index: {}]
  %s1 = inlined_call_operand.vmem [shape: bf16[32,576], index: 1, kind: input, shape index: {}]
  %s2 = inlined_call_operand.vmem [shape: f32[32,1], index: 2, kind: input, shape index: {}]
  %s3 = inlined_call_operand.vmem [shape: bf16[2,32,192], index: 3, kind: output, shape index: {}]
  %s4 = sld [smem:[#allocation0]]
  $region45: #{_lambda_.7} parent=0
    _
  %s6 = ssub.s32 1, %s4
  %s7 = scalar_select 0, %s6, %s4
  loop: start=0, step=1, limit=4
  $region2: #{_lambda_.7} parent=0 // loop_pre_header
    _
  $region3: #{_lambda_.7} parent=0 // loop_header
    %s9 = sphi 0, %s13
    %p10 = scmp.ge.s32.totalorder %s9, 4
    %s19 = sphi 0, %s21
    %s22 = sphi 0, %s19
    %s23 = sphi 0, %s22
    %s39 = sphi 0, %s23
    %s43 = sphi 0, %s43
    %s45 = sphi 0, %s43
    %s46 = sphi 0, %s45
    %s60 = sphi 0, %s46
    %s64 = sphi 0, %s64
    %s66 = sphi 0, %s64
    %s67 = sphi 0, %s66
    %s81 = sphi 0, %s67
    %s87 = sphi 0, %s89
    %s90 = sphi 0, %s87
    %s91 = sphi 0, %s90
    %s107 = sphi 0, %s91
  $region4: #{_lambda_.7} parent=0 // loop_header_branch
    %12 = sbr.rel (%p10) target = $region8
  $region5: #{_lambda_.7} parent=0 // loop_body
    %s14 = ssub.s32 %s9, 1
    %s15 = ssub.s32 %s9, 2
    %s16 = sadd.s32 %s9, 1
    %s17 = ssub.s32 %s9, %s16
    %p18 = scmp.eq.s32.totalorder %s17, 0
    %s20 = sadd.s32 %s19, 1
    %s21 = scalar_select %p18, %s19, %s20
    %p24 = pneg %p18
    %p25 = scmp.eq.s32.totalorder %s9, 1
    %p26 = por %p24, %p25
    %p27 = scmp.ne.s32.totalorder %s19, %s22
    %p28 = scmp.eq.s32.totalorder %s9, 0
    %p29 = por %p27, %p28
    %p30 = scmp.ne.s32.totalorder %s19, %s22
    %p31 = scmp.eq.s32.totalorder %s14, 1
    %p32 = por %p30, %p31
    %p33 = scmp.ne.s32.totalorder %s22, %s23
    %p34 = scmp.eq.s32.totalorder %s14, 0
    %p35 = por %p33, %p34
    %p36 = scmp.ne.s32.totalorder %s22, %s23
    %p37 = scmp.eq.s32.totalorder %s15, 1
    %p38 = por %p36, %p37
    %p40 = scmp.ne.s32.totalorder %s23, %s39
    %p41 = scmp.eq.s32.totalorder %s15, 0
    %p42 = por %p40, %p41
    %s44 = sadd.s32 %s43, 1
    %p47 = scmp.eq.s32.totalorder %s9, 1
    %p48 = scmp.ne.s32.totalorder %s43, %s45
    %p49 = scmp.eq.s32.totalorder %s9, 0
    %p50 = por %p48, %p49
    %p51 = scmp.ne.s32.totalorder %s43, %s45
    %p52 = scmp.eq.s32.totalorder %s14, 1
    %p53 = por %p51, %p52
    %p54 = scmp.ne.s32.totalorder %s45, %s46
    %p55 = scmp.eq.s32.totalorder %s14, 0
    %p56 = por %p54, %p55
    %p57 = scmp.ne.s32.totalorder %s45, %s46
    %p58 = scmp.eq.s32.totalorder %s15, 1
    %p59 = por %p57, %p58
    %p61 = scmp.ne.s32.totalorder %s46, %s60
    %p62 = scmp.eq.s32.totalorder %s15, 0
    %p63 = por %p61, %p62
    %s65 = sadd.s32 %s64, 1
    %p68 = scmp.eq.s32.totalorder %s9, 1
    %p69 = scmp.ne.s32.totalorder %s64, %s66
    %p70 = scmp.eq.s32.totalorder %s9, 0
    %p71 = por %p69, %p70
    %p72 = scmp.ne.s32.totalorder %s64, %s66
    %p73 = scmp.eq.s32.totalorder %s14, 1
    %p74 = por %p72, %p73
    %p75 = scmp.ne.s32.totalorder %s66, %s67
    %p76 = scmp.eq.s32.totalorder %s14, 0
    %p77 = por %p75, %p76
    %p78 = scmp.ne.s32.totalorder %s66, %s67
    %p79 = scmp.eq.s32.totalorder %s15, 1
    %p80 = por %p78, %p79
    %p82 = scmp.ne.s32.totalorder %s67, %s81
    %p83 = scmp.eq.s32.totalorder %s15, 0
    %p84 = por %p82, %p83
    %s85 = ssub.s32 %s9, %s16
    %p86 = scmp.eq.s32.totalorder %s85, 0
    %s88 = sadd.s32 %s87, 1
    %s89 = scalar_select %p86, %s87, %s88
    %p92 = pneg %p86
    %p93 = scmp.eq.s32.totalorder %s9, 1
    %p94 = por %p92, %p93
    %p95 = scmp.ne.s32.totalorder %s87, %s90
    %p96 = scmp.eq.s32.totalorder %s9, 0
    %p97 = por %p95, %p96
    %p98 = scmp.ne.s32.totalorder %s87, %s90
    %p99 = scmp.eq.s32.totalorder %s14, 1
    %p100 = por %p98, %p99
    %p101 = scmp.ne.s32.totalorder %s90, %s91
    %p102 = scmp.eq.s32.totalorder %s14, 0
    %p103 = por %p101, %p102
    %p104 = scmp.ne.s32.totalorder %s90, %s91
    %p105 = scmp.eq.s32.totalorder %s15, 1
    %p106 = por %p104, %p105
    %p108 = scmp.ne.s32.totalorder %s91, %s107
    %p109 = scmp.eq.s32.totalorder %s15, 0
    %p110 = por %p108, %p109
    %p111 = scmp.le.s32.totalorder 1, %s9
    %p112 = scmp.lt.s32.totalorder %s9, 3
    %p113 = pnand %p111, %p112
    %p114 = pneg %p113
    // Predicated region
    $region9: #{_lambda_.7} parent=5 // pred_check
      _
    $region10: #{_lambda_.7} parent=5 // pred_check_branch
      %116 = sbr.rel (%p113) target = $region12
    $region11: #{_lambda_.7} parent=5 // pred_region
      %s117 = ssub.s32 %s9, 1
      // Predicated region
      $region13: #{_lambda_.7} parent=11 // pred_check
        %p118 = pneg %p56
      $region14: #{_lambda_.7} parent=11 // pred_check_branch
        %120 = sbr.rel (%p118) target = $region16
      $region15: #{_lambda_.7} parent=11 // pred_region
        _
      $region16: #{_lambda_.7} parent=11 // pred_fallthru
        _
      // Predicated region
      $region17: #{_lambda_.7} parent=11 // pred_check
        %p121 = pneg %p77
      $region18: #{_lambda_.7} parent=11 // pred_check_branch
        %123 = sbr.rel (%p121) target = $region20
      $region19: #{_lambda_.7} parent=11 // pred_region
        _
      $region20: #{_lambda_.7} parent=11 // pred_fallthru
        _
    $region12: #{_lambda_.7} parent=5 // pred_fallthru
      _
    %p124 = scmp.lt.s32.totalorder %s9, 2
    // Predicated region
    $region21: #{_lambda_.7} parent=5 // pred_check
      %p125 = pneg %p124
    $region22: #{_lambda_.7} parent=5 // pred_check_branch
      %127 = sbr.rel (%p125) target = $region24
    $region23: #{_lambda_.7} parent=5 // pred_region
      // Predicated region
      $region25: #{_lambda_.7} parent=23 // pred_check
        %p128 = pneg %p29
      $region26: #{_lambda_.7} parent=23 // pred_check_branch
        %130 = sbr.rel (%p128) target = $region28
      $region27: #{_lambda_.7} parent=23 // pred_region
        %p131 = scmp.lt.s32.totalorder %s9, 1
        %s132 = scalar_select %p131, %s9, 1
        %s133 = smul.addr %s132, 64
        %s134 = smul.addr %s133, 4
        %s135 = scalar_lea.vmem %s0, %s134
      $region28: #{_lambda_.7} parent=23 // pred_fallthru
        _
    $region24: #{_lambda_.7} parent=5 // pred_fallthru
      _
    %p136 = scmp.le.s32.totalorder 1, %s9
    %p137 = scmp.lt.s32.totalorder %s9, 3
    %p138 = pnand %p136, %p137
    %p139 = pneg %p138
    // Predicated region
    $region29: #{_lambda_.7} parent=5 // pred_check
      _
    $region30: #{_lambda_.7} parent=5 // pred_check_branch
      %141 = sbr.rel (%p138) target = $region32
    $region31: #{_lambda_.7} parent=5 // pred_region
      %s142 = ssub.s32 %s9, 1
      %p143 = scmp.lt.s32.totalorder %s14, 1
      %s144 = scalar_select %p143, %s14, 1
      %s145 = smul.addr %s144, 64
      %s146 = smul.addr %s145, 4
      %s147 = scalar_lea.vmem %s0, %s146
      %p148 = pneg %p35
      %p149 = pneg %p32
      %p150 = pneg %p56
      %p151 = pneg %p53
      %p152 = pneg %p77
      %p153 = pneg %p74
      %p154 = pneg %p103
      %p155 = pneg %p100
      %p156 = scmp.lt.s32.totalorder %s14, 1
      %s157 = scalar_select %p156, %s14, 1
      %s158 = smul.addr %s157, 8
      %s159 = smul.addr %s158, 4
      %s160 = scalar_lea.vmem %s3, %s159
      %p161 = scmp.lt.s32.totalorder %s14, 1
      %s162 = scalar_select %p161, %s14, 1
      %s163 = smul.addr %s162, 64
      %s164 = smul.addr %s163, 4
      %s165 = scalar_lea.vmem %s0, %s164
      %p166 = scmp.lt.s32.totalorder %s14, 1
      %s167 = scalar_select %p166, %s14, 1
      %s168 = smul.addr %s167, 8
      %s169 = smul.addr %s168, 4
      %s170 = scalar_lea.vmem %s3, %s169
      %v172 = vld [vmem:[%s165] sm:$0xff]
      %v173 = vld [vmem:[%s165 + $0x8] sm:$0xff]
      %v174 = vld [vmem:[%s165 + $0x10] sm:$0xff]
      %v175 = vld [vmem:[%s165 + $0x18] sm:$0xff]
      %v176 = vld [vmem:[%s165 + $0x20] sm:$0xff]
      %v177 = vld [vmem:[%s165 + $0x28] sm:$0xff]
      %v178 = vld [vmem:[%s165 + $0x30] sm:$0xff]
      %v179 = vld [vmem:[%s165 + $0x38] sm:$0xff]
      %v188 = vunpack.c.l.b16 %v172
      %v189 = vunpack.c.h.b16 %v172
      %v190 = vunpack.c.l.b16 %v173
      %v191 = vunpack.c.h.b16 %v173
      %v192 = vunpack.c.l.b16 %v174
      %v193 = vunpack.c.h.b16 %v174
      %v194 = vunpack.c.l.b16 %v175
      %v195 = vunpack.c.h.b16 %v175
      %v196 = vunpack.c.l.b16 %v176
      %v197 = vunpack.c.h.b16 %v176
      %v198 = vunpack.c.l.b16 %v177
      %v199 = vunpack.c.h.b16 %v177
      %v200 = vunpack.c.l.b16 %v178
      %v201 = vunpack.c.h.b16 %v178
      %v202 = vunpack.c.l.b16 %v179
      %v203 = vunpack.c.h.b16 %v179
      %v204 = vpack.c.b16 %v190, %v188
      %v205 = vpack.c.b16 %v191, %v189
      %v206 = vpack.c.b16 %v194, %v192
      %v207 = vpack.c.b16 %v195, %v193
      %v208 = vpack.c.b16 %v198, %v196
      %v209 = vpack.c.b16 %v199, %v197
      %v210 = vpack.c.b16 %v202, %v200
      %v211 = vpack.c.b16 %v203, %v201
      %220 = vst [vmem:[#allocation2] sm:$0xff] %v204
      %vm221 = vcmask 523264
      %222 = vst.msk [vmem:[#allocation2 + $0x8] sm:$0xff] %vm221, %v205
      %223 = vst [vmem:[#allocation2 + $0x10] sm:$0xff] %v206
      %224 = vst.msk [vmem:[#allocation2 + $0x18] sm:$0xff] %vm221, %v207
      %225 = vst [vmem:[#allocation2 + $0x20] sm:$0xff] %v208
      %226 = vst.msk [vmem:[#allocation2 + $0x28] sm:$0xff] %vm221, %v209
      %227 = vst [vmem:[#allocation2 + $0x30] sm:$0xff] %v210
      %228 = vst.msk [vmem:[#allocation2 + $0x38] sm:$0xff] %vm221, %v211
      %s229 = scalar_lea.vmem %s165, 64
      %v230 = vld [vmem:[%s229] sm:$0xff]
      %v231 = vld [vmem:[%s229 + $0x8] sm:$0xff]
      %v232 = vld [vmem:[%s229 + $0x10] sm:$0xff]
      %v233 = vld [vmem:[%s229 + $0x18] sm:$0xff]
      %v234 = vld [vmem:[%s229 + $0x20] sm:$0xff]
      %v235 = vld [vmem:[%s229 + $0x28] sm:$0xff]
      %v236 = vld [vmem:[%s229 + $0x30] sm:$0xff]
      %v237 = vld [vmem:[%s229 + $0x38] sm:$0xff]
      %v246 = vunpack.c.l.b16 %v230
      %v247 = vunpack.c.h.b16 %v230
      %v248 = vunpack.c.l.b16 %v231
      %v249 = vunpack.c.h.b16 %v231
      %v250 = vunpack.c.l.b16 %v232
      %v251 = vunpack.c.h.b16 %v232
      %v252 = vunpack.c.l.b16 %v233
      %v253 = vunpack.c.h.b16 %v233
      %v254 = vunpack.c.l.b16 %v234
      %v255 = vunpack.c.h.b16 %v234
      %v256 = vunpack.c.l.b16 %v235
      %v257 = vunpack.c.h.b16 %v235
      %v258 = vunpack.c.l.b16 %v236
      %v259 = vunpack.c.h.b16 %v236
      %v260 = vunpack.c.l.b16 %v237
      %v261 = vunpack.c.h.b16 %v237
      %v262 = vpack.c.b16 %v248, %v246
      %v263 = vpack.c.b16 %v249, %v247
      %v264 = vpack.c.b16 %v252, %v250
      %v265 = vpack.c.b16 %v253, %v251
      %v266 = vpack.c.b16 %v256, %v254
      %v267 = vpack.c.b16 %v257, %v255
      %v268 = vpack.c.b16 %v260, %v258
      %v269 = vpack.c.b16 %v261, %v259
      %278 = vst [vmem:[#allocation2 + $0x40] sm:$0xff] %v262
      %279 = vst.msk [vmem:[#allocation2 + $0x48] sm:$0xff] %vm221, %v263
      %280 = vst [vmem:[#allocation2 + $0x50] sm:$0xff] %v264
      %281 = vst.msk [vmem:[#allocation2 + $0x58] sm:$0xff] %vm221, %v265
      %282 = vst [vmem:[#allocation2 + $0x60] sm:$0xff] %v266
      %283 = vst.msk [vmem:[#allocation2 + $0x68] sm:$0xff] %vm221, %v267
      %284 = vst [vmem:[#allocation2 + $0x70] sm:$0xff] %v268
      %285 = vst.msk [vmem:[#allocation2 + $0x78] sm:$0xff] %vm221, %v269
      %v286 = vld [vmem:[%s165] sm:$0xff]
      %v287 = vld [vmem:[%s165 + $0x8] sm:$0xff]
      %v288 = vld [vmem:[%s165 + $0x10] sm:$0xff]
      %v289 = vld [vmem:[%s165 + $0x18] sm:$0xff]
      %v290 = vld [vmem:[%s165 + $0x20] sm:$0xff]
      %v291 = vld [vmem:[%s165 + $0x28] sm:$0xff]
      %v292 = vld [vmem:[%s165 + $0x30] sm:$0xff]
      %v293 = vld [vmem:[%s165 + $0x38] sm:$0xff]
      %v302 = vunpack.c.l.b16 %v286
      %v303 = vunpack.c.h.b16 %v286
      %v304 = vunpack.c.l.b16 %v287
      %v305 = vunpack.c.h.b16 %v287
      %v306 = vunpack.c.l.b16 %v288
      %v307 = vunpack.c.h.b16 %v288
      %v308 = vunpack.c.l.b16 %v289
      %v309 = vunpack.c.h.b16 %v289
      %v310 = vunpack.c.l.b16 %v290
      %v311 = vunpack.c.h.b16 %v290
      %v312 = vunpack.c.l.b16 %v291
      %v313 = vunpack.c.h.b16 %v291
      %v314 = vunpack.c.l.b16 %v292
      %v315 = vunpack.c.h.b16 %v292
      %v316 = vunpack.c.l.b16 %v293
      %v317 = vunpack.c.h.b16 %v293
      %v318 = vpack.c.b16 %v304, %v302
      %v319 = vpack.c.b16 %v305, %v303
      %v320 = vpack.c.b16 %v308, %v306
      %v321 = vpack.c.b16 %v309, %v307
      %v322 = vpack.c.b16 %v312, %v310
      %v323 = vpack.c.b16 %v313, %v311
      %v324 = vpack.c.b16 %v316, %v314
      %v325 = vpack.c.b16 %v317, %v315
      %326 = vrot.lane.b32.xlu0 %v318, 127
      %v327 = vpop.permute.xlu0 %326
      %328 = vrot.lane.b32.xlu0 %v319, 127
      %v329 = vpop.permute.xlu0 %328
      %330 = vrot.lane.b32.xlu0 %v320, 127
      %v331 = vpop.permute.xlu0 %330
      %332 = vrot.lane.b32.xlu0 %v321, 127
      %v333 = vpop.permute.xlu0 %332
      %334 = vrot.lane.b32.xlu0 %v322, 127
      %v335 = vpop.permute.xlu0 %334
      %336 = vrot.lane.b32.xlu0 %v323, 127
      %v337 = vpop.permute.xlu0 %336
      %338 = vrot.lane.b32.xlu0 %v324, 127
      %v339 = vpop.permute.xlu0 %338
      %340 = vrot.lane.b32.xlu0 %v325, 127
      %v341 = vpop.permute.xlu0 %340
      %vm342 = vcmask 1039360
      %v343 = vsel %vm342, %v327, %v329
      %v344 = vsel %vm342, %v331, %v333
      %v345 = vsel %vm342, %v335, %v337
      %v346 = vsel %vm342, %v339, %v341
      %355 = vst [vmem:[#allocation2 + $0x80] sm:$0xff] %v343
      %356 = vst.msk [vmem:[#allocation2 + $0x88] sm:$0xff] %vm221, %v329
      %357 = vst [vmem:[#allocation2 + $0x90] sm:$0xff] %v344
      %358 = vst.msk [vmem:[#allocation2 + $0x98] sm:$0xff] %vm221, %v333
      %359 = vst [vmem:[#allocation2 + $0xa0] sm:$0xff] %v345
      %360 = vst.msk [vmem:[#allocation2 + $0xa8] sm:$0xff] %vm221, %v337
      %361 = vst [vmem:[#allocation2 + $0xb0] sm:$0xff] %v346
      %362 = vst.msk [vmem:[#allocation2 + $0xb8] sm:$0xff] %vm221, %v341
      %s363 = scalar_lea.vmem %s165, 128
      %v364 = vld [vmem:[%s363] sm:$0xff]
      %v365 = vld [vmem:[%s363 + $0x8] sm:$0xff]
      %v366 = vld [vmem:[%s363 + $0x10] sm:$0xff]
      %v367 = vld [vmem:[%s363 + $0x18] sm:$0xff]
      %v368 = vld [vmem:[%s363 + $0x20] sm:$0xff]
      %v369 = vld [vmem:[%s363 + $0x28] sm:$0xff]
      %v370 = vld [vmem:[%s363 + $0x30] sm:$0xff]
      %v371 = vld [vmem:[%s363 + $0x38] sm:$0xff]
      %v380 = vunpack.c.l.b16 %v364
      %v381 = vunpack.c.h.b16 %v364
      %v382 = vunpack.c.l.b16 %v365
      %v383 = vunpack.c.h.b16 %v365
      %v384 = vunpack.c.l.b16 %v366
      %v385 = vunpack.c.h.b16 %v366
      %v386 = vunpack.c.l.b16 %v367
      %v387 = vunpack.c.h.b16 %v367
      %v388 = vunpack.c.l.b16 %v368
      %v389 = vunpack.c.h.b16 %v368
      %v390 = vunpack.c.l.b16 %v369
      %v391 = vunpack.c.h.b16 %v369
      %v392 = vunpack.c.l.b16 %v370
      %v393 = vunpack.c.h.b16 %v370
      %v394 = vunpack.c.l.b16 %v371
      %v395 = vunpack.c.h.b16 %v371
      %v396 = vpack.c.b16 %v382, %v380
      %v397 = vpack.c.b16 %v383, %v381
      %v398 = vpack.c.b16 %v386, %v384
      %v399 = vpack.c.b16 %v387, %v385
      %v400 = vpack.c.b16 %v390, %v388
      %v401 = vpack.c.b16 %v391, %v389
      %v402 = vpack.c.b16 %v394, %v392
      %v403 = vpack.c.b16 %v395, %v393
      %412 = vst [vmem:[#allocation2 + $0xc0] sm:$0xff] %v396
      %413 = vst.msk [vmem:[#allocation2 + $0xc8] sm:$0xff] %vm221, %v397
      %414 = vst [vmem:[#allocation2 + $0xd0] sm:$0xff] %v398
      %415 = vst.msk [vmem:[#allocation2 + $0xd8] sm:$0xff] %vm221, %v399
      %416 = vst [vmem:[#allocation2 + $0xe0] sm:$0xff] %v400
      %417 = vst.msk [vmem:[#allocation2 + $0xe8] sm:$0xff] %vm221, %v401
      %418 = vst [vmem:[#allocation2 + $0xf0] sm:$0xff] %v402
      %419 = vst.msk [vmem:[#allocation2 + $0xf8] sm:$0xff] %vm221, %v403
      %s420 = scalar_lea.vmem %s165, 192
      %v421 = vld [vmem:[%s420] sm:$0xff]
      %v422 = vld [vmem:[%s420 + $0x8] sm:$0xff]
      %v423 = vld [vmem:[%s420 + $0x10] sm:$0xff]
      %v424 = vld [vmem:[%s420 + $0x18] sm:$0xff]
      %v425 = vld [vmem:[%s420 + $0x20] sm:$0xff]
      %v426 = vld [vmem:[%s420 + $0x28] sm:$0xff]
      %v427 = vld [vmem:[%s420 + $0x30] sm:$0xff]
      %v428 = vld [vmem:[%s420 + $0x38] sm:$0xff]
      %v437 = vunpack.c.l.b16 %v421
      %v438 = vunpack.c.h.b16 %v421
      %v439 = vunpack.c.l.b16 %v422
      %v440 = vunpack.c.h.b16 %v422
      %v441 = vunpack.c.l.b16 %v423
      %v442 = vunpack.c.h.b16 %v423
      %v443 = vunpack.c.l.b16 %v424
      %v444 = vunpack.c.h.b16 %v424
      %v445 = vunpack.c.l.b16 %v425
      %v446 = vunpack.c.h.b16 %v425
      %v447 = vunpack.c.l.b16 %v426
      %v448 = vunpack.c.h.b16 %v426
      %v449 = vunpack.c.l.b16 %v427
      %v450 = vunpack.c.h.b16 %v427
      %v451 = vunpack.c.l.b16 %v428
      %v452 = vunpack.c.h.b16 %v428
      %v453 = vpack.c.b16 %v439, %v437
      %v454 = vpack.c.b16 %v440, %v438
      %v455 = vpack.c.b16 %v443, %v441
      %v456 = vpack.c.b16 %v444, %v442
      %v457 = vpack.c.b16 %v447, %v445
      %v458 = vpack.c.b16 %v448, %v446
      %v459 = vpack.c.b16 %v451, %v449
      %v460 = vpack.c.b16 %v452, %v450
      %469 = vst [vmem:[#allocation2 + $0x100] sm:$0xff] %v453
      %470 = vst.msk [vmem:[#allocation2 + $0x108] sm:$0xff] %vm221, %v454
      %471 = vst [vmem:[#allocation2 + $0x110] sm:$0xff] %v455
      %472 = vst.msk [vmem:[#allocation2 + $0x118] sm:$0xff] %vm221, %v456
      %473 = vst [vmem:[#allocation2 + $0x120] sm:$0xff] %v457
      %474 = vst.msk [vmem:[#allocation2 + $0x128] sm:$0xff] %vm221, %v458
      %475 = vst [vmem:[#allocation2 + $0x130] sm:$0xff] %v459
      %476 = vst.msk [vmem:[#allocation2 + $0x138] sm:$0xff] %vm221, %v460
      %v477 = vld [vmem:[%s363] sm:$0xff]
      %v478 = vld [vmem:[%s363 + $0x8] sm:$0xff]
      %v479 = vld [vmem:[%s363 + $0x10] sm:$0xff]
      %v480 = vld [vmem:[%s363 + $0x18] sm:$0xff]
      %v481 = vld [vmem:[%s363 + $0x20] sm:$0xff]
      %v482 = vld [vmem:[%s363 + $0x28] sm:$0xff]
      %v483 = vld [vmem:[%s363 + $0x30] sm:$0xff]
      %v484 = vld [vmem:[%s363 + $0x38] sm:$0xff]
      %v493 = vunpack.c.l.b16 %v477
      %v494 = vunpack.c.h.b16 %v477
      %v495 = vunpack.c.l.b16 %v478
      %v496 = vunpack.c.h.b16 %v478
      %v497 = vunpack.c.l.b16 %v479
      %v498 = vunpack.c.h.b16 %v479
      %v499 = vunpack.c.l.b16 %v480
      %v500 = vunpack.c.h.b16 %v480
      %v501 = vunpack.c.l.b16 %v481
      %v502 = vunpack.c.h.b16 %v481
      %v503 = vunpack.c.l.b16 %v482
      %v504 = vunpack.c.h.b16 %v482
      %v505 = vunpack.c.l.b16 %v483
      %v506 = vunpack.c.h.b16 %v483
      %v507 = vunpack.c.l.b16 %v484
      %v508 = vunpack.c.h.b16 %v484
      %v509 = vpack.c.b16 %v495, %v493
      %v510 = vpack.c.b16 %v496, %v494
      %v511 = vpack.c.b16 %v499, %v497
      %v512 = vpack.c.b16 %v500, %v498
      %v513 = vpack.c.b16 %v503, %v501
      %v514 = vpack.c.b16 %v504, %v502
      %v515 = vpack.c.b16 %v507, %v505
      %v516 = vpack.c.b16 %v508, %v506
      %517 = vrot.lane.b32.xlu0 %v509, 127
      %v518 = vpop.permute.xlu0 %517
      %519 = vrot.lane.b32.xlu0 %v510, 127
      %v520 = vpop.permute.xlu0 %519
      %521 = vrot.lane.b32.xlu0 %v511, 127
      %v522 = vpop.permute.xlu0 %521
      %523 = vrot.lane.b32.xlu0 %v512, 127
      %v524 = vpop.permute.xlu0 %523
      %525 = vrot.lane.b32.xlu0 %v513, 127
      %v526 = vpop.permute.xlu0 %525
      %527 = vrot.lane.b32.xlu0 %v514, 127
      %v528 = vpop.permute.xlu0 %527
      %529 = vrot.lane.b32.xlu0 %v515, 127
      %v530 = vpop.permute.xlu0 %529
      %531 = vrot.lane.b32.xlu0 %v516, 127
      %v532 = vpop.permute.xlu0 %531
      %v533 = vsel %vm342, %v518, %v520
      %v534 = vsel %vm342, %v522, %v524
      %v535 = vsel %vm342, %v526, %v528
      %v536 = vsel %vm342, %v530, %v532
      %545 = vst [vmem:[#allocation2 + $0x140] sm:$0xff] %v533
      %546 = vst.msk [vmem:[#allocation2 + $0x148] sm:$0xff] %vm221, %v520
      %547 = vst [vmem:[#allocation2 + $0x150] sm:$0xff] %v534
      %548 = vst.msk [vmem:[#allocation2 + $0x158] sm:$0xff] %vm221, %v524
      %549 = vst [vmem:[#allocation2 + $0x160] sm:$0xff] %v535
      %550 = vst.msk [vmem:[#allocation2 + $0x168] sm:$0xff] %vm221, %v528
      %551 = vst [vmem:[#allocation2 + $0x170] sm:$0xff] %v536
      %552 = vst.msk [vmem:[#allocation2 + $0x178] sm:$0xff] %vm221, %v532
      %v553 = vld [vmem:[%s165] sm:$0xff]
      %v554 = vld [vmem:[%s165 + $0x8] sm:$0xff]
      %v555 = vld [vmem:[%s165 + $0x10] sm:$0xff]
      %v556 = vld [vmem:[%s165 + $0x18] sm:$0xff]
      %v557 = vld [vmem:[%s165 + $0x20] sm:$0xff]
      %v558 = vld [vmem:[%s165 + $0x28] sm:$0xff]
      %v559 = vld [vmem:[%s165 + $0x30] sm:$0xff]
      %v560 = vld [vmem:[%s165 + $0x38] sm:$0xff]
      %v569 = vunpack.c.l.b16 %v553
      %v570 = vunpack.c.h.b16 %v553
      %v571 = vunpack.c.l.b16 %v554
      %v572 = vunpack.c.h.b16 %v554
      %v573 = vunpack.c.l.b16 %v555
      %v574 = vunpack.c.h.b16 %v555
      %v575 = vunpack.c.l.b16 %v556
      %v576 = vunpack.c.h.b16 %v556
      %v577 = vunpack.c.l.b16 %v557
      %v578 = vunpack.c.h.b16 %v557
      %v579 = vunpack.c.l.b16 %v558
      %v580 = vunpack.c.h.b16 %v558
      %v581 = vunpack.c.l.b16 %v559
      %v582 = vunpack.c.h.b16 %v559
      %v583 = vunpack.c.l.b16 %v560
      %v584 = vunpack.c.h.b16 %v560
      %v585 = vpack.c.b16 %v571, %v569
      %v586 = vpack.c.b16 %v572, %v570
      %v587 = vpack.c.b16 %v575, %v573
      %v588 = vpack.c.b16 %v576, %v574
      %v589 = vpack.c.b16 %v579, %v577
      %v590 = vpack.c.b16 %v580, %v578
      %v591 = vpack.c.b16 %v583, %v581
      %v592 = vpack.c.b16 %v584, %v582
      %593 = vrot.lane.b32.xlu0 %v585, 112
      %v594 = vpop.permute.xlu0 %593
      %595 = vrot.lane.b32.xlu0 %v586, 112
      %v596 = vpop.permute.xlu0 %595
      %597 = vrot.lane.b32.xlu0 %v587, 112
      %v598 = vpop.permute.xlu0 %597
      %599 = vrot.lane.b32.xlu0 %v588, 112
      %v600 = vpop.permute.xlu0 %599
      %601 = vrot.lane.b32.xlu0 %v589, 112
      %v602 = vpop.permute.xlu0 %601
      %603 = vrot.lane.b32.xlu0 %v590, 112
      %v604 = vpop.permute.xlu0 %603
      %605 = vrot.lane.b32.xlu0 %v591, 112
      %v606 = vpop.permute.xlu0 %605
      %607 = vrot.lane.b32.xlu0 %v592, 112
      %v608 = vpop.permute.xlu0 %607
      %vm609 = vcmask 916480
      %v610 = vsel %vm609, %v594, %v596
      %v611 = vsel %vm609, %v598, %v600
      %v612 = vsel %vm609, %v602, %v604
      %v613 = vsel %vm609, %v606, %v608
      %622 = vst [vmem:[#allocation2 + $0x180] sm:$0xff] %v610
      %623 = vst.msk [vmem:[#allocation2 + $0x188] sm:$0xff] %vm221, %v596
      %624 = vst [vmem:[#allocation2 + $0x190] sm:$0xff] %v611
      %625 = vst.msk [vmem:[#allocation2 + $0x198] sm:$0xff] %vm221, %v600
      %626 = vst [vmem:[#allocation2 + $0x1a0] sm:$0xff] %v612
      %627 = vst.msk [vmem:[#allocation2 + $0x1a8] sm:$0xff] %vm221, %v604
      %628 = vst [vmem:[#allocation2 + $0x1b0] sm:$0xff] %v613
      %629 = vst.msk [vmem:[#allocation2 + $0x1b8] sm:$0xff] %vm221, %v608
      %v630 = vld [vmem:[%s229] sm:$0xff]
      %v631 = vld [vmem:[%s229 + $0x8] sm:$0xff]
      %v632 = vld [vmem:[%s229 + $0x10] sm:$0xff]
      %v633 = vld [vmem:[%s229 + $0x18] sm:$0xff]
      %v634 = vld [vmem:[%s229 + $0x20] sm:$0xff]
      %v635 = vld [vmem:[%s229 + $0x28] sm:$0xff]
      %v636 = vld [vmem:[%s229 + $0x30] sm:$0xff]
      %v637 = vld [vmem:[%s229 + $0x38] sm:$0xff]
      %v646 = vunpack.c.l.b16 %v630
      %v647 = vunpack.c.h.b16 %v630
      %v648 = vunpack.c.l.b16 %v631
      %v649 = vunpack.c.h.b16 %v631
      %v650 = vunpack.c.l.b16 %v632
      %v651 = vunpack.c.h.b16 %v632
      %v652 = vunpack.c.l.b16 %v633
      %v653 = vunpack.c.h.b16 %v633
      %v654 = vunpack.c.l.b16 %v634
      %v655 = vunpack.c.h.b16 %v634
      %v656 = vunpack.c.l.b16 %v635
      %v657 = vunpack.c.h.b16 %v635
      %v658 = vunpack.c.l.b16 %v636
      %v659 = vunpack.c.h.b16 %v636
      %v660 = vunpack.c.l.b16 %v637
      %v661 = vunpack.c.h.b16 %v637
      %v662 = vpack.c.b16 %v648, %v646
      %v663 = vpack.c.b16 %v649, %v647
      %v664 = vpack.c.b16 %v652, %v650
      %v665 = vpack.c.b16 %v653, %v651
      %v666 = vpack.c.b16 %v656, %v654
      %v667 = vpack.c.b16 %v657, %v655
      %v668 = vpack.c.b16 %v660, %v658
      %v669 = vpack.c.b16 %v661, %v659
      %670 = vrot.lane.b32.xlu0 %v662, 112
      %v671 = vpop.permute.xlu0 %670
      %672 = vrot.lane.b32.xlu0 %v663, 112
      %v673 = vpop.permute.xlu0 %672
      %674 = vrot.lane.b32.xlu0 %v664, 112
      %v675 = vpop.permute.xlu0 %674
      %676 = vrot.lane.b32.xlu0 %v665, 112
      %v677 = vpop.permute.xlu0 %676
      %678 = vrot.lane.b32.xlu0 %v666, 112
      %v679 = vpop.permute.xlu0 %678
      %680 = vrot.lane.b32.xlu0 %v667, 112
      %v681 = vpop.permute.xlu0 %680
      %682 = vrot.lane.b32.xlu0 %v668, 112
      %v683 = vpop.permute.xlu0 %682
      %684 = vrot.lane.b32.xlu0 %v669, 112
      %v685 = vpop.permute.xlu0 %684
      %v686 = vsel %vm609, %v671, %v673
      %v687 = vsel %vm609, %v675, %v677
      %v688 = vsel %vm609, %v679, %v681
      %v689 = vsel %vm609, %v683, %v685
      %698 = vst [vmem:[#allocation2 + $0x1c0] sm:$0xff] %v686
      %699 = vst.msk [vmem:[#allocation2 + $0x1c8] sm:$0xff] %vm221, %v673
      %700 = vst [vmem:[#allocation2 + $0x1d0] sm:$0xff] %v687
      %701 = vst.msk [vmem:[#allocation2 + $0x1d8] sm:$0xff] %vm221, %v677
      %702 = vst [vmem:[#allocation2 + $0x1e0] sm:$0xff] %v688
      %703 = vst.msk [vmem:[#allocation2 + $0x1e8] sm:$0xff] %vm221, %v681
      %704 = vst [vmem:[#allocation2 + $0x1f0] sm:$0xff] %v689
      %705 = vst.msk [vmem:[#allocation2 + $0x1f8] sm:$0xff] %vm221, %v685
      %v706 = vld [vmem:[%s165] sm:$0xff]
      %v707 = vld [vmem:[%s165 + $0x8] sm:$0xff]
      %v708 = vld [vmem:[%s165 + $0x10] sm:$0xff]
      %v709 = vld [vmem:[%s165 + $0x18] sm:$0xff]
      %v710 = vld [vmem:[%s165 + $0x20] sm:$0xff]
      %v711 = vld [vmem:[%s165 + $0x28] sm:$0xff]
      %v712 = vld [vmem:[%s165 + $0x30] sm:$0xff]
      %v713 = vld [vmem:[%s165 + $0x38] sm:$0xff]
      %v722 = vunpack.c.l.b16 %v706
      %v723 = vunpack.c.h.b16 %v706
      %v724 = vunpack.c.l.b16 %v707
      %v725 = vunpack.c.h.b16 %v707
      %v726 = vunpack.c.l.b16 %v708
      %v727 = vunpack.c.h.b16 %v708
      %v728 = vunpack.c.l.b16 %v709
      %v729 = vunpack.c.h.b16 %v709
      %v730 = vunpack.c.l.b16 %v710
      %v731 = vunpack.c.h.b16 %v710
      %v732 = vunpack.c.l.b16 %v711
      %v733 = vunpack.c.h.b16 %v711
      %v734 = vunpack.c.l.b16 %v712
      %v735 = vunpack.c.h.b16 %v712
      %v736 = vunpack.c.l.b16 %v713
      %v737 = vunpack.c.h.b16 %v713
      %v738 = vpack.c.b16 %v724, %v722
      %v739 = vpack.c.b16 %v725, %v723
      %v740 = vpack.c.b16 %v728, %v726
      %v741 = vpack.c.b16 %v729, %v727
      %v742 = vpack.c.b16 %v732, %v730
      %v743 = vpack.c.b16 %v733, %v731
      %v744 = vpack.c.b16 %v736, %v734
      %v745 = vpack.c.b16 %v737, %v735
      %746 = vrot.lane.b32.xlu0 %v738, 111
      %v747 = vpop.permute.xlu0 %746
      %748 = vrot.lane.b32.xlu0 %v739, 111
      %v749 = vpop.permute.xlu0 %748
      %750 = vrot.lane.b32.xlu0 %v740, 111
      %v751 = vpop.permute.xlu0 %750
      %752 = vrot.lane.b32.xlu0 %v741, 111
      %v753 = vpop.permute.xlu0 %752
      %754 = vrot.lane.b32.xlu0 %v742, 111
      %v755 = vpop.permute.xlu0 %754
      %756 = vrot.lane.b32.xlu0 %v743, 111
      %v757 = vpop.permute.xlu0 %756
      %758 = vrot.lane.b32.xlu0 %v744, 111
      %v759 = vpop.permute.xlu0 %758
      %760 = vrot.lane.b32.xlu0 %v745, 111
      %v761 = vpop.permute.xlu0 %760
      %vm762 = vcmask 908288
      %v763 = vsel %vm762, %v747, %v749
      %v764 = vsel %vm762, %v751, %v753
      %v765 = vsel %vm762, %v755, %v757
      %v766 = vsel %vm762, %v759, %v761
      %775 = vst [vmem:[#allocation2 + $0x200] sm:$0xff] %v763
      %776 = vst.msk [vmem:[#allocation2 + $0x208] sm:$0xff] %vm221, %v749
      %777 = vst [vmem:[#allocation2 + $0x210] sm:$0xff] %v764
      %778 = vst.msk [vmem:[#allocation2 + $0x218] sm:$0xff] %vm221, %v753
      %779 = vst [vmem:[#allocation2 + $0x220] sm:$0xff] %v765
      %780 = vst.msk [vmem:[#allocation2 + $0x228] sm:$0xff] %vm221, %v757
      %781 = vst [vmem:[#allocation2 + $0x230] sm:$0xff] %v766
      %782 = vst.msk [vmem:[#allocation2 + $0x238] sm:$0xff] %vm221, %v761
      %v783 = vld [vmem:[%s1] sm:$0xff]
      %v784 = vld [vmem:[%s1 + $0x8] sm:$0xff]
      %v785 = vld [vmem:[%s1 + $0x10] sm:$0xf]
      %v786 = vld [vmem:[%s1 + $0x14] sm:$0xff]
      %v787 = vld [vmem:[%s1 + $0x1c] sm:$0xff]
      %v788 = vld [vmem:[%s1 + $0x24] sm:$0xf]
      %v789 = vld [vmem:[%s1 + $0x28] sm:$0xff]
      %v790 = vld [vmem:[%s1 + $0x30] sm:$0xff]
      %v791 = vld [vmem:[%s1 + $0x38] sm:$0xf]
      %v792 = vld [vmem:[%s1 + $0x3c] sm:$0xff]
      %v793 = vld [vmem:[%s1 + $0x44] sm:$0xff]
      %v794 = vld [vmem:[%s1 + $0x4c] sm:$0xf]
      %v795 = vld [vmem:[#allocation2] sm:$0xff]
      %v796 = vld [vmem:[#allocation2 + $0x8] sm:$0xff]
      %v797 = vld [vmem:[#allocation2 + $0x10] sm:$0xff]
      %v798 = vld [vmem:[#allocation2 + $0x18] sm:$0xff]
      %v799 = vld [vmem:[#allocation2 + $0x20] sm:$0xff]
      %v800 = vld [vmem:[#allocation2 + $0x28] sm:$0xff]
      %v801 = vld [vmem:[#allocation2 + $0x30] sm:$0xff]
      %v802 = vld [vmem:[#allocation2 + $0x38] sm:$0xff]
      %v803 = vld [vmem:[#allocation2 + $0x40] sm:$0xff]
      %v804 = vld [vmem:[#allocation2 + $0x48] sm:$0xff]
      %v805 = vld [vmem:[#allocation2 + $0x50] sm:$0xff]
      %v806 = vld [vmem:[#allocation2 + $0x58] sm:$0xff]
      %v807 = vld [vmem:[#allocation2 + $0x60] sm:$0xff]
      %v808 = vld [vmem:[#allocation2 + $0x68] sm:$0xff]
      %v809 = vld [vmem:[#allocation2 + $0x70] sm:$0xff]
      %v810 = vld [vmem:[#allocation2 + $0x78] sm:$0xff]
      %v811 = vld [vmem:[#allocation2 + $0x80] sm:$0xff]
      %v812 = vld [vmem:[#allocation2 + $0x88] sm:$0xff]
      %v813 = vld [vmem:[#allocation2 + $0x90] sm:$0xff]
      %v814 = vld [vmem:[#allocation2 + $0x98] sm:$0xff]
      %v815 = vld [vmem:[#allocation2 + $0xa0] sm:$0xff]
      %v816 = vld [vmem:[#allocation2 + $0xa8] sm:$0xff]
      %v817 = vld [vmem:[#allocation2 + $0xb0] sm:$0xff]
      %v818 = vld [vmem:[#allocation2 + $0xb8] sm:$0xff]
      %v819 = vld [vmem:[#allocation2 + $0xc0] sm:$0xff]
      %v820 = vld [vmem:[#allocation2 + $0xc8] sm:$0xff]
      %v821 = vld [vmem:[#allocation2 + $0xd0] sm:$0xff]
      %v822 = vld [vmem:[#allocation2 + $0xd8] sm:$0xff]
      %v823 = vld [vmem:[#allocation2 + $0xe0] sm:$0xff]
      %v824 = vld [vmem:[#allocation2 + $0xe8] sm:$0xff]
      %v825 = vld [vmem:[#allocation2 + $0xf0] sm:$0xff]
      %v826 = vld [vmem:[#allocation2 + $0xf8] sm:$0xff]
      %v827 = vld [vmem:[#allocation2 + $0x100] sm:$0xff]
      %v828 = vld [vmem:[#allocation2 + $0x108] sm:$0xff]
      %v829 = vld [vmem:[#allocation2 + $0x110] sm:$0xff]
      %v830 = vld [vmem:[#allocation2 + $0x118] sm:$0xff]
      %v831 = vld [vmem:[#allocation2 + $0x120] sm:$0xff]
      %v832 = vld [vmem:[#allocation2 + $0x128] sm:$0xff]
      %v833 = vld [vmem:[#allocation2 + $0x130] sm:$0xff]
      %v834 = vld [vmem:[#allocation2 + $0x138] sm:$0xff]
      %v835 = vld [vmem:[#allocation2 + $0x140] sm:$0xff]
      %v836 = vld [vmem:[#allocation2 + $0x148] sm:$0xff]
      %v837 = vld [vmem:[#allocation2 + $0x150] sm:$0xff]
      %v838 = vld [vmem:[#allocation2 + $0x158] sm:$0xff]
      %v839 = vld [vmem:[#allocation2 + $0x160] sm:$0xff]
      %v840 = vld [vmem:[#allocation2 + $0x168] sm:$0xff]
      %v841 = vld [vmem:[#allocation2 + $0x170] sm:$0xff]
      %v842 = vld [vmem:[#allocation2 + $0x178] sm:$0xff]
      %v843 = vld [vmem:[#allocation2 + $0x180] sm:$0xff]
      %v844 = vld [vmem:[#allocation2 + $0x188] sm:$0xff]
      %v845 = vld [vmem:[#allocation2 + $0x190] sm:$0xff]
      %v846 = vld [vmem:[#allocation2 + $0x198] sm:$0xff]
      %v847 = vld [vmem:[#allocation2 + $0x1a0] sm:$0xff]
      %v848 = vld [vmem:[#allocation2 + $0x1a8] sm:$0xff]
      %v849 = vld [vmem:[#allocation2 + $0x1b0] sm:$0xff]
      %v850 = vld [vmem:[#allocation2 + $0x1b8] sm:$0xff]
      %v851 = vld [vmem:[#allocation2 + $0x1c0] sm:$0xff]
      %v852 = vld [vmem:[#allocation2 + $0x1c8] sm:$0xff]
      %v853 = vld [vmem:[#allocation2 + $0x1d0] sm:$0xff]
      %v854 = vld [vmem:[#allocation2 + $0x1d8] sm:$0xff]
      %v855 = vld [vmem:[#allocation2 + $0x1e0] sm:$0xff]
      %v856 = vld [vmem:[#allocation2 + $0x1e8] sm:$0xff]
      %v857 = vld [vmem:[#allocation2 + $0x1f0] sm:$0xff]
      %v858 = vld [vmem:[#allocation2 + $0x1f8] sm:$0xff]
      %v859 = vld [vmem:[#allocation2 + $0x200] sm:$0xff]
      %v860 = vld [vmem:[#allocation2 + $0x208] sm:$0xff]
      %v861 = vld [vmem:[#allocation2 + $0x210] sm:$0xff]
      %v862 = vld [vmem:[#allocation2 + $0x218] sm:$0xff]
      %v863 = vld [vmem:[#allocation2 + $0x220] sm:$0xff]
      %v864 = vld [vmem:[#allocation2 + $0x228] sm:$0xff]
      %v865 = vld [vmem:[#allocation2 + $0x230] sm:$0xff]
      %v866 = vld [vmem:[#allocation2 + $0x238] sm:$0xff]
      %v867 = vld [vmem:[%s2] sm:$0xff]
      %v868 = vld [vmem:[%s2 + $0x8] sm:$0xff]
      %v869 = vld [vmem:[%s2 + $0x10] sm:$0xff]
      %v870 = vld [vmem:[%s2 + $0x18] sm:$0xff]
      %872 = vset.pattern.permute.xlu0 0
      %873 = vperm.xlu0 %872, %v867
      %v874 = vpop.permute.xlu0 %873
      %877 = vset.pattern.permute.xlu0 0
      %878 = vperm.xlu0 %877, %v868
      %v879 = vpop.permute.xlu0 %878
      %882 = vset.pattern.permute.xlu0 0
      %883 = vperm.xlu0 %882, %v869
      %v884 = vpop.permute.xlu0 %883
      %887 = vset.pattern.permute.xlu0 0
      %888 = vperm.xlu0 %887, %v870
      %v889 = vpop.permute.xlu0 %888
      %v903 = vunpack.c.l.b16 %v783
      %v904 = vunpack.c.h.b16 %v783
      %v905 = vunpack.c.l.b16 %v784
      %v906 = vunpack.c.h.b16 %v784
      %v907 = vunpack.c.l.b16 %v785
      %v908 = vunpack.c.l.b16 %v786
      %v909 = vunpack.c.h.b16 %v786
      %v910 = vunpack.c.l.b16 %v787
      %v911 = vunpack.c.h.b16 %v787
      %v912 = vunpack.c.l.b16 %v788
      %v913 = vunpack.c.l.b16 %v789
      %v914 = vunpack.c.h.b16 %v789
      %v915 = vunpack.c.l.b16 %v790
      %v916 = vunpack.c.h.b16 %v790
      %v917 = vunpack.c.l.b16 %v791
      %v918 = vunpack.c.l.b16 %v792
      %v919 = vunpack.c.h.b16 %v792
      %v920 = vunpack.c.l.b16 %v793
      %v921 = vunpack.c.h.b16 %v793
      %v922 = vunpack.c.l.b16 %v794
      %v923 = vpack.c.b16 %v908, %v903
      %v924 = vpack.c.b16 %v909, %v904
      %v925 = vpack.c.b16 %v910, %v905
      %v926 = vpack.c.b16 %v911, %v906
      %v927 = vpack.c.b16 %v912, %v907
      %v928 = vpack.c.b16 %v918, %v913
      %v929 = vpack.c.b16 %v919, %v914
      %v930 = vpack.c.b16 %v920, %v915
      %v931 = vpack.c.b16 %v921, %v916
      %v932 = vpack.c.b16 %v922, %v917
      %v942 = vsel %vm221, %v927, 0
      %v945 = vsel %vm221, %v932, 0
      %947 = vmatprep.subr.bf16.mxu0 %v796
      %948 = vmatpush1.bf16.msra.mxu0 %v795
      %949 = vmatprep.subr.bf16.mxu0 %v798
      %950 = vmatpush1.bf16.msra.mxu0 %v797
      %951 = vmatprep.subr.bf16.mxu0 %v800
      %952 = vmatpush1.bf16.msra.mxu0 %v799
      %953 = vmatprep.subr.bf16.mxu0 %v802
      %954 = vmatpush1.bf16.msra.mxu0 %v801
      %955 = vmatprep.subr.bf16.mxu0 %v804
      %956 = vmatpush1.bf16.msra.mxu0 %v803
      %957 = vmatprep.subr.bf16.mxu0 %v806
      %958 = vmatpush1.bf16.msra.mxu0 %v805
      %959 = vmatprep.subr.bf16.mxu0 %v808
      %960 = vmatpush1.bf16.msra.mxu0 %v807
      %961 = vmatprep.subr.bf16.mxu0 %v810
      %962 = vmatpush1.bf16.msra.mxu0 %v809
      %963 = vmatprep.subr.bf16.mxu0 %v812
      %964 = vmatpush1.bf16.msra.mxu0 %v811
      %965 = vmatprep.subr.bf16.mxu0 %v814
      %966 = vmatpush1.bf16.msra.mxu0 %v813
      %967 = vmatprep.subr.bf16.mxu0 %v816
      %968 = vmatpush1.bf16.msra.mxu0 %v815
      %969 = vmatprep.subr.bf16.mxu0 %v818
      %970 = vmatpush1.bf16.msra.mxu0 %v817
      %971 = vmatprep.subr.bf16.mxu0 %v820
      %972 = vmatpush1.bf16.msra.mxu0 %v819
      %973 = vmatprep.subr.bf16.mxu0 %v822
      %974 = vmatpush1.bf16.msra.mxu0 %v821
      %975 = vmatprep.subr.bf16.mxu0 %v824
      %976 = vmatpush1.bf16.msra.mxu0 %v823
      %977 = vmatprep.subr.bf16.mxu0 %v826
      %978 = vmatpush1.bf16.msra.mxu0 %v825
      %979 = vmatprep.mubr.bf16.mxu0 %v924
      %980 = vmatmul.mubr.bf16.gmra.mrb[0].mxu0 %v923
      %v981 = vpop.f32.mrb[0].mxu0
      %v982 = vadd.f32 %v874, %v981
      %v983 = vpop.f32.mrb[0].mxu0
      %v984 = vadd.f32 %v874, %v983
      %v985 = vpop.f32.mrb[0].mxu0
      %v986 = vadd.f32 %v879, %v985
      %v987 = vpop.f32.mrb[0].mxu0
      %v988 = vadd.f32 %v879, %v987
      %989 = vmatprep.mubr.bf16.mxu0 %v929
      %990 = vmatmul.mubr.bf16.gmra.mrb[0].mxu0 %v928
      %v991 = vpop.f32.mrb[0].mxu0
      %v992 = vadd.f32 %v884, %v991
      %v993 = vpop.f32.mrb[0].mxu0
      %v994 = vadd.f32 %v884, %v993
      %v995 = vpop.f32.mrb[0].mxu0
      %v996 = vadd.f32 %v889, %v995
      %v997 = vpop.f32.mrb[0].mxu0
      %v998 = vadd.f32 %v889, %v997
      %999 = vdwg.mxu0
      %1000 = vmatprep.subr.bf16.mxu0 %v828
      %1001 = vmatpush1.bf16.msra.mxu0 %v827
      %1002 = vmatprep.subr.bf16.mxu0 %v830
      %1003 = vmatpush1.bf16.msra.mxu0 %v829
      %1004 = vmatprep.subr.bf16.mxu0 %v832
      %1005 = vmatpush1.bf16.msra.mxu0 %v831
      %1006 = vmatprep.subr.bf16.mxu0 %v834
      %1007 = vmatpush1.bf16.msra.mxu0 %v833
      %1008 = vmatprep.subr.bf16.mxu0 %v836
      %1009 = vmatpush1.bf16.msra.mxu0 %v835
      %1010 = vmatprep.subr.bf16.mxu0 %v838
      %1011 = vmatpush1.bf16.msra.mxu0 %v837
      %1012 = vmatprep.subr.bf16.mxu0 %v840
      %1013 = vmatpush1.bf16.msra.mxu0 %v839
      %1014 = vmatprep.subr.bf16.mxu0 %v842
      %1015 = vmatpush1.bf16.msra.mxu0 %v841
      %1016 = vmatprep.subr.bf16.mxu0 %v844
      %1017 = vmatpush1.bf16.msra.mxu0 %v843
      %1018 = vmatprep.subr.bf16.mxu0 %v846
      %1019 = vmatpush1.bf16.msra.mxu0 %v845
      %1020 = vmatprep.subr.bf16.mxu0 %v848
      %1021 = vmatpush1.bf16.msra.mxu0 %v847
      %1022 = vmatprep.subr.bf16.mxu0 %v850
      %1023 = vmatpush1.bf16.msra.mxu0 %v849
      %1024 = vmatprep.subr.bf16.mxu0 %v852
      %1025 = vmatpush1.bf16.msra.mxu0 %v851
      %1026 = vmatprep.subr.bf16.mxu0 %v854
      %1027 = vmatpush1.bf16.msra.mxu0 %v853
      %1028 = vmatprep.subr.bf16.mxu0 %v856
      %1029 = vmatpush1.bf16.msra.mxu0 %v855
      %1030 = vmatprep.subr.bf16.mxu0 %v858
      %1031 = vmatpush1.bf16.msra.mxu0 %v857
      %1032 = vmatprep.mubr.bf16.mxu0 %v926
      %1033 = vmatmul.mubr.bf16.gmra.mrb[0].mxu0 %v925
      %v1034 = vpop.f32.mrb[0].mxu0
      %v1035 = vadd.f32 %v982, %v1034
      %v1036 = vpop.f32.mrb[0].mxu0
      %v1037 = vadd.f32 %v984, %v1036
      %v1038 = vpop.f32.mrb[0].mxu0
      %v1039 = vadd.f32 %v986, %v1038
      %v1040 = vpop.f32.mrb[0].mxu0
      %v1041 = vadd.f32 %v988, %v1040
      %1042 = vmatprep.mubr.bf16.mxu0 %v931
      %1043 = vmatmul.mubr.bf16.gmra.mrb[0].mxu0 %v930
      %v1044 = vpop.f32.mrb[0].mxu0
      %v1045 = vadd.f32 %v992, %v1044
      %v1046 = vpop.f32.mrb[0].mxu0
      %v1047 = vadd.f32 %v994, %v1046
      %v1048 = vpop.f32.mrb[0].mxu0
      %v1049 = vadd.f32 %v996, %v1048
      %v1050 = vpop.f32.mrb[0].mxu0
      %v1051 = vadd.f32 %v998, %v1050
      %1052 = vdwg.mxu0
      %1053 = vmatprep.subr.bf16.mxu0 %v860
      %1054 = vmatpush1.bf16.msra.mxu0 %v859
      %1055 = vmatprep.subr.bf16.mxu0 %v862
      %1056 = vmatpush1.bf16.msra.mxu0 %v861
      %1057 = vmatprep.subr.bf16.mxu0 %v864
      %1058 = vmatpush1.bf16.msra.mxu0 %v863
      %1059 = vmatprep.subr.bf16.mxu0 %v866
      %1060 = vmatpush1.bf16.msra.mxu0 %v865
      %1061 = vmatprep.subr.bf16.mxu0 0
      %1062 = vmatpush1.bf16.msra.mxu0 0
      %1063 = vmatprep.subr.bf16.mxu0 0
      %1064 = vmatpush1.bf16.msra.mxu0 0
      %1065 = vmatprep.subr.bf16.mxu0 0
      %1066 = vmatpush1.bf16.msra.mxu0 0
      %1067 = vmatprep.subr.bf16.mxu0 0
      %1068 = vmatpush1.bf16.msra.mxu0 0
      %1069 = vmatprep.subr.bf16.mxu0 0
      %1070 = vmatpush1.bf16.msra.mxu0 0
      %1071 = vmatprep.subr.bf16.mxu0 0
      %1072 = vmatpush1.bf16.msra.mxu0 0
      %1073 = vmatprep.subr.bf16.mxu0 0
      %1074 = vmatpush1.bf16.msra.mxu0 0
      %1075 = vmatprep.subr.bf16.mxu0 0
      %1076 = vmatpush1.bf16.msra.mxu0 0
      %1077 = vmatprep.subr.bf16.mxu0 0
      %1078 = vmatpush1.bf16.msra.mxu0 0
      %1079 = vmatprep.subr.bf16.mxu0 0
      %1080 = vmatpush1.bf16.msra.mxu0 0
      %1081 = vmatprep.subr.bf16.mxu0 0
      %1082 = vmatpush1.bf16.msra.mxu0 0
      %1083 = vmatprep.subr.bf16.mxu0 0
      %1084 = vmatpush1.bf16.msra.mxu0 0
      %1085 = vmatprep.mubr.bf16.mxu0 0
      %1086 = vmatmul.mubr.bf16.gmra.mrb[0].mxu0 %v942
      %v1087 = vpop.f32.mrb[0].mxu0
      %v1088 = vadd.f32 %v1035, %v1087
      %v1089 = vpop.f32.mrb[0].mxu0
      %v1090 = vadd.f32 %v1037, %v1089
      %v1091 = vpop.f32.mrb[0].mxu0
      %v1092 = vadd.f32 %v1039, %v1091
      %v1093 = vpop.f32.mrb[0].mxu0
      %v1094 = vadd.f32 %v1041, %v1093
      %1095 = vmatprep.mubr.bf16.mxu0 0
      %1096 = vmatmul.mubr.bf16.gmra.mrb[0].mxu0 %v945
      %v1097 = vpop.f32.mrb[0].mxu0
      %v1098 = vadd.f32 %v1045, %v1097
      %v1099 = vpop.f32.mrb[0].mxu0
      %v1100 = vadd.f32 %v1047, %v1099
      %v1101 = vpop.f32.mrb[0].mxu0
      %v1102 = vadd.f32 %v1049, %v1101
      %v1103 = vpop.f32.mrb[0].mxu0
      %v1104 = vadd.f32 %v1051, %v1103
      %1105 = vdwg.mxu0
      %v1106 = vmax.f32 %v1088, 0.0
      %v1107 = vmax.f32 %v1090, 0.0
      %v1108 = vmax.f32 %v1092, 0.0
      %v1109 = vmax.f32 %v1094, 0.0
      %v1110 = vmax.f32 %v1098, 0.0
      %v1111 = vmax.f32 %v1100, 0.0
      %v1112 = vmax.f32 %v1102, 0.0
      %v1113 = vmax.f32 %v1104, 0.0
      %v1114 = vpack.c.bf16 %v1108, %v1106
      %v1115 = vpack.c.bf16 %v1109, %v1107
      %v1116 = vpack.c.bf16 %v1112, %v1110
      %v1117 = vpack.c.bf16 %v1113, %v1111
      %v1122 = vunpack.c.l.b16 %v1114
      %v1123 = vunpack.c.l.b16 %v1115
      %v1124 = vunpack.c.h.b16 %v1114
      %v1125 = vunpack.c.h.b16 %v1115
      %v1126 = vunpack.c.l.b16 %v1116
      %v1127 = vunpack.c.l.b16 %v1117
      %v1128 = vunpack.c.h.b16 %v1116
      %v1129 = vunpack.c.h.b16 %v1117
      %v1130 = vpack.c.b16 %v1123, %v1122
      %v1131 = vpack.c.b16 %v1125, %v1124
      %v1132 = vpack.c.b16 %v1127, %v1126
      %v1133 = vpack.c.b16 %v1129, %v1128
      %vm1138 = vcmask 1043456
      %vm1139 = vcmask 523268
      %vm1140 = vmor %vm1139, %vm1138
      %1141 = vst.msk [vmem:[%s170] sm:$0xff] %vm1140, %v1130
      %1142 = vst.msk [vmem:[%s170 + $0x8] sm:$0xff] %vm1140, %v1131
      %1143 = vst.msk [vmem:[%s170 + $0x10] sm:$0xff] %vm1140, %v1132
      %1144 = vst.msk [vmem:[%s170 + $0x18] sm:$0xff] %vm1140, %v1133
      %p1145 = scmp.lt.s32.totalorder %s14, 1
      %s1146 = scalar_select %p1145, %s14, 1
      %s1147 = smul.addr %s1146, 8
      %s1148 = smul.addr %s1147, 4
      %s1149 = scalar_lea.vmem %s3, %s1148
      // Predicated region
      $region33: #{_lambda_.7} parent=31 // pred_check
        %p1150 = pneg %p100
      $region34: #{_lambda_.7} parent=31 // pred_check_branch
        %1152 = sbr.rel (%p1150) target = $region36
      $region35: #{_lambda_.7} parent=31 // pred_region
        _
      $region36: #{_lambda_.7} parent=31 // pred_fallthru
        _
    $region32: #{_lambda_.7} parent=5 // pred_fallthru
      _
    %p1153 = scmp.le.s32.totalorder 2, %s9
    // Predicated region
    $region37: #{_lambda_.7} parent=5 // pred_check
      %p1154 = pneg %p1153
    $region38: #{_lambda_.7} parent=5 // pred_check_branch
      %1156 = sbr.rel (%p1154) target = $region40
    $region39: #{_lambda_.7} parent=5 // pred_region
      %s1157 = ssub.s32 %s9, 2
      // Predicated region
      $region41: #{_lambda_.7} parent=39 // pred_check
        %p1158 = pneg %p106
      $region42: #{_lambda_.7} parent=39 // pred_check_branch
        %1160 = sbr.rel (%p1158) target = $region44
      $region43: #{_lambda_.7} parent=39 // pred_region
        %p1161 = scmp.lt.s32.totalorder %s15, 1
        %s1162 = scalar_select %p1161, %s15, 1
        %s1163 = smul.addr %s1162, 8
        %s1164 = smul.addr %s1163, 4
        %s1165 = scalar_lea.vmem %s3, %s1164
      $region44: #{_lambda_.7} parent=39 // pred_fallthru
        _
    $region40: #{_lambda_.7} parent=5 // pred_fallthru
      _
  $region6: #{_lambda_.7} parent=0 // loop_footer
    %s13 = sadd.s32 1, %s9
  $region7: #{_lambda_.7} parent=0 // loop_footer_branch
    %8 = sbr.rel target = $region3
  $region8: #{_lambda_.7} parent=0 // loop_exit
    _

// kernel: _lambda_.8
$region0: #{_lambda_.8}
  #allocation0 [shape = 'u32[]', space=smem, size = 0x4, offset = 0x4, fixed_abs, tag = 'smem constant byte address 0x4 - core index']
  #allocation1 [shape = 'u32[144,128]{1,0:T(1,128)}', space=vmem, size = 0x12000, scoped, tag = 'internal scratch']
  #allocation2 [shape = 'bf16[288,48]{1,0:T(16,128)(2,1)}', space=vmem, size = 0x12000, scoped, tag = 'scratch operand']
  %s0 = inlined_call_operand.vmem [shape: bf16[2,4,32,64], index: 0, kind: input, shape index: {}]
  %s1 = inlined_call_operand.vmem [shape: bf16[16,288], index: 1, kind: input, shape index: {}]
  %s2 = inlined_call_operand.vmem [shape: f32[16,1], index: 2, kind: input, shape index: {}]
  %s3 = inlined_call_operand.vmem [shape: bf16[2,16,48], index: 3, kind: output, shape index: {}]
  %s4 = sld [smem:[#allocation0]]
  $region45: #{_lambda_.8} parent=0
    _
  %s6 = ssub.s32 1, %s4
  %s7 = scalar_select 0, %s6, %s4
  loop: start=0, step=1, limit=4
  $region2: #{_lambda_.8} parent=0 // loop_pre_header
    _
  $region3: #{_lambda_.8} parent=0 // loop_header
    %s9 = sphi 0, %s13
    %p10 = scmp.ge.s32.totalorder %s9, 4
    %s19 = sphi 0, %s21
    %s22 = sphi 0, %s19
    %s23 = sphi 0, %s22
    %s39 = sphi 0, %s23
    %s43 = sphi 0, %s43
    %s45 = sphi 0, %s43
    %s46 = sphi 0, %s45
    %s60 = sphi 0, %s46
    %s64 = sphi 0, %s64
    %s66 = sphi 0, %s64
    %s67 = sphi 0, %s66
    %s81 = sphi 0, %s67
    %s87 = sphi 0, %s89
    %s90 = sphi 0, %s87
    %s91 = sphi 0, %s90
    %s107 = sphi 0, %s91
  $region4: #{_lambda_.8} parent=0 // loop_header_branch
    %12 = sbr.rel (%p10) target = $region8
  $region5: #{_lambda_.8} parent=0 // loop_body
    %s14 = ssub.s32 %s9, 1
    %s15 = ssub.s32 %s9, 2
    %s16 = sadd.s32 %s9, 1
    %s17 = ssub.s32 %s9, %s16
    %p18 = scmp.eq.s32.totalorder %s17, 0
    %s20 = sadd.s32 %s19, 1
    %s21 = scalar_select %p18, %s19, %s20
    %p24 = pneg %p18
    %p25 = scmp.eq.s32.totalorder %s9, 1
    %p26 = por %p24, %p25
    %p27 = scmp.ne.s32.totalorder %s19, %s22
    %p28 = scmp.eq.s32.totalorder %s9, 0
    %p29 = por %p27, %p28
    %p30 = scmp.ne.s32.totalorder %s19, %s22
    %p31 = scmp.eq.s32.totalorder %s14, 1
    %p32 = por %p30, %p31
    %p33 = scmp.ne.s32.totalorder %s22, %s23
    %p34 = scmp.eq.s32.totalorder %s14, 0
    %p35 = por %p33, %p34
    %p36 = scmp.ne.s32.totalorder %s22, %s23
    %p37 = scmp.eq.s32.totalorder %s15, 1
    %p38 = por %p36, %p37
    %p40 = scmp.ne.s32.totalorder %s23, %s39
    %p41 = scmp.eq.s32.totalorder %s15, 0
    %p42 = por %p40, %p41
    %s44 = sadd.s32 %s43, 1
    %p47 = scmp.eq.s32.totalorder %s9, 1
    %p48 = scmp.ne.s32.totalorder %s43, %s45
    %p49 = scmp.eq.s32.totalorder %s9, 0
    %p50 = por %p48, %p49
    %p51 = scmp.ne.s32.totalorder %s43, %s45
    %p52 = scmp.eq.s32.totalorder %s14, 1
    %p53 = por %p51, %p52
    %p54 = scmp.ne.s32.totalorder %s45, %s46
    %p55 = scmp.eq.s32.totalorder %s14, 0
    %p56 = por %p54, %p55
    %p57 = scmp.ne.s32.totalorder %s45, %s46
    %p58 = scmp.eq.s32.totalorder %s15, 1
    %p59 = por %p57, %p58
    %p61 = scmp.ne.s32.totalorder %s46, %s60
    %p62 = scmp.eq.s32.totalorder %s15, 0
    %p63 = por %p61, %p62
    %s65 = sadd.s32 %s64, 1
    %p68 = scmp.eq.s32.totalorder %s9, 1
    %p69 = scmp.ne.s32.totalorder %s64, %s66
    %p70 = scmp.eq.s32.totalorder %s9, 0
    %p71 = por %p69, %p70
    %p72 = scmp.ne.s32.totalorder %s64, %s66
    %p73 = scmp.eq.s32.totalorder %s14, 1
    %p74 = por %p72, %p73
    %p75 = scmp.ne.s32.totalorder %s66, %s67
    %p76 = scmp.eq.s32.totalorder %s14, 0
    %p77 = por %p75, %p76
    %p78 = scmp.ne.s32.totalorder %s66, %s67
    %p79 = scmp.eq.s32.totalorder %s15, 1
    %p80 = por %p78, %p79
    %p82 = scmp.ne.s32.totalorder %s67, %s81
    %p83 = scmp.eq.s32.totalorder %s15, 0
    %p84 = por %p82, %p83
    %s85 = ssub.s32 %s9, %s16
    %p86 = scmp.eq.s32.totalorder %s85, 0
    %s88 = sadd.s32 %s87, 1
    %s89 = scalar_select %p86, %s87, %s88
    %p92 = pneg %p86
    %p93 = scmp.eq.s32.totalorder %s9, 1
    %p94 = por %p92, %p93
    %p95 = scmp.ne.s32.totalorder %s87, %s90
    %p96 = scmp.eq.s32.totalorder %s9, 0
    %p97 = por %p95, %p96
    %p98 = scmp.ne.s32.totalorder %s87, %s90
    %p99 = scmp.eq.s32.totalorder %s14, 1
    %p100 = por %p98, %p99
    %p101 = scmp.ne.s32.totalorder %s90, %s91
    %p102 = scmp.eq.s32.totalorder %s14, 0
    %p103 = por %p101, %p102
    %p104 = scmp.ne.s32.totalorder %s90, %s91
    %p105 = scmp.eq.s32.totalorder %s15, 1
    %p106 = por %p104, %p105
    %p108 = scmp.ne.s32.totalorder %s91, %s107
    %p109 = scmp.eq.s32.totalorder %s15, 0
    %p110 = por %p108, %p109
    %p111 = scmp.le.s32.totalorder 1, %s9
    %p112 = scmp.lt.s32.totalorder %s9, 3
    %p113 = pnand %p111, %p112
    %p114 = pneg %p113
    // Predicated region
    $region9: #{_lambda_.8} parent=5 // pred_check
      _
    $region10: #{_lambda_.8} parent=5 // pred_check_branch
      %116 = sbr.rel (%p113) target = $region12
    $region11: #{_lambda_.8} parent=5 // pred_region
      %s117 = ssub.s32 %s9, 1
      // Predicated region
      $region13: #{_lambda_.8} parent=11 // pred_check
        %p118 = pneg %p56
      $region14: #{_lambda_.8} parent=11 // pred_check_branch
        %120 = sbr.rel (%p118) target = $region16
      $region15: #{_lambda_.8} parent=11 // pred_region
        _
      $region16: #{_lambda_.8} parent=11 // pred_fallthru
        _
      // Predicated region
      $region17: #{_lambda_.8} parent=11 // pred_check
        %p121 = pneg %p77
      $region18: #{_lambda_.8} parent=11 // pred_check_branch
        %123 = sbr.rel (%p121) target = $region20
      $region19: #{_lambda_.8} parent=11 // pred_region
        _
      $region20: #{_lambda_.8} parent=11 // pred_fallthru
        _
    $region12: #{_lambda_.8} parent=5 // pred_fallthru
      _
    %p124 = scmp.lt.s32.totalorder %s9, 2
    // Predicated region
    $region21: #{_lambda_.8} parent=5 // pred_check
      %p125 = pneg %p124
    $region22: #{_lambda_.8} parent=5 // pred_check_branch
      %127 = sbr.rel (%p125) target = $region24
    $region23: #{_lambda_.8} parent=5 // pred_region
      // Predicated region
      $region25: #{_lambda_.8} parent=23 // pred_check
        %p128 = pneg %p29
      $region26: #{_lambda_.8} parent=23 // pred_check_branch
        %130 = sbr.rel (%p128) target = $region28
      $region27: #{_lambda_.8} parent=23 // pred_region
        %p131 = scmp.lt.s32.totalorder %s9, 1
        %s132 = scalar_select %p131, %s9, 1
        %s133 = smul.addr %s132, 16
        %s134 = smul.addr %s133, 4
        %s135 = scalar_lea.vmem %s0, %s134
      $region28: #{_lambda_.8} parent=23 // pred_fallthru
        _
    $region24: #{_lambda_.8} parent=5 // pred_fallthru
      _
    %p136 = scmp.le.s32.totalorder 1, %s9
    %p137 = scmp.lt.s32.totalorder %s9, 3
    %p138 = pnand %p136, %p137
    %p139 = pneg %p138
    // Predicated region
    $region29: #{_lambda_.8} parent=5 // pred_check
      _
    $region30: #{_lambda_.8} parent=5 // pred_check_branch
      %141 = sbr.rel (%p138) target = $region32
    $region31: #{_lambda_.8} parent=5 // pred_region
      %s142 = ssub.s32 %s9, 1
      %p143 = scmp.lt.s32.totalorder %s14, 1
      %s144 = scalar_select %p143, %s14, 1
      %s145 = smul.addr %s144, 16
      %s146 = smul.addr %s145, 4
      %s147 = scalar_lea.vmem %s0, %s146
      %p148 = pneg %p35
      %p149 = pneg %p32
      %p150 = pneg %p56
      %p151 = pneg %p53
      %p152 = pneg %p77
      %p153 = pneg %p74
      %p154 = pneg %p103
      %p155 = pneg %p100
      %p156 = scmp.lt.s32.totalorder %s14, 1
      %s157 = scalar_select %p156, %s14, 1
      %s158 = smul.addr %s157, 2
      %s159 = smul.addr %s158, 4
      %s160 = scalar_lea.vmem %s3, %s159
      %p161 = scmp.lt.s32.totalorder %s14, 1
      %s162 = scalar_select %p161, %s14, 1
      %s163 = smul.addr %s162, 16
      %s164 = smul.addr %s163, 4
      %s165 = scalar_lea.vmem %s0, %s164
      %p166 = scmp.lt.s32.totalorder %s14, 1
      %s167 = scalar_select %p166, %s14, 1
      %s168 = smul.addr %s167, 2
      %s169 = smul.addr %s168, 4
      %s170 = scalar_lea.vmem %s3, %s169
      %v172 = vld [vmem:[%s165] sm:$0xf]
      %v173 = vld [vmem:[%s165 + $0x4] sm:$0xf]
      %v174 = vld [vmem:[%s165 + $0x8] sm:$0xf]
      %v175 = vld [vmem:[%s165 + $0xc] sm:$0xf]
      %v180 = vunpack.c.l.b16 %v172
      %v181 = vunpack.c.l.b16 %v173
      %v182 = vunpack.c.l.b16 %v174
      %v183 = vunpack.c.l.b16 %v175
      %v184 = vpack.c.b16 %v181, %v180
      %v185 = vpack.c.b16 %v183, %v182
      %vm188 = vcmask 392192
      %189 = vst.msk [vmem:[#allocation2] sm:$0xff] %vm188, %v184
      %190 = vst.msk [vmem:[#allocation2 + $0x8] sm:$0xff] %vm188, %v185
      %s191 = scalar_lea.vmem %s165, 16
      %v192 = vld [vmem:[%s191] sm:$0xf]
      %v193 = vld [vmem:[%s191 + $0x4] sm:$0xf]
      %v194 = vld [vmem:[%s191 + $0x8] sm:$0xf]
      %v195 = vld [vmem:[%s191 + $0xc] sm:$0xf]
      %v200 = vunpack.c.l.b16 %v192
      %v201 = vunpack.c.l.b16 %v193
      %v202 = vunpack.c.l.b16 %v194
      %v203 = vunpack.c.l.b16 %v195
      %v204 = vpack.c.b16 %v201, %v200
      %v205 = vpack.c.b16 %v203, %v202
      %208 = vst.msk [vmem:[#allocation2 + $0x10] sm:$0xff] %vm188, %v204
      %209 = vst.msk [vmem:[#allocation2 + $0x18] sm:$0xff] %vm188, %v205
      %v210 = vld [vmem:[%s165] sm:$0xf]
      %v211 = vld [vmem:[%s165 + $0x4] sm:$0xf]
      %v212 = vld [vmem:[%s165 + $0x8] sm:$0xf]
      %v213 = vld [vmem:[%s165 + $0xc] sm:$0xf]
      %v218 = vunpack.c.l.b16 %v210
      %v219 = vunpack.c.l.b16 %v211
      %v220 = vunpack.c.l.b16 %v212
      %v221 = vunpack.c.l.b16 %v213
      %v222 = vpack.c.b16 %v219, %v218
      %v223 = vpack.c.b16 %v221, %v220
      %224 = vrot.lane.b32.xlu0 %v222, 127
      %v225 = vpop.permute.xlu0 %224
      %226 = vrot.lane.b32.xlu0 %v223, 127
      %v227 = vpop.permute.xlu0 %226
      %230 = vst.msk [vmem:[#allocation2 + $0x20] sm:$0xff] %vm188, %v225
      %231 = vst.msk [vmem:[#allocation2 + $0x28] sm:$0xff] %vm188, %v227
      %s232 = scalar_lea.vmem %s165, 32
      %v233 = vld [vmem:[%s232] sm:$0xf]
      %v234 = vld [vmem:[%s232 + $0x4] sm:$0xf]
      %v235 = vld [vmem:[%s232 + $0x8] sm:$0xf]
      %v236 = vld [vmem:[%s232 + $0xc] sm:$0xf]
      %v241 = vunpack.c.l.b16 %v233
      %v242 = vunpack.c.l.b16 %v234
      %v243 = vunpack.c.l.b16 %v235
      %v244 = vunpack.c.l.b16 %v236
      %v245 = vpack.c.b16 %v242, %v241
      %v246 = vpack.c.b16 %v244, %v243
      %249 = vst.msk [vmem:[#allocation2 + $0x30] sm:$0xff] %vm188, %v245
      %250 = vst.msk [vmem:[#allocation2 + $0x38] sm:$0xff] %vm188, %v246
      %s251 = scalar_lea.vmem %s165, 48
      %v252 = vld [vmem:[%s251] sm:$0xf]
      %v253 = vld [vmem:[%s251 + $0x4] sm:$0xf]
      %v254 = vld [vmem:[%s251 + $0x8] sm:$0xf]
      %v255 = vld [vmem:[%s251 + $0xc] sm:$0xf]
      %v260 = vunpack.c.l.b16 %v252
      %v261 = vunpack.c.l.b16 %v253
      %v262 = vunpack.c.l.b16 %v254
      %v263 = vunpack.c.l.b16 %v255
      %v264 = vpack.c.b16 %v261, %v260
      %v265 = vpack.c.b16 %v263, %v262
      %268 = vst.msk [vmem:[#allocation2 + $0x40] sm:$0xff] %vm188, %v264
      %269 = vst.msk [vmem:[#allocation2 + $0x48] sm:$0xff] %vm188, %v265
      %v270 = vld [vmem:[%s232] sm:$0xf]
      %v271 = vld [vmem:[%s232 + $0x4] sm:$0xf]
      %v272 = vld [vmem:[%s232 + $0x8] sm:$0xf]
      %v273 = vld [vmem:[%s232 + $0xc] sm:$0xf]
      %v278 = vunpack.c.l.b16 %v270
      %v279 = vunpack.c.l.b16 %v271
      %v280 = vunpack.c.l.b16 %v272
      %v281 = vunpack.c.l.b16 %v273
      %v282 = vpack.c.b16 %v279, %v278
      %v283 = vpack.c.b16 %v281, %v280
      %284 = vrot.lane.b32.xlu0 %v282, 127
      %v285 = vpop.permute.xlu0 %284
      %286 = vrot.lane.b32.xlu0 %v283, 127
      %v287 = vpop.permute.xlu0 %286
      %290 = vst.msk [vmem:[#allocation2 + $0x50] sm:$0xff] %vm188, %v285
      %291 = vst.msk [vmem:[#allocation2 + $0x58] sm:$0xff] %vm188, %v287
      %v292 = vld [vmem:[%s165] sm:$0xf]
      %v293 = vld [vmem:[%s165 + $0x4] sm:$0xf]
      %v294 = vld [vmem:[%s165 + $0x8] sm:$0xf]
      %v295 = vld [vmem:[%s165 + $0xc] sm:$0xf]
      %v300 = vunpack.c.l.b16 %v292
      %v301 = vunpack.c.l.b16 %v293
      %v302 = vunpack.c.l.b16 %v294
      %v303 = vunpack.c.l.b16 %v295
      %v304 = vpack.c.b16 %v301, %v300
      %v305 = vpack.c.b16 %v303, %v302
      %306 = vrot.lane.b32.xlu0 %v304, 120
      %v307 = vpop.permute.xlu0 %306
      %308 = vrot.lane.b32.xlu0 %v305, 120
      %v309 = vpop.permute.xlu0 %308
      %312 = vst.msk [vmem:[#allocation2 + $0x60] sm:$0xff] %vm188, %v307
      %313 = vst.msk [vmem:[#allocation2 + $0x68] sm:$0xff] %vm188, %v309
      %v314 = vld [vmem:[%s191] sm:$0xf]
      %v315 = vld [vmem:[%s191 + $0x4] sm:$0xf]
      %v316 = vld [vmem:[%s191 + $0x8] sm:$0xf]
      %v317 = vld [vmem:[%s191 + $0xc] sm:$0xf]
      %v322 = vunpack.c.l.b16 %v314
      %v323 = vunpack.c.l.b16 %v315
      %v324 = vunpack.c.l.b16 %v316
      %v325 = vunpack.c.l.b16 %v317
      %v326 = vpack.c.b16 %v323, %v322
      %v327 = vpack.c.b16 %v325, %v324
      %328 = vrot.lane.b32.xlu0 %v326, 120
      %v329 = vpop.permute.xlu0 %328
      %330 = vrot.lane.b32.xlu0 %v327, 120
      %v331 = vpop.permute.xlu0 %330
      %334 = vst.msk [vmem:[#allocation2 + $0x70] sm:$0xff] %vm188, %v329
      %335 = vst.msk [vmem:[#allocation2 + $0x78] sm:$0xff] %vm188, %v331
      %v336 = vld [vmem:[%s165] sm:$0xf]
      %v337 = vld [vmem:[%s165 + $0x4] sm:$0xf]
      %v338 = vld [vmem:[%s165 + $0x8] sm:$0xf]
      %v339 = vld [vmem:[%s165 + $0xc] sm:$0xf]
      %v344 = vunpack.c.l.b16 %v336
      %v345 = vunpack.c.l.b16 %v337
      %v346 = vunpack.c.l.b16 %v338
      %v347 = vunpack.c.l.b16 %v339
      %v348 = vpack.c.b16 %v345, %v344
      %v349 = vpack.c.b16 %v347, %v346
      %350 = vrot.lane.b32.xlu0 %v348, 119
      %v351 = vpop.permute.xlu0 %350
      %352 = vrot.lane.b32.xlu0 %v349, 119
      %v353 = vpop.permute.xlu0 %352
      %356 = vst.msk [vmem:[#allocation2 + $0x80] sm:$0xff] %vm188, %v351
      %357 = vst.msk [vmem:[#allocation2 + $0x88] sm:$0xff] %vm188, %v353
      %v358 = vld [vmem:[%s1] sm:$0xff]
      %v359 = vld [vmem:[%s1 + $0x8] sm:$0xf]
      %v360 = vld [vmem:[%s1 + $0xc] sm:$0xff]
      %v361 = vld [vmem:[%s1 + $0x14] sm:$0xf]
      %v362 = vld [vmem:[#allocation2] sm:$0xff]
      %v363 = vld [vmem:[#allocation2 + $0x8] sm:$0xff]
      %v364 = vld [vmem:[#allocation2 + $0x10] sm:$0xff]
      %v365 = vld [vmem:[#allocation2 + $0x18] sm:$0xff]
      %v366 = vld [vmem:[#allocation2 + $0x20] sm:$0xff]
      %v367 = vld [vmem:[#allocation2 + $0x28] sm:$0xff]
      %v368 = vld [vmem:[#allocation2 + $0x30] sm:$0xff]
      %v369 = vld [vmem:[#allocation2 + $0x38] sm:$0xff]
      %v370 = vld [vmem:[#allocation2 + $0x40] sm:$0xff]
      %v371 = vld [vmem:[#allocation2 + $0x48] sm:$0xff]
      %v372 = vld [vmem:[#allocation2 + $0x50] sm:$0xff]
      %v373 = vld [vmem:[#allocation2 + $0x58] sm:$0xff]
      %v374 = vld [vmem:[#allocation2 + $0x60] sm:$0xff]
      %v375 = vld [vmem:[#allocation2 + $0x68] sm:$0xff]
      %v376 = vld [vmem:[#allocation2 + $0x70] sm:$0xff]
      %v377 = vld [vmem:[#allocation2 + $0x78] sm:$0xff]
      %v378 = vld [vmem:[#allocation2 + $0x80] sm:$0xff]
      %v379 = vld [vmem:[#allocation2 + $0x88] sm:$0xff]
      %v380 = vld [vmem:[%s2] sm:$0xff]
      %v381 = vld [vmem:[%s2 + $0x8] sm:$0xff]
      %383 = vset.pattern.permute.xlu0 0
      %384 = vperm.xlu0 %383, %v380
      %v385 = vpop.permute.xlu0 %384
      %388 = vset.pattern.permute.xlu0 0
      %389 = vperm.xlu0 %388, %v381
      %v390 = vpop.permute.xlu0 %389
      %v396 = vunpack.c.l.b16 %v358
      %v397 = vunpack.c.h.b16 %v358
      %v398 = vunpack.c.l.b16 %v359
      %v399 = vunpack.c.l.b16 %v360
      %v400 = vunpack.c.h.b16 %v360
      %v401 = vunpack.c.l.b16 %v361
      %v402 = vpack.c.b16 %v399, %v396
      %v403 = vpack.c.b16 %v400, %v397
      %v404 = vpack.c.b16 %v401, %v398
      %vm407 = vcmask 261120
      %v409 = vsel %vm407, %v404, 0
      %411 = vmatprep.subr.bf16.mxu0 0
      %412 = vmatpush1.bf16.msra.mxu0 %v362
      %413 = vmatprep.subr.bf16.mxu0 0
      %414 = vmatpush1.bf16.msra.mxu0 %v363
      %415 = vmatprep.subr.bf16.mxu0 0
      %416 = vmatpush1.bf16.msra.mxu0 %v364
      %417 = vmatprep.subr.bf16.mxu0 0
      %418 = vmatpush1.bf16.msra.mxu0 %v365
      %419 = vmatprep.subr.bf16.mxu0 0
      %420 = vmatpush1.bf16.msra.mxu0 %v366
      %421 = vmatprep.subr.bf16.mxu0 0
      %422 = vmatpush1.bf16.msra.mxu0 %v367
      %423 = vmatprep.subr.bf16.mxu0 0
      %424 = vmatpush1.bf16.msra.mxu0 %v368
      %425 = vmatprep.subr.bf16.mxu0 0
      %426 = vmatpush1.bf16.msra.mxu0 %v369
      %427 = vmatprep.subr.bf16.mxu0 0
      %428 = vmatpush1.bf16.msra.mxu0 %v370
      %429 = vmatprep.subr.bf16.mxu0 0
      %430 = vmatpush1.bf16.msra.mxu0 %v371
      %431 = vmatprep.subr.bf16.mxu0 0
      %432 = vmatpush1.bf16.msra.mxu0 %v372
      %433 = vmatprep.subr.bf16.mxu0 0
      %434 = vmatpush1.bf16.msra.mxu0 %v373
      %435 = vmatprep.subr.bf16.mxu0 0
      %436 = vmatpush1.bf16.msra.mxu0 %v374
      %437 = vmatprep.subr.bf16.mxu0 0
      %438 = vmatpush1.bf16.msra.mxu0 %v375
      %439 = vmatprep.subr.bf16.mxu0 0
      %440 = vmatpush1.bf16.msra.mxu0 %v376
      %441 = vmatprep.subr.bf16.mxu0 0
      %442 = vmatpush1.bf16.msra.mxu0 %v377
      %443 = vmatprep.mubr.bf16.mxu0 %v403
      %444 = vmatmul.mubr.bf16.gmra.mrb[0].mxu0 %v402
      %v445 = vpop.f32.mrb[0].mxu0
      %v446 = vadd.f32 %v385, %v445
      %v447 = vpop.f32.mrb[0].mxu0
      %v448 = vpop.f32.mrb[0].mxu0
      %v449 = vadd.f32 %v390, %v448
      %v450 = vpop.f32.mrb[0].mxu0
      %451 = vdwg.mxu0
      %452 = vmatprep.subr.bf16.mxu0 0
      %453 = vmatpush1.bf16.msra.mxu0 %v378
      %454 = vmatprep.subr.bf16.mxu0 0
      %455 = vmatpush1.bf16.msra.mxu0 %v379
      %456 = vmatprep.subr.bf16.mxu0 0
      %457 = vmatpush1.bf16.msra.mxu0 0
      %458 = vmatprep.subr.bf16.mxu0 0
      %459 = vmatpush1.bf16.msra.mxu0 0
      %460 = vmatprep.subr.bf16.mxu0 0
      %461 = vmatpush1.bf16.msra.mxu0 0
      %462 = vmatprep.subr.bf16.mxu0 0
      %463 = vmatpush1.bf16.msra.mxu0 0
      %464 = vmatprep.subr.bf16.mxu0 0
      %465 = vmatpush1.bf16.msra.mxu0 0
      %466 = vmatprep.subr.bf16.mxu0 0
      %467 = vmatpush1.bf16.msra.mxu0 0
      %468 = vmatprep.subr.bf16.mxu0 0
      %469 = vmatpush1.bf16.msra.mxu0 0
      %470 = vmatprep.subr.bf16.mxu0 0
      %471 = vmatpush1.bf16.msra.mxu0 0
      %472 = vmatprep.subr.bf16.mxu0 0
      %473 = vmatpush1.bf16.msra.mxu0 0
      %474 = vmatprep.subr.bf16.mxu0 0
      %475 = vmatpush1.bf16.msra.mxu0 0
      %476 = vmatprep.subr.bf16.mxu0 0
      %477 = vmatpush1.bf16.msra.mxu0 0
      %478 = vmatprep.subr.bf16.mxu0 0
      %479 = vmatpush1.bf16.msra.mxu0 0
      %480 = vmatprep.subr.bf16.mxu0 0
      %481 = vmatpush1.bf16.msra.mxu0 0
      %482 = vmatprep.subr.bf16.mxu0 0
      %483 = vmatpush1.bf16.msra.mxu0 0
      %484 = vmatprep.mubr.bf16.mxu0 0
      %485 = vmatmul.mubr.bf16.gmra.mrb[0].mxu0 %v409
      %v486 = vpop.f32.mrb[0].mxu0
      %v487 = vadd.f32 %v446, %v486
      %v488 = vpop.f32.mrb[0].mxu0
      %v489 = vpop.f32.mrb[0].mxu0
      %v490 = vadd.f32 %v449, %v489
      %v491 = vpop.f32.mrb[0].mxu0
      %492 = vdwg.mxu0
      %v493 = vmax.f32 %v487, 0.0
      %v494 = vmax.f32 %v490, 0.0
      %v495 = vpack.c.bf16 %v494, %v493
      %v497 = vunpack.c.l.b16 %v495
      %v498 = vunpack.c.h.b16 %v495
      %v499 = vpack.c.b16 %v497, %v497
      %v500 = vpack.c.b16 %v498, %v498
      %vm503 = vcmask 388096
      %504 = vst.msk [vmem:[%s170] sm:$0xf] %vm503, %v499
      %505 = vst.msk [vmem:[%s170 + $0x4] sm:$0xf] %vm503, %v500
      %p506 = scmp.lt.s32.totalorder %s14, 1
      %s507 = scalar_select %p506, %s14, 1
      %s508 = smul.addr %s507, 2
      %s509 = smul.addr %s508, 4
      %s510 = scalar_lea.vmem %s3, %s509
      // Predicated region
      $region33: #{_lambda_.8} parent=31 // pred_check
        %p511 = pneg %p100
      $region34: #{_lambda_.8} parent=31 // pred_check_branch
        %513 = sbr.rel (%p511) target = $region36
      $region35: #{_lambda_.8} parent=31 // pred_region
        _
      $region36: #{_lambda_.8} parent=31 // pred_fallthru
        _
    $region32: #{_lambda_.8} parent=5 // pred_fallthru
      _
    %p514 = scmp.le.s32.totalorder 2, %s9
    // Predicated region
    $region37: #{_lambda_.8} parent=5 // pred_check
      %p515 = pneg %p514
    $region38: #{_lambda_.8} parent=5 // pred_check_branch
      %517 = sbr.rel (%p515) target = $region40
    $region39: #{_lambda_.8} parent=5 // pred_region
      %s518 = ssub.s32 %s9, 2
      // Predicated region
      $region41: #{_lambda_.8} parent=39 // pred_check
        %p519 = pneg %p106
      $region42: #{_lambda_.8} parent=39 // pred_check_branch
        %521 = sbr.rel (%p519) target = $region44
      $region43: #{_lambda_.8} parent=39 // pred_region
        %p522 = scmp.lt.s32.totalorder %s15, 1
        %s523 = scalar_select %p522, %s15, 1
        %s524 = smul.addr %s523, 2
        %s525 = smul.addr %s524, 4
        %s526 = scalar_lea.vmem %s3, %s525
      $region44: #{_lambda_.8} parent=39 // pred_fallthru
        _
    $region40: #{_lambda_.8} parent=5 // pred_fallthru
      _
  $region6: #{_lambda_.8} parent=0 // loop_footer
    %s13 = sadd.s32 1, %s9
  $region7: #{_lambda_.8} parent=0 // loop_footer_branch
    %8 = sbr.rel target = $region3
  $region8: #{_lambda_.8} parent=0 // loop_exit
    _

// kernel: _lambda_.9
$region0: #{_lambda_.9}
  #allocation0 [shape = 'u32[]', space=smem, size = 0x4, offset = 0x4, fixed_abs, tag = 'smem constant byte address 0x4 - core index']
  #allocation1 [shape = 'u32[144,128]{1,0:T(1,128)}', space=vmem, size = 0x12000, scoped, tag = 'internal scratch']
  #allocation2 [shape = 'f32[1,1]{1,0:T(1,128)S(1)}', space=vmem, size = 0x200, scoped, tag = 'scoped memory for _lambda_.9']
  %s0 = inlined_call_operand.vmem [shape: bf16[2,768], index: 0, kind: input, shape index: {}]
  %s1 = inlined_call_operand.vmem [shape: f32[2,2], index: 1, kind: input, shape index: {}]
  %s2 = inlined_call_operand.vmem [shape: bf16[768,256], index: 2, kind: input, shape index: {}]
  %s3 = inlined_call_operand.vmem [shape: f32[2,256], index: 3, kind: input, shape index: {}]
  %s4 = inlined_call_operand.vmem [shape: f32[1,256], index: 4, kind: input, shape index: {}]
  %s5 = inlined_call_operand.vmem [shape: f32[1,256], index: 5, kind: input, shape index: {}]
  %s6 = inlined_call_operand.<no memory space> [shape: f32[1,1], index: 6, kind: input, shape index: {}]
  %s7 = inlined_call_operand.vmem [shape: f32[2,1], index: 7, kind: output, shape index: {}]
  %s8 = sld [smem:[#allocation0]]
  $region38: #{_lambda_.9} parent=0
    _
  %s10 = ssub.s32 1, %s8
  %s11 = scalar_select 0, %s10, %s8
  %v12 = vstv %s6
  %13 = vst [vmem:[#allocation2] sm:$0x1] %v12
  // Predicated region
  $region2: #{_lambda_.9} parent=0 // pred_check
    _
  $region3: #{_lambda_.9} parent=0 // pred_check_branch
    %15 = sbr.rel (0) target = $region5
  $region4: #{_lambda_.9} parent=0 // pred_region
    _
  $region5: #{_lambda_.9} parent=0 // pred_fallthru
    _
  // Predicated region
  $region6: #{_lambda_.9} parent=0 // pred_check
    _
  $region7: #{_lambda_.9} parent=0 // pred_check_branch
    %17 = sbr.rel (0) target = $region9
  $region8: #{_lambda_.9} parent=0 // pred_region
    _
  $region9: #{_lambda_.9} parent=0 // pred_fallthru
    _
  // Predicated region
  $region10: #{_lambda_.9} parent=0 // pred_check
    _
  $region11: #{_lambda_.9} parent=0 // pred_check_branch
    %19 = sbr.rel (0) target = $region13
  $region12: #{_lambda_.9} parent=0 // pred_region
    _
  $region13: #{_lambda_.9} parent=0 // pred_fallthru
    _
  // Predicated region
  $region14: #{_lambda_.9} parent=0 // pred_check
    _
  $region15: #{_lambda_.9} parent=0 // pred_check_branch
    %21 = sbr.rel (0) target = $region17
  $region16: #{_lambda_.9} parent=0 // pred_region
    _
  $region17: #{_lambda_.9} parent=0 // pred_fallthru
    _
  // Predicated region
  $region18: #{_lambda_.9} parent=0 // pred_check
    _
  $region19: #{_lambda_.9} parent=0 // pred_check_branch
    %23 = sbr.rel (0) target = $region21
  $region20: #{_lambda_.9} parent=0 // pred_region
    _
  $region21: #{_lambda_.9} parent=0 // pred_fallthru
    _
  // Predicated region
  $region22: #{_lambda_.9} parent=0 // pred_check
    _
  $region23: #{_lambda_.9} parent=0 // pred_check_branch
    %25 = sbr.rel (0) target = $region25
  $region24: #{_lambda_.9} parent=0 // pred_region
    _
  $region25: #{_lambda_.9} parent=0 // pred_fallthru
    _
  // Predicated region
  $region26: #{_lambda_.9} parent=0 // pred_check
    _
  $region27: #{_lambda_.9} parent=0 // pred_check_branch
    %27 = sbr.rel (0) target = $region29
  $region28: #{_lambda_.9} parent=0 // pred_region
    _
  $region29: #{_lambda_.9} parent=0 // pred_fallthru
    _
  %v28 = vld [vmem:[%s0] sm:$0x3f]
  %v29 = vld [vmem:[%s2] sm:$0xff]
  %v30 = vld [vmem:[%s2 + $0x8] sm:$0xff]
  %v31 = vld [vmem:[%s2 + $0x10] sm:$0xff]
  %v32 = vld [vmem:[%s2 + $0x18] sm:$0xff]
  %v33 = vld [vmem:[%s2 + $0x20] sm:$0xff]
  %v34 = vld [vmem:[%s2 + $0x28] sm:$0xff]
  %v35 = vld [vmem:[%s2 + $0x30] sm:$0xff]
  %v36 = vld [vmem:[%s2 + $0x38] sm:$0xff]
  %v37 = vld [vmem:[%s2 + $0x40] sm:$0xff]
  %v38 = vld [vmem:[%s2 + $0x48] sm:$0xff]
  %v39 = vld [vmem:[%s2 + $0x50] sm:$0xff]
  %v40 = vld [vmem:[%s2 + $0x58] sm:$0xff]
  %v41 = vld [vmem:[%s2 + $0x60] sm:$0xff]
  %v42 = vld [vmem:[%s2 + $0x68] sm:$0xff]
  %v43 = vld [vmem:[%s2 + $0x70] sm:$0xff]
  %v44 = vld [vmem:[%s2 + $0x78] sm:$0xff]
  %v45 = vld [vmem:[%s2 + $0x80] sm:$0xff]
  %v46 = vld [vmem:[%s2 + $0x88] sm:$0xff]
  %v47 = vld [vmem:[%s2 + $0x90] sm:$0xff]
  %v48 = vld [vmem:[%s2 + $0x98] sm:$0xff]
  %v49 = vld [vmem:[%s2 + $0xa0] sm:$0xff]
  %v50 = vld [vmem:[%s2 + $0xa8] sm:$0xff]
  %v51 = vld [vmem:[%s2 + $0xb0] sm:$0xff]
  %v52 = vld [vmem:[%s2 + $0xb8] sm:$0xff]
  %v53 = vld [vmem:[%s2 + $0xc0] sm:$0xff]
  %v54 = vld [vmem:[%s2 + $0xc8] sm:$0xff]
  %v55 = vld [vmem:[%s2 + $0xd0] sm:$0xff]
  %v56 = vld [vmem:[%s2 + $0xd8] sm:$0xff]
  %v57 = vld [vmem:[%s2 + $0xe0] sm:$0xff]
  %v58 = vld [vmem:[%s2 + $0xe8] sm:$0xff]
  %v59 = vld [vmem:[%s2 + $0xf0] sm:$0xff]
  %v60 = vld [vmem:[%s2 + $0xf8] sm:$0xff]
  %v61 = vld [vmem:[%s2 + $0x100] sm:$0xff]
  %v62 = vld [vmem:[%s2 + $0x108] sm:$0xff]
  %v63 = vld [vmem:[%s2 + $0x110] sm:$0xff]
  %v64 = vld [vmem:[%s2 + $0x118] sm:$0xff]
  %v65 = vld [vmem:[%s2 + $0x120] sm:$0xff]
  %v66 = vld [vmem:[%s2 + $0x128] sm:$0xff]
  %v67 = vld [vmem:[%s2 + $0x130] sm:$0xff]
  %v68 = vld [vmem:[%s2 + $0x138] sm:$0xff]
  %v69 = vld [vmem:[%s2 + $0x140] sm:$0xff]
  %v70 = vld [vmem:[%s2 + $0x148] sm:$0xff]
  %v71 = vld [vmem:[%s2 + $0x150] sm:$0xff]
  %v72 = vld [vmem:[%s2 + $0x158] sm:$0xff]
  %v73 = vld [vmem:[%s2 + $0x160] sm:$0xff]
  %v74 = vld [vmem:[%s2 + $0x168] sm:$0xff]
  %v75 = vld [vmem:[%s2 + $0x170] sm:$0xff]
  %v76 = vld [vmem:[%s2 + $0x178] sm:$0xff]
  %v77 = vld [vmem:[%s2 + $0x180] sm:$0xff]
  %v78 = vld [vmem:[%s2 + $0x188] sm:$0xff]
  %v79 = vld [vmem:[%s2 + $0x190] sm:$0xff]
  %v80 = vld [vmem:[%s2 + $0x198] sm:$0xff]
  %v81 = vld [vmem:[%s2 + $0x1a0] sm:$0xff]
  %v82 = vld [vmem:[%s2 + $0x1a8] sm:$0xff]
  %v83 = vld [vmem:[%s2 + $0x1b0] sm:$0xff]
  %v84 = vld [vmem:[%s2 + $0x1b8] sm:$0xff]
  %v85 = vld [vmem:[%s2 + $0x1c0] sm:$0xff]
  %v86 = vld [vmem:[%s2 + $0x1c8] sm:$0xff]
  %v87 = vld [vmem:[%s2 + $0x1d0] sm:$0xff]
  %v88 = vld [vmem:[%s2 + $0x1d8] sm:$0xff]
  %v89 = vld [vmem:[%s2 + $0x1e0] sm:$0xff]
  %v90 = vld [vmem:[%s2 + $0x1e8] sm:$0xff]
  %v91 = vld [vmem:[%s2 + $0x1f0] sm:$0xff]
  %v92 = vld [vmem:[%s2 + $0x1f8] sm:$0xff]
  %v93 = vld [vmem:[%s2 + $0x200] sm:$0xff]
  %v94 = vld [vmem:[%s2 + $0x208] sm:$0xff]
  %v95 = vld [vmem:[%s2 + $0x210] sm:$0xff]
  %v96 = vld [vmem:[%s2 + $0x218] sm:$0xff]
  %v97 = vld [vmem:[%s2 + $0x220] sm:$0xff]
  %v98 = vld [vmem:[%s2 + $0x228] sm:$0xff]
  %v99 = vld [vmem:[%s2 + $0x230] sm:$0xff]
  %v100 = vld [vmem:[%s2 + $0x238] sm:$0xff]
  %v101 = vld [vmem:[%s2 + $0x240] sm:$0xff]
  %v102 = vld [vmem:[%s2 + $0x248] sm:$0xff]
  %v103 = vld [vmem:[%s2 + $0x250] sm:$0xff]
  %v104 = vld [vmem:[%s2 + $0x258] sm:$0xff]
  %v105 = vld [vmem:[%s2 + $0x260] sm:$0xff]
  %v106 = vld [vmem:[%s2 + $0x268] sm:$0xff]
  %v107 = vld [vmem:[%s2 + $0x270] sm:$0xff]
  %v108 = vld [vmem:[%s2 + $0x278] sm:$0xff]
  %v109 = vld [vmem:[%s2 + $0x280] sm:$0xff]
  %v110 = vld [vmem:[%s2 + $0x288] sm:$0xff]
  %v111 = vld [vmem:[%s2 + $0x290] sm:$0xff]
  %v112 = vld [vmem:[%s2 + $0x298] sm:$0xff]
  %v113 = vld [vmem:[%s2 + $0x2a0] sm:$0xff]
  %v114 = vld [vmem:[%s2 + $0x2a8] sm:$0xff]
  %v115 = vld [vmem:[%s2 + $0x2b0] sm:$0xff]
  %v116 = vld [vmem:[%s2 + $0x2b8] sm:$0xff]
  %v117 = vld [vmem:[%s2 + $0x2c0] sm:$0xff]
  %v118 = vld [vmem:[%s2 + $0x2c8] sm:$0xff]
  %v119 = vld [vmem:[%s2 + $0x2d0] sm:$0xff]
  %v120 = vld [vmem:[%s2 + $0x2d8] sm:$0xff]
  %v121 = vld [vmem:[%s2 + $0x2e0] sm:$0xff]
  %v122 = vld [vmem:[%s2 + $0x2e8] sm:$0xff]
  %v123 = vld [vmem:[%s2 + $0x2f0] sm:$0xff]
  %v124 = vld [vmem:[%s2 + $0x2f8] sm:$0xff]
  %v125 = vld [vmem:[%s1] sm:$0x3]
  %v126 = vld [vmem:[%s3] ss:$2 sm:$0x3]
  %128 = vset.pattern.permute.xlu0 0
  %129 = vperm.xlu0 %128, %v125
  %v130 = vpop.permute.xlu0 %129
  %v133 = vlaneseq
  %v134 = vshrl.u32 %v133, 7
  %v135 = vsub.s32 0, %v134
  %v136 = vrot.slane %v126, %v135
  %v137 = vlaneseq
  %v138 = vshrl.u32 %v137, 7
  %v139 = vsub.s32 1, %v138
  %v140 = vrot.slane %v126, %v139
  %v143 = vmul.f32 %v130, %v136
  %v144 = vmul.f32 %v130, %v140
  %v146 = vcombine.high %v28, %v28
  %v148 = vunpack.c.l.s4 1966171168
  %v149 = vunpack.c.0.s8 %v148
  %v150 = vlaneseq
  %v151 = vshrl.u32 %v150, 7
  %v152 = vsub.s32 %v149, %v151
  %v153 = vrot.slane %v28, %v152
  %v155 = vunpack.c.l.s4 1966171168
  %v156 = vunpack.c.0.s8 %v155
  %v157 = vlaneseq
  %v158 = vshrl.u32 %v157, 7
  %v159 = vsub.s32 %v156, %v158
  %v160 = vrot.slane %v146, %v159
  %v161 = vcombine.high %v153, %v153
  %v162 = vcombine.high %v160, %v160
  %v164 = vunpack.c.l.s4 1966171168
  %v165 = vunpack.c.0.s8 %v164
  %v166 = vlaneseq
  %v167 = vshrl.u32 %v166, 7
  %v168 = vsub.s32 %v165, %v167
  %v169 = vrot.slane %v153, %v168
  %v171 = vunpack.c.l.s4 1966171168
  %v172 = vunpack.c.0.s8 %v171
  %v173 = vlaneseq
  %v174 = vshrl.u32 %v173, 7
  %v175 = vsub.s32 %v172, %v174
  %v176 = vrot.slane %v160, %v175
  %v178 = vunpack.c.l.s4 1966171168
  %v179 = vunpack.c.0.s8 %v178
  %v180 = vlaneseq
  %v181 = vshrl.u32 %v180, 7
  %v182 = vsub.s32 %v179, %v181
  %v183 = vrot.slane %v161, %v182
  %v185 = vunpack.c.l.s4 1966171168
  %v186 = vunpack.c.0.s8 %v185
  %v187 = vlaneseq
  %v188 = vshrl.u32 %v187, 7
  %v189 = vsub.s32 %v186, %v188
  %v190 = vrot.slane %v162, %v189
  %v191 = vcombine.high %v169, %v169
  %v192 = vcombine.high %v183, %v183
  %v295 = vunpack.c.l.b16 %v29
  %v296 = vunpack.c.h.b16 %v29
  %v297 = vunpack.c.l.b16 %v30
  %v298 = vunpack.c.h.b16 %v30
  %v299 = vunpack.c.l.b16 %v31
  %v300 = vunpack.c.h.b16 %v31
  %v301 = vunpack.c.l.b16 %v32
  %v302 = vunpack.c.h.b16 %v32
  %v303 = vunpack.c.l.b16 %v33
  %v304 = vunpack.c.h.b16 %v33
  %v305 = vunpack.c.l.b16 %v34
  %v306 = vunpack.c.h.b16 %v34
  %v307 = vunpack.c.l.b16 %v35
  %v308 = vunpack.c.h.b16 %v35
  %v309 = vunpack.c.l.b16 %v36
  %v310 = vunpack.c.h.b16 %v36
  %v311 = vunpack.c.l.b16 %v37
  %v312 = vunpack.c.h.b16 %v37
  %v313 = vunpack.c.l.b16 %v38
  %v314 = vunpack.c.h.b16 %v38
  %v315 = vunpack.c.l.b16 %v39
  %v316 = vunpack.c.h.b16 %v39
  %v317 = vunpack.c.l.b16 %v40
  %v318 = vunpack.c.h.b16 %v40
  %v319 = vunpack.c.l.b16 %v41
  %v320 = vunpack.c.h.b16 %v41
  %v321 = vunpack.c.l.b16 %v42
  %v322 = vunpack.c.h.b16 %v42
  %v323 = vunpack.c.l.b16 %v43
  %v324 = vunpack.c.h.b16 %v43
  %v325 = vunpack.c.l.b16 %v44
  %v326 = vunpack.c.h.b16 %v44
  %v327 = vunpack.c.l.b16 %v45
  %v328 = vunpack.c.h.b16 %v45
  %v329 = vunpack.c.l.b16 %v46
  %v330 = vunpack.c.h.b16 %v46
  %v331 = vunpack.c.l.b16 %v47
  %v332 = vunpack.c.h.b16 %v47
  %v333 = vunpack.c.l.b16 %v48
  %v334 = vunpack.c.h.b16 %v48
  %v335 = vunpack.c.l.b16 %v49
  %v336 = vunpack.c.h.b16 %v49
  %v337 = vunpack.c.l.b16 %v50
  %v338 = vunpack.c.h.b16 %v50
  %v339 = vunpack.c.l.b16 %v51
  %v340 = vunpack.c.h.b16 %v51
  %v341 = vunpack.c.l.b16 %v52
  %v342 = vunpack.c.h.b16 %v52
  %v343 = vunpack.c.l.b16 %v53
  %v344 = vunpack.c.h.b16 %v53
  %v345 = vunpack.c.l.b16 %v54
  %v346 = vunpack.c.h.b16 %v54
  %v347 = vunpack.c.l.b16 %v55
  %v348 = vunpack.c.h.b16 %v55
  %v349 = vunpack.c.l.b16 %v56
  %v350 = vunpack.c.h.b16 %v56
  %v351 = vunpack.c.l.b16 %v57
  %v352 = vunpack.c.h.b16 %v57
  %v353 = vunpack.c.l.b16 %v58
  %v354 = vunpack.c.h.b16 %v58
  %v355 = vunpack.c.l.b16 %v59
  %v356 = vunpack.c.h.b16 %v59
  %v357 = vunpack.c.l.b16 %v60
  %v358 = vunpack.c.h.b16 %v60
  %v359 = vunpack.c.l.b16 %v61
  %v360 = vunpack.c.h.b16 %v61
  %v361 = vunpack.c.l.b16 %v62
  %v362 = vunpack.c.h.b16 %v62
  %v363 = vunpack.c.l.b16 %v63
  %v364 = vunpack.c.h.b16 %v63
  %v365 = vunpack.c.l.b16 %v64
  %v366 = vunpack.c.h.b16 %v64
  %v367 = vunpack.c.l.b16 %v65
  %v368 = vunpack.c.h.b16 %v65
  %v369 = vunpack.c.l.b16 %v66
  %v370 = vunpack.c.h.b16 %v66
  %v371 = vunpack.c.l.b16 %v67
  %v372 = vunpack.c.h.b16 %v67
  %v373 = vunpack.c.l.b16 %v68
  %v374 = vunpack.c.h.b16 %v68
  %v375 = vunpack.c.l.b16 %v69
  %v376 = vunpack.c.h.b16 %v69
  %v377 = vunpack.c.l.b16 %v70
  %v378 = vunpack.c.h.b16 %v70
  %v379 = vunpack.c.l.b16 %v71
  %v380 = vunpack.c.h.b16 %v71
  %v381 = vunpack.c.l.b16 %v72
  %v382 = vunpack.c.h.b16 %v72
  %v383 = vunpack.c.l.b16 %v73
  %v384 = vunpack.c.h.b16 %v73
  %v385 = vunpack.c.l.b16 %v74
  %v386 = vunpack.c.h.b16 %v74
  %v387 = vunpack.c.l.b16 %v75
  %v388 = vunpack.c.h.b16 %v75
  %v389 = vunpack.c.l.b16 %v76
  %v390 = vunpack.c.h.b16 %v76
  %v391 = vunpack.c.l.b16 %v77
  %v392 = vunpack.c.h.b16 %v77
  %v393 = vunpack.c.l.b16 %v78
  %v394 = vunpack.c.h.b16 %v78
  %v395 = vunpack.c.l.b16 %v79
  %v396 = vunpack.c.h.b16 %v79
  %v397 = vunpack.c.l.b16 %v80
  %v398 = vunpack.c.h.b16 %v80
  %v399 = vunpack.c.l.b16 %v81
  %v400 = vunpack.c.h.b16 %v81
  %v401 = vunpack.c.l.b16 %v82
  %v402 = vunpack.c.h.b16 %v82
  %v403 = vunpack.c.l.b16 %v83
  %v404 = vunpack.c.h.b16 %v83
  %v405 = vunpack.c.l.b16 %v84
  %v406 = vunpack.c.h.b16 %v84
  %v407 = vunpack.c.l.b16 %v85
  %v408 = vunpack.c.h.b16 %v85
  %v409 = vunpack.c.l.b16 %v86
  %v410 = vunpack.c.h.b16 %v86
  %v411 = vunpack.c.l.b16 %v87
  %v412 = vunpack.c.h.b16 %v87
  %v413 = vunpack.c.l.b16 %v88
  %v414 = vunpack.c.h.b16 %v88
  %v415 = vunpack.c.l.b16 %v89
  %v416 = vunpack.c.h.b16 %v89
  %v417 = vunpack.c.l.b16 %v90
  %v418 = vunpack.c.h.b16 %v90
  %v419 = vunpack.c.l.b16 %v91
  %v420 = vunpack.c.h.b16 %v91
  %v421 = vunpack.c.l.b16 %v92
  %v422 = vunpack.c.h.b16 %v92
  %v423 = vunpack.c.l.b16 %v93
  %v424 = vunpack.c.h.b16 %v93
  %v425 = vunpack.c.l.b16 %v94
  %v426 = vunpack.c.h.b16 %v94
  %v427 = vunpack.c.l.b16 %v95
  %v428 = vunpack.c.h.b16 %v95
  %v429 = vunpack.c.l.b16 %v96
  %v430 = vunpack.c.h.b16 %v96
  %v431 = vunpack.c.l.b16 %v97
  %v432 = vunpack.c.h.b16 %v97
  %v433 = vunpack.c.l.b16 %v98
  %v434 = vunpack.c.h.b16 %v98
  %v435 = vunpack.c.l.b16 %v99
  %v436 = vunpack.c.h.b16 %v99
  %v437 = vunpack.c.l.b16 %v100
  %v438 = vunpack.c.h.b16 %v100
  %v439 = vunpack.c.l.b16 %v101
  %v440 = vunpack.c.h.b16 %v101
  %v441 = vunpack.c.l.b16 %v102
  %v442 = vunpack.c.h.b16 %v102
  %v443 = vunpack.c.l.b16 %v103
  %v444 = vunpack.c.h.b16 %v103
  %v445 = vunpack.c.l.b16 %v104
  %v446 = vunpack.c.h.b16 %v104
  %v447 = vunpack.c.l.b16 %v105
  %v448 = vunpack.c.h.b16 %v105
  %v449 = vunpack.c.l.b16 %v106
  %v450 = vunpack.c.h.b16 %v106
  %v451 = vunpack.c.l.b16 %v107
  %v452 = vunpack.c.h.b16 %v107
  %v453 = vunpack.c.l.b16 %v108
  %v454 = vunpack.c.h.b16 %v108
  %v455 = vunpack.c.l.b16 %v109
  %v456 = vunpack.c.h.b16 %v109
  %v457 = vunpack.c.l.b16 %v110
  %v458 = vunpack.c.h.b16 %v110
  %v459 = vunpack.c.l.b16 %v111
  %v460 = vunpack.c.h.b16 %v111
  %v461 = vunpack.c.l.b16 %v112
  %v462 = vunpack.c.h.b16 %v112
  %v463 = vunpack.c.l.b16 %v113
  %v464 = vunpack.c.h.b16 %v113
  %v465 = vunpack.c.l.b16 %v114
  %v466 = vunpack.c.h.b16 %v114
  %v467 = vunpack.c.l.b16 %v115
  %v468 = vunpack.c.h.b16 %v115
  %v469 = vunpack.c.l.b16 %v116
  %v470 = vunpack.c.h.b16 %v116
  %v471 = vunpack.c.l.b16 %v117
  %v472 = vunpack.c.h.b16 %v117
  %v473 = vunpack.c.l.b16 %v118
  %v474 = vunpack.c.h.b16 %v118
  %v475 = vunpack.c.l.b16 %v119
  %v476 = vunpack.c.h.b16 %v119
  %v477 = vunpack.c.l.b16 %v120
  %v478 = vunpack.c.h.b16 %v120
  %v479 = vunpack.c.l.b16 %v121
  %v480 = vunpack.c.h.b16 %v121
  %v481 = vunpack.c.l.b16 %v122
  %v482 = vunpack.c.h.b16 %v122
  %v483 = vunpack.c.l.b16 %v123
  %v484 = vunpack.c.h.b16 %v123
  %v485 = vunpack.c.l.b16 %v124
  %v486 = vunpack.c.h.b16 %v124
  %v487 = vpack.c.b16 %v297, %v295
  %v488 = vpack.c.b16 %v298, %v296
  %v489 = vpack.c.b16 %v301, %v299
  %v490 = vpack.c.b16 %v302, %v300
  %v491 = vpack.c.b16 %v305, %v303
  %v492 = vpack.c.b16 %v306, %v304
  %v493 = vpack.c.b16 %v309, %v307
  %v494 = vpack.c.b16 %v310, %v308
  %v495 = vpack.c.b16 %v313, %v311
  %v496 = vpack.c.b16 %v314, %v312
  %v497 = vpack.c.b16 %v317, %v315
  %v498 = vpack.c.b16 %v318, %v316
  %v499 = vpack.c.b16 %v321, %v319
  %v500 = vpack.c.b16 %v322, %v320
  %v501 = vpack.c.b16 %v325, %v323
  %v502 = vpack.c.b16 %v326, %v324
  %v503 = vpack.c.b16 %v329, %v327
  %v504 = vpack.c.b16 %v330, %v328
  %v505 = vpack.c.b16 %v333, %v331
  %v506 = vpack.c.b16 %v334, %v332
  %v507 = vpack.c.b16 %v337, %v335
  %v508 = vpack.c.b16 %v338, %v336
  %v509 = vpack.c.b16 %v341, %v339
  %v510 = vpack.c.b16 %v342, %v340
  %v511 = vpack.c.b16 %v345, %v343
  %v512 = vpack.c.b16 %v346, %v344
  %v513 = vpack.c.b16 %v349, %v347
  %v514 = vpack.c.b16 %v350, %v348
  %v515 = vpack.c.b16 %v353, %v351
  %v516 = vpack.c.b16 %v354, %v352
  %v517 = vpack.c.b16 %v357, %v355
  %v518 = vpack.c.b16 %v358, %v356
  %v519 = vpack.c.b16 %v361, %v359
  %v520 = vpack.c.b16 %v362, %v360
  %v521 = vpack.c.b16 %v365, %v363
  %v522 = vpack.c.b16 %v366, %v364
  %v523 = vpack.c.b16 %v369, %v367
  %v524 = vpack.c.b16 %v370, %v368
  %v525 = vpack.c.b16 %v373, %v371
  %v526 = vpack.c.b16 %v374, %v372
  %v527 = vpack.c.b16 %v377, %v375
  %v528 = vpack.c.b16 %v378, %v376
  %v529 = vpack.c.b16 %v381, %v379
  %v530 = vpack.c.b16 %v382, %v380
  %v531 = vpack.c.b16 %v385, %v383
  %v532 = vpack.c.b16 %v386, %v384
  %v533 = vpack.c.b16 %v389, %v387
  %v534 = vpack.c.b16 %v390, %v388
  %v535 = vpack.c.b16 %v393, %v391
  %v536 = vpack.c.b16 %v394, %v392
  %v537 = vpack.c.b16 %v397, %v395
  %v538 = vpack.c.b16 %v398, %v396
  %v539 = vpack.c.b16 %v401, %v399
  %v540 = vpack.c.b16 %v402, %v400
  %v541 = vpack.c.b16 %v405, %v403
  %v542 = vpack.c.b16 %v406, %v404
  %v543 = vpack.c.b16 %v409, %v407
  %v544 = vpack.c.b16 %v410, %v408
  %v545 = vpack.c.b16 %v413, %v411
  %v546 = vpack.c.b16 %v414, %v412
  %v547 = vpack.c.b16 %v417, %v415
  %v548 = vpack.c.b16 %v418, %v416
  %v549 = vpack.c.b16 %v421, %v419
  %v550 = vpack.c.b16 %v422, %v420
  %v551 = vpack.c.b16 %v425, %v423
  %v552 = vpack.c.b16 %v426, %v424
  %v553 = vpack.c.b16 %v429, %v427
  %v554 = vpack.c.b16 %v430, %v428
  %v555 = vpack.c.b16 %v433, %v431
  %v556 = vpack.c.b16 %v434, %v432
  %v557 = vpack.c.b16 %v437, %v435
  %v558 = vpack.c.b16 %v438, %v436
  %v559 = vpack.c.b16 %v441, %v439
  %v560 = vpack.c.b16 %v442, %v440
  %v561 = vpack.c.b16 %v445, %v443
  %v562 = vpack.c.b16 %v446, %v444
  %v563 = vpack.c.b16 %v449, %v447
  %v564 = vpack.c.b16 %v450, %v448
  %v565 = vpack.c.b16 %v453, %v451
  %v566 = vpack.c.b16 %v454, %v452
  %v567 = vpack.c.b16 %v457, %v455
  %v568 = vpack.c.b16 %v458, %v456
  %v569 = vpack.c.b16 %v461, %v459
  %v570 = vpack.c.b16 %v462, %v460
  %v571 = vpack.c.b16 %v465, %v463
  %v572 = vpack.c.b16 %v466, %v464
  %v573 = vpack.c.b16 %v469, %v467
  %v574 = vpack.c.b16 %v470, %v468
  %v575 = vpack.c.b16 %v473, %v471
  %v576 = vpack.c.b16 %v474, %v472
  %v577 = vpack.c.b16 %v477, %v475
  %v578 = vpack.c.b16 %v478, %v476
  %v579 = vpack.c.b16 %v481, %v479
  %v580 = vpack.c.b16 %v482, %v480
  %v581 = vpack.c.b16 %v485, %v483
  %v582 = vpack.c.b16 %v486, %v484
  %679 = vmatprep.subr.bf16.mxu0 %v488
  %680 = vmatpush1.bf16.msra.mxu0 %v487
  %681 = vmatprep.subr.bf16.mxu0 %v490
  %682 = vmatpush1.bf16.msra.mxu0 %v489
  %683 = vmatprep.subr.bf16.mxu0 %v492
  %684 = vmatpush1.bf16.msra.mxu0 %v491
  %685 = vmatprep.subr.bf16.mxu0 %v494
  %686 = vmatpush1.bf16.msra.mxu0 %v493
  %687 = vmatprep.subr.bf16.mxu0 %v496
  %688 = vmatpush1.bf16.msra.mxu0 %v495
  %689 = vmatprep.subr.bf16.mxu0 %v498
  %690 = vmatpush1.bf16.msra.mxu0 %v497
  %691 = vmatprep.subr.bf16.mxu0 %v500
  %692 = vmatpush1.bf16.msra.mxu0 %v499
  %693 = vmatprep.subr.bf16.mxu0 %v502
  %694 = vmatpush1.bf16.msra.mxu0 %v501
  %695 = vmatprep.subr.bf16.mxu0 %v504
  %696 = vmatpush1.bf16.msra.mxu0 %v503
  %697 = vmatprep.subr.bf16.mxu0 %v506
  %698 = vmatpush1.bf16.msra.mxu0 %v505
  %699 = vmatprep.subr.bf16.mxu0 %v508
  %700 = vmatpush1.bf16.msra.mxu0 %v507
  %701 = vmatprep.subr.bf16.mxu0 %v510
  %702 = vmatpush1.bf16.msra.mxu0 %v509
  %703 = vmatprep.subr.bf16.mxu0 %v512
  %704 = vmatpush1.bf16.msra.mxu0 %v511
  %705 = vmatprep.subr.bf16.mxu0 %v514
  %706 = vmatpush1.bf16.msra.mxu0 %v513
  %707 = vmatprep.subr.bf16.mxu0 %v516
  %708 = vmatpush1.bf16.msra.mxu0 %v515
  %709 = vmatprep.subr.bf16.mxu0 %v518
  %710 = vmatpush1.bf16.msra.mxu0 %v517
  %711 = vmatprep.mubr.bf16.mxu0 %v183
  %712 = vmatmul.mubr.bf16.gmra.mrb[0].mxu0 %v169
  %v713 = vpop.f32.mrb[0].mxu0
  %v714 = vadd.f32 %v143, %v713
  %v715 = vpop.f32.mrb[0].mxu0
  %v716 = vadd.f32 %v144, %v715
  %v717 = vpop.f32.mrb[0].mxu0
  %v718 = vpop.f32.mrb[0].mxu0
  %719 = vdwg.mxu0
  %720 = vmatprep.subr.bf16.mxu0 %v520
  %721 = vmatpush1.bf16.msra.mxu0 %v519
  %722 = vmatprep.subr.bf16.mxu0 %v522
  %723 = vmatpush1.bf16.msra.mxu0 %v521
  %724 = vmatprep.subr.bf16.mxu0 %v524
  %725 = vmatpush1.bf16.msra.mxu0 %v523
  %726 = vmatprep.subr.bf16.mxu0 %v526
  %727 = vmatpush1.bf16.msra.mxu0 %v525
  %728 = vmatprep.subr.bf16.mxu0 %v528
  %729 = vmatpush1.bf16.msra.mxu0 %v527
  %730 = vmatprep.subr.bf16.mxu0 %v530
  %731 = vmatpush1.bf16.msra.mxu0 %v529
  %732 = vmatprep.subr.bf16.mxu0 %v532
  %733 = vmatpush1.bf16.msra.mxu0 %v531
  %734 = vmatprep.subr.bf16.mxu0 %v534
  %735 = vmatpush1.bf16.msra.mxu0 %v533
  %736 = vmatprep.subr.bf16.mxu0 %v536
  %737 = vmatpush1.bf16.msra.mxu0 %v535
  %738 = vmatprep.subr.bf16.mxu0 %v538
  %739 = vmatpush1.bf16.msra.mxu0 %v537
  %740 = vmatprep.subr.bf16.mxu0 %v540
  %741 = vmatpush1.bf16.msra.mxu0 %v539
  %742 = vmatprep.subr.bf16.mxu0 %v542
  %743 = vmatpush1.bf16.msra.mxu0 %v541
  %744 = vmatprep.subr.bf16.mxu0 %v544
  %745 = vmatpush1.bf16.msra.mxu0 %v543
  %746 = vmatprep.subr.bf16.mxu0 %v546
  %747 = vmatpush1.bf16.msra.mxu0 %v545
  %748 = vmatprep.subr.bf16.mxu0 %v548
  %749 = vmatpush1.bf16.msra.mxu0 %v547
  %750 = vmatprep.subr.bf16.mxu0 %v550
  %751 = vmatpush1.bf16.msra.mxu0 %v549
  %752 = vmatprep.mubr.bf16.mxu0 %v192
  %753 = vmatmul.mubr.bf16.gmra.mrb[0].mxu0 %v191
  %v754 = vpop.f32.mrb[0].mxu0
  %v755 = vadd.f32 %v714, %v754
  %v756 = vpop.f32.mrb[0].mxu0
  %v757 = vadd.f32 %v716, %v756
  %v758 = vpop.f32.mrb[0].mxu0
  %v759 = vpop.f32.mrb[0].mxu0
  %760 = vdwg.mxu0
  %761 = vmatprep.subr.bf16.mxu0 %v552
  %762 = vmatpush1.bf16.msra.mxu0 %v551
  %763 = vmatprep.subr.bf16.mxu0 %v554
  %764 = vmatpush1.bf16.msra.mxu0 %v553
  %765 = vmatprep.subr.bf16.mxu0 %v556
  %766 = vmatpush1.bf16.msra.mxu0 %v555
  %767 = vmatprep.subr.bf16.mxu0 %v558
  %768 = vmatpush1.bf16.msra.mxu0 %v557
  %769 = vmatprep.subr.bf16.mxu0 %v560
  %770 = vmatpush1.bf16.msra.mxu0 %v559
  %771 = vmatprep.subr.bf16.mxu0 %v562
  %772 = vmatpush1.bf16.msra.mxu0 %v561
  %773 = vmatprep.subr.bf16.mxu0 %v564
  %774 = vmatpush1.bf16.msra.mxu0 %v563
  %775 = vmatprep.subr.bf16.mxu0 %v566
  %776 = vmatpush1.bf16.msra.mxu0 %v565
  %777 = vmatprep.subr.bf16.mxu0 %v568
  %778 = vmatpush1.bf16.msra.mxu0 %v567
  %779 = vmatprep.subr.bf16.mxu0 %v570
  %780 = vmatpush1.bf16.msra.mxu0 %v569
  %781 = vmatprep.subr.bf16.mxu0 %v572
  %782 = vmatpush1.bf16.msra.mxu0 %v571
  %783 = vmatprep.subr.bf16.mxu0 %v574
  %784 = vmatpush1.bf16.msra.mxu0 %v573
  %785 = vmatprep.subr.bf16.mxu0 %v576
  %786 = vmatpush1.bf16.msra.mxu0 %v575
  %787 = vmatprep.subr.bf16.mxu0 %v578
  %788 = vmatpush1.bf16.msra.mxu0 %v577
  %789 = vmatprep.subr.bf16.mxu0 %v580
  %790 = vmatpush1.bf16.msra.mxu0 %v579
  %791 = vmatprep.subr.bf16.mxu0 %v582
  %792 = vmatpush1.bf16.msra.mxu0 %v581
  %793 = vmatprep.mubr.bf16.mxu0 %v190
  %794 = vmatmul.mubr.bf16.gmra.mrb[0].mxu0 %v176
  %v795 = vpop.f32.mrb[0].mxu0
  %v796 = vadd.f32 %v755, %v795
  %v797 = vpop.f32.mrb[0].mxu0
  %v798 = vadd.f32 %v757, %v797
  %v799 = vpop.f32.mrb[0].mxu0
  %v800 = vpop.f32.mrb[0].mxu0
  %801 = vdwg.mxu0
  %v802 = vld [vmem:[%s1] sm:$0x3]
  %s803 = scalar_lea.vmem %s3, 1
  %v804 = vld [vmem:[%s803] ss:$2 sm:$0x3]
  %806 = vset.pattern.permute.xlu0 1
  %807 = vperm.xlu0 %806, %v802
  %v808 = vpop.permute.xlu0 %807
  %v811 = vlaneseq
  %v812 = vshrl.u32 %v811, 7
  %v813 = vsub.s32 0, %v812
  %v814 = vrot.slane %v804, %v813
  %v815 = vlaneseq
  %v816 = vshrl.u32 %v815, 7
  %v817 = vsub.s32 1, %v816
  %v818 = vrot.slane %v804, %v817
  %v821 = vmul.f32 %v808, %v814
  %v822 = vmul.f32 %v808, %v818
  %v823 = vadd.f32 %v796, %v821
  %v824 = vadd.f32 %v798, %v822
  %v825 = vld [vmem:[%s4] sm:$0x3]
  %v827 = vlaneseq
  %v828 = vshrl.u32 %v827, 7
  %v829 = vsub.s32 0, %v828
  %v830 = vrot.slane %v825, %v829
  %v831 = vlaneseq
  %v832 = vshrl.u32 %v831, 7
  %v833 = vsub.s32 1, %v832
  %v834 = vrot.slane %v825, %v833
  %v837 = vadd.f32 %v823, %v830
  %v838 = vadd.f32 %v824, %v834
  %v839 = vmax.f32 %v837, 0.0
  %v840 = vmax.f32 %v838, 0.0
  %v841 = vld [vmem:[%s5] sm:$0x3]
  %v843 = vlaneseq
  %v844 = vshrl.u32 %v843, 7
  %v845 = vsub.s32 0, %v844
  %v846 = vrot.slane %v841, %v845
  %v847 = vlaneseq
  %v848 = vshrl.u32 %v847, 7
  %v849 = vsub.s32 1, %v848
  %v850 = vrot.slane %v841, %v849
  %v853 = vmul.f32 %v839, %v846
  %v854 = vmul.f32 %v840, %v850
  %vm855 = vcmask 1041408
  %v856 = vsel %vm855, %v853, 0.0
  %v857 = vsel %vm855, %v854, 0.0
  %v858 = vadd.f32 %v856, %v857
  %859 = vadd.xlane.f32.xlu0 %v858
  %v860 = vpop.xlane.xlu0 %859
  %v861 = vld [vmem:[#allocation2] sm:$0x1]
  %v863 = vlaneseq
  %v864 = vshrl.u32 %v863, 7
  %v865 = vsub.s32 0, %v864
  %v866 = vrot.slane %v861, %v865
  %v868 = vadd.f32 %v860, %v866
  %vm869 = vcmask 1024
  %870 = vst.msk [vmem:[%s7] sm:$0x3] %vm869, %v868
  // Predicated region
  $region30: #{_lambda_.9} parent=0 // pred_check
    _
  $region31: #{_lambda_.9} parent=0 // pred_check_branch
    %872 = sbr.rel (0) target = $region33
  $region32: #{_lambda_.9} parent=0 // pred_region
    _
  $region33: #{_lambda_.9} parent=0 // pred_fallthru
    _
  // Predicated region
  $region34: #{_lambda_.9} parent=0 // pred_check
    _
  $region35: #{_lambda_.9} parent=0 // pred_check_branch
    %874 = sbr.rel (0) target = $region37
  $region36: #{_lambda_.9} parent=0 // pred_region
    _
  $region37: #{_lambda_.9} parent=0 // pred_fallthru
    _

</llo_original>
